<compile_context>
chip_gen: v6e
topology: v6e:2x2x1
jax: 0.10.0
libtpu: 0.0.40
codegen_flags: <defaults>
</compile_context>

<pallas_src>
import jax
import jax.numpy as jnp
from jax.experimental import pallas as pl
from jax.experimental.pallas import tpu as pltpu

EPS = 1e-5


def style_adain_kernel(x_ref,
                       w1, b1, am1, as1, g1, be1,
                       w2, b2, am2, as2, g2, be2,
                       w3, b3, am3, as3, g3, be3,
                       w4, b4,
                       out_ref):
    B = x_ref.shape[0]
    N = x_ref.shape[2]
    inv_n = 1.0 / N
    inv_bn = 1.0 / (B * N)

    def layer(hs, w_ref, b_ref, am_ref, as_ref, g_ref, be_ref):
        # hs: list of per-batch (C_in, N) f32 activations.
        w = w_ref[...]                                   # (Co, Ci) bf16
        bias = b_ref[...]                                # (Co, 1)  f32
        ys = []
        for b in range(B):
            # Conv1d(k=1) == channel matmul on the MXU (bf16 in, f32 acc).
            y = jnp.dot(w, hs[b].astype(jnp.bfloat16),
                        preferred_element_type=jnp.float32) + bias   # (Co, N)
            # AdaIN: instance norm per (b, c) over points, fused stats.
            mu = jnp.sum(y, axis=1, keepdims=True) * inv_n           # (Co, 1)
            ex2 = jnp.sum(y * y, axis=1, keepdims=True) * inv_n
            var = jnp.maximum(ex2 - mu * mu, 0.0)
            y = (y - mu) * jax.lax.rsqrt(var + EPS)
            # adain "std" slice -> weight, "mean" slice -> bias.
            y = y * as_ref[b] + am_ref[b]
            ys.append(y)
        # BatchNorm1d, training-mode batch statistics over (batch, points).
        s = sum(jnp.sum(y, axis=1, keepdims=True) for y in ys)       # (Co, 1)
        s2 = sum(jnp.sum(y * y, axis=1, keepdims=True) for y in ys)
        mu = s * inv_bn
        var = jnp.maximum(s2 * inv_bn - mu * mu, 0.0)
        scale = jax.lax.rsqrt(var + EPS) * g_ref[...]
        shift = be_ref[...] - mu * scale
        return [jnp.maximum(y * scale + shift, 0.0) for y in ys]     # ReLU

    hs = [x_ref[b] for b in range(B)]                    # per-batch (Cin, N)
    hs = layer(hs, w1, b1, am1, as1, g1, be1)
    hs = layer(hs, w2, b2, am2, as2, g2, be2)
    hs = layer(hs, w3, b3, am3, as3, g3, be3)

    w4v = w4[...]                                        # (3, C3) bf16
    b4v = b4[...]                                        # (3, 1)  f32
    for b in range(B):
        y = jnp.dot(w4v, hs[b].astype(jnp.bfloat16),
                    preferred_element_type=jnp.float32) + b4v        # (3, N)
        out_ref[b] = jnp.tanh(y)                         # lane-dense (3, N)


def split_adain_params(adain_params, channels):
    """Mirror assign_adain_params: (mean, std) per AdaIN in module order."""
    out = []
    off = 0
    for c in channels:
        mean = adain_params[:, off:off + c]
        std = adain_params[:, off + c:off + 2 * c]
        out.append((mean, std))
        off += 2 * c
    return out


def style_based_adain_pallas(content, adain_params, ws, bs, gs, bes):
    """content: (B, Cin, N); adain_params: (B, 2*(C1+C2+C3)); returns (B, 3, N)."""
    B, _, N = content.shape
    channels = tuple(w.shape[0] for w in ws[:3])
    adain_split = split_adain_params(adain_params, channels)

    col = lambda v: v.reshape(v.shape[0], 1)             # per-channel column
    inputs = [content]
    for l in range(3):
        mean_l, std_l = adain_split[l]
        inputs += [ws[l].astype(jnp.bfloat16),           # (Co, Ci) native layout
                   col(bs[l]),
                   mean_l[:, :, None],                   # (B, Co, 1)
                   std_l[:, :, None],
                   col(gs[l]), col(bes[l])]
    inputs += [ws[3].astype(jnp.bfloat16), col(bs[3])]

    return pl.pallas_call(
        style_adain_kernel,
        out_shape=jax.ShapeDtypeStruct((B, 3, N), jnp.float32),
        in_specs=[pl.BlockSpec(memory_space=pltpu.MemorySpace.VMEM)] * len(inputs),
        out_specs=pl.BlockSpec(memory_space=pltpu.MemorySpace.VMEM),
        compiler_params=pltpu.CompilerParams(vmem_limit_bytes=32 * 1024 * 1024),
    )(*inputs)


def style_based_adain_reference(content, adain_params, ws, bs, gs, bes):
    """Pure-JAX reference in the PyTorch NCW layout (same bf16 matmul precision)."""
    channels = tuple(w.shape[0] for w in ws[:3])
    adain_split = split_adain_params(adain_params, channels)

    def conv(x, w, b):
        y = jnp.einsum('oc,bcn->bon', w.astype(jnp.bfloat16),
                       x.astype(jnp.bfloat16),
                       preferred_element_type=jnp.float32)
        return y + b[None, :, None]

    def adain_norm(x, mean_p, std_p):
        mu = jnp.mean(x, axis=2, keepdims=True)
        var = jnp.mean((x - mu) ** 2, axis=2, keepdims=True)
        return (x - mu) / jnp.sqrt(var + EPS) * std_p[:, :, None] + mean_p[:, :, None]

    def bn(x, g, be):
        mu = jnp.mean(x, axis=(0, 2), keepdims=True)
        var = jnp.mean((x - mu) ** 2, axis=(0, 2), keepdims=True)
        return (x - mu) / jnp.sqrt(var + EPS) * g[None, :, None] + be[None, :, None]

    h = content
    for l in range(3):
        mean_l, std_l = adain_split[l]
        h = jax.nn.relu(bn(adain_norm(conv(h, ws[l], bs[l]), mean_l, std_l),
                           gs[l], bes[l]))
    return jnp.tanh(conv(h, ws[3], bs[3]))


def make_params(key, cin, c1):
    """Deterministic synthetic parameters matching the module's shapes."""
    c2, c3 = c1 // 2, c1 // 4
    dims = [(c1, cin), (c2, c1), (c3, c2), (3, c3)]
    ws, bs = [], []
    for co, ci in dims:
        key, kw, kb = jax.random.split(key, 3)
        ws.append(jax.random.normal(kw, (co, ci), jnp.float32) * (ci ** -0.5))
        bs.append(jax.random.normal(kb, (co,), jnp.float32) * 0.05)
    gs, bes = [], []
    for c in (c1, c2, c3):
        key, kg, kbe = jax.random.split(key, 3)
        gs.append(1.0 + 0.1 * jax.random.normal(kg, (c,), jnp.float32))
        bes.append(0.1 * jax.random.normal(kbe, (c,), jnp.float32))
    return ws, bs, gs, bes


if __name__ == "__main__":
    key = jax.random.PRNGKey(0)
    # Small shapes consistent with the module (defaults are input_dim=1026,
    # bottleneck_size=1026; scaled down, structure preserved: C, C/2, C/4, 3).
    B, N = 2, 256
    CIN = 256          # input_dim
    C1 = 256           # bottleneck_size
    C2, C3 = C1 // 2, C1 // 4

    key, kc, ka, kp = jax.random.split(key, 4)
    content = jax.random.normal(kc, (B, CIN, N), jnp.float32)
    adain_dim = 2 * (C1 + C2 + C3)
    adain_params = 0.5 * jax.random.normal(ka, (B, adain_dim), jnp.float32)
    ws, bs, gs, bes = make_params(kp, CIN, C1)

    out = jax.block_until_ready(
        style_based_adain_pallas(content, adain_params, ws, bs, gs, bes))
    assert out.shape == (B, 3, N), out.shape

    ref = jax.block_until_ready(
        style_based_adain_reference(content, adain_params, ws, bs, gs, bes))
    max_err = float(jnp.max(jnp.abs(out - ref)))
    assert jnp.allclose(out, ref, atol=5e-3, rtol=5e-3), max_err

    print("KERNEL_OK")
</pallas_src>

<mosaic_0001>
module attributes {stable_mosaic.version = 11 : i64} {
  func.func @style_adain_kernel(%arg0: memref<2x256x256xf32, #tpu.memory_space<vmem>>, %arg1: memref<256x256xbf16, #tpu.memory_space<vmem>>, %arg2: memref<256x1xf32, #tpu.memory_space<vmem>>, %arg3: memref<2x256x1xf32, #tpu.memory_space<vmem>>, %arg4: memref<2x256x1xf32, #tpu.memory_space<vmem>>, %arg5: memref<256x1xf32, #tpu.memory_space<vmem>>, %arg6: memref<256x1xf32, #tpu.memory_space<vmem>>, %arg7: memref<128x256xbf16, #tpu.memory_space<vmem>>, %arg8: memref<128x1xf32, #tpu.memory_space<vmem>>, %arg9: memref<2x128x1xf32, #tpu.memory_space<vmem>>, %arg10: memref<2x128x1xf32, #tpu.memory_space<vmem>>, %arg11: memref<128x1xf32, #tpu.memory_space<vmem>>, %arg12: memref<128x1xf32, #tpu.memory_space<vmem>>, %arg13: memref<64x128xbf16, #tpu.memory_space<vmem>>, %arg14: memref<64x1xf32, #tpu.memory_space<vmem>>, %arg15: memref<2x64x1xf32, #tpu.memory_space<vmem>>, %arg16: memref<2x64x1xf32, #tpu.memory_space<vmem>>, %arg17: memref<64x1xf32, #tpu.memory_space<vmem>>, %arg18: memref<64x1xf32, #tpu.memory_space<vmem>>, %arg19: memref<3x64xbf16, #tpu.memory_space<vmem>>, %arg20: memref<3x1xf32, #tpu.memory_space<vmem>>, %arg21: memref<2x3x256xf32, #tpu.memory_space<vmem>>) attributes {dimension_semantics = [], scalar_prefetch = 0 : i64, scratch_operands = 0 : i64, tpu.core_type = #tpu.core_type<tc>} {
    %c0 = arith.constant 0 : index
    %c0_0 = arith.constant 0 : index
    %c0_1 = arith.constant 0 : index
    %0 = vector.load %arg0[%c0, %c0_0, %c0_1] : memref<2x256x256xf32, #tpu.memory_space<vmem>>, vector<1x256x256xf32>
    %1 = vector.shape_cast %0 : vector<1x256x256xf32> to vector<256x256xf32>
    %c1 = arith.constant 1 : index
    %c0_2 = arith.constant 0 : index
    %c0_3 = arith.constant 0 : index
    %2 = vector.load %arg0[%c1, %c0_2, %c0_3] : memref<2x256x256xf32, #tpu.memory_space<vmem>>, vector<1x256x256xf32>
    %3 = vector.shape_cast %2 : vector<1x256x256xf32> to vector<256x256xf32>
    %c0_4 = arith.constant 0 : index
    %c0_5 = arith.constant 0 : index
    %4 = vector.load %arg1[%c0_4, %c0_5] : memref<256x256xbf16, #tpu.memory_space<vmem>>, vector<256x256xbf16>
    %c0_6 = arith.constant 0 : index
    %c0_7 = arith.constant 0 : index
    %5 = vector.load %arg2[%c0_6, %c0_7] : memref<256x1xf32, #tpu.memory_space<vmem>>, vector<256x1xf32>
    %6 = arith.truncf %1 : vector<256x256xf32> to vector<256x256xbf16>
    %cst = arith.constant dense<0.000000e+00> : vector<256x256xf32>
    %7 = tpu.matmul %4, %6, %cst {dimension_numbers = #tpu.dot_dimension_numbers<[1], [0], [0], [1], [0, 0, 1, 1], [], []>} : vector<256x256xbf16>, vector<256x256xbf16>, vector<256x256xf32> -> vector<256x256xf32>
    %8 = vector.broadcast %5 : vector<256x1xf32> to vector<256x256xf32>
    %9 = arith.addf %7, %8 : vector<256x256xf32>
    %cst_8 = arith.constant dense<0.000000e+00> : vector<256xf32>
    %10 = vector.multi_reduction <add>, %9, %cst_8 [1] : vector<256x256xf32> to vector<256xf32>
    %11 = vector.shape_cast %10 : vector<256xf32> to vector<256x1xf32>
    %cst_9 = arith.constant 3.906250e-03 : f32
    %12 = vector.broadcast %cst_9 : f32 to vector<256x1xf32>
    %13 = arith.mulf %11, %12 : vector<256x1xf32>
    %14 = arith.mulf %9, %9 : vector<256x256xf32>
    %cst_10 = arith.constant dense<0.000000e+00> : vector<256xf32>
    %15 = vector.multi_reduction <add>, %14, %cst_10 [1] : vector<256x256xf32> to vector<256xf32>
    %16 = vector.shape_cast %15 : vector<256xf32> to vector<256x1xf32>
    %cst_11 = arith.constant 3.906250e-03 : f32
    %17 = vector.broadcast %cst_11 : f32 to vector<256x1xf32>
    %18 = arith.mulf %16, %17 : vector<256x1xf32>
    %19 = arith.mulf %13, %13 : vector<256x1xf32>
    %20 = arith.subf %18, %19 : vector<256x1xf32>
    %cst_12 = arith.constant 0.000000e+00 : f32
    %21 = vector.broadcast %cst_12 : f32 to vector<256x1xf32>
    %22 = arith.maximumf %20, %21 : vector<256x1xf32>
    %23 = vector.broadcast %13 : vector<256x1xf32> to vector<256x256xf32>
    %24 = arith.subf %9, %23 : vector<256x256xf32>
    %cst_13 = arith.constant 9.99999974E-6 : f32
    %25 = vector.broadcast %cst_13 : f32 to vector<256x1xf32>
    %26 = arith.addf %22, %25 : vector<256x1xf32>
    %27 = math.rsqrt %26 : vector<256x1xf32>
    %28 = vector.broadcast %27 : vector<256x1xf32> to vector<256x256xf32>
    %29 = arith.mulf %24, %28 : vector<256x256xf32>
    %c0_14 = arith.constant 0 : index
    %c0_15 = arith.constant 0 : index
    %c0_16 = arith.constant 0 : index
    %30 = vector.load %arg4[%c0_14, %c0_15, %c0_16] : memref<2x256x1xf32, #tpu.memory_space<vmem>>, vector<1x256x1xf32>
    %31 = vector.shape_cast %30 : vector<1x256x1xf32> to vector<256x1xf32>
    %32 = vector.broadcast %31 : vector<256x1xf32> to vector<256x256xf32>
    %33 = arith.mulf %29, %32 : vector<256x256xf32>
    %c0_17 = arith.constant 0 : index
    %c0_18 = arith.constant 0 : index
    %c0_19 = arith.constant 0 : index
    %34 = vector.load %arg3[%c0_17, %c0_18, %c0_19] : memref<2x256x1xf32, #tpu.memory_space<vmem>>, vector<1x256x1xf32>
    %35 = vector.shape_cast %34 : vector<1x256x1xf32> to vector<256x1xf32>
    %36 = vector.broadcast %35 : vector<256x1xf32> to vector<256x256xf32>
    %37 = arith.addf %33, %36 : vector<256x256xf32>
    %38 = arith.truncf %3 : vector<256x256xf32> to vector<256x256xbf16>
    %cst_20 = arith.constant dense<0.000000e+00> : vector<256x256xf32>
    %39 = tpu.matmul %4, %38, %cst_20 {dimension_numbers = #tpu.dot_dimension_numbers<[1], [0], [0], [1], [0, 0, 1, 1], [], []>} : vector<256x256xbf16>, vector<256x256xbf16>, vector<256x256xf32> -> vector<256x256xf32>
    %40 = vector.broadcast %5 : vector<256x1xf32> to vector<256x256xf32>
    %41 = arith.addf %39, %40 : vector<256x256xf32>
    %cst_21 = arith.constant dense<0.000000e+00> : vector<256xf32>
    %42 = vector.multi_reduction <add>, %41, %cst_21 [1] : vector<256x256xf32> to vector<256xf32>
    %43 = vector.shape_cast %42 : vector<256xf32> to vector<256x1xf32>
    %cst_22 = arith.constant 3.906250e-03 : f32
    %44 = vector.broadcast %cst_22 : f32 to vector<256x1xf32>
    %45 = arith.mulf %43, %44 : vector<256x1xf32>
    %46 = arith.mulf %41, %41 : vector<256x256xf32>
    %cst_23 = arith.constant dense<0.000000e+00> : vector<256xf32>
    %47 = vector.multi_reduction <add>, %46, %cst_23 [1] : vector<256x256xf32> to vector<256xf32>
    %48 = vector.shape_cast %47 : vector<256xf32> to vector<256x1xf32>
    %cst_24 = arith.constant 3.906250e-03 : f32
    %49 = vector.broadcast %cst_24 : f32 to vector<256x1xf32>
    %50 = arith.mulf %48, %49 : vector<256x1xf32>
    %51 = arith.mulf %45, %45 : vector<256x1xf32>
    %52 = arith.subf %50, %51 : vector<256x1xf32>
    %cst_25 = arith.constant 0.000000e+00 : f32
    %53 = vector.broadcast %cst_25 : f32 to vector<256x1xf32>
    %54 = arith.maximumf %52, %53 : vector<256x1xf32>
    %55 = vector.broadcast %45 : vector<256x1xf32> to vector<256x256xf32>
    %56 = arith.subf %41, %55 : vector<256x256xf32>
    %cst_26 = arith.constant 9.99999974E-6 : f32
    %57 = vector.broadcast %cst_26 : f32 to vector<256x1xf32>
    %58 = arith.addf %54, %57 : vector<256x1xf32>
    %59 = math.rsqrt %58 : vector<256x1xf32>
    %60 = vector.broadcast %59 : vector<256x1xf32> to vector<256x256xf32>
    %61 = arith.mulf %56, %60 : vector<256x256xf32>
    %c1_27 = arith.constant 1 : index
    %c0_28 = arith.constant 0 : index
    %c0_29 = arith.constant 0 : index
    %62 = vector.load %arg4[%c1_27, %c0_28, %c0_29] : memref<2x256x1xf32, #tpu.memory_space<vmem>>, vector<1x256x1xf32>
    %63 = vector.shape_cast %62 : vector<1x256x1xf32> to vector<256x1xf32>
    %64 = vector.broadcast %63 : vector<256x1xf32> to vector<256x256xf32>
    %65 = arith.mulf %61, %64 : vector<256x256xf32>
    %c1_30 = arith.constant 1 : index
    %c0_31 = arith.constant 0 : index
    %c0_32 = arith.constant 0 : index
    %66 = vector.load %arg3[%c1_30, %c0_31, %c0_32] : memref<2x256x1xf32, #tpu.memory_space<vmem>>, vector<1x256x1xf32>
    %67 = vector.shape_cast %66 : vector<1x256x1xf32> to vector<256x1xf32>
    %68 = vector.broadcast %67 : vector<256x1xf32> to vector<256x256xf32>
    %69 = arith.addf %65, %68 : vector<256x256xf32>
    %cst_33 = arith.constant dense<0.000000e+00> : vector<256xf32>
    %70 = vector.multi_reduction <add>, %37, %cst_33 [1] : vector<256x256xf32> to vector<256xf32>
    %71 = vector.shape_cast %70 : vector<256xf32> to vector<256x1xf32>
    %cst_34 = arith.constant 0.000000e+00 : f32
    %72 = vector.broadcast %cst_34 : f32 to vector<256x1xf32>
    %73 = arith.addf %72, %71 : vector<256x1xf32>
    %cst_35 = arith.constant dense<0.000000e+00> : vector<256xf32>
    %74 = vector.multi_reduction <add>, %69, %cst_35 [1] : vector<256x256xf32> to vector<256xf32>
    %75 = vector.shape_cast %74 : vector<256xf32> to vector<256x1xf32>
    %76 = arith.addf %73, %75 : vector<256x1xf32>
    %77 = arith.mulf %37, %37 : vector<256x256xf32>
    %cst_36 = arith.constant dense<0.000000e+00> : vector<256xf32>
    %78 = vector.multi_reduction <add>, %77, %cst_36 [1] : vector<256x256xf32> to vector<256xf32>
    %79 = vector.shape_cast %78 : vector<256xf32> to vector<256x1xf32>
    %cst_37 = arith.constant 0.000000e+00 : f32
    %80 = vector.broadcast %cst_37 : f32 to vector<256x1xf32>
    %81 = arith.addf %80, %79 : vector<256x1xf32>
    %82 = arith.mulf %69, %69 : vector<256x256xf32>
    %cst_38 = arith.constant dense<0.000000e+00> : vector<256xf32>
    %83 = vector.multi_reduction <add>, %82, %cst_38 [1] : vector<256x256xf32> to vector<256xf32>
    %84 = vector.shape_cast %83 : vector<256xf32> to vector<256x1xf32>
    %85 = arith.addf %81, %84 : vector<256x1xf32>
    %cst_39 = arith.constant 0.001953125 : f32
    %86 = vector.broadcast %cst_39 : f32 to vector<256x1xf32>
    %87 = arith.mulf %76, %86 : vector<256x1xf32>
    %cst_40 = arith.constant 0.001953125 : f32
    %88 = vector.broadcast %cst_40 : f32 to vector<256x1xf32>
    %89 = arith.mulf %85, %88 : vector<256x1xf32>
    %90 = arith.mulf %87, %87 : vector<256x1xf32>
    %91 = arith.subf %89, %90 : vector<256x1xf32>
    %cst_41 = arith.constant 0.000000e+00 : f32
    %92 = vector.broadcast %cst_41 : f32 to vector<256x1xf32>
    %93 = arith.maximumf %91, %92 : vector<256x1xf32>
    %cst_42 = arith.constant 9.99999974E-6 : f32
    %94 = vector.broadcast %cst_42 : f32 to vector<256x1xf32>
    %95 = arith.addf %93, %94 : vector<256x1xf32>
    %96 = math.rsqrt %95 : vector<256x1xf32>
    %c0_43 = arith.constant 0 : index
    %c0_44 = arith.constant 0 : index
    %97 = vector.load %arg5[%c0_43, %c0_44] : memref<256x1xf32, #tpu.memory_space<vmem>>, vector<256x1xf32>
    %98 = arith.mulf %96, %97 : vector<256x1xf32>
    %c0_45 = arith.constant 0 : index
    %c0_46 = arith.constant 0 : index
    %99 = vector.load %arg6[%c0_45, %c0_46] : memref<256x1xf32, #tpu.memory_space<vmem>>, vector<256x1xf32>
    %100 = arith.mulf %87, %98 : vector<256x1xf32>
    %101 = arith.subf %99, %100 : vector<256x1xf32>
    %102 = vector.broadcast %98 : vector<256x1xf32> to vector<256x256xf32>
    %103 = arith.mulf %37, %102 : vector<256x256xf32>
    %104 = vector.broadcast %101 : vector<256x1xf32> to vector<256x256xf32>
    %105 = arith.addf %103, %104 : vector<256x256xf32>
    %cst_47 = arith.constant 0.000000e+00 : f32
    %106 = vector.broadcast %cst_47 : f32 to vector<256x256xf32>
    %107 = arith.maximumf %105, %106 : vector<256x256xf32>
    %108 = vector.broadcast %98 : vector<256x1xf32> to vector<256x256xf32>
    %109 = arith.mulf %69, %108 : vector<256x256xf32>
    %110 = vector.broadcast %101 : vector<256x1xf32> to vector<256x256xf32>
    %111 = arith.addf %109, %110 : vector<256x256xf32>
    %cst_48 = arith.constant 0.000000e+00 : f32
    %112 = vector.broadcast %cst_48 : f32 to vector<256x256xf32>
    %113 = arith.maximumf %111, %112 : vector<256x256xf32>
    %c0_49 = arith.constant 0 : index
    %c0_50 = arith.constant 0 : index
    %114 = vector.load %arg7[%c0_49, %c0_50] : memref<128x256xbf16, #tpu.memory_space<vmem>>, vector<128x256xbf16>
    %c0_51 = arith.constant 0 : index
    %c0_52 = arith.constant 0 : index
    %115 = vector.load %arg8[%c0_51, %c0_52] : memref<128x1xf32, #tpu.memory_space<vmem>>, vector<128x1xf32>
    %116 = arith.truncf %107 : vector<256x256xf32> to vector<256x256xbf16>
    %cst_53 = arith.constant dense<0.000000e+00> : vector<128x256xf32>
    %117 = tpu.matmul %114, %116, %cst_53 {dimension_numbers = #tpu.dot_dimension_numbers<[1], [0], [0], [1], [0, 0, 1, 1], [], []>} : vector<128x256xbf16>, vector<256x256xbf16>, vector<128x256xf32> -> vector<128x256xf32>
    %118 = vector.broadcast %115 : vector<128x1xf32> to vector<128x256xf32>
    %119 = arith.addf %117, %118 : vector<128x256xf32>
    %cst_54 = arith.constant dense<0.000000e+00> : vector<128xf32>
    %120 = vector.multi_reduction <add>, %119, %cst_54 [1] : vector<128x256xf32> to vector<128xf32>
    %121 = vector.shape_cast %120 : vector<128xf32> to vector<128x1xf32>
    %cst_55 = arith.constant 3.906250e-03 : f32
    %122 = vector.broadcast %cst_55 : f32 to vector<128x1xf32>
    %123 = arith.mulf %121, %122 : vector<128x1xf32>
    %124 = arith.mulf %119, %119 : vector<128x256xf32>
    %cst_56 = arith.constant dense<0.000000e+00> : vector<128xf32>
    %125 = vector.multi_reduction <add>, %124, %cst_56 [1] : vector<128x256xf32> to vector<128xf32>
    %126 = vector.shape_cast %125 : vector<128xf32> to vector<128x1xf32>
    %cst_57 = arith.constant 3.906250e-03 : f32
    %127 = vector.broadcast %cst_57 : f32 to vector<128x1xf32>
    %128 = arith.mulf %126, %127 : vector<128x1xf32>
    %129 = arith.mulf %123, %123 : vector<128x1xf32>
    %130 = arith.subf %128, %129 : vector<128x1xf32>
    %cst_58 = arith.constant 0.000000e+00 : f32
    %131 = vector.broadcast %cst_58 : f32 to vector<128x1xf32>
    %132 = arith.maximumf %130, %131 : vector<128x1xf32>
    %133 = vector.broadcast %123 : vector<128x1xf32> to vector<128x256xf32>
    %134 = arith.subf %119, %133 : vector<128x256xf32>
    %cst_59 = arith.constant 9.99999974E-6 : f32
    %135 = vector.broadcast %cst_59 : f32 to vector<128x1xf32>
    %136 = arith.addf %132, %135 : vector<128x1xf32>
    %137 = math.rsqrt %136 : vector<128x1xf32>
    %138 = vector.broadcast %137 : vector<128x1xf32> to vector<128x256xf32>
    %139 = arith.mulf %134, %138 : vector<128x256xf32>
    %c0_60 = arith.constant 0 : index
    %c0_61 = arith.constant 0 : index
    %c0_62 = arith.constant 0 : index
    %140 = vector.load %arg10[%c0_60, %c0_61, %c0_62] : memref<2x128x1xf32, #tpu.memory_space<vmem>>, vector<1x128x1xf32>
    %141 = vector.shape_cast %140 : vector<1x128x1xf32> to vector<128x1xf32>
    %142 = vector.broadcast %141 : vector<128x1xf32> to vector<128x256xf32>
    %143 = arith.mulf %139, %142 : vector<128x256xf32>
    %c0_63 = arith.constant 0 : index
    %c0_64 = arith.constant 0 : index
    %c0_65 = arith.constant 0 : index
    %144 = vector.load %arg9[%c0_63, %c0_64, %c0_65] : memref<2x128x1xf32, #tpu.memory_space<vmem>>, vector<1x128x1xf32>
    %145 = vector.shape_cast %144 : vector<1x128x1xf32> to vector<128x1xf32>
    %146 = vector.broadcast %145 : vector<128x1xf32> to vector<128x256xf32>
    %147 = arith.addf %143, %146 : vector<128x256xf32>
    %148 = arith.truncf %113 : vector<256x256xf32> to vector<256x256xbf16>
    %cst_66 = arith.constant dense<0.000000e+00> : vector<128x256xf32>
    %149 = tpu.matmul %114, %148, %cst_66 {dimension_numbers = #tpu.dot_dimension_numbers<[1], [0], [0], [1], [0, 0, 1, 1], [], []>} : vector<128x256xbf16>, vector<256x256xbf16>, vector<128x256xf32> -> vector<128x256xf32>
    %150 = vector.broadcast %115 : vector<128x1xf32> to vector<128x256xf32>
    %151 = arith.addf %149, %150 : vector<128x256xf32>
    %cst_67 = arith.constant dense<0.000000e+00> : vector<128xf32>
    %152 = vector.multi_reduction <add>, %151, %cst_67 [1] : vector<128x256xf32> to vector<128xf32>
    %153 = vector.shape_cast %152 : vector<128xf32> to vector<128x1xf32>
    %cst_68 = arith.constant 3.906250e-03 : f32
    %154 = vector.broadcast %cst_68 : f32 to vector<128x1xf32>
    %155 = arith.mulf %153, %154 : vector<128x1xf32>
    %156 = arith.mulf %151, %151 : vector<128x256xf32>
    %cst_69 = arith.constant dense<0.000000e+00> : vector<128xf32>
    %157 = vector.multi_reduction <add>, %156, %cst_69 [1] : vector<128x256xf32> to vector<128xf32>
    %158 = vector.shape_cast %157 : vector<128xf32> to vector<128x1xf32>
    %cst_70 = arith.constant 3.906250e-03 : f32
    %159 = vector.broadcast %cst_70 : f32 to vector<128x1xf32>
    %160 = arith.mulf %158, %159 : vector<128x1xf32>
    %161 = arith.mulf %155, %155 : vector<128x1xf32>
    %162 = arith.subf %160, %161 : vector<128x1xf32>
    %cst_71 = arith.constant 0.000000e+00 : f32
    %163 = vector.broadcast %cst_71 : f32 to vector<128x1xf32>
    %164 = arith.maximumf %162, %163 : vector<128x1xf32>
    %165 = vector.broadcast %155 : vector<128x1xf32> to vector<128x256xf32>
    %166 = arith.subf %151, %165 : vector<128x256xf32>
    %cst_72 = arith.constant 9.99999974E-6 : f32
    %167 = vector.broadcast %cst_72 : f32 to vector<128x1xf32>
    %168 = arith.addf %164, %167 : vector<128x1xf32>
    %169 = math.rsqrt %168 : vector<128x1xf32>
    %170 = vector.broadcast %169 : vector<128x1xf32> to vector<128x256xf32>
    %171 = arith.mulf %166, %170 : vector<128x256xf32>
    %c1_73 = arith.constant 1 : index
    %c0_74 = arith.constant 0 : index
    %c0_75 = arith.constant 0 : index
    %172 = vector.load %arg10[%c1_73, %c0_74, %c0_75] : memref<2x128x1xf32, #tpu.memory_space<vmem>>, vector<1x128x1xf32>
    %173 = vector.shape_cast %172 : vector<1x128x1xf32> to vector<128x1xf32>
    %174 = vector.broadcast %173 : vector<128x1xf32> to vector<128x256xf32>
    %175 = arith.mulf %171, %174 : vector<128x256xf32>
    %c1_76 = arith.constant 1 : index
    %c0_77 = arith.constant 0 : index
    %c0_78 = arith.constant 0 : index
    %176 = vector.load %arg9[%c1_76, %c0_77, %c0_78] : memref<2x128x1xf32, #tpu.memory_space<vmem>>, vector<1x128x1xf32>
    %177 = vector.shape_cast %176 : vector<1x128x1xf32> to vector<128x1xf32>
    %178 = vector.broadcast %177 : vector<128x1xf32> to vector<128x256xf32>
    %179 = arith.addf %175, %178 : vector<128x256xf32>
    %cst_79 = arith.constant dense<0.000000e+00> : vector<128xf32>
    %180 = vector.multi_reduction <add>, %147, %cst_79 [1] : vector<128x256xf32> to vector<128xf32>
    %181 = vector.shape_cast %180 : vector<128xf32> to vector<128x1xf32>
    %cst_80 = arith.constant 0.000000e+00 : f32
    %182 = vector.broadcast %cst_80 : f32 to vector<128x1xf32>
    %183 = arith.addf %182, %181 : vector<128x1xf32>
    %cst_81 = arith.constant dense<0.000000e+00> : vector<128xf32>
    %184 = vector.multi_reduction <add>, %179, %cst_81 [1] : vector<128x256xf32> to vector<128xf32>
    %185 = vector.shape_cast %184 : vector<128xf32> to vector<128x1xf32>
    %186 = arith.addf %183, %185 : vector<128x1xf32>
    %187 = arith.mulf %147, %147 : vector<128x256xf32>
    %cst_82 = arith.constant dense<0.000000e+00> : vector<128xf32>
    %188 = vector.multi_reduction <add>, %187, %cst_82 [1] : vector<128x256xf32> to vector<128xf32>
    %189 = vector.shape_cast %188 : vector<128xf32> to vector<128x1xf32>
    %cst_83 = arith.constant 0.000000e+00 : f32
    %190 = vector.broadcast %cst_83 : f32 to vector<128x1xf32>
    %191 = arith.addf %190, %189 : vector<128x1xf32>
    %192 = arith.mulf %179, %179 : vector<128x256xf32>
    %cst_84 = arith.constant dense<0.000000e+00> : vector<128xf32>
    %193 = vector.multi_reduction <add>, %192, %cst_84 [1] : vector<128x256xf32> to vector<128xf32>
    %194 = vector.shape_cast %193 : vector<128xf32> to vector<128x1xf32>
    %195 = arith.addf %191, %194 : vector<128x1xf32>
    %cst_85 = arith.constant 0.001953125 : f32
    %196 = vector.broadcast %cst_85 : f32 to vector<128x1xf32>
    %197 = arith.mulf %186, %196 : vector<128x1xf32>
    %cst_86 = arith.constant 0.001953125 : f32
    %198 = vector.broadcast %cst_86 : f32 to vector<128x1xf32>
    %199 = arith.mulf %195, %198 : vector<128x1xf32>
    %200 = arith.mulf %197, %197 : vector<128x1xf32>
    %201 = arith.subf %199, %200 : vector<128x1xf32>
    %cst_87 = arith.constant 0.000000e+00 : f32
    %202 = vector.broadcast %cst_87 : f32 to vector<128x1xf32>
    %203 = arith.maximumf %201, %202 : vector<128x1xf32>
    %cst_88 = arith.constant 9.99999974E-6 : f32
    %204 = vector.broadcast %cst_88 : f32 to vector<128x1xf32>
    %205 = arith.addf %203, %204 : vector<128x1xf32>
    %206 = math.rsqrt %205 : vector<128x1xf32>
    %c0_89 = arith.constant 0 : index
    %c0_90 = arith.constant 0 : index
    %207 = vector.load %arg11[%c0_89, %c0_90] : memref<128x1xf32, #tpu.memory_space<vmem>>, vector<128x1xf32>
    %208 = arith.mulf %206, %207 : vector<128x1xf32>
    %c0_91 = arith.constant 0 : index
    %c0_92 = arith.constant 0 : index
    %209 = vector.load %arg12[%c0_91, %c0_92] : memref<128x1xf32, #tpu.memory_space<vmem>>, vector<128x1xf32>
    %210 = arith.mulf %197, %208 : vector<128x1xf32>
    %211 = arith.subf %209, %210 : vector<128x1xf32>
    %212 = vector.broadcast %208 : vector<128x1xf32> to vector<128x256xf32>
    %213 = arith.mulf %147, %212 : vector<128x256xf32>
    %214 = vector.broadcast %211 : vector<128x1xf32> to vector<128x256xf32>
    %215 = arith.addf %213, %214 : vector<128x256xf32>
    %cst_93 = arith.constant 0.000000e+00 : f32
    %216 = vector.broadcast %cst_93 : f32 to vector<128x256xf32>
    %217 = arith.maximumf %215, %216 : vector<128x256xf32>
    %218 = vector.broadcast %208 : vector<128x1xf32> to vector<128x256xf32>
    %219 = arith.mulf %179, %218 : vector<128x256xf32>
    %220 = vector.broadcast %211 : vector<128x1xf32> to vector<128x256xf32>
    %221 = arith.addf %219, %220 : vector<128x256xf32>
    %cst_94 = arith.constant 0.000000e+00 : f32
    %222 = vector.broadcast %cst_94 : f32 to vector<128x256xf32>
    %223 = arith.maximumf %221, %222 : vector<128x256xf32>
    %c0_95 = arith.constant 0 : index
    %c0_96 = arith.constant 0 : index
    %224 = vector.load %arg13[%c0_95, %c0_96] : memref<64x128xbf16, #tpu.memory_space<vmem>>, vector<64x128xbf16>
    %c0_97 = arith.constant 0 : index
    %c0_98 = arith.constant 0 : index
    %225 = vector.load %arg14[%c0_97, %c0_98] : memref<64x1xf32, #tpu.memory_space<vmem>>, vector<64x1xf32>
    %226 = arith.truncf %217 : vector<128x256xf32> to vector<128x256xbf16>
    %cst_99 = arith.constant dense<0.000000e+00> : vector<64x256xf32>
    %227 = tpu.matmul %224, %226, %cst_99 {dimension_numbers = #tpu.dot_dimension_numbers<[1], [0], [0], [1], [0, 0, 1, 1], [], []>} : vector<64x128xbf16>, vector<128x256xbf16>, vector<64x256xf32> -> vector<64x256xf32>
    %228 = vector.broadcast %225 : vector<64x1xf32> to vector<64x256xf32>
    %229 = arith.addf %227, %228 : vector<64x256xf32>
    %cst_100 = arith.constant dense<0.000000e+00> : vector<64xf32>
    %230 = vector.multi_reduction <add>, %229, %cst_100 [1] : vector<64x256xf32> to vector<64xf32>
    %231 = vector.shape_cast %230 : vector<64xf32> to vector<64x1xf32>
    %cst_101 = arith.constant 3.906250e-03 : f32
    %232 = vector.broadcast %cst_101 : f32 to vector<64x1xf32>
    %233 = arith.mulf %231, %232 : vector<64x1xf32>
    %234 = arith.mulf %229, %229 : vector<64x256xf32>
    %cst_102 = arith.constant dense<0.000000e+00> : vector<64xf32>
    %235 = vector.multi_reduction <add>, %234, %cst_102 [1] : vector<64x256xf32> to vector<64xf32>
    %236 = vector.shape_cast %235 : vector<64xf32> to vector<64x1xf32>
    %cst_103 = arith.constant 3.906250e-03 : f32
    %237 = vector.broadcast %cst_103 : f32 to vector<64x1xf32>
    %238 = arith.mulf %236, %237 : vector<64x1xf32>
    %239 = arith.mulf %233, %233 : vector<64x1xf32>
    %240 = arith.subf %238, %239 : vector<64x1xf32>
    %cst_104 = arith.constant 0.000000e+00 : f32
    %241 = vector.broadcast %cst_104 : f32 to vector<64x1xf32>
    %242 = arith.maximumf %240, %241 : vector<64x1xf32>
    %243 = vector.broadcast %233 : vector<64x1xf32> to vector<64x256xf32>
    %244 = arith.subf %229, %243 : vector<64x256xf32>
    %cst_105 = arith.constant 9.99999974E-6 : f32
    %245 = vector.broadcast %cst_105 : f32 to vector<64x1xf32>
    %246 = arith.addf %242, %245 : vector<64x1xf32>
    %247 = math.rsqrt %246 : vector<64x1xf32>
    %248 = vector.broadcast %247 : vector<64x1xf32> to vector<64x256xf32>
    %249 = arith.mulf %244, %248 : vector<64x256xf32>
    %c0_106 = arith.constant 0 : index
    %c0_107 = arith.constant 0 : index
    %c0_108 = arith.constant 0 : index
    %250 = vector.load %arg16[%c0_106, %c0_107, %c0_108] : memref<2x64x1xf32, #tpu.memory_space<vmem>>, vector<1x64x1xf32>
    %251 = vector.shape_cast %250 : vector<1x64x1xf32> to vector<64x1xf32>
    %252 = vector.broadcast %251 : vector<64x1xf32> to vector<64x256xf32>
    %253 = arith.mulf %249, %252 : vector<64x256xf32>
    %c0_109 = arith.constant 0 : index
    %c0_110 = arith.constant 0 : index
    %c0_111 = arith.constant 0 : index
    %254 = vector.load %arg15[%c0_109, %c0_110, %c0_111] : memref<2x64x1xf32, #tpu.memory_space<vmem>>, vector<1x64x1xf32>
    %255 = vector.shape_cast %254 : vector<1x64x1xf32> to vector<64x1xf32>
    %256 = vector.broadcast %255 : vector<64x1xf32> to vector<64x256xf32>
    %257 = arith.addf %253, %256 : vector<64x256xf32>
    %258 = arith.truncf %223 : vector<128x256xf32> to vector<128x256xbf16>
    %cst_112 = arith.constant dense<0.000000e+00> : vector<64x256xf32>
    %259 = tpu.matmul %224, %258, %cst_112 {dimension_numbers = #tpu.dot_dimension_numbers<[1], [0], [0], [1], [0, 0, 1, 1], [], []>} : vector<64x128xbf16>, vector<128x256xbf16>, vector<64x256xf32> -> vector<64x256xf32>
    %260 = vector.broadcast %225 : vector<64x1xf32> to vector<64x256xf32>
    %261 = arith.addf %259, %260 : vector<64x256xf32>
    %cst_113 = arith.constant dense<0.000000e+00> : vector<64xf32>
    %262 = vector.multi_reduction <add>, %261, %cst_113 [1] : vector<64x256xf32> to vector<64xf32>
    %263 = vector.shape_cast %262 : vector<64xf32> to vector<64x1xf32>
    %cst_114 = arith.constant 3.906250e-03 : f32
    %264 = vector.broadcast %cst_114 : f32 to vector<64x1xf32>
    %265 = arith.mulf %263, %264 : vector<64x1xf32>
    %266 = arith.mulf %261, %261 : vector<64x256xf32>
    %cst_115 = arith.constant dense<0.000000e+00> : vector<64xf32>
    %267 = vector.multi_reduction <add>, %266, %cst_115 [1] : vector<64x256xf32> to vector<64xf32>
    %268 = vector.shape_cast %267 : vector<64xf32> to vector<64x1xf32>
    %cst_116 = arith.constant 3.906250e-03 : f32
    %269 = vector.broadcast %cst_116 : f32 to vector<64x1xf32>
    %270 = arith.mulf %268, %269 : vector<64x1xf32>
    %271 = arith.mulf %265, %265 : vector<64x1xf32>
    %272 = arith.subf %270, %271 : vector<64x1xf32>
    %cst_117 = arith.constant 0.000000e+00 : f32
    %273 = vector.broadcast %cst_117 : f32 to vector<64x1xf32>
    %274 = arith.maximumf %272, %273 : vector<64x1xf32>
    %275 = vector.broadcast %265 : vector<64x1xf32> to vector<64x256xf32>
    %276 = arith.subf %261, %275 : vector<64x256xf32>
    %cst_118 = arith.constant 9.99999974E-6 : f32
    %277 = vector.broadcast %cst_118 : f32 to vector<64x1xf32>
    %278 = arith.addf %274, %277 : vector<64x1xf32>
    %279 = math.rsqrt %278 : vector<64x1xf32>
    %280 = vector.broadcast %279 : vector<64x1xf32> to vector<64x256xf32>
    %281 = arith.mulf %276, %280 : vector<64x256xf32>
    %c1_119 = arith.constant 1 : index
    %c0_120 = arith.constant 0 : index
    %c0_121 = arith.constant 0 : index
    %282 = vector.load %arg16[%c1_119, %c0_120, %c0_121] : memref<2x64x1xf32, #tpu.memory_space<vmem>>, vector<1x64x1xf32>
    %283 = vector.shape_cast %282 : vector<1x64x1xf32> to vector<64x1xf32>
    %284 = vector.broadcast %283 : vector<64x1xf32> to vector<64x256xf32>
    %285 = arith.mulf %281, %284 : vector<64x256xf32>
    %c1_122 = arith.constant 1 : index
    %c0_123 = arith.constant 0 : index
    %c0_124 = arith.constant 0 : index
    %286 = vector.load %arg15[%c1_122, %c0_123, %c0_124] : memref<2x64x1xf32, #tpu.memory_space<vmem>>, vector<1x64x1xf32>
    %287 = vector.shape_cast %286 : vector<1x64x1xf32> to vector<64x1xf32>
    %288 = vector.broadcast %287 : vector<64x1xf32> to vector<64x256xf32>
    %289 = arith.addf %285, %288 : vector<64x256xf32>
    %cst_125 = arith.constant dense<0.000000e+00> : vector<64xf32>
    %290 = vector.multi_reduction <add>, %257, %cst_125 [1] : vector<64x256xf32> to vector<64xf32>
    %291 = vector.shape_cast %290 : vector<64xf32> to vector<64x1xf32>
    %cst_126 = arith.constant 0.000000e+00 : f32
    %292 = vector.broadcast %cst_126 : f32 to vector<64x1xf32>
    %293 = arith.addf %292, %291 : vector<64x1xf32>
    %cst_127 = arith.constant dense<0.000000e+00> : vector<64xf32>
    %294 = vector.multi_reduction <add>, %289, %cst_127 [1] : vector<64x256xf32> to vector<64xf32>
    %295 = vector.shape_cast %294 : vector<64xf32> to vector<64x1xf32>
    %296 = arith.addf %293, %295 : vector<64x1xf32>
    %297 = arith.mulf %257, %257 : vector<64x256xf32>
    %cst_128 = arith.constant dense<0.000000e+00> : vector<64xf32>
    %298 = vector.multi_reduction <add>, %297, %cst_128 [1] : vector<64x256xf32> to vector<64xf32>
    %299 = vector.shape_cast %298 : vector<64xf32> to vector<64x1xf32>
    %cst_129 = arith.constant 0.000000e+00 : f32
    %300 = vector.broadcast %cst_129 : f32 to vector<64x1xf32>
    %301 = arith.addf %300, %299 : vector<64x1xf32>
    %302 = arith.mulf %289, %289 : vector<64x256xf32>
    %cst_130 = arith.constant dense<0.000000e+00> : vector<64xf32>
    %303 = vector.multi_reduction <add>, %302, %cst_130 [1] : vector<64x256xf32> to vector<64xf32>
    %304 = vector.shape_cast %303 : vector<64xf32> to vector<64x1xf32>
    %305 = arith.addf %301, %304 : vector<64x1xf32>
    %cst_131 = arith.constant 0.001953125 : f32
    %306 = vector.broadcast %cst_131 : f32 to vector<64x1xf32>
    %307 = arith.mulf %296, %306 : vector<64x1xf32>
    %cst_132 = arith.constant 0.001953125 : f32
    %308 = vector.broadcast %cst_132 : f32 to vector<64x1xf32>
    %309 = arith.mulf %305, %308 : vector<64x1xf32>
    %310 = arith.mulf %307, %307 : vector<64x1xf32>
    %311 = arith.subf %309, %310 : vector<64x1xf32>
    %cst_133 = arith.constant 0.000000e+00 : f32
    %312 = vector.broadcast %cst_133 : f32 to vector<64x1xf32>
    %313 = arith.maximumf %311, %312 : vector<64x1xf32>
    %cst_134 = arith.constant 9.99999974E-6 : f32
    %314 = vector.broadcast %cst_134 : f32 to vector<64x1xf32>
    %315 = arith.addf %313, %314 : vector<64x1xf32>
    %316 = math.rsqrt %315 : vector<64x1xf32>
    %c0_135 = arith.constant 0 : index
    %c0_136 = arith.constant 0 : index
    %317 = vector.load %arg17[%c0_135, %c0_136] : memref<64x1xf32, #tpu.memory_space<vmem>>, vector<64x1xf32>
    %318 = arith.mulf %316, %317 : vector<64x1xf32>
    %c0_137 = arith.constant 0 : index
    %c0_138 = arith.constant 0 : index
    %319 = vector.load %arg18[%c0_137, %c0_138] : memref<64x1xf32, #tpu.memory_space<vmem>>, vector<64x1xf32>
    %320 = arith.mulf %307, %318 : vector<64x1xf32>
    %321 = arith.subf %319, %320 : vector<64x1xf32>
    %322 = vector.broadcast %318 : vector<64x1xf32> to vector<64x256xf32>
    %323 = arith.mulf %257, %322 : vector<64x256xf32>
    %324 = vector.broadcast %321 : vector<64x1xf32> to vector<64x256xf32>
    %325 = arith.addf %323, %324 : vector<64x256xf32>
    %cst_139 = arith.constant 0.000000e+00 : f32
    %326 = vector.broadcast %cst_139 : f32 to vector<64x256xf32>
    %327 = arith.maximumf %325, %326 : vector<64x256xf32>
    %328 = vector.broadcast %318 : vector<64x1xf32> to vector<64x256xf32>
    %329 = arith.mulf %289, %328 : vector<64x256xf32>
    %330 = vector.broadcast %321 : vector<64x1xf32> to vector<64x256xf32>
    %331 = arith.addf %329, %330 : vector<64x256xf32>
    %cst_140 = arith.constant 0.000000e+00 : f32
    %332 = vector.broadcast %cst_140 : f32 to vector<64x256xf32>
    %333 = arith.maximumf %331, %332 : vector<64x256xf32>
    %c0_141 = arith.constant 0 : index
    %c0_142 = arith.constant 0 : index
    %334 = vector.load %arg19[%c0_141, %c0_142] : memref<3x64xbf16, #tpu.memory_space<vmem>>, vector<3x64xbf16>
    %c0_143 = arith.constant 0 : index
    %c0_144 = arith.constant 0 : index
    %335 = vector.load %arg20[%c0_143, %c0_144] : memref<3x1xf32, #tpu.memory_space<vmem>>, vector<3x1xf32>
    %336 = arith.truncf %327 : vector<64x256xf32> to vector<64x256xbf16>
    %cst_145 = arith.constant dense<0.000000e+00> : vector<3x256xf32>
    %337 = tpu.matmul %334, %336, %cst_145 {dimension_numbers = #tpu.dot_dimension_numbers<[1], [0], [0], [1], [0, 0, 1, 1], [], []>} : vector<3x64xbf16>, vector<64x256xbf16>, vector<3x256xf32> -> vector<3x256xf32>
    %338 = vector.broadcast %335 : vector<3x1xf32> to vector<3x256xf32>
    %339 = arith.addf %337, %338 : vector<3x256xf32>
    %340 = math.tanh %339 : vector<3x256xf32>
    %c0_146 = arith.constant 0 : index
    %c0_147 = arith.constant 0 : index
    %c0_148 = arith.constant 0 : index
    %341 = vector.load %arg21[%c0_146, %c0_147, %c0_148] : memref<2x3x256xf32, #tpu.memory_space<vmem>>, vector<1x3x256xf32>
    %342 = vector.shape_cast %341 : vector<1x3x256xf32> to vector<3x256xf32>
    %343 = vector.shape_cast %340 : vector<3x256xf32> to vector<1x3x256xf32>
    tpu.vector_store %arg21[%c0_146, %c0_147, %c0_148], %343 {strides = array<i32>} : memref<2x3x256xf32, #tpu.memory_space<vmem>>, vector<1x3x256xf32>,
    %344 = arith.truncf %333 : vector<64x256xf32> to vector<64x256xbf16>
    %cst_149 = arith.constant dense<0.000000e+00> : vector<3x256xf32>
    %345 = tpu.matmul %334, %344, %cst_149 {dimension_numbers = #tpu.dot_dimension_numbers<[1], [0], [0], [1], [0, 0, 1, 1], [], []>} : vector<3x64xbf16>, vector<64x256xbf16>, vector<3x256xf32> -> vector<3x256xf32>
    %346 = vector.broadcast %335 : vector<3x1xf32> to vector<3x256xf32>
    %347 = arith.addf %345, %346 : vector<3x256xf32>
    %348 = math.tanh %347 : vector<3x256xf32>
    %c1_150 = arith.constant 1 : index
    %c0_151 = arith.constant 0 : index
    %c0_152 = arith.constant 0 : index
    %349 = vector.load %arg21[%c1_150, %c0_151, %c0_152] : memref<2x3x256xf32, #tpu.memory_space<vmem>>, vector<1x3x256xf32>
    %350 = vector.shape_cast %349 : vector<1x3x256xf32> to vector<3x256xf32>
    %351 = vector.shape_cast %348 : vector<3x256xf32> to vector<1x3x256xf32>
    tpu.vector_store %arg21[%c1_150, %c0_151, %c0_152], %351 {strides = array<i32>} : memref<2x3x256xf32, #tpu.memory_space<vmem>>, vector<1x3x256xf32>,
    return
  }
}

</mosaic_0001>

<llo_original>
// kernel: tpu_custom_call.1
$region0: #{tpu_custom_call.1}
  #allocation0 [shape = 'u32[]', space=smem, size = 0x4, offset = 0x4, fixed_abs, tag = 'smem constant byte address 0x4 - core index']
  #allocation1 [shape = 'u32[144,128]{1,0:T(1,128)}', space=vmem, size = 0x12000, scoped, tag = 'internal scratch']
  %s0 = inlined_call_operand.vmem [shape: f32[2,256,256], index: 0, kind: input, shape index: {}]
  %s1 = inlined_call_operand.vmem [shape: bf16[256,256], index: 1, kind: input, shape index: {}]
  %s2 = inlined_call_operand.vmem [shape: f32[256,1], index: 2, kind: input, shape index: {}]
  %s3 = inlined_call_operand.vmem [shape: f32[2,256,1], index: 3, kind: input, shape index: {}]
  %s4 = inlined_call_operand.vmem [shape: f32[2,256,1], index: 4, kind: input, shape index: {}]
  %s5 = inlined_call_operand.vmem [shape: f32[256,1], index: 5, kind: input, shape index: {}]
  %s6 = inlined_call_operand.vmem [shape: f32[256,1], index: 6, kind: input, shape index: {}]
  %s7 = inlined_call_operand.vmem [shape: bf16[128,256], index: 7, kind: input, shape index: {}]
  %s8 = inlined_call_operand.vmem [shape: f32[128,1], index: 8, kind: input, shape index: {}]
  %s9 = inlined_call_operand.vmem [shape: f32[2,128,1], index: 9, kind: input, shape index: {}]
  %s10 = inlined_call_operand.vmem [shape: f32[2,128,1], index: 10, kind: input, shape index: {}]
  %s11 = inlined_call_operand.vmem [shape: f32[128,1], index: 11, kind: input, shape index: {}]
  %s12 = inlined_call_operand.vmem [shape: f32[128,1], index: 12, kind: input, shape index: {}]
  %s13 = inlined_call_operand.vmem [shape: bf16[64,128], index: 13, kind: input, shape index: {}]
  %s14 = inlined_call_operand.vmem [shape: f32[64,1], index: 14, kind: input, shape index: {}]
  %s15 = inlined_call_operand.vmem [shape: f32[2,64,1], index: 15, kind: input, shape index: {}]
  %s16 = inlined_call_operand.vmem [shape: f32[2,64,1], index: 16, kind: input, shape index: {}]
  %s17 = inlined_call_operand.vmem [shape: f32[64,1], index: 17, kind: input, shape index: {}]
  %s18 = inlined_call_operand.vmem [shape: f32[64,1], index: 18, kind: input, shape index: {}]
  %s19 = inlined_call_operand.vmem [shape: bf16[3,64], index: 19, kind: input, shape index: {}]
  %s20 = inlined_call_operand.vmem [shape: f32[3,1], index: 20, kind: input, shape index: {}]
  %s21 = inlined_call_operand.vmem [shape: f32[2,3,256], index: 21, kind: output, shape index: {}]
  %s22 = sld [smem:[#allocation0]]
  $region94: #{tpu_custom_call.1} parent=0
    _
  %s24 = ssub.s32 1, %s22
  %s25 = scalar_select 0, %s24, %s22
  // Predicated region
  $region2: #{tpu_custom_call.1} parent=0 // pred_check
    _
  $region3: #{tpu_custom_call.1} parent=0 // pred_check_branch
    %27 = sbr.rel (0) target = $region5
  $region4: #{tpu_custom_call.1} parent=0 // pred_region
    _
  $region5: #{tpu_custom_call.1} parent=0 // pred_fallthru
    _
  // Predicated region
  $region6: #{tpu_custom_call.1} parent=0 // pred_check
    _
  $region7: #{tpu_custom_call.1} parent=0 // pred_check_branch
    %29 = sbr.rel (0) target = $region9
  $region8: #{tpu_custom_call.1} parent=0 // pred_region
    _
  $region9: #{tpu_custom_call.1} parent=0 // pred_fallthru
    _
  // Predicated region
  $region10: #{tpu_custom_call.1} parent=0 // pred_check
    _
  $region11: #{tpu_custom_call.1} parent=0 // pred_check_branch
    %31 = sbr.rel (0) target = $region13
  $region12: #{tpu_custom_call.1} parent=0 // pred_region
    _
  $region13: #{tpu_custom_call.1} parent=0 // pred_fallthru
    _
  // Predicated region
  $region14: #{tpu_custom_call.1} parent=0 // pred_check
    _
  $region15: #{tpu_custom_call.1} parent=0 // pred_check_branch
    %33 = sbr.rel (0) target = $region17
  $region16: #{tpu_custom_call.1} parent=0 // pred_region
    _
  $region17: #{tpu_custom_call.1} parent=0 // pred_fallthru
    _
  // Predicated region
  $region18: #{tpu_custom_call.1} parent=0 // pred_check
    _
  $region19: #{tpu_custom_call.1} parent=0 // pred_check_branch
    %35 = sbr.rel (0) target = $region21
  $region20: #{tpu_custom_call.1} parent=0 // pred_region
    _
  $region21: #{tpu_custom_call.1} parent=0 // pred_fallthru
    _
  // Predicated region
  $region22: #{tpu_custom_call.1} parent=0 // pred_check
    _
  $region23: #{tpu_custom_call.1} parent=0 // pred_check_branch
    %37 = sbr.rel (0) target = $region25
  $region24: #{tpu_custom_call.1} parent=0 // pred_region
    _
  $region25: #{tpu_custom_call.1} parent=0 // pred_fallthru
    _
  // Predicated region
  $region26: #{tpu_custom_call.1} parent=0 // pred_check
    _
  $region27: #{tpu_custom_call.1} parent=0 // pred_check_branch
    %39 = sbr.rel (0) target = $region29
  $region28: #{tpu_custom_call.1} parent=0 // pred_region
    _
  $region29: #{tpu_custom_call.1} parent=0 // pred_fallthru
    _
  // Predicated region
  $region30: #{tpu_custom_call.1} parent=0 // pred_check
    _
  $region31: #{tpu_custom_call.1} parent=0 // pred_check_branch
    %41 = sbr.rel (0) target = $region33
  $region32: #{tpu_custom_call.1} parent=0 // pred_region
    _
  $region33: #{tpu_custom_call.1} parent=0 // pred_fallthru
    _
  // Predicated region
  $region34: #{tpu_custom_call.1} parent=0 // pred_check
    _
  $region35: #{tpu_custom_call.1} parent=0 // pred_check_branch
    %43 = sbr.rel (0) target = $region37
  $region36: #{tpu_custom_call.1} parent=0 // pred_region
    _
  $region37: #{tpu_custom_call.1} parent=0 // pred_fallthru
    _
  // Predicated region
  $region38: #{tpu_custom_call.1} parent=0 // pred_check
    _
  $region39: #{tpu_custom_call.1} parent=0 // pred_check_branch
    %45 = sbr.rel (0) target = $region41
  $region40: #{tpu_custom_call.1} parent=0 // pred_region
    _
  $region41: #{tpu_custom_call.1} parent=0 // pred_fallthru
    _
  // Predicated region
  $region42: #{tpu_custom_call.1} parent=0 // pred_check
    _
  $region43: #{tpu_custom_call.1} parent=0 // pred_check_branch
    %47 = sbr.rel (0) target = $region45
  $region44: #{tpu_custom_call.1} parent=0 // pred_region
    _
  $region45: #{tpu_custom_call.1} parent=0 // pred_fallthru
    _
  // Predicated region
  $region46: #{tpu_custom_call.1} parent=0 // pred_check
    _
  $region47: #{tpu_custom_call.1} parent=0 // pred_check_branch
    %49 = sbr.rel (0) target = $region49
  $region48: #{tpu_custom_call.1} parent=0 // pred_region
    _
  $region49: #{tpu_custom_call.1} parent=0 // pred_fallthru
    _
  // Predicated region
  $region50: #{tpu_custom_call.1} parent=0 // pred_check
    _
  $region51: #{tpu_custom_call.1} parent=0 // pred_check_branch
    %51 = sbr.rel (0) target = $region53
  $region52: #{tpu_custom_call.1} parent=0 // pred_region
    _
  $region53: #{tpu_custom_call.1} parent=0 // pred_fallthru
    _
  // Predicated region
  $region54: #{tpu_custom_call.1} parent=0 // pred_check
    _
  $region55: #{tpu_custom_call.1} parent=0 // pred_check_branch
    %53 = sbr.rel (0) target = $region57
  $region56: #{tpu_custom_call.1} parent=0 // pred_region
    _
  $region57: #{tpu_custom_call.1} parent=0 // pred_fallthru
    _
  // Predicated region
  $region58: #{tpu_custom_call.1} parent=0 // pred_check
    _
  $region59: #{tpu_custom_call.1} parent=0 // pred_check_branch
    %55 = sbr.rel (0) target = $region61
  $region60: #{tpu_custom_call.1} parent=0 // pred_region
    _
  $region61: #{tpu_custom_call.1} parent=0 // pred_fallthru
    _
  // Predicated region
  $region62: #{tpu_custom_call.1} parent=0 // pred_check
    _
  $region63: #{tpu_custom_call.1} parent=0 // pred_check_branch
    %57 = sbr.rel (0) target = $region65
  $region64: #{tpu_custom_call.1} parent=0 // pred_region
    _
  $region65: #{tpu_custom_call.1} parent=0 // pred_fallthru
    _
  // Predicated region
  $region66: #{tpu_custom_call.1} parent=0 // pred_check
    _
  $region67: #{tpu_custom_call.1} parent=0 // pred_check_branch
    %59 = sbr.rel (0) target = $region69
  $region68: #{tpu_custom_call.1} parent=0 // pred_region
    _
  $region69: #{tpu_custom_call.1} parent=0 // pred_fallthru
    _
  // Predicated region
  $region70: #{tpu_custom_call.1} parent=0 // pred_check
    _
  $region71: #{tpu_custom_call.1} parent=0 // pred_check_branch
    %61 = sbr.rel (0) target = $region73
  $region72: #{tpu_custom_call.1} parent=0 // pred_region
    _
  $region73: #{tpu_custom_call.1} parent=0 // pred_fallthru
    _
  // Predicated region
  $region74: #{tpu_custom_call.1} parent=0 // pred_check
    _
  $region75: #{tpu_custom_call.1} parent=0 // pred_check_branch
    %63 = sbr.rel (0) target = $region77
  $region76: #{tpu_custom_call.1} parent=0 // pred_region
    _
  $region77: #{tpu_custom_call.1} parent=0 // pred_fallthru
    _
  // Predicated region
  $region78: #{tpu_custom_call.1} parent=0 // pred_check
    _
  $region79: #{tpu_custom_call.1} parent=0 // pred_check_branch
    %65 = sbr.rel (0) target = $region81
  $region80: #{tpu_custom_call.1} parent=0 // pred_region
    _
  $region81: #{tpu_custom_call.1} parent=0 // pred_fallthru
    _
  // Predicated region
  $region82: #{tpu_custom_call.1} parent=0 // pred_check
    _
  $region83: #{tpu_custom_call.1} parent=0 // pred_check_branch
    %67 = sbr.rel (0) target = $region85
  $region84: #{tpu_custom_call.1} parent=0 // pred_region
    _
  $region85: #{tpu_custom_call.1} parent=0 // pred_fallthru
    _
  %v69 = vld [vmem:[%s0] sm:$0xff]
  %v70 = vld [vmem:[%s0 + $0x8] sm:$0xff]
  %v71 = vld [vmem:[%s0 + $0x10] sm:$0xff]
  %v72 = vld [vmem:[%s0 + $0x18] sm:$0xff]
  %v73 = vld [vmem:[%s0 + $0x20] sm:$0xff]
  %v74 = vld [vmem:[%s0 + $0x28] sm:$0xff]
  %v75 = vld [vmem:[%s0 + $0x30] sm:$0xff]
  %v76 = vld [vmem:[%s0 + $0x38] sm:$0xff]
  %v77 = vld [vmem:[%s0 + $0x40] sm:$0xff]
  %v78 = vld [vmem:[%s0 + $0x48] sm:$0xff]
  %v79 = vld [vmem:[%s0 + $0x50] sm:$0xff]
  %v80 = vld [vmem:[%s0 + $0x58] sm:$0xff]
  %v81 = vld [vmem:[%s0 + $0x60] sm:$0xff]
  %v82 = vld [vmem:[%s0 + $0x68] sm:$0xff]
  %v83 = vld [vmem:[%s0 + $0x70] sm:$0xff]
  %v84 = vld [vmem:[%s0 + $0x78] sm:$0xff]
  %v85 = vld [vmem:[%s0 + $0x80] sm:$0xff]
  %v86 = vld [vmem:[%s0 + $0x88] sm:$0xff]
  %v87 = vld [vmem:[%s0 + $0x90] sm:$0xff]
  %v88 = vld [vmem:[%s0 + $0x98] sm:$0xff]
  %v89 = vld [vmem:[%s0 + $0xa0] sm:$0xff]
  %v90 = vld [vmem:[%s0 + $0xa8] sm:$0xff]
  %v91 = vld [vmem:[%s0 + $0xb0] sm:$0xff]
  %v92 = vld [vmem:[%s0 + $0xb8] sm:$0xff]
  %v93 = vld [vmem:[%s0 + $0xc0] sm:$0xff]
  %v94 = vld [vmem:[%s0 + $0xc8] sm:$0xff]
  %v95 = vld [vmem:[%s0 + $0xd0] sm:$0xff]
  %v96 = vld [vmem:[%s0 + $0xd8] sm:$0xff]
  %v97 = vld [vmem:[%s0 + $0xe0] sm:$0xff]
  %v98 = vld [vmem:[%s0 + $0xe8] sm:$0xff]
  %v99 = vld [vmem:[%s0 + $0xf0] sm:$0xff]
  %v100 = vld [vmem:[%s0 + $0xf8] sm:$0xff]
  %v101 = vld [vmem:[%s0 + $0x100] sm:$0xff]
  %v102 = vld [vmem:[%s0 + $0x108] sm:$0xff]
  %v103 = vld [vmem:[%s0 + $0x110] sm:$0xff]
  %v104 = vld [vmem:[%s0 + $0x118] sm:$0xff]
  %v105 = vld [vmem:[%s0 + $0x120] sm:$0xff]
  %v106 = vld [vmem:[%s0 + $0x128] sm:$0xff]
  %v107 = vld [vmem:[%s0 + $0x130] sm:$0xff]
  %v108 = vld [vmem:[%s0 + $0x138] sm:$0xff]
  %v109 = vld [vmem:[%s0 + $0x140] sm:$0xff]
  %v110 = vld [vmem:[%s0 + $0x148] sm:$0xff]
  %v111 = vld [vmem:[%s0 + $0x150] sm:$0xff]
  %v112 = vld [vmem:[%s0 + $0x158] sm:$0xff]
  %v113 = vld [vmem:[%s0 + $0x160] sm:$0xff]
  %v114 = vld [vmem:[%s0 + $0x168] sm:$0xff]
  %v115 = vld [vmem:[%s0 + $0x170] sm:$0xff]
  %v116 = vld [vmem:[%s0 + $0x178] sm:$0xff]
  %v117 = vld [vmem:[%s0 + $0x180] sm:$0xff]
  %v118 = vld [vmem:[%s0 + $0x188] sm:$0xff]
  %v119 = vld [vmem:[%s0 + $0x190] sm:$0xff]
  %v120 = vld [vmem:[%s0 + $0x198] sm:$0xff]
  %v121 = vld [vmem:[%s0 + $0x1a0] sm:$0xff]
  %v122 = vld [vmem:[%s0 + $0x1a8] sm:$0xff]
  %v123 = vld [vmem:[%s0 + $0x1b0] sm:$0xff]
  %v124 = vld [vmem:[%s0 + $0x1b8] sm:$0xff]
  %v125 = vld [vmem:[%s0 + $0x1c0] sm:$0xff]
  %v126 = vld [vmem:[%s0 + $0x1c8] sm:$0xff]
  %v127 = vld [vmem:[%s0 + $0x1d0] sm:$0xff]
  %v128 = vld [vmem:[%s0 + $0x1d8] sm:$0xff]
  %v129 = vld [vmem:[%s0 + $0x1e0] sm:$0xff]
  %v130 = vld [vmem:[%s0 + $0x1e8] sm:$0xff]
  %v131 = vld [vmem:[%s0 + $0x1f0] sm:$0xff]
  %v132 = vld [vmem:[%s0 + $0x1f8] sm:$0xff]
  %s133 = scalar_lea.vmem %s0, 512
  %v134 = vld [vmem:[%s133] sm:$0xff]
  %v135 = vld [vmem:[%s133 + $0x8] sm:$0xff]
  %v136 = vld [vmem:[%s133 + $0x10] sm:$0xff]
  %v137 = vld [vmem:[%s133 + $0x18] sm:$0xff]
  %v138 = vld [vmem:[%s133 + $0x20] sm:$0xff]
  %v139 = vld [vmem:[%s133 + $0x28] sm:$0xff]
  %v140 = vld [vmem:[%s133 + $0x30] sm:$0xff]
  %v141 = vld [vmem:[%s133 + $0x38] sm:$0xff]
  %v142 = vld [vmem:[%s133 + $0x40] sm:$0xff]
  %v143 = vld [vmem:[%s133 + $0x48] sm:$0xff]
  %v144 = vld [vmem:[%s133 + $0x50] sm:$0xff]
  %v145 = vld [vmem:[%s133 + $0x58] sm:$0xff]
  %v146 = vld [vmem:[%s133 + $0x60] sm:$0xff]
  %v147 = vld [vmem:[%s133 + $0x68] sm:$0xff]
  %v148 = vld [vmem:[%s133 + $0x70] sm:$0xff]
  %v149 = vld [vmem:[%s133 + $0x78] sm:$0xff]
  %v150 = vld [vmem:[%s133 + $0x80] sm:$0xff]
  %v151 = vld [vmem:[%s133 + $0x88] sm:$0xff]
  %v152 = vld [vmem:[%s133 + $0x90] sm:$0xff]
  %v153 = vld [vmem:[%s133 + $0x98] sm:$0xff]
  %v154 = vld [vmem:[%s133 + $0xa0] sm:$0xff]
  %v155 = vld [vmem:[%s133 + $0xa8] sm:$0xff]
  %v156 = vld [vmem:[%s133 + $0xb0] sm:$0xff]
  %v157 = vld [vmem:[%s133 + $0xb8] sm:$0xff]
  %v158 = vld [vmem:[%s133 + $0xc0] sm:$0xff]
  %v159 = vld [vmem:[%s133 + $0xc8] sm:$0xff]
  %v160 = vld [vmem:[%s133 + $0xd0] sm:$0xff]
  %v161 = vld [vmem:[%s133 + $0xd8] sm:$0xff]
  %v162 = vld [vmem:[%s133 + $0xe0] sm:$0xff]
  %v163 = vld [vmem:[%s133 + $0xe8] sm:$0xff]
  %v164 = vld [vmem:[%s133 + $0xf0] sm:$0xff]
  %v165 = vld [vmem:[%s133 + $0xf8] sm:$0xff]
  %v166 = vld [vmem:[%s133 + $0x100] sm:$0xff]
  %v167 = vld [vmem:[%s133 + $0x108] sm:$0xff]
  %v168 = vld [vmem:[%s133 + $0x110] sm:$0xff]
  %v169 = vld [vmem:[%s133 + $0x118] sm:$0xff]
  %v170 = vld [vmem:[%s133 + $0x120] sm:$0xff]
  %v171 = vld [vmem:[%s133 + $0x128] sm:$0xff]
  %v172 = vld [vmem:[%s133 + $0x130] sm:$0xff]
  %v173 = vld [vmem:[%s133 + $0x138] sm:$0xff]
  %v174 = vld [vmem:[%s133 + $0x140] sm:$0xff]
  %v175 = vld [vmem:[%s133 + $0x148] sm:$0xff]
  %v176 = vld [vmem:[%s133 + $0x150] sm:$0xff]
  %v177 = vld [vmem:[%s133 + $0x158] sm:$0xff]
  %v178 = vld [vmem:[%s133 + $0x160] sm:$0xff]
  %v179 = vld [vmem:[%s133 + $0x168] sm:$0xff]
  %v180 = vld [vmem:[%s133 + $0x170] sm:$0xff]
  %v181 = vld [vmem:[%s133 + $0x178] sm:$0xff]
  %v182 = vld [vmem:[%s133 + $0x180] sm:$0xff]
  %v183 = vld [vmem:[%s133 + $0x188] sm:$0xff]
  %v184 = vld [vmem:[%s133 + $0x190] sm:$0xff]
  %v185 = vld [vmem:[%s133 + $0x198] sm:$0xff]
  %v186 = vld [vmem:[%s133 + $0x1a0] sm:$0xff]
  %v187 = vld [vmem:[%s133 + $0x1a8] sm:$0xff]
  %v188 = vld [vmem:[%s133 + $0x1b0] sm:$0xff]
  %v189 = vld [vmem:[%s133 + $0x1b8] sm:$0xff]
  %v190 = vld [vmem:[%s133 + $0x1c0] sm:$0xff]
  %v191 = vld [vmem:[%s133 + $0x1c8] sm:$0xff]
  %v192 = vld [vmem:[%s133 + $0x1d0] sm:$0xff]
  %v193 = vld [vmem:[%s133 + $0x1d8] sm:$0xff]
  %v194 = vld [vmem:[%s133 + $0x1e0] sm:$0xff]
  %v195 = vld [vmem:[%s133 + $0x1e8] sm:$0xff]
  %v196 = vld [vmem:[%s133 + $0x1f0] sm:$0xff]
  %v197 = vld [vmem:[%s133 + $0x1f8] sm:$0xff]
  %v198 = vld [vmem:[%s1] sm:$0xff]
  %v199 = vld [vmem:[%s1 + $0x8] sm:$0xff]
  %v200 = vld [vmem:[%s1 + $0x10] sm:$0xff]
  %v201 = vld [vmem:[%s1 + $0x18] sm:$0xff]
  %v202 = vld [vmem:[%s1 + $0x20] sm:$0xff]
  %v203 = vld [vmem:[%s1 + $0x28] sm:$0xff]
  %v204 = vld [vmem:[%s1 + $0x30] sm:$0xff]
  %v205 = vld [vmem:[%s1 + $0x38] sm:$0xff]
  %v206 = vld [vmem:[%s1 + $0x40] sm:$0xff]
  %v207 = vld [vmem:[%s1 + $0x48] sm:$0xff]
  %v208 = vld [vmem:[%s1 + $0x50] sm:$0xff]
  %v209 = vld [vmem:[%s1 + $0x58] sm:$0xff]
  %v210 = vld [vmem:[%s1 + $0x60] sm:$0xff]
  %v211 = vld [vmem:[%s1 + $0x68] sm:$0xff]
  %v212 = vld [vmem:[%s1 + $0x70] sm:$0xff]
  %v213 = vld [vmem:[%s1 + $0x78] sm:$0xff]
  %v214 = vld [vmem:[%s1 + $0x80] sm:$0xff]
  %v215 = vld [vmem:[%s1 + $0x88] sm:$0xff]
  %v216 = vld [vmem:[%s1 + $0x90] sm:$0xff]
  %v217 = vld [vmem:[%s1 + $0x98] sm:$0xff]
  %v218 = vld [vmem:[%s1 + $0xa0] sm:$0xff]
  %v219 = vld [vmem:[%s1 + $0xa8] sm:$0xff]
  %v220 = vld [vmem:[%s1 + $0xb0] sm:$0xff]
  %v221 = vld [vmem:[%s1 + $0xb8] sm:$0xff]
  %v222 = vld [vmem:[%s1 + $0xc0] sm:$0xff]
  %v223 = vld [vmem:[%s1 + $0xc8] sm:$0xff]
  %v224 = vld [vmem:[%s1 + $0xd0] sm:$0xff]
  %v225 = vld [vmem:[%s1 + $0xd8] sm:$0xff]
  %v226 = vld [vmem:[%s1 + $0xe0] sm:$0xff]
  %v227 = vld [vmem:[%s1 + $0xe8] sm:$0xff]
  %v228 = vld [vmem:[%s1 + $0xf0] sm:$0xff]
  %v229 = vld [vmem:[%s1 + $0xf8] sm:$0xff]
  %v230 = vld [vmem:[%s2] sm:$0xff]
  %v231 = vld [vmem:[%s2 + $0x8] sm:$0xff]
  %v232 = vld [vmem:[%s2 + $0x10] sm:$0xff]
  %v233 = vld [vmem:[%s2 + $0x18] sm:$0xff]
  %v234 = vld [vmem:[%s2 + $0x20] sm:$0xff]
  %v235 = vld [vmem:[%s2 + $0x28] sm:$0xff]
  %v236 = vld [vmem:[%s2 + $0x30] sm:$0xff]
  %v237 = vld [vmem:[%s2 + $0x38] sm:$0xff]
  %v238 = vld [vmem:[%s2 + $0x40] sm:$0xff]
  %v239 = vld [vmem:[%s2 + $0x48] sm:$0xff]
  %v240 = vld [vmem:[%s2 + $0x50] sm:$0xff]
  %v241 = vld [vmem:[%s2 + $0x58] sm:$0xff]
  %v242 = vld [vmem:[%s2 + $0x60] sm:$0xff]
  %v243 = vld [vmem:[%s2 + $0x68] sm:$0xff]
  %v244 = vld [vmem:[%s2 + $0x70] sm:$0xff]
  %v245 = vld [vmem:[%s2 + $0x78] sm:$0xff]
  %v246 = vld [vmem:[%s2 + $0x80] sm:$0xff]
  %v247 = vld [vmem:[%s2 + $0x88] sm:$0xff]
  %v248 = vld [vmem:[%s2 + $0x90] sm:$0xff]
  %v249 = vld [vmem:[%s2 + $0x98] sm:$0xff]
  %v250 = vld [vmem:[%s2 + $0xa0] sm:$0xff]
  %v251 = vld [vmem:[%s2 + $0xa8] sm:$0xff]
  %v252 = vld [vmem:[%s2 + $0xb0] sm:$0xff]
  %v253 = vld [vmem:[%s2 + $0xb8] sm:$0xff]
  %v254 = vld [vmem:[%s2 + $0xc0] sm:$0xff]
  %v255 = vld [vmem:[%s2 + $0xc8] sm:$0xff]
  %v256 = vld [vmem:[%s2 + $0xd0] sm:$0xff]
  %v257 = vld [vmem:[%s2 + $0xd8] sm:$0xff]
  %v258 = vld [vmem:[%s2 + $0xe0] sm:$0xff]
  %v259 = vld [vmem:[%s2 + $0xe8] sm:$0xff]
  %v260 = vld [vmem:[%s2 + $0xf0] sm:$0xff]
  %v261 = vld [vmem:[%s2 + $0xf8] sm:$0xff]
  %v262 = vpack.c.bf16 %v71, %v69
  %v263 = vpack.c.bf16 %v72, %v70
  %v264 = vpack.c.bf16 %v75, %v73
  %v265 = vpack.c.bf16 %v76, %v74
  %v266 = vpack.c.bf16 %v79, %v77
  %v267 = vpack.c.bf16 %v80, %v78
  %v268 = vpack.c.bf16 %v83, %v81
  %v269 = vpack.c.bf16 %v84, %v82
  %v270 = vpack.c.bf16 %v87, %v85
  %v271 = vpack.c.bf16 %v88, %v86
  %v272 = vpack.c.bf16 %v91, %v89
  %v273 = vpack.c.bf16 %v92, %v90
  %v274 = vpack.c.bf16 %v95, %v93
  %v275 = vpack.c.bf16 %v96, %v94
  %v276 = vpack.c.bf16 %v99, %v97
  %v277 = vpack.c.bf16 %v100, %v98
  %v278 = vpack.c.bf16 %v103, %v101
  %v279 = vpack.c.bf16 %v104, %v102
  %v280 = vpack.c.bf16 %v107, %v105
  %v281 = vpack.c.bf16 %v108, %v106
  %v282 = vpack.c.bf16 %v111, %v109
  %v283 = vpack.c.bf16 %v112, %v110
  %v284 = vpack.c.bf16 %v115, %v113
  %v285 = vpack.c.bf16 %v116, %v114
  %v286 = vpack.c.bf16 %v119, %v117
  %v287 = vpack.c.bf16 %v120, %v118
  %v288 = vpack.c.bf16 %v123, %v121
  %v289 = vpack.c.bf16 %v124, %v122
  %v290 = vpack.c.bf16 %v127, %v125
  %v291 = vpack.c.bf16 %v128, %v126
  %v292 = vpack.c.bf16 %v131, %v129
  %v293 = vpack.c.bf16 %v132, %v130
  %295 = vset.pattern.permute.xlu0 0
  %296 = vperm.xlu0 %295, %v230
  %v297 = vpop.permute.xlu0 %296
  %300 = vset.pattern.permute.xlu0 0
  %301 = vperm.xlu0 %300, %v231
  %v302 = vpop.permute.xlu0 %301
  %305 = vset.pattern.permute.xlu0 0
  %306 = vperm.xlu0 %305, %v232
  %v307 = vpop.permute.xlu0 %306
  %310 = vset.pattern.permute.xlu0 0
  %311 = vperm.xlu0 %310, %v233
  %v312 = vpop.permute.xlu0 %311
  %315 = vset.pattern.permute.xlu0 0
  %316 = vperm.xlu0 %315, %v234
  %v317 = vpop.permute.xlu0 %316
  %320 = vset.pattern.permute.xlu0 0
  %321 = vperm.xlu0 %320, %v235
  %v322 = vpop.permute.xlu0 %321
  %325 = vset.pattern.permute.xlu0 0
  %326 = vperm.xlu0 %325, %v236
  %v327 = vpop.permute.xlu0 %326
  %330 = vset.pattern.permute.xlu0 0
  %331 = vperm.xlu0 %330, %v237
  %v332 = vpop.permute.xlu0 %331
  %335 = vset.pattern.permute.xlu0 0
  %336 = vperm.xlu0 %335, %v238
  %v337 = vpop.permute.xlu0 %336
  %340 = vset.pattern.permute.xlu0 0
  %341 = vperm.xlu0 %340, %v239
  %v342 = vpop.permute.xlu0 %341
  %345 = vset.pattern.permute.xlu0 0
  %346 = vperm.xlu0 %345, %v240
  %v347 = vpop.permute.xlu0 %346
  %350 = vset.pattern.permute.xlu0 0
  %351 = vperm.xlu0 %350, %v241
  %v352 = vpop.permute.xlu0 %351
  %355 = vset.pattern.permute.xlu0 0
  %356 = vperm.xlu0 %355, %v242
  %v357 = vpop.permute.xlu0 %356
  %360 = vset.pattern.permute.xlu0 0
  %361 = vperm.xlu0 %360, %v243
  %v362 = vpop.permute.xlu0 %361
  %365 = vset.pattern.permute.xlu0 0
  %366 = vperm.xlu0 %365, %v244
  %v367 = vpop.permute.xlu0 %366
  %370 = vset.pattern.permute.xlu0 0
  %371 = vperm.xlu0 %370, %v245
  %v372 = vpop.permute.xlu0 %371
  %375 = vset.pattern.permute.xlu0 0
  %376 = vperm.xlu0 %375, %v246
  %v377 = vpop.permute.xlu0 %376
  %380 = vset.pattern.permute.xlu0 0
  %381 = vperm.xlu0 %380, %v247
  %v382 = vpop.permute.xlu0 %381
  %385 = vset.pattern.permute.xlu0 0
  %386 = vperm.xlu0 %385, %v248
  %v387 = vpop.permute.xlu0 %386
  %390 = vset.pattern.permute.xlu0 0
  %391 = vperm.xlu0 %390, %v249
  %v392 = vpop.permute.xlu0 %391
  %395 = vset.pattern.permute.xlu0 0
  %396 = vperm.xlu0 %395, %v250
  %v397 = vpop.permute.xlu0 %396
  %400 = vset.pattern.permute.xlu0 0
  %401 = vperm.xlu0 %400, %v251
  %v402 = vpop.permute.xlu0 %401
  %405 = vset.pattern.permute.xlu0 0
  %406 = vperm.xlu0 %405, %v252
  %v407 = vpop.permute.xlu0 %406
  %410 = vset.pattern.permute.xlu0 0
  %411 = vperm.xlu0 %410, %v253
  %v412 = vpop.permute.xlu0 %411
  %415 = vset.pattern.permute.xlu0 0
  %416 = vperm.xlu0 %415, %v254
  %v417 = vpop.permute.xlu0 %416
  %420 = vset.pattern.permute.xlu0 0
  %421 = vperm.xlu0 %420, %v255
  %v422 = vpop.permute.xlu0 %421
  %425 = vset.pattern.permute.xlu0 0
  %426 = vperm.xlu0 %425, %v256
  %v427 = vpop.permute.xlu0 %426
  %430 = vset.pattern.permute.xlu0 0
  %431 = vperm.xlu0 %430, %v257
  %v432 = vpop.permute.xlu0 %431
  %435 = vset.pattern.permute.xlu0 0
  %436 = vperm.xlu0 %435, %v258
  %v437 = vpop.permute.xlu0 %436
  %440 = vset.pattern.permute.xlu0 0
  %441 = vperm.xlu0 %440, %v259
  %v442 = vpop.permute.xlu0 %441
  %445 = vset.pattern.permute.xlu0 0
  %446 = vperm.xlu0 %445, %v260
  %v447 = vpop.permute.xlu0 %446
  %450 = vset.pattern.permute.xlu0 0
  %451 = vperm.xlu0 %450, %v261
  %v452 = vpop.permute.xlu0 %451
  %v486 = vunpack.c.l.b16 %v198
  %v487 = vunpack.c.h.b16 %v198
  %v488 = vunpack.c.l.b16 %v199
  %v489 = vunpack.c.h.b16 %v199
  %v490 = vunpack.c.l.b16 %v200
  %v491 = vunpack.c.h.b16 %v200
  %v492 = vunpack.c.l.b16 %v201
  %v493 = vunpack.c.h.b16 %v201
  %v494 = vunpack.c.l.b16 %v202
  %v495 = vunpack.c.h.b16 %v202
  %v496 = vunpack.c.l.b16 %v203
  %v497 = vunpack.c.h.b16 %v203
  %v498 = vunpack.c.l.b16 %v204
  %v499 = vunpack.c.h.b16 %v204
  %v500 = vunpack.c.l.b16 %v205
  %v501 = vunpack.c.h.b16 %v205
  %v502 = vunpack.c.l.b16 %v206
  %v503 = vunpack.c.h.b16 %v206
  %v504 = vunpack.c.l.b16 %v207
  %v505 = vunpack.c.h.b16 %v207
  %v506 = vunpack.c.l.b16 %v208
  %v507 = vunpack.c.h.b16 %v208
  %v508 = vunpack.c.l.b16 %v209
  %v509 = vunpack.c.h.b16 %v209
  %v510 = vunpack.c.l.b16 %v210
  %v511 = vunpack.c.h.b16 %v210
  %v512 = vunpack.c.l.b16 %v211
  %v513 = vunpack.c.h.b16 %v211
  %v514 = vunpack.c.l.b16 %v212
  %v515 = vunpack.c.h.b16 %v212
  %v516 = vunpack.c.l.b16 %v213
  %v517 = vunpack.c.h.b16 %v213
  %v518 = vunpack.c.l.b16 %v214
  %v519 = vunpack.c.h.b16 %v214
  %v520 = vunpack.c.l.b16 %v215
  %v521 = vunpack.c.h.b16 %v215
  %v522 = vunpack.c.l.b16 %v216
  %v523 = vunpack.c.h.b16 %v216
  %v524 = vunpack.c.l.b16 %v217
  %v525 = vunpack.c.h.b16 %v217
  %v526 = vunpack.c.l.b16 %v218
  %v527 = vunpack.c.h.b16 %v218
  %v528 = vunpack.c.l.b16 %v219
  %v529 = vunpack.c.h.b16 %v219
  %v530 = vunpack.c.l.b16 %v220
  %v531 = vunpack.c.h.b16 %v220
  %v532 = vunpack.c.l.b16 %v221
  %v533 = vunpack.c.h.b16 %v221
  %v534 = vunpack.c.l.b16 %v222
  %v535 = vunpack.c.h.b16 %v222
  %v536 = vunpack.c.l.b16 %v223
  %v537 = vunpack.c.h.b16 %v223
  %v538 = vunpack.c.l.b16 %v224
  %v539 = vunpack.c.h.b16 %v224
  %v540 = vunpack.c.l.b16 %v225
  %v541 = vunpack.c.h.b16 %v225
  %v542 = vunpack.c.l.b16 %v226
  %v543 = vunpack.c.h.b16 %v226
  %v544 = vunpack.c.l.b16 %v227
  %v545 = vunpack.c.h.b16 %v227
  %v546 = vunpack.c.l.b16 %v228
  %v547 = vunpack.c.h.b16 %v228
  %v548 = vunpack.c.l.b16 %v229
  %v549 = vunpack.c.h.b16 %v229
  %v550 = vpack.c.b16 %v488, %v486
  %v551 = vpack.c.b16 %v489, %v487
  %v552 = vpack.c.b16 %v492, %v490
  %v553 = vpack.c.b16 %v493, %v491
  %v554 = vpack.c.b16 %v496, %v494
  %v555 = vpack.c.b16 %v497, %v495
  %v556 = vpack.c.b16 %v500, %v498
  %v557 = vpack.c.b16 %v501, %v499
  %v558 = vpack.c.b16 %v504, %v502
  %v559 = vpack.c.b16 %v505, %v503
  %v560 = vpack.c.b16 %v508, %v506
  %v561 = vpack.c.b16 %v509, %v507
  %v562 = vpack.c.b16 %v512, %v510
  %v563 = vpack.c.b16 %v513, %v511
  %v564 = vpack.c.b16 %v516, %v514
  %v565 = vpack.c.b16 %v517, %v515
  %v566 = vpack.c.b16 %v520, %v518
  %v567 = vpack.c.b16 %v521, %v519
  %v568 = vpack.c.b16 %v524, %v522
  %v569 = vpack.c.b16 %v525, %v523
  %v570 = vpack.c.b16 %v528, %v526
  %v571 = vpack.c.b16 %v529, %v527
  %v572 = vpack.c.b16 %v532, %v530
  %v573 = vpack.c.b16 %v533, %v531
  %v574 = vpack.c.b16 %v536, %v534
  %v575 = vpack.c.b16 %v537, %v535
  %v576 = vpack.c.b16 %v540, %v538
  %v577 = vpack.c.b16 %v541, %v539
  %v578 = vpack.c.b16 %v544, %v542
  %v579 = vpack.c.b16 %v545, %v543
  %v580 = vpack.c.b16 %v548, %v546
  %v581 = vpack.c.b16 %v549, %v547
  %614 = vmatprep.subr.bf16.mxu0 %v277
  %615 = vmatpush1.bf16.msra.mxu0 %v276
  %616 = vmatprep.subr.bf16.mxu0 %v275
  %617 = vmatpush1.bf16.msra.mxu0 %v274
  %618 = vmatprep.subr.bf16.mxu0 %v273
  %619 = vmatpush1.bf16.msra.mxu0 %v272
  %620 = vmatprep.subr.bf16.mxu0 %v271
  %621 = vmatpush1.bf16.msra.mxu0 %v270
  %622 = vmatprep.subr.bf16.mxu0 %v269
  %623 = vmatpush1.bf16.msra.mxu0 %v268
  %624 = vmatprep.subr.bf16.mxu0 %v267
  %625 = vmatpush1.bf16.msra.mxu0 %v266
  %626 = vmatprep.subr.bf16.mxu0 %v265
  %627 = vmatpush1.bf16.msra.mxu0 %v264
  %628 = vmatprep.subr.bf16.mxu0 %v263
  %629 = vmatpush1.bf16.msra.mxu0 %v262
  %630 = vmatprep.subr.bf16.mxu0 %v293
  %631 = vmatpush2.bf16.msra.mxu0 %v292
  %632 = vmatprep.subr.bf16.mxu0 %v291
  %633 = vmatpush2.bf16.msra.mxu0 %v290
  %634 = vmatprep.subr.bf16.mxu0 %v289
  %635 = vmatpush2.bf16.msra.mxu0 %v288
  %636 = vmatprep.subr.bf16.mxu0 %v287
  %637 = vmatpush2.bf16.msra.mxu0 %v286
  %638 = vmatprep.subr.bf16.mxu0 %v285
  %639 = vmatpush2.bf16.msra.mxu0 %v284
  %640 = vmatprep.subr.bf16.mxu0 %v283
  %641 = vmatpush2.bf16.msra.mxu0 %v282
  %642 = vmatprep.subr.bf16.mxu0 %v281
  %643 = vmatpush2.bf16.msra.mxu0 %v280
  %644 = vmatprep.subr.bf16.mxu0 %v279
  %645 = vmatpush2.bf16.msra.mxu0 %v278
  %646 = vmatprep.mubr.bf16.mxu0 %v551
  %647 = vmatmul.mubr.bf16.gmra.mxu0 %v550
  %v648 = vpop.f32.mrf.mxu0
  %v649 = vadd.f32 %v297, %v648
  %v650 = vpop.f32.mrf.mxu0
  %v651 = vadd.f32 %v297, %v650
  %v652 = vpop.f32.mrf.mxu0
  %v653 = vadd.f32 %v302, %v652
  %v654 = vpop.f32.mrf.mxu0
  %v655 = vadd.f32 %v302, %v654
  %656 = vmatprep.mubr.bf16.mxu0 %v553
  %657 = vmatmul.mubr.bf16.gmra.mxu0 %v552
  %v658 = vpop.f32.mrf.mxu0
  %v659 = vadd.f32 %v307, %v658
  %v660 = vpop.f32.mrf.mxu0
  %v661 = vadd.f32 %v307, %v660
  %v662 = vpop.f32.mrf.mxu0
  %v663 = vadd.f32 %v312, %v662
  %v664 = vpop.f32.mrf.mxu0
  %v665 = vadd.f32 %v312, %v664
  %666 = vmatprep.mubr.bf16.mxu0 %v555
  %667 = vmatmul.mubr.bf16.gmra.mxu0 %v554
  %v668 = vpop.f32.mrf.mxu0
  %v669 = vadd.f32 %v317, %v668
  %v670 = vpop.f32.mrf.mxu0
  %v671 = vadd.f32 %v317, %v670
  %v672 = vpop.f32.mrf.mxu0
  %v673 = vadd.f32 %v322, %v672
  %v674 = vpop.f32.mrf.mxu0
  %v675 = vadd.f32 %v322, %v674
  %676 = vmatprep.mubr.bf16.mxu0 %v557
  %677 = vmatmul.mubr.bf16.gmra.mxu0 %v556
  %v678 = vpop.f32.mrf.mxu0
  %v679 = vadd.f32 %v327, %v678
  %v680 = vpop.f32.mrf.mxu0
  %v681 = vadd.f32 %v327, %v680
  %v682 = vpop.f32.mrf.mxu0
  %v683 = vadd.f32 %v332, %v682
  %v684 = vpop.f32.mrf.mxu0
  %v685 = vadd.f32 %v332, %v684
  %686 = vmatprep.mubr.bf16.mxu0 %v559
  %687 = vmatmul.mubr.bf16.gmra.mxu0 %v558
  %v688 = vpop.f32.mrf.mxu0
  %v689 = vadd.f32 %v337, %v688
  %v690 = vpop.f32.mrf.mxu0
  %v691 = vadd.f32 %v337, %v690
  %v692 = vpop.f32.mrf.mxu0
  %v693 = vadd.f32 %v342, %v692
  %v694 = vpop.f32.mrf.mxu0
  %v695 = vadd.f32 %v342, %v694
  %696 = vmatprep.mubr.bf16.mxu0 %v561
  %697 = vmatmul.mubr.bf16.gmra.mxu0 %v560
  %v698 = vpop.f32.mrf.mxu0
  %v699 = vadd.f32 %v347, %v698
  %v700 = vpop.f32.mrf.mxu0
  %v701 = vadd.f32 %v347, %v700
  %v702 = vpop.f32.mrf.mxu0
  %v703 = vadd.f32 %v352, %v702
  %v704 = vpop.f32.mrf.mxu0
  %v705 = vadd.f32 %v352, %v704
  %706 = vmatprep.mubr.bf16.mxu0 %v563
  %707 = vmatmul.mubr.bf16.gmra.mxu0 %v562
  %v708 = vpop.f32.mrf.mxu0
  %v709 = vadd.f32 %v357, %v708
  %v710 = vpop.f32.mrf.mxu0
  %v711 = vadd.f32 %v357, %v710
  %v712 = vpop.f32.mrf.mxu0
  %v713 = vadd.f32 %v362, %v712
  %v714 = vpop.f32.mrf.mxu0
  %v715 = vadd.f32 %v362, %v714
  %716 = vmatprep.mubr.bf16.mxu0 %v565
  %717 = vmatmul.mubr.bf16.gmra.mxu0 %v564
  %v718 = vpop.f32.mrf.mxu0
  %v719 = vadd.f32 %v367, %v718
  %v720 = vpop.f32.mrf.mxu0
  %v721 = vadd.f32 %v367, %v720
  %v722 = vpop.f32.mrf.mxu0
  %v723 = vadd.f32 %v372, %v722
  %v724 = vpop.f32.mrf.mxu0
  %v725 = vadd.f32 %v372, %v724
  %726 = vmatprep.mubr.bf16.mxu0 %v567
  %727 = vmatmul.mubr.bf16.gmra.mxu0 %v566
  %v728 = vpop.f32.mrf.mxu0
  %v729 = vadd.f32 %v377, %v728
  %v730 = vpop.f32.mrf.mxu0
  %v731 = vadd.f32 %v377, %v730
  %v732 = vpop.f32.mrf.mxu0
  %v733 = vadd.f32 %v382, %v732
  %v734 = vpop.f32.mrf.mxu0
  %v735 = vadd.f32 %v382, %v734
  %736 = vmatprep.mubr.bf16.mxu0 %v569
  %737 = vmatmul.mubr.bf16.gmra.mxu0 %v568
  %v738 = vpop.f32.mrf.mxu0
  %v739 = vadd.f32 %v387, %v738
  %v740 = vpop.f32.mrf.mxu0
  %v741 = vadd.f32 %v387, %v740
  %v742 = vpop.f32.mrf.mxu0
  %v743 = vadd.f32 %v392, %v742
  %v744 = vpop.f32.mrf.mxu0
  %v745 = vadd.f32 %v392, %v744
  %746 = vmatprep.mubr.bf16.mxu0 %v571
  %747 = vmatmul.mubr.bf16.gmra.mxu0 %v570
  %v748 = vpop.f32.mrf.mxu0
  %v749 = vadd.f32 %v397, %v748
  %v750 = vpop.f32.mrf.mxu0
  %v751 = vadd.f32 %v397, %v750
  %v752 = vpop.f32.mrf.mxu0
  %v753 = vadd.f32 %v402, %v752
  %v754 = vpop.f32.mrf.mxu0
  %v755 = vadd.f32 %v402, %v754
  %756 = vmatprep.mubr.bf16.mxu0 %v573
  %757 = vmatmul.mubr.bf16.gmra.mxu0 %v572
  %v758 = vpop.f32.mrf.mxu0
  %v759 = vadd.f32 %v407, %v758
  %v760 = vpop.f32.mrf.mxu0
  %v761 = vadd.f32 %v407, %v760
  %v762 = vpop.f32.mrf.mxu0
  %v763 = vadd.f32 %v412, %v762
  %v764 = vpop.f32.mrf.mxu0
  %v765 = vadd.f32 %v412, %v764
  %766 = vmatprep.mubr.bf16.mxu0 %v575
  %767 = vmatmul.mubr.bf16.gmra.mxu0 %v574
  %v768 = vpop.f32.mrf.mxu0
  %v769 = vadd.f32 %v417, %v768
  %v770 = vpop.f32.mrf.mxu0
  %v771 = vadd.f32 %v417, %v770
  %v772 = vpop.f32.mrf.mxu0
  %v773 = vadd.f32 %v422, %v772
  %v774 = vpop.f32.mrf.mxu0
  %v775 = vadd.f32 %v422, %v774
  %776 = vmatprep.mubr.bf16.mxu0 %v577
  %777 = vmatmul.mubr.bf16.gmra.mxu0 %v576
  %v778 = vpop.f32.mrf.mxu0
  %v779 = vadd.f32 %v427, %v778
  %v780 = vpop.f32.mrf.mxu0
  %v781 = vadd.f32 %v427, %v780
  %v782 = vpop.f32.mrf.mxu0
  %v783 = vadd.f32 %v432, %v782
  %v784 = vpop.f32.mrf.mxu0
  %v785 = vadd.f32 %v432, %v784
  %786 = vmatprep.mubr.bf16.mxu0 %v579
  %787 = vmatmul.mubr.bf16.gmra.mxu0 %v578
  %v788 = vpop.f32.mrf.mxu0
  %v789 = vadd.f32 %v437, %v788
  %v790 = vpop.f32.mrf.mxu0
  %v791 = vadd.f32 %v437, %v790
  %v792 = vpop.f32.mrf.mxu0
  %v793 = vadd.f32 %v442, %v792
  %v794 = vpop.f32.mrf.mxu0
  %v795 = vadd.f32 %v442, %v794
  %796 = vmatprep.mubr.bf16.mxu0 %v581
  %797 = vmatmul.mubr.bf16.gmra.mxu0 %v580
  %v798 = vpop.f32.mrf.mxu0
  %v799 = vadd.f32 %v447, %v798
  %v800 = vpop.f32.mrf.mxu0
  %v801 = vadd.f32 %v447, %v800
  %v802 = vpop.f32.mrf.mxu0
  %v803 = vadd.f32 %v452, %v802
  %v804 = vpop.f32.mrf.mxu0
  %v805 = vadd.f32 %v452, %v804
  %806 = vdwg.mxu0
  %v807 = vadd.f32 %v649, %v651
  %808 = vadd.xlane.f32.xlu0 %v807
  %v809 = vpop.xlane.xlu0 %808
  %v810 = vadd.f32 %v653, %v655
  %811 = vadd.xlane.f32.xlu0 %v810
  %v812 = vpop.xlane.xlu0 %811
  %v813 = vadd.f32 %v659, %v661
  %814 = vadd.xlane.f32.xlu0 %v813
  %v815 = vpop.xlane.xlu0 %814
  %v816 = vadd.f32 %v663, %v665
  %817 = vadd.xlane.f32.xlu0 %v816
  %v818 = vpop.xlane.xlu0 %817
  %v819 = vadd.f32 %v669, %v671
  %820 = vadd.xlane.f32.xlu0 %v819
  %v821 = vpop.xlane.xlu0 %820
  %v822 = vadd.f32 %v673, %v675
  %823 = vadd.xlane.f32.xlu0 %v822
  %v824 = vpop.xlane.xlu0 %823
  %v825 = vadd.f32 %v679, %v681
  %826 = vadd.xlane.f32.xlu0 %v825
  %v827 = vpop.xlane.xlu0 %826
  %v828 = vadd.f32 %v683, %v685
  %829 = vadd.xlane.f32.xlu0 %v828
  %v830 = vpop.xlane.xlu0 %829
  %v831 = vadd.f32 %v689, %v691
  %832 = vadd.xlane.f32.xlu0 %v831
  %v833 = vpop.xlane.xlu0 %832
  %v834 = vadd.f32 %v693, %v695
  %835 = vadd.xlane.f32.xlu0 %v834
  %v836 = vpop.xlane.xlu0 %835
  %v837 = vadd.f32 %v699, %v701
  %838 = vadd.xlane.f32.xlu0 %v837
  %v839 = vpop.xlane.xlu0 %838
  %v840 = vadd.f32 %v703, %v705
  %841 = vadd.xlane.f32.xlu0 %v840
  %v842 = vpop.xlane.xlu0 %841
  %v843 = vadd.f32 %v709, %v711
  %844 = vadd.xlane.f32.xlu0 %v843
  %v845 = vpop.xlane.xlu0 %844
  %v846 = vadd.f32 %v713, %v715
  %847 = vadd.xlane.f32.xlu0 %v846
  %v848 = vpop.xlane.xlu0 %847
  %v849 = vadd.f32 %v719, %v721
  %850 = vadd.xlane.f32.xlu0 %v849
  %v851 = vpop.xlane.xlu0 %850
  %v852 = vadd.f32 %v723, %v725
  %853 = vadd.xlane.f32.xlu0 %v852
  %v854 = vpop.xlane.xlu0 %853
  %v855 = vadd.f32 %v729, %v731
  %856 = vadd.xlane.f32.xlu0 %v855
  %v857 = vpop.xlane.xlu0 %856
  %v858 = vadd.f32 %v733, %v735
  %859 = vadd.xlane.f32.xlu0 %v858
  %v860 = vpop.xlane.xlu0 %859
  %v861 = vadd.f32 %v739, %v741
  %862 = vadd.xlane.f32.xlu0 %v861
  %v863 = vpop.xlane.xlu0 %862
  %v864 = vadd.f32 %v743, %v745
  %865 = vadd.xlane.f32.xlu0 %v864
  %v866 = vpop.xlane.xlu0 %865
  %v867 = vadd.f32 %v749, %v751
  %868 = vadd.xlane.f32.xlu0 %v867
  %v869 = vpop.xlane.xlu0 %868
  %v870 = vadd.f32 %v753, %v755
  %871 = vadd.xlane.f32.xlu0 %v870
  %v872 = vpop.xlane.xlu0 %871
  %v873 = vadd.f32 %v759, %v761
  %874 = vadd.xlane.f32.xlu0 %v873
  %v875 = vpop.xlane.xlu0 %874
  %v876 = vadd.f32 %v763, %v765
  %877 = vadd.xlane.f32.xlu0 %v876
  %v878 = vpop.xlane.xlu0 %877
  %v879 = vadd.f32 %v769, %v771
  %880 = vadd.xlane.f32.xlu0 %v879
  %v881 = vpop.xlane.xlu0 %880
  %v882 = vadd.f32 %v773, %v775
  %883 = vadd.xlane.f32.xlu0 %v882
  %v884 = vpop.xlane.xlu0 %883
  %v885 = vadd.f32 %v779, %v781
  %886 = vadd.xlane.f32.xlu0 %v885
  %v887 = vpop.xlane.xlu0 %886
  %v888 = vadd.f32 %v783, %v785
  %889 = vadd.xlane.f32.xlu0 %v888
  %v890 = vpop.xlane.xlu0 %889
  %v891 = vadd.f32 %v789, %v791
  %892 = vadd.xlane.f32.xlu0 %v891
  %v893 = vpop.xlane.xlu0 %892
  %v894 = vadd.f32 %v793, %v795
  %895 = vadd.xlane.f32.xlu0 %v894
  %v896 = vpop.xlane.xlu0 %895
  %v897 = vadd.f32 %v799, %v801
  %898 = vadd.xlane.f32.xlu0 %v897
  %v899 = vpop.xlane.xlu0 %898
  %v900 = vadd.f32 %v803, %v805
  %901 = vadd.xlane.f32.xlu0 %v900
  %v902 = vpop.xlane.xlu0 %901
  %v903 = vmul.f32 %v809, 0.00390625
  %v904 = vmul.f32 %v812, 0.00390625
  %v905 = vmul.f32 %v815, 0.00390625
  %v906 = vmul.f32 %v818, 0.00390625
  %v907 = vmul.f32 %v821, 0.00390625
  %v908 = vmul.f32 %v824, 0.00390625
  %v909 = vmul.f32 %v827, 0.00390625
  %v910 = vmul.f32 %v830, 0.00390625
  %v911 = vmul.f32 %v833, 0.00390625
  %v912 = vmul.f32 %v836, 0.00390625
  %v913 = vmul.f32 %v839, 0.00390625
  %v914 = vmul.f32 %v842, 0.00390625
  %v915 = vmul.f32 %v845, 0.00390625
  %v916 = vmul.f32 %v848, 0.00390625
  %v917 = vmul.f32 %v851, 0.00390625
  %v918 = vmul.f32 %v854, 0.00390625
  %v919 = vmul.f32 %v857, 0.00390625
  %v920 = vmul.f32 %v860, 0.00390625
  %v921 = vmul.f32 %v863, 0.00390625
  %v922 = vmul.f32 %v866, 0.00390625
  %v923 = vmul.f32 %v869, 0.00390625
  %v924 = vmul.f32 %v872, 0.00390625
  %v925 = vmul.f32 %v875, 0.00390625
  %v926 = vmul.f32 %v878, 0.00390625
  %v927 = vmul.f32 %v881, 0.00390625
  %v928 = vmul.f32 %v884, 0.00390625
  %v929 = vmul.f32 %v887, 0.00390625
  %v930 = vmul.f32 %v890, 0.00390625
  %v931 = vmul.f32 %v893, 0.00390625
  %v932 = vmul.f32 %v896, 0.00390625
  %v933 = vmul.f32 %v899, 0.00390625
  %v934 = vmul.f32 %v902, 0.00390625
  %v935 = vmul.f32 %v649, %v649
  %v936 = vmul.f32 %v651, %v651
  %v937 = vmul.f32 %v653, %v653
  %v938 = vmul.f32 %v655, %v655
  %v939 = vmul.f32 %v659, %v659
  %v940 = vmul.f32 %v661, %v661
  %v941 = vmul.f32 %v663, %v663
  %v942 = vmul.f32 %v665, %v665
  %v943 = vmul.f32 %v669, %v669
  %v944 = vmul.f32 %v671, %v671
  %v945 = vmul.f32 %v673, %v673
  %v946 = vmul.f32 %v675, %v675
  %v947 = vmul.f32 %v679, %v679
  %v948 = vmul.f32 %v681, %v681
  %v949 = vmul.f32 %v683, %v683
  %v950 = vmul.f32 %v685, %v685
  %v951 = vmul.f32 %v689, %v689
  %v952 = vmul.f32 %v691, %v691
  %v953 = vmul.f32 %v693, %v693
  %v954 = vmul.f32 %v695, %v695
  %v955 = vmul.f32 %v699, %v699
  %v956 = vmul.f32 %v701, %v701
  %v957 = vmul.f32 %v703, %v703
  %v958 = vmul.f32 %v705, %v705
  %v959 = vmul.f32 %v709, %v709
  %v960 = vmul.f32 %v711, %v711
  %v961 = vmul.f32 %v713, %v713
  %v962 = vmul.f32 %v715, %v715
  %v963 = vmul.f32 %v719, %v719
  %v964 = vmul.f32 %v721, %v721
  %v965 = vmul.f32 %v723, %v723
  %v966 = vmul.f32 %v725, %v725
  %v967 = vmul.f32 %v729, %v729
  %v968 = vmul.f32 %v731, %v731
  %v969 = vmul.f32 %v733, %v733
  %v970 = vmul.f32 %v735, %v735
  %v971 = vmul.f32 %v739, %v739
  %v972 = vmul.f32 %v741, %v741
  %v973 = vmul.f32 %v743, %v743
  %v974 = vmul.f32 %v745, %v745
  %v975 = vmul.f32 %v749, %v749
  %v976 = vmul.f32 %v751, %v751
  %v977 = vmul.f32 %v753, %v753
  %v978 = vmul.f32 %v755, %v755
  %v979 = vmul.f32 %v759, %v759
  %v980 = vmul.f32 %v761, %v761
  %v981 = vmul.f32 %v763, %v763
  %v982 = vmul.f32 %v765, %v765
  %v983 = vmul.f32 %v769, %v769
  %v984 = vmul.f32 %v771, %v771
  %v985 = vmul.f32 %v773, %v773
  %v986 = vmul.f32 %v775, %v775
  %v987 = vmul.f32 %v779, %v779
  %v988 = vmul.f32 %v781, %v781
  %v989 = vmul.f32 %v783, %v783
  %v990 = vmul.f32 %v785, %v785
  %v991 = vmul.f32 %v789, %v789
  %v992 = vmul.f32 %v791, %v791
  %v993 = vmul.f32 %v793, %v793
  %v994 = vmul.f32 %v795, %v795
  %v995 = vmul.f32 %v799, %v799
  %v996 = vmul.f32 %v801, %v801
  %v997 = vmul.f32 %v803, %v803
  %v998 = vmul.f32 %v805, %v805
  %v999 = vadd.f32 %v935, %v936
  %1000 = vadd.xlane.f32.xlu0 %v999
  %v1001 = vpop.xlane.xlu0 %1000
  %v1002 = vadd.f32 %v937, %v938
  %1003 = vadd.xlane.f32.xlu0 %v1002
  %v1004 = vpop.xlane.xlu0 %1003
  %v1005 = vadd.f32 %v939, %v940
  %1006 = vadd.xlane.f32.xlu0 %v1005
  %v1007 = vpop.xlane.xlu0 %1006
  %v1008 = vadd.f32 %v941, %v942
  %1009 = vadd.xlane.f32.xlu0 %v1008
  %v1010 = vpop.xlane.xlu0 %1009
  %v1011 = vadd.f32 %v943, %v944
  %1012 = vadd.xlane.f32.xlu0 %v1011
  %v1013 = vpop.xlane.xlu0 %1012
  %v1014 = vadd.f32 %v945, %v946
  %1015 = vadd.xlane.f32.xlu0 %v1014
  %v1016 = vpop.xlane.xlu0 %1015
  %v1017 = vadd.f32 %v947, %v948
  %1018 = vadd.xlane.f32.xlu0 %v1017
  %v1019 = vpop.xlane.xlu0 %1018
  %v1020 = vadd.f32 %v949, %v950
  %1021 = vadd.xlane.f32.xlu0 %v1020
  %v1022 = vpop.xlane.xlu0 %1021
  %v1023 = vadd.f32 %v951, %v952
  %1024 = vadd.xlane.f32.xlu0 %v1023
  %v1025 = vpop.xlane.xlu0 %1024
  %v1026 = vadd.f32 %v953, %v954
  %1027 = vadd.xlane.f32.xlu0 %v1026
  %v1028 = vpop.xlane.xlu0 %1027
  %v1029 = vadd.f32 %v955, %v956
  %1030 = vadd.xlane.f32.xlu0 %v1029
  %v1031 = vpop.xlane.xlu0 %1030
  %v1032 = vadd.f32 %v957, %v958
  %1033 = vadd.xlane.f32.xlu0 %v1032
  %v1034 = vpop.xlane.xlu0 %1033
  %v1035 = vadd.f32 %v959, %v960
  %1036 = vadd.xlane.f32.xlu0 %v1035
  %v1037 = vpop.xlane.xlu0 %1036
  %v1038 = vadd.f32 %v961, %v962
  %1039 = vadd.xlane.f32.xlu0 %v1038
  %v1040 = vpop.xlane.xlu0 %1039
  %v1041 = vadd.f32 %v963, %v964
  %1042 = vadd.xlane.f32.xlu0 %v1041
  %v1043 = vpop.xlane.xlu0 %1042
  %v1044 = vadd.f32 %v965, %v966
  %1045 = vadd.xlane.f32.xlu0 %v1044
  %v1046 = vpop.xlane.xlu0 %1045
  %v1047 = vadd.f32 %v967, %v968
  %1048 = vadd.xlane.f32.xlu0 %v1047
  %v1049 = vpop.xlane.xlu0 %1048
  %v1050 = vadd.f32 %v969, %v970
  %1051 = vadd.xlane.f32.xlu0 %v1050
  %v1052 = vpop.xlane.xlu0 %1051
  %v1053 = vadd.f32 %v971, %v972
  %1054 = vadd.xlane.f32.xlu0 %v1053
  %v1055 = vpop.xlane.xlu0 %1054
  %v1056 = vadd.f32 %v973, %v974
  %1057 = vadd.xlane.f32.xlu0 %v1056
  %v1058 = vpop.xlane.xlu0 %1057
  %v1059 = vadd.f32 %v975, %v976
  %1060 = vadd.xlane.f32.xlu0 %v1059
  %v1061 = vpop.xlane.xlu0 %1060
  %v1062 = vadd.f32 %v977, %v978
  %1063 = vadd.xlane.f32.xlu0 %v1062
  %v1064 = vpop.xlane.xlu0 %1063
  %v1065 = vadd.f32 %v979, %v980
  %1066 = vadd.xlane.f32.xlu0 %v1065
  %v1067 = vpop.xlane.xlu0 %1066
  %v1068 = vadd.f32 %v981, %v982
  %1069 = vadd.xlane.f32.xlu0 %v1068
  %v1070 = vpop.xlane.xlu0 %1069
  %v1071 = vadd.f32 %v983, %v984
  %1072 = vadd.xlane.f32.xlu0 %v1071
  %v1073 = vpop.xlane.xlu0 %1072
  %v1074 = vadd.f32 %v985, %v986
  %1075 = vadd.xlane.f32.xlu0 %v1074
  %v1076 = vpop.xlane.xlu0 %1075
  %v1077 = vadd.f32 %v987, %v988
  %1078 = vadd.xlane.f32.xlu0 %v1077
  %v1079 = vpop.xlane.xlu0 %1078
  %v1080 = vadd.f32 %v989, %v990
  %1081 = vadd.xlane.f32.xlu0 %v1080
  %v1082 = vpop.xlane.xlu0 %1081
  %v1083 = vadd.f32 %v991, %v992
  %1084 = vadd.xlane.f32.xlu0 %v1083
  %v1085 = vpop.xlane.xlu0 %1084
  %v1086 = vadd.f32 %v993, %v994
  %1087 = vadd.xlane.f32.xlu0 %v1086
  %v1088 = vpop.xlane.xlu0 %1087
  %v1089 = vadd.f32 %v995, %v996
  %1090 = vadd.xlane.f32.xlu0 %v1089
  %v1091 = vpop.xlane.xlu0 %1090
  %v1092 = vadd.f32 %v997, %v998
  %1093 = vadd.xlane.f32.xlu0 %v1092
  %v1094 = vpop.xlane.xlu0 %1093
  %v1095 = vmul.f32 %v1001, 0.00390625
  %v1096 = vmul.f32 %v1004, 0.00390625
  %v1097 = vmul.f32 %v1007, 0.00390625
  %v1098 = vmul.f32 %v1010, 0.00390625
  %v1099 = vmul.f32 %v1013, 0.00390625
  %v1100 = vmul.f32 %v1016, 0.00390625
  %v1101 = vmul.f32 %v1019, 0.00390625
  %v1102 = vmul.f32 %v1022, 0.00390625
  %v1103 = vmul.f32 %v1025, 0.00390625
  %v1104 = vmul.f32 %v1028, 0.00390625
  %v1105 = vmul.f32 %v1031, 0.00390625
  %v1106 = vmul.f32 %v1034, 0.00390625
  %v1107 = vmul.f32 %v1037, 0.00390625
  %v1108 = vmul.f32 %v1040, 0.00390625
  %v1109 = vmul.f32 %v1043, 0.00390625
  %v1110 = vmul.f32 %v1046, 0.00390625
  %v1111 = vmul.f32 %v1049, 0.00390625
  %v1112 = vmul.f32 %v1052, 0.00390625
  %v1113 = vmul.f32 %v1055, 0.00390625
  %v1114 = vmul.f32 %v1058, 0.00390625
  %v1115 = vmul.f32 %v1061, 0.00390625
  %v1116 = vmul.f32 %v1064, 0.00390625
  %v1117 = vmul.f32 %v1067, 0.00390625
  %v1118 = vmul.f32 %v1070, 0.00390625
  %v1119 = vmul.f32 %v1073, 0.00390625
  %v1120 = vmul.f32 %v1076, 0.00390625
  %v1121 = vmul.f32 %v1079, 0.00390625
  %v1122 = vmul.f32 %v1082, 0.00390625
  %v1123 = vmul.f32 %v1085, 0.00390625
  %v1124 = vmul.f32 %v1088, 0.00390625
  %v1125 = vmul.f32 %v1091, 0.00390625
  %v1126 = vmul.f32 %v1094, 0.00390625
  %v1127 = vmul.f32 %v903, %v903
  %v1128 = vmul.f32 %v904, %v904
  %v1129 = vmul.f32 %v905, %v905
  %v1130 = vmul.f32 %v906, %v906
  %v1131 = vmul.f32 %v907, %v907
  %v1132 = vmul.f32 %v908, %v908
  %v1133 = vmul.f32 %v909, %v909
  %v1134 = vmul.f32 %v910, %v910
  %v1135 = vmul.f32 %v911, %v911
  %v1136 = vmul.f32 %v912, %v912
  %v1137 = vmul.f32 %v913, %v913
  %v1138 = vmul.f32 %v914, %v914
  %v1139 = vmul.f32 %v915, %v915
  %v1140 = vmul.f32 %v916, %v916
  %v1141 = vmul.f32 %v917, %v917
  %v1142 = vmul.f32 %v918, %v918
  %v1143 = vmul.f32 %v919, %v919
  %v1144 = vmul.f32 %v920, %v920
  %v1145 = vmul.f32 %v921, %v921
  %v1146 = vmul.f32 %v922, %v922
  %v1147 = vmul.f32 %v923, %v923
  %v1148 = vmul.f32 %v924, %v924
  %v1149 = vmul.f32 %v925, %v925
  %v1150 = vmul.f32 %v926, %v926
  %v1151 = vmul.f32 %v927, %v927
  %v1152 = vmul.f32 %v928, %v928
  %v1153 = vmul.f32 %v929, %v929
  %v1154 = vmul.f32 %v930, %v930
  %v1155 = vmul.f32 %v931, %v931
  %v1156 = vmul.f32 %v932, %v932
  %v1157 = vmul.f32 %v933, %v933
  %v1158 = vmul.f32 %v934, %v934
  %v1159 = vsub.f32 %v1095, %v1127
  %v1160 = vsub.f32 %v1096, %v1128
  %v1161 = vsub.f32 %v1097, %v1129
  %v1162 = vsub.f32 %v1098, %v1130
  %v1163 = vsub.f32 %v1099, %v1131
  %v1164 = vsub.f32 %v1100, %v1132
  %v1165 = vsub.f32 %v1101, %v1133
  %v1166 = vsub.f32 %v1102, %v1134
  %v1167 = vsub.f32 %v1103, %v1135
  %v1168 = vsub.f32 %v1104, %v1136
  %v1169 = vsub.f32 %v1105, %v1137
  %v1170 = vsub.f32 %v1106, %v1138
  %v1171 = vsub.f32 %v1107, %v1139
  %v1172 = vsub.f32 %v1108, %v1140
  %v1173 = vsub.f32 %v1109, %v1141
  %v1174 = vsub.f32 %v1110, %v1142
  %v1175 = vsub.f32 %v1111, %v1143
  %v1176 = vsub.f32 %v1112, %v1144
  %v1177 = vsub.f32 %v1113, %v1145
  %v1178 = vsub.f32 %v1114, %v1146
  %v1179 = vsub.f32 %v1115, %v1147
  %v1180 = vsub.f32 %v1116, %v1148
  %v1181 = vsub.f32 %v1117, %v1149
  %v1182 = vsub.f32 %v1118, %v1150
  %v1183 = vsub.f32 %v1119, %v1151
  %v1184 = vsub.f32 %v1120, %v1152
  %v1185 = vsub.f32 %v1121, %v1153
  %v1186 = vsub.f32 %v1122, %v1154
  %v1187 = vsub.f32 %v1123, %v1155
  %v1188 = vsub.f32 %v1124, %v1156
  %v1189 = vsub.f32 %v1125, %v1157
  %v1190 = vsub.f32 %v1126, %v1158
  %v1191 = vmax.f32 %v1159, 0.0
  %v1192 = vmax.f32 %v1160, 0.0
  %v1193 = vmax.f32 %v1161, 0.0
  %v1194 = vmax.f32 %v1162, 0.0
  %v1195 = vmax.f32 %v1163, 0.0
  %v1196 = vmax.f32 %v1164, 0.0
  %v1197 = vmax.f32 %v1165, 0.0
  %v1198 = vmax.f32 %v1166, 0.0
  %v1199 = vmax.f32 %v1167, 0.0
  %v1200 = vmax.f32 %v1168, 0.0
  %v1201 = vmax.f32 %v1169, 0.0
  %v1202 = vmax.f32 %v1170, 0.0
  %v1203 = vmax.f32 %v1171, 0.0
  %v1204 = vmax.f32 %v1172, 0.0
  %v1205 = vmax.f32 %v1173, 0.0
  %v1206 = vmax.f32 %v1174, 0.0
  %v1207 = vmax.f32 %v1175, 0.0
  %v1208 = vmax.f32 %v1176, 0.0
  %v1209 = vmax.f32 %v1177, 0.0
  %v1210 = vmax.f32 %v1178, 0.0
  %v1211 = vmax.f32 %v1179, 0.0
  %v1212 = vmax.f32 %v1180, 0.0
  %v1213 = vmax.f32 %v1181, 0.0
  %v1214 = vmax.f32 %v1182, 0.0
  %v1215 = vmax.f32 %v1183, 0.0
  %v1216 = vmax.f32 %v1184, 0.0
  %v1217 = vmax.f32 %v1185, 0.0
  %v1218 = vmax.f32 %v1186, 0.0
  %v1219 = vmax.f32 %v1187, 0.0
  %v1220 = vmax.f32 %v1188, 0.0
  %v1221 = vmax.f32 %v1189, 0.0
  %v1222 = vmax.f32 %v1190, 0.0
  %v1223 = vsub.f32 %v649, %v903
  %v1224 = vsub.f32 %v651, %v903
  %v1225 = vsub.f32 %v653, %v904
  %v1226 = vsub.f32 %v655, %v904
  %v1227 = vsub.f32 %v659, %v905
  %v1228 = vsub.f32 %v661, %v905
  %v1229 = vsub.f32 %v663, %v906
  %v1230 = vsub.f32 %v665, %v906
  %v1231 = vsub.f32 %v669, %v907
  %v1232 = vsub.f32 %v671, %v907
  %v1233 = vsub.f32 %v673, %v908
  %v1234 = vsub.f32 %v675, %v908
  %v1235 = vsub.f32 %v679, %v909
  %v1236 = vsub.f32 %v681, %v909
  %v1237 = vsub.f32 %v683, %v910
  %v1238 = vsub.f32 %v685, %v910
  %v1239 = vsub.f32 %v689, %v911
  %v1240 = vsub.f32 %v691, %v911
  %v1241 = vsub.f32 %v693, %v912
  %v1242 = vsub.f32 %v695, %v912
  %v1243 = vsub.f32 %v699, %v913
  %v1244 = vsub.f32 %v701, %v913
  %v1245 = vsub.f32 %v703, %v914
  %v1246 = vsub.f32 %v705, %v914
  %v1247 = vsub.f32 %v709, %v915
  %v1248 = vsub.f32 %v711, %v915
  %v1249 = vsub.f32 %v713, %v916
  %v1250 = vsub.f32 %v715, %v916
  %v1251 = vsub.f32 %v719, %v917
  %v1252 = vsub.f32 %v721, %v917
  %v1253 = vsub.f32 %v723, %v918
  %v1254 = vsub.f32 %v725, %v918
  %v1255 = vsub.f32 %v729, %v919
  %v1256 = vsub.f32 %v731, %v919
  %v1257 = vsub.f32 %v733, %v920
  %v1258 = vsub.f32 %v735, %v920
  %v1259 = vsub.f32 %v739, %v921
  %v1260 = vsub.f32 %v741, %v921
  %v1261 = vsub.f32 %v743, %v922
  %v1262 = vsub.f32 %v745, %v922
  %v1263 = vsub.f32 %v749, %v923
  %v1264 = vsub.f32 %v751, %v923
  %v1265 = vsub.f32 %v753, %v924
  %v1266 = vsub.f32 %v755, %v924
  %v1267 = vsub.f32 %v759, %v925
  %v1268 = vsub.f32 %v761, %v925
  %v1269 = vsub.f32 %v763, %v926
  %v1270 = vsub.f32 %v765, %v926
  %v1271 = vsub.f32 %v769, %v927
  %v1272 = vsub.f32 %v771, %v927
  %v1273 = vsub.f32 %v773, %v928
  %v1274 = vsub.f32 %v775, %v928
  %v1275 = vsub.f32 %v779, %v929
  %v1276 = vsub.f32 %v781, %v929
  %v1277 = vsub.f32 %v783, %v930
  %v1278 = vsub.f32 %v785, %v930
  %v1279 = vsub.f32 %v789, %v931
  %v1280 = vsub.f32 %v791, %v931
  %v1281 = vsub.f32 %v793, %v932
  %v1282 = vsub.f32 %v795, %v932
  %v1283 = vsub.f32 %v799, %v933
  %v1284 = vsub.f32 %v801, %v933
  %v1285 = vsub.f32 %v803, %v934
  %v1286 = vsub.f32 %v805, %v934
  %v1287 = vadd.f32 %v1191, 1e-05
  %v1288 = vadd.f32 %v1192, 1e-05
  %v1289 = vadd.f32 %v1193, 1e-05
  %v1290 = vadd.f32 %v1194, 1e-05
  %v1291 = vadd.f32 %v1195, 1e-05
  %v1292 = vadd.f32 %v1196, 1e-05
  %v1293 = vadd.f32 %v1197, 1e-05
  %v1294 = vadd.f32 %v1198, 1e-05
  %v1295 = vadd.f32 %v1199, 1e-05
  %v1296 = vadd.f32 %v1200, 1e-05
  %v1297 = vadd.f32 %v1201, 1e-05
  %v1298 = vadd.f32 %v1202, 1e-05
  %v1299 = vadd.f32 %v1203, 1e-05
  %v1300 = vadd.f32 %v1204, 1e-05
  %v1301 = vadd.f32 %v1205, 1e-05
  %v1302 = vadd.f32 %v1206, 1e-05
  %v1303 = vadd.f32 %v1207, 1e-05
  %v1304 = vadd.f32 %v1208, 1e-05
  %v1305 = vadd.f32 %v1209, 1e-05
  %v1306 = vadd.f32 %v1210, 1e-05
  %v1307 = vadd.f32 %v1211, 1e-05
  %v1308 = vadd.f32 %v1212, 1e-05
  %v1309 = vadd.f32 %v1213, 1e-05
  %v1310 = vadd.f32 %v1214, 1e-05
  %v1311 = vadd.f32 %v1215, 1e-05
  %v1312 = vadd.f32 %v1216, 1e-05
  %v1313 = vadd.f32 %v1217, 1e-05
  %v1314 = vadd.f32 %v1218, 1e-05
  %v1315 = vadd.f32 %v1219, 1e-05
  %v1316 = vadd.f32 %v1220, 1e-05
  %v1317 = vadd.f32 %v1221, 1e-05
  %v1318 = vadd.f32 %v1222, 1e-05
  %v1319 = vrsqrt.pop %v1287
  %v1320 = vrsqrt.pop %v1288
  %v1321 = vrsqrt.pop %v1289
  %v1322 = vrsqrt.pop %v1290
  %v1323 = vrsqrt.pop %v1291
  %v1324 = vrsqrt.pop %v1292
  %v1325 = vrsqrt.pop %v1293
  %v1326 = vrsqrt.pop %v1294
  %v1327 = vrsqrt.pop %v1295
  %v1328 = vrsqrt.pop %v1296
  %v1329 = vrsqrt.pop %v1297
  %v1330 = vrsqrt.pop %v1298
  %v1331 = vrsqrt.pop %v1299
  %v1332 = vrsqrt.pop %v1300
  %v1333 = vrsqrt.pop %v1301
  %v1334 = vrsqrt.pop %v1302
  %v1335 = vrsqrt.pop %v1303
  %v1336 = vrsqrt.pop %v1304
  %v1337 = vrsqrt.pop %v1305
  %v1338 = vrsqrt.pop %v1306
  %v1339 = vrsqrt.pop %v1307
  %v1340 = vrsqrt.pop %v1308
  %v1341 = vrsqrt.pop %v1309
  %v1342 = vrsqrt.pop %v1310
  %v1343 = vrsqrt.pop %v1311
  %v1344 = vrsqrt.pop %v1312
  %v1345 = vrsqrt.pop %v1313
  %v1346 = vrsqrt.pop %v1314
  %v1347 = vrsqrt.pop %v1315
  %v1348 = vrsqrt.pop %v1316
  %v1349 = vrsqrt.pop %v1317
  %v1350 = vrsqrt.pop %v1318
  %v1351 = vmul.f32 %v1223, %v1319
  %v1352 = vmul.f32 %v1224, %v1319
  %v1353 = vmul.f32 %v1225, %v1320
  %v1354 = vmul.f32 %v1226, %v1320
  %v1355 = vmul.f32 %v1227, %v1321
  %v1356 = vmul.f32 %v1228, %v1321
  %v1357 = vmul.f32 %v1229, %v1322
  %v1358 = vmul.f32 %v1230, %v1322
  %v1359 = vmul.f32 %v1231, %v1323
  %v1360 = vmul.f32 %v1232, %v1323
  %v1361 = vmul.f32 %v1233, %v1324
  %v1362 = vmul.f32 %v1234, %v1324
  %v1363 = vmul.f32 %v1235, %v1325
  %v1364 = vmul.f32 %v1236, %v1325
  %v1365 = vmul.f32 %v1237, %v1326
  %v1366 = vmul.f32 %v1238, %v1326
  %v1367 = vmul.f32 %v1239, %v1327
  %v1368 = vmul.f32 %v1240, %v1327
  %v1369 = vmul.f32 %v1241, %v1328
  %v1370 = vmul.f32 %v1242, %v1328
  %v1371 = vmul.f32 %v1243, %v1329
  %v1372 = vmul.f32 %v1244, %v1329
  %v1373 = vmul.f32 %v1245, %v1330
  %v1374 = vmul.f32 %v1246, %v1330
  %v1375 = vmul.f32 %v1247, %v1331
  %v1376 = vmul.f32 %v1248, %v1331
  %v1377 = vmul.f32 %v1249, %v1332
  %v1378 = vmul.f32 %v1250, %v1332
  %v1379 = vmul.f32 %v1251, %v1333
  %v1380 = vmul.f32 %v1252, %v1333
  %v1381 = vmul.f32 %v1253, %v1334
  %v1382 = vmul.f32 %v1254, %v1334
  %v1383 = vmul.f32 %v1255, %v1335
  %v1384 = vmul.f32 %v1256, %v1335
  %v1385 = vmul.f32 %v1257, %v1336
  %v1386 = vmul.f32 %v1258, %v1336
  %v1387 = vmul.f32 %v1259, %v1337
  %v1388 = vmul.f32 %v1260, %v1337
  %v1389 = vmul.f32 %v1261, %v1338
  %v1390 = vmul.f32 %v1262, %v1338
  %v1391 = vmul.f32 %v1263, %v1339
  %v1392 = vmul.f32 %v1264, %v1339
  %v1393 = vmul.f32 %v1265, %v1340
  %v1394 = vmul.f32 %v1266, %v1340
  %v1395 = vmul.f32 %v1267, %v1341
  %v1396 = vmul.f32 %v1268, %v1341
  %v1397 = vmul.f32 %v1269, %v1342
  %v1398 = vmul.f32 %v1270, %v1342
  %v1399 = vmul.f32 %v1271, %v1343
  %v1400 = vmul.f32 %v1272, %v1343
  %v1401 = vmul.f32 %v1273, %v1344
  %v1402 = vmul.f32 %v1274, %v1344
  %v1403 = vmul.f32 %v1275, %v1345
  %v1404 = vmul.f32 %v1276, %v1345
  %v1405 = vmul.f32 %v1277, %v1346
  %v1406 = vmul.f32 %v1278, %v1346
  %v1407 = vmul.f32 %v1279, %v1347
  %v1408 = vmul.f32 %v1280, %v1347
  %v1409 = vmul.f32 %v1281, %v1348
  %v1410 = vmul.f32 %v1282, %v1348
  %v1411 = vmul.f32 %v1283, %v1349
  %v1412 = vmul.f32 %v1284, %v1349
  %v1413 = vmul.f32 %v1285, %v1350
  %v1414 = vmul.f32 %v1286, %v1350
  %v1415 = vld [vmem:[%s4] sm:$0xff]
  %v1416 = vld [vmem:[%s4 + $0x8] sm:$0xff]
  %v1417 = vld [vmem:[%s4 + $0x10] sm:$0xff]
  %v1418 = vld [vmem:[%s4 + $0x18] sm:$0xff]
  %v1419 = vld [vmem:[%s4 + $0x20] sm:$0xff]
  %v1420 = vld [vmem:[%s4 + $0x28] sm:$0xff]
  %v1421 = vld [vmem:[%s4 + $0x30] sm:$0xff]
  %v1422 = vld [vmem:[%s4 + $0x38] sm:$0xff]
  %v1423 = vld [vmem:[%s4 + $0x40] sm:$0xff]
  %v1424 = vld [vmem:[%s4 + $0x48] sm:$0xff]
  %v1425 = vld [vmem:[%s4 + $0x50] sm:$0xff]
  %v1426 = vld [vmem:[%s4 + $0x58] sm:$0xff]
  %v1427 = vld [vmem:[%s4 + $0x60] sm:$0xff]
  %v1428 = vld [vmem:[%s4 + $0x68] sm:$0xff]
  %v1429 = vld [vmem:[%s4 + $0x70] sm:$0xff]
  %v1430 = vld [vmem:[%s4 + $0x78] sm:$0xff]
  %v1431 = vld [vmem:[%s4 + $0x80] sm:$0xff]
  %v1432 = vld [vmem:[%s4 + $0x88] sm:$0xff]
  %v1433 = vld [vmem:[%s4 + $0x90] sm:$0xff]
  %v1434 = vld [vmem:[%s4 + $0x98] sm:$0xff]
  %v1435 = vld [vmem:[%s4 + $0xa0] sm:$0xff]
  %v1436 = vld [vmem:[%s4 + $0xa8] sm:$0xff]
  %v1437 = vld [vmem:[%s4 + $0xb0] sm:$0xff]
  %v1438 = vld [vmem:[%s4 + $0xb8] sm:$0xff]
  %v1439 = vld [vmem:[%s4 + $0xc0] sm:$0xff]
  %v1440 = vld [vmem:[%s4 + $0xc8] sm:$0xff]
  %v1441 = vld [vmem:[%s4 + $0xd0] sm:$0xff]
  %v1442 = vld [vmem:[%s4 + $0xd8] sm:$0xff]
  %v1443 = vld [vmem:[%s4 + $0xe0] sm:$0xff]
  %v1444 = vld [vmem:[%s4 + $0xe8] sm:$0xff]
  %v1445 = vld [vmem:[%s4 + $0xf0] sm:$0xff]
  %v1446 = vld [vmem:[%s4 + $0xf8] sm:$0xff]
  %1448 = vset.pattern.permute.xlu0 0
  %1449 = vperm.xlu0 %1448, %v1415
  %v1450 = vpop.permute.xlu0 %1449
  %1453 = vset.pattern.permute.xlu0 0
  %1454 = vperm.xlu0 %1453, %v1416
  %v1455 = vpop.permute.xlu0 %1454
  %1458 = vset.pattern.permute.xlu0 0
  %1459 = vperm.xlu0 %1458, %v1417
  %v1460 = vpop.permute.xlu0 %1459
  %1463 = vset.pattern.permute.xlu0 0
  %1464 = vperm.xlu0 %1463, %v1418
  %v1465 = vpop.permute.xlu0 %1464
  %1468 = vset.pattern.permute.xlu0 0
  %1469 = vperm.xlu0 %1468, %v1419
  %v1470 = vpop.permute.xlu0 %1469
  %1473 = vset.pattern.permute.xlu0 0
  %1474 = vperm.xlu0 %1473, %v1420
  %v1475 = vpop.permute.xlu0 %1474
  %1478 = vset.pattern.permute.xlu0 0
  %1479 = vperm.xlu0 %1478, %v1421
  %v1480 = vpop.permute.xlu0 %1479
  %1483 = vset.pattern.permute.xlu0 0
  %1484 = vperm.xlu0 %1483, %v1422
  %v1485 = vpop.permute.xlu0 %1484
  %1488 = vset.pattern.permute.xlu0 0
  %1489 = vperm.xlu0 %1488, %v1423
  %v1490 = vpop.permute.xlu0 %1489
  %1493 = vset.pattern.permute.xlu0 0
  %1494 = vperm.xlu0 %1493, %v1424
  %v1495 = vpop.permute.xlu0 %1494
  %1498 = vset.pattern.permute.xlu0 0
  %1499 = vperm.xlu0 %1498, %v1425
  %v1500 = vpop.permute.xlu0 %1499
  %1503 = vset.pattern.permute.xlu0 0
  %1504 = vperm.xlu0 %1503, %v1426
  %v1505 = vpop.permute.xlu0 %1504
  %1508 = vset.pattern.permute.xlu0 0
  %1509 = vperm.xlu0 %1508, %v1427
  %v1510 = vpop.permute.xlu0 %1509
  %1513 = vset.pattern.permute.xlu0 0
  %1514 = vperm.xlu0 %1513, %v1428
  %v1515 = vpop.permute.xlu0 %1514
  %1518 = vset.pattern.permute.xlu0 0
  %1519 = vperm.xlu0 %1518, %v1429
  %v1520 = vpop.permute.xlu0 %1519
  %1523 = vset.pattern.permute.xlu0 0
  %1524 = vperm.xlu0 %1523, %v1430
  %v1525 = vpop.permute.xlu0 %1524
  %1528 = vset.pattern.permute.xlu0 0
  %1529 = vperm.xlu0 %1528, %v1431
  %v1530 = vpop.permute.xlu0 %1529
  %1533 = vset.pattern.permute.xlu0 0
  %1534 = vperm.xlu0 %1533, %v1432
  %v1535 = vpop.permute.xlu0 %1534
  %1538 = vset.pattern.permute.xlu0 0
  %1539 = vperm.xlu0 %1538, %v1433
  %v1540 = vpop.permute.xlu0 %1539
  %1543 = vset.pattern.permute.xlu0 0
  %1544 = vperm.xlu0 %1543, %v1434
  %v1545 = vpop.permute.xlu0 %1544
  %1548 = vset.pattern.permute.xlu0 0
  %1549 = vperm.xlu0 %1548, %v1435
  %v1550 = vpop.permute.xlu0 %1549
  %1553 = vset.pattern.permute.xlu0 0
  %1554 = vperm.xlu0 %1553, %v1436
  %v1555 = vpop.permute.xlu0 %1554
  %1558 = vset.pattern.permute.xlu0 0
  %1559 = vperm.xlu0 %1558, %v1437
  %v1560 = vpop.permute.xlu0 %1559
  %1563 = vset.pattern.permute.xlu0 0
  %1564 = vperm.xlu0 %1563, %v1438
  %v1565 = vpop.permute.xlu0 %1564
  %1568 = vset.pattern.permute.xlu0 0
  %1569 = vperm.xlu0 %1568, %v1439
  %v1570 = vpop.permute.xlu0 %1569
  %1573 = vset.pattern.permute.xlu0 0
  %1574 = vperm.xlu0 %1573, %v1440
  %v1575 = vpop.permute.xlu0 %1574
  %1578 = vset.pattern.permute.xlu0 0
  %1579 = vperm.xlu0 %1578, %v1441
  %v1580 = vpop.permute.xlu0 %1579
  %1583 = vset.pattern.permute.xlu0 0
  %1584 = vperm.xlu0 %1583, %v1442
  %v1585 = vpop.permute.xlu0 %1584
  %1588 = vset.pattern.permute.xlu0 0
  %1589 = vperm.xlu0 %1588, %v1443
  %v1590 = vpop.permute.xlu0 %1589
  %1593 = vset.pattern.permute.xlu0 0
  %1594 = vperm.xlu0 %1593, %v1444
  %v1595 = vpop.permute.xlu0 %1594
  %1598 = vset.pattern.permute.xlu0 0
  %1599 = vperm.xlu0 %1598, %v1445
  %v1600 = vpop.permute.xlu0 %1599
  %1603 = vset.pattern.permute.xlu0 0
  %1604 = vperm.xlu0 %1603, %v1446
  %v1605 = vpop.permute.xlu0 %1604
  %v1607 = vmul.f32 %v1351, %v1450
  %v1608 = vmul.f32 %v1352, %v1450
  %v1609 = vmul.f32 %v1353, %v1455
  %v1610 = vmul.f32 %v1354, %v1455
  %v1611 = vmul.f32 %v1355, %v1460
  %v1612 = vmul.f32 %v1356, %v1460
  %v1613 = vmul.f32 %v1357, %v1465
  %v1614 = vmul.f32 %v1358, %v1465
  %v1615 = vmul.f32 %v1359, %v1470
  %v1616 = vmul.f32 %v1360, %v1470
  %v1617 = vmul.f32 %v1361, %v1475
  %v1618 = vmul.f32 %v1362, %v1475
  %v1619 = vmul.f32 %v1363, %v1480
  %v1620 = vmul.f32 %v1364, %v1480
  %v1621 = vmul.f32 %v1365, %v1485
  %v1622 = vmul.f32 %v1366, %v1485
  %v1623 = vmul.f32 %v1367, %v1490
  %v1624 = vmul.f32 %v1368, %v1490
  %v1625 = vmul.f32 %v1369, %v1495
  %v1626 = vmul.f32 %v1370, %v1495
  %v1627 = vmul.f32 %v1371, %v1500
  %v1628 = vmul.f32 %v1372, %v1500
  %v1629 = vmul.f32 %v1373, %v1505
  %v1630 = vmul.f32 %v1374, %v1505
  %v1631 = vmul.f32 %v1375, %v1510
  %v1632 = vmul.f32 %v1376, %v1510
  %v1633 = vmul.f32 %v1377, %v1515
  %v1634 = vmul.f32 %v1378, %v1515
  %v1635 = vmul.f32 %v1379, %v1520
  %v1636 = vmul.f32 %v1380, %v1520
  %v1637 = vmul.f32 %v1381, %v1525
  %v1638 = vmul.f32 %v1382, %v1525
  %v1639 = vmul.f32 %v1383, %v1530
  %v1640 = vmul.f32 %v1384, %v1530
  %v1641 = vmul.f32 %v1385, %v1535
  %v1642 = vmul.f32 %v1386, %v1535
  %v1643 = vmul.f32 %v1387, %v1540
  %v1644 = vmul.f32 %v1388, %v1540
  %v1645 = vmul.f32 %v1389, %v1545
  %v1646 = vmul.f32 %v1390, %v1545
  %v1647 = vmul.f32 %v1391, %v1550
  %v1648 = vmul.f32 %v1392, %v1550
  %v1649 = vmul.f32 %v1393, %v1555
  %v1650 = vmul.f32 %v1394, %v1555
  %v1651 = vmul.f32 %v1395, %v1560
  %v1652 = vmul.f32 %v1396, %v1560
  %v1653 = vmul.f32 %v1397, %v1565
  %v1654 = vmul.f32 %v1398, %v1565
  %v1655 = vmul.f32 %v1399, %v1570
  %v1656 = vmul.f32 %v1400, %v1570
  %v1657 = vmul.f32 %v1401, %v1575
  %v1658 = vmul.f32 %v1402, %v1575
  %v1659 = vmul.f32 %v1403, %v1580
  %v1660 = vmul.f32 %v1404, %v1580
  %v1661 = vmul.f32 %v1405, %v1585
  %v1662 = vmul.f32 %v1406, %v1585
  %v1663 = vmul.f32 %v1407, %v1590
  %v1664 = vmul.f32 %v1408, %v1590
  %v1665 = vmul.f32 %v1409, %v1595
  %v1666 = vmul.f32 %v1410, %v1595
  %v1667 = vmul.f32 %v1411, %v1600
  %v1668 = vmul.f32 %v1412, %v1600
  %v1669 = vmul.f32 %v1413, %v1605
  %v1670 = vmul.f32 %v1414, %v1605
  %v1671 = vld [vmem:[%s3] sm:$0xff]
  %v1672 = vld [vmem:[%s3 + $0x8] sm:$0xff]
  %v1673 = vld [vmem:[%s3 + $0x10] sm:$0xff]
  %v1674 = vld [vmem:[%s3 + $0x18] sm:$0xff]
  %v1675 = vld [vmem:[%s3 + $0x20] sm:$0xff]
  %v1676 = vld [vmem:[%s3 + $0x28] sm:$0xff]
  %v1677 = vld [vmem:[%s3 + $0x30] sm:$0xff]
  %v1678 = vld [vmem:[%s3 + $0x38] sm:$0xff]
  %v1679 = vld [vmem:[%s3 + $0x40] sm:$0xff]
  %v1680 = vld [vmem:[%s3 + $0x48] sm:$0xff]
  %v1681 = vld [vmem:[%s3 + $0x50] sm:$0xff]
  %v1682 = vld [vmem:[%s3 + $0x58] sm:$0xff]
  %v1683 = vld [vmem:[%s3 + $0x60] sm:$0xff]
  %v1684 = vld [vmem:[%s3 + $0x68] sm:$0xff]
  %v1685 = vld [vmem:[%s3 + $0x70] sm:$0xff]
  %v1686 = vld [vmem:[%s3 + $0x78] sm:$0xff]
  %v1687 = vld [vmem:[%s3 + $0x80] sm:$0xff]
  %v1688 = vld [vmem:[%s3 + $0x88] sm:$0xff]
  %v1689 = vld [vmem:[%s3 + $0x90] sm:$0xff]
  %v1690 = vld [vmem:[%s3 + $0x98] sm:$0xff]
  %v1691 = vld [vmem:[%s3 + $0xa0] sm:$0xff]
  %v1692 = vld [vmem:[%s3 + $0xa8] sm:$0xff]
  %v1693 = vld [vmem:[%s3 + $0xb0] sm:$0xff]
  %v1694 = vld [vmem:[%s3 + $0xb8] sm:$0xff]
  %v1695 = vld [vmem:[%s3 + $0xc0] sm:$0xff]
  %v1696 = vld [vmem:[%s3 + $0xc8] sm:$0xff]
  %v1697 = vld [vmem:[%s3 + $0xd0] sm:$0xff]
  %v1698 = vld [vmem:[%s3 + $0xd8] sm:$0xff]
  %v1699 = vld [vmem:[%s3 + $0xe0] sm:$0xff]
  %v1700 = vld [vmem:[%s3 + $0xe8] sm:$0xff]
  %v1701 = vld [vmem:[%s3 + $0xf0] sm:$0xff]
  %v1702 = vld [vmem:[%s3 + $0xf8] sm:$0xff]
  %1704 = vset.pattern.permute.xlu0 0
  %1705 = vperm.xlu0 %1704, %v1671
  %v1706 = vpop.permute.xlu0 %1705
  %1709 = vset.pattern.permute.xlu0 0
  %1710 = vperm.xlu0 %1709, %v1672
  %v1711 = vpop.permute.xlu0 %1710
  %1714 = vset.pattern.permute.xlu0 0
  %1715 = vperm.xlu0 %1714, %v1673
  %v1716 = vpop.permute.xlu0 %1715
  %1719 = vset.pattern.permute.xlu0 0
  %1720 = vperm.xlu0 %1719, %v1674
  %v1721 = vpop.permute.xlu0 %1720
  %1724 = vset.pattern.permute.xlu0 0
  %1725 = vperm.xlu0 %1724, %v1675
  %v1726 = vpop.permute.xlu0 %1725
  %1729 = vset.pattern.permute.xlu0 0
  %1730 = vperm.xlu0 %1729, %v1676
  %v1731 = vpop.permute.xlu0 %1730
  %1734 = vset.pattern.permute.xlu0 0
  %1735 = vperm.xlu0 %1734, %v1677
  %v1736 = vpop.permute.xlu0 %1735
  %1739 = vset.pattern.permute.xlu0 0
  %1740 = vperm.xlu0 %1739, %v1678
  %v1741 = vpop.permute.xlu0 %1740
  %1744 = vset.pattern.permute.xlu0 0
  %1745 = vperm.xlu0 %1744, %v1679
  %v1746 = vpop.permute.xlu0 %1745
  %1749 = vset.pattern.permute.xlu0 0
  %1750 = vperm.xlu0 %1749, %v1680
  %v1751 = vpop.permute.xlu0 %1750
  %1754 = vset.pattern.permute.xlu0 0
  %1755 = vperm.xlu0 %1754, %v1681
  %v1756 = vpop.permute.xlu0 %1755
  %1759 = vset.pattern.permute.xlu0 0
  %1760 = vperm.xlu0 %1759, %v1682
  %v1761 = vpop.permute.xlu0 %1760
  %1764 = vset.pattern.permute.xlu0 0
  %1765 = vperm.xlu0 %1764, %v1683
  %v1766 = vpop.permute.xlu0 %1765
  %1769 = vset.pattern.permute.xlu0 0
  %1770 = vperm.xlu0 %1769, %v1684
  %v1771 = vpop.permute.xlu0 %1770
  %1774 = vset.pattern.permute.xlu0 0
  %1775 = vperm.xlu0 %1774, %v1685
  %v1776 = vpop.permute.xlu0 %1775
  %1779 = vset.pattern.permute.xlu0 0
  %1780 = vperm.xlu0 %1779, %v1686
  %v1781 = vpop.permute.xlu0 %1780
  %1784 = vset.pattern.permute.xlu0 0
  %1785 = vperm.xlu0 %1784, %v1687
  %v1786 = vpop.permute.xlu0 %1785
  %1789 = vset.pattern.permute.xlu0 0
  %1790 = vperm.xlu0 %1789, %v1688
  %v1791 = vpop.permute.xlu0 %1790
  %1794 = vset.pattern.permute.xlu0 0
  %1795 = vperm.xlu0 %1794, %v1689
  %v1796 = vpop.permute.xlu0 %1795
  %1799 = vset.pattern.permute.xlu0 0
  %1800 = vperm.xlu0 %1799, %v1690
  %v1801 = vpop.permute.xlu0 %1800
  %1804 = vset.pattern.permute.xlu0 0
  %1805 = vperm.xlu0 %1804, %v1691
  %v1806 = vpop.permute.xlu0 %1805
  %1809 = vset.pattern.permute.xlu0 0
  %1810 = vperm.xlu0 %1809, %v1692
  %v1811 = vpop.permute.xlu0 %1810
  %1814 = vset.pattern.permute.xlu0 0
  %1815 = vperm.xlu0 %1814, %v1693
  %v1816 = vpop.permute.xlu0 %1815
  %1819 = vset.pattern.permute.xlu0 0
  %1820 = vperm.xlu0 %1819, %v1694
  %v1821 = vpop.permute.xlu0 %1820
  %1824 = vset.pattern.permute.xlu0 0
  %1825 = vperm.xlu0 %1824, %v1695
  %v1826 = vpop.permute.xlu0 %1825
  %1829 = vset.pattern.permute.xlu0 0
  %1830 = vperm.xlu0 %1829, %v1696
  %v1831 = vpop.permute.xlu0 %1830
  %1834 = vset.pattern.permute.xlu0 0
  %1835 = vperm.xlu0 %1834, %v1697
  %v1836 = vpop.permute.xlu0 %1835
  %1839 = vset.pattern.permute.xlu0 0
  %1840 = vperm.xlu0 %1839, %v1698
  %v1841 = vpop.permute.xlu0 %1840
  %1844 = vset.pattern.permute.xlu0 0
  %1845 = vperm.xlu0 %1844, %v1699
  %v1846 = vpop.permute.xlu0 %1845
  %1849 = vset.pattern.permute.xlu0 0
  %1850 = vperm.xlu0 %1849, %v1700
  %v1851 = vpop.permute.xlu0 %1850
  %1854 = vset.pattern.permute.xlu0 0
  %1855 = vperm.xlu0 %1854, %v1701
  %v1856 = vpop.permute.xlu0 %1855
  %1859 = vset.pattern.permute.xlu0 0
  %1860 = vperm.xlu0 %1859, %v1702
  %v1861 = vpop.permute.xlu0 %1860
  %v1863 = vadd.f32 %v1607, %v1706
  %v1864 = vadd.f32 %v1608, %v1706
  %v1865 = vadd.f32 %v1609, %v1711
  %v1866 = vadd.f32 %v1610, %v1711
  %v1867 = vadd.f32 %v1611, %v1716
  %v1868 = vadd.f32 %v1612, %v1716
  %v1869 = vadd.f32 %v1613, %v1721
  %v1870 = vadd.f32 %v1614, %v1721
  %v1871 = vadd.f32 %v1615, %v1726
  %v1872 = vadd.f32 %v1616, %v1726
  %v1873 = vadd.f32 %v1617, %v1731
  %v1874 = vadd.f32 %v1618, %v1731
  %v1875 = vadd.f32 %v1619, %v1736
  %v1876 = vadd.f32 %v1620, %v1736
  %v1877 = vadd.f32 %v1621, %v1741
  %v1878 = vadd.f32 %v1622, %v1741
  %v1879 = vadd.f32 %v1623, %v1746
  %v1880 = vadd.f32 %v1624, %v1746
  %v1881 = vadd.f32 %v1625, %v1751
  %v1882 = vadd.f32 %v1626, %v1751
  %v1883 = vadd.f32 %v1627, %v1756
  %v1884 = vadd.f32 %v1628, %v1756
  %v1885 = vadd.f32 %v1629, %v1761
  %v1886 = vadd.f32 %v1630, %v1761
  %v1887 = vadd.f32 %v1631, %v1766
  %v1888 = vadd.f32 %v1632, %v1766
  %v1889 = vadd.f32 %v1633, %v1771
  %v1890 = vadd.f32 %v1634, %v1771
  %v1891 = vadd.f32 %v1635, %v1776
  %v1892 = vadd.f32 %v1636, %v1776
  %v1893 = vadd.f32 %v1637, %v1781
  %v1894 = vadd.f32 %v1638, %v1781
  %v1895 = vadd.f32 %v1639, %v1786
  %v1896 = vadd.f32 %v1640, %v1786
  %v1897 = vadd.f32 %v1641, %v1791
  %v1898 = vadd.f32 %v1642, %v1791
  %v1899 = vadd.f32 %v1643, %v1796
  %v1900 = vadd.f32 %v1644, %v1796
  %v1901 = vadd.f32 %v1645, %v1801
  %v1902 = vadd.f32 %v1646, %v1801
  %v1903 = vadd.f32 %v1647, %v1806
  %v1904 = vadd.f32 %v1648, %v1806
  %v1905 = vadd.f32 %v1649, %v1811
  %v1906 = vadd.f32 %v1650, %v1811
  %v1907 = vadd.f32 %v1651, %v1816
  %v1908 = vadd.f32 %v1652, %v1816
  %v1909 = vadd.f32 %v1653, %v1821
  %v1910 = vadd.f32 %v1654, %v1821
  %v1911 = vadd.f32 %v1655, %v1826
  %v1912 = vadd.f32 %v1656, %v1826
  %v1913 = vadd.f32 %v1657, %v1831
  %v1914 = vadd.f32 %v1658, %v1831
  %v1915 = vadd.f32 %v1659, %v1836
  %v1916 = vadd.f32 %v1660, %v1836
  %v1917 = vadd.f32 %v1661, %v1841
  %v1918 = vadd.f32 %v1662, %v1841
  %v1919 = vadd.f32 %v1663, %v1846
  %v1920 = vadd.f32 %v1664, %v1846
  %v1921 = vadd.f32 %v1665, %v1851
  %v1922 = vadd.f32 %v1666, %v1851
  %v1923 = vadd.f32 %v1667, %v1856
  %v1924 = vadd.f32 %v1668, %v1856
  %v1925 = vadd.f32 %v1669, %v1861
  %v1926 = vadd.f32 %v1670, %v1861
  %v1927 = vpack.c.bf16 %v136, %v134
  %v1928 = vpack.c.bf16 %v137, %v135
  %v1929 = vpack.c.bf16 %v140, %v138
  %v1930 = vpack.c.bf16 %v141, %v139
  %v1931 = vpack.c.bf16 %v144, %v142
  %v1932 = vpack.c.bf16 %v145, %v143
  %v1933 = vpack.c.bf16 %v148, %v146
  %v1934 = vpack.c.bf16 %v149, %v147
  %v1935 = vpack.c.bf16 %v152, %v150
  %v1936 = vpack.c.bf16 %v153, %v151
  %v1937 = vpack.c.bf16 %v156, %v154
  %v1938 = vpack.c.bf16 %v157, %v155
  %v1939 = vpack.c.bf16 %v160, %v158
  %v1940 = vpack.c.bf16 %v161, %v159
  %v1941 = vpack.c.bf16 %v164, %v162
  %v1942 = vpack.c.bf16 %v165, %v163
  %v1943 = vpack.c.bf16 %v168, %v166
  %v1944 = vpack.c.bf16 %v169, %v167
  %v1945 = vpack.c.bf16 %v172, %v170
  %v1946 = vpack.c.bf16 %v173, %v171
  %v1947 = vpack.c.bf16 %v176, %v174
  %v1948 = vpack.c.bf16 %v177, %v175
  %v1949 = vpack.c.bf16 %v180, %v178
  %v1950 = vpack.c.bf16 %v181, %v179
  %v1951 = vpack.c.bf16 %v184, %v182
  %v1952 = vpack.c.bf16 %v185, %v183
  %v1953 = vpack.c.bf16 %v188, %v186
  %v1954 = vpack.c.bf16 %v189, %v187
  %v1955 = vpack.c.bf16 %v192, %v190
  %v1956 = vpack.c.bf16 %v193, %v191
  %v1957 = vpack.c.bf16 %v196, %v194
  %v1958 = vpack.c.bf16 %v197, %v195
  %1959 = vmatprep.subr.bf16.mxu0 %v1942
  %1960 = vmatpush1.bf16.msra.mxu0 %v1941
  %1961 = vmatprep.subr.bf16.mxu0 %v1940
  %1962 = vmatpush1.bf16.msra.mxu0 %v1939
  %1963 = vmatprep.subr.bf16.mxu0 %v1938
  %1964 = vmatpush1.bf16.msra.mxu0 %v1937
  %1965 = vmatprep.subr.bf16.mxu0 %v1936
  %1966 = vmatpush1.bf16.msra.mxu0 %v1935
  %1967 = vmatprep.subr.bf16.mxu0 %v1934
  %1968 = vmatpush1.bf16.msra.mxu0 %v1933
  %1969 = vmatprep.subr.bf16.mxu0 %v1932
  %1970 = vmatpush1.bf16.msra.mxu0 %v1931
  %1971 = vmatprep.subr.bf16.mxu0 %v1930
  %1972 = vmatpush1.bf16.msra.mxu0 %v1929
  %1973 = vmatprep.subr.bf16.mxu0 %v1928
  %1974 = vmatpush1.bf16.msra.mxu0 %v1927
  %1975 = vmatprep.subr.bf16.mxu0 %v1958
  %1976 = vmatpush2.bf16.msra.mxu0 %v1957
  %1977 = vmatprep.subr.bf16.mxu0 %v1956
  %1978 = vmatpush2.bf16.msra.mxu0 %v1955
  %1979 = vmatprep.subr.bf16.mxu0 %v1954
  %1980 = vmatpush2.bf16.msra.mxu0 %v1953
  %1981 = vmatprep.subr.bf16.mxu0 %v1952
  %1982 = vmatpush2.bf16.msra.mxu0 %v1951
  %1983 = vmatprep.subr.bf16.mxu0 %v1950
  %1984 = vmatpush2.bf16.msra.mxu0 %v1949
  %1985 = vmatprep.subr.bf16.mxu0 %v1948
  %1986 = vmatpush2.bf16.msra.mxu0 %v1947
  %1987 = vmatprep.subr.bf16.mxu0 %v1946
  %1988 = vmatpush2.bf16.msra.mxu0 %v1945
  %1989 = vmatprep.subr.bf16.mxu0 %v1944
  %1990 = vmatpush2.bf16.msra.mxu0 %v1943
  %1991 = vmatprep.mubr.bf16.mxu0 %v551
  %1992 = vmatmul.mubr.bf16.gmra.mxu0 %v550
  %v1993 = vpop.f32.mrf.mxu0
  %v1994 = vadd.f32 %v297, %v1993
  %v1995 = vpop.f32.mrf.mxu0
  %v1996 = vadd.f32 %v297, %v1995
  %v1997 = vpop.f32.mrf.mxu0
  %v1998 = vadd.f32 %v302, %v1997
  %v1999 = vpop.f32.mrf.mxu0
  %v2000 = vadd.f32 %v302, %v1999
  %2001 = vmatprep.mubr.bf16.mxu0 %v553
  %2002 = vmatmul.mubr.bf16.gmra.mxu0 %v552
  %v2003 = vpop.f32.mrf.mxu0
  %v2004 = vadd.f32 %v307, %v2003
  %v2005 = vpop.f32.mrf.mxu0
  %v2006 = vadd.f32 %v307, %v2005
  %v2007 = vpop.f32.mrf.mxu0
  %v2008 = vadd.f32 %v312, %v2007
  %v2009 = vpop.f32.mrf.mxu0
  %v2010 = vadd.f32 %v312, %v2009
  %2011 = vmatprep.mubr.bf16.mxu0 %v555
  %2012 = vmatmul.mubr.bf16.gmra.mxu0 %v554
  %v2013 = vpop.f32.mrf.mxu0
  %v2014 = vadd.f32 %v317, %v2013
  %v2015 = vpop.f32.mrf.mxu0
  %v2016 = vadd.f32 %v317, %v2015
  %v2017 = vpop.f32.mrf.mxu0
  %v2018 = vadd.f32 %v322, %v2017
  %v2019 = vpop.f32.mrf.mxu0
  %v2020 = vadd.f32 %v322, %v2019
  %2021 = vmatprep.mubr.bf16.mxu0 %v557
  %2022 = vmatmul.mubr.bf16.gmra.mxu0 %v556
  %v2023 = vpop.f32.mrf.mxu0
  %v2024 = vadd.f32 %v327, %v2023
  %v2025 = vpop.f32.mrf.mxu0
  %v2026 = vadd.f32 %v327, %v2025
  %v2027 = vpop.f32.mrf.mxu0
  %v2028 = vadd.f32 %v332, %v2027
  %v2029 = vpop.f32.mrf.mxu0
  %v2030 = vadd.f32 %v332, %v2029
  %2031 = vmatprep.mubr.bf16.mxu0 %v559
  %2032 = vmatmul.mubr.bf16.gmra.mxu0 %v558
  %v2033 = vpop.f32.mrf.mxu0
  %v2034 = vadd.f32 %v337, %v2033
  %v2035 = vpop.f32.mrf.mxu0
  %v2036 = vadd.f32 %v337, %v2035
  %v2037 = vpop.f32.mrf.mxu0
  %v2038 = vadd.f32 %v342, %v2037
  %v2039 = vpop.f32.mrf.mxu0
  %v2040 = vadd.f32 %v342, %v2039
  %2041 = vmatprep.mubr.bf16.mxu0 %v561
  %2042 = vmatmul.mubr.bf16.gmra.mxu0 %v560
  %v2043 = vpop.f32.mrf.mxu0
  %v2044 = vadd.f32 %v347, %v2043
  %v2045 = vpop.f32.mrf.mxu0
  %v2046 = vadd.f32 %v347, %v2045
  %v2047 = vpop.f32.mrf.mxu0
  %v2048 = vadd.f32 %v352, %v2047
  %v2049 = vpop.f32.mrf.mxu0
  %v2050 = vadd.f32 %v352, %v2049
  %2051 = vmatprep.mubr.bf16.mxu0 %v563
  %2052 = vmatmul.mubr.bf16.gmra.mxu0 %v562
  %v2053 = vpop.f32.mrf.mxu0
  %v2054 = vadd.f32 %v357, %v2053
  %v2055 = vpop.f32.mrf.mxu0
  %v2056 = vadd.f32 %v357, %v2055
  %v2057 = vpop.f32.mrf.mxu0
  %v2058 = vadd.f32 %v362, %v2057
  %v2059 = vpop.f32.mrf.mxu0
  %v2060 = vadd.f32 %v362, %v2059
  %2061 = vmatprep.mubr.bf16.mxu0 %v565
  %2062 = vmatmul.mubr.bf16.gmra.mxu0 %v564
  %v2063 = vpop.f32.mrf.mxu0
  %v2064 = vadd.f32 %v367, %v2063
  %v2065 = vpop.f32.mrf.mxu0
  %v2066 = vadd.f32 %v367, %v2065
  %v2067 = vpop.f32.mrf.mxu0
  %v2068 = vadd.f32 %v372, %v2067
  %v2069 = vpop.f32.mrf.mxu0
  %v2070 = vadd.f32 %v372, %v2069
  %2071 = vmatprep.mubr.bf16.mxu0 %v567
  %2072 = vmatmul.mubr.bf16.gmra.mxu0 %v566
  %v2073 = vpop.f32.mrf.mxu0
  %v2074 = vadd.f32 %v377, %v2073
  %v2075 = vpop.f32.mrf.mxu0
  %v2076 = vadd.f32 %v377, %v2075
  %v2077 = vpop.f32.mrf.mxu0
  %v2078 = vadd.f32 %v382, %v2077
  %v2079 = vpop.f32.mrf.mxu0
  %v2080 = vadd.f32 %v382, %v2079
  %2081 = vmatprep.mubr.bf16.mxu0 %v569
  %2082 = vmatmul.mubr.bf16.gmra.mxu0 %v568
  %v2083 = vpop.f32.mrf.mxu0
  %v2084 = vadd.f32 %v387, %v2083
  %v2085 = vpop.f32.mrf.mxu0
  %v2086 = vadd.f32 %v387, %v2085
  %v2087 = vpop.f32.mrf.mxu0
  %v2088 = vadd.f32 %v392, %v2087
  %v2089 = vpop.f32.mrf.mxu0
  %v2090 = vadd.f32 %v392, %v2089
  %2091 = vmatprep.mubr.bf16.mxu0 %v571
  %2092 = vmatmul.mubr.bf16.gmra.mxu0 %v570
  %v2093 = vpop.f32.mrf.mxu0
  %v2094 = vadd.f32 %v397, %v2093
  %v2095 = vpop.f32.mrf.mxu0
  %v2096 = vadd.f32 %v397, %v2095
  %v2097 = vpop.f32.mrf.mxu0
  %v2098 = vadd.f32 %v402, %v2097
  %v2099 = vpop.f32.mrf.mxu0
  %v2100 = vadd.f32 %v402, %v2099
  %2101 = vmatprep.mubr.bf16.mxu0 %v573
  %2102 = vmatmul.mubr.bf16.gmra.mxu0 %v572
  %v2103 = vpop.f32.mrf.mxu0
  %v2104 = vadd.f32 %v407, %v2103
  %v2105 = vpop.f32.mrf.mxu0
  %v2106 = vadd.f32 %v407, %v2105
  %v2107 = vpop.f32.mrf.mxu0
  %v2108 = vadd.f32 %v412, %v2107
  %v2109 = vpop.f32.mrf.mxu0
  %v2110 = vadd.f32 %v412, %v2109
  %2111 = vmatprep.mubr.bf16.mxu0 %v575
  %2112 = vmatmul.mubr.bf16.gmra.mxu0 %v574
  %v2113 = vpop.f32.mrf.mxu0
  %v2114 = vadd.f32 %v417, %v2113
  %v2115 = vpop.f32.mrf.mxu0
  %v2116 = vadd.f32 %v417, %v2115
  %v2117 = vpop.f32.mrf.mxu0
  %v2118 = vadd.f32 %v422, %v2117
  %v2119 = vpop.f32.mrf.mxu0
  %v2120 = vadd.f32 %v422, %v2119
  %2121 = vmatprep.mubr.bf16.mxu0 %v577
  %2122 = vmatmul.mubr.bf16.gmra.mxu0 %v576
  %v2123 = vpop.f32.mrf.mxu0
  %v2124 = vadd.f32 %v427, %v2123
  %v2125 = vpop.f32.mrf.mxu0
  %v2126 = vadd.f32 %v427, %v2125
  %v2127 = vpop.f32.mrf.mxu0
  %v2128 = vadd.f32 %v432, %v2127
  %v2129 = vpop.f32.mrf.mxu0
  %v2130 = vadd.f32 %v432, %v2129
  %2131 = vmatprep.mubr.bf16.mxu0 %v579
  %2132 = vmatmul.mubr.bf16.gmra.mxu0 %v578
  %v2133 = vpop.f32.mrf.mxu0
  %v2134 = vadd.f32 %v437, %v2133
  %v2135 = vpop.f32.mrf.mxu0
  %v2136 = vadd.f32 %v437, %v2135
  %v2137 = vpop.f32.mrf.mxu0
  %v2138 = vadd.f32 %v442, %v2137
  %v2139 = vpop.f32.mrf.mxu0
  %v2140 = vadd.f32 %v442, %v2139
  %2141 = vmatprep.mubr.bf16.mxu0 %v581
  %2142 = vmatmul.mubr.bf16.gmra.mxu0 %v580
  %v2143 = vpop.f32.mrf.mxu0
  %v2144 = vadd.f32 %v447, %v2143
  %v2145 = vpop.f32.mrf.mxu0
  %v2146 = vadd.f32 %v447, %v2145
  %v2147 = vpop.f32.mrf.mxu0
  %v2148 = vadd.f32 %v452, %v2147
  %v2149 = vpop.f32.mrf.mxu0
  %v2150 = vadd.f32 %v452, %v2149
  %2151 = vdwg.mxu0
  %v2152 = vadd.f32 %v1994, %v1996
  %2153 = vadd.xlane.f32.xlu0 %v2152
  %v2154 = vpop.xlane.xlu0 %2153
  %v2155 = vadd.f32 %v1998, %v2000
  %2156 = vadd.xlane.f32.xlu0 %v2155
  %v2157 = vpop.xlane.xlu0 %2156
  %v2158 = vadd.f32 %v2004, %v2006
  %2159 = vadd.xlane.f32.xlu0 %v2158
  %v2160 = vpop.xlane.xlu0 %2159
  %v2161 = vadd.f32 %v2008, %v2010
  %2162 = vadd.xlane.f32.xlu0 %v2161
  %v2163 = vpop.xlane.xlu0 %2162
  %v2164 = vadd.f32 %v2014, %v2016
  %2165 = vadd.xlane.f32.xlu0 %v2164
  %v2166 = vpop.xlane.xlu0 %2165
  %v2167 = vadd.f32 %v2018, %v2020
  %2168 = vadd.xlane.f32.xlu0 %v2167
  %v2169 = vpop.xlane.xlu0 %2168
  %v2170 = vadd.f32 %v2024, %v2026
  %2171 = vadd.xlane.f32.xlu0 %v2170
  %v2172 = vpop.xlane.xlu0 %2171
  %v2173 = vadd.f32 %v2028, %v2030
  %2174 = vadd.xlane.f32.xlu0 %v2173
  %v2175 = vpop.xlane.xlu0 %2174
  %v2176 = vadd.f32 %v2034, %v2036
  %2177 = vadd.xlane.f32.xlu0 %v2176
  %v2178 = vpop.xlane.xlu0 %2177
  %v2179 = vadd.f32 %v2038, %v2040
  %2180 = vadd.xlane.f32.xlu0 %v2179
  %v2181 = vpop.xlane.xlu0 %2180
  %v2182 = vadd.f32 %v2044, %v2046
  %2183 = vadd.xlane.f32.xlu0 %v2182
  %v2184 = vpop.xlane.xlu0 %2183
  %v2185 = vadd.f32 %v2048, %v2050
  %2186 = vadd.xlane.f32.xlu0 %v2185
  %v2187 = vpop.xlane.xlu0 %2186
  %v2188 = vadd.f32 %v2054, %v2056
  %2189 = vadd.xlane.f32.xlu0 %v2188
  %v2190 = vpop.xlane.xlu0 %2189
  %v2191 = vadd.f32 %v2058, %v2060
  %2192 = vadd.xlane.f32.xlu0 %v2191
  %v2193 = vpop.xlane.xlu0 %2192
  %v2194 = vadd.f32 %v2064, %v2066
  %2195 = vadd.xlane.f32.xlu0 %v2194
  %v2196 = vpop.xlane.xlu0 %2195
  %v2197 = vadd.f32 %v2068, %v2070
  %2198 = vadd.xlane.f32.xlu0 %v2197
  %v2199 = vpop.xlane.xlu0 %2198
  %v2200 = vadd.f32 %v2074, %v2076
  %2201 = vadd.xlane.f32.xlu0 %v2200
  %v2202 = vpop.xlane.xlu0 %2201
  %v2203 = vadd.f32 %v2078, %v2080
  %2204 = vadd.xlane.f32.xlu0 %v2203
  %v2205 = vpop.xlane.xlu0 %2204
  %v2206 = vadd.f32 %v2084, %v2086
  %2207 = vadd.xlane.f32.xlu0 %v2206
  %v2208 = vpop.xlane.xlu0 %2207
  %v2209 = vadd.f32 %v2088, %v2090
  %2210 = vadd.xlane.f32.xlu0 %v2209
  %v2211 = vpop.xlane.xlu0 %2210
  %v2212 = vadd.f32 %v2094, %v2096
  %2213 = vadd.xlane.f32.xlu0 %v2212
  %v2214 = vpop.xlane.xlu0 %2213
  %v2215 = vadd.f32 %v2098, %v2100
  %2216 = vadd.xlane.f32.xlu0 %v2215
  %v2217 = vpop.xlane.xlu0 %2216
  %v2218 = vadd.f32 %v2104, %v2106
  %2219 = vadd.xlane.f32.xlu0 %v2218
  %v2220 = vpop.xlane.xlu0 %2219
  %v2221 = vadd.f32 %v2108, %v2110
  %2222 = vadd.xlane.f32.xlu0 %v2221
  %v2223 = vpop.xlane.xlu0 %2222
  %v2224 = vadd.f32 %v2114, %v2116
  %2225 = vadd.xlane.f32.xlu0 %v2224
  %v2226 = vpop.xlane.xlu0 %2225
  %v2227 = vadd.f32 %v2118, %v2120
  %2228 = vadd.xlane.f32.xlu0 %v2227
  %v2229 = vpop.xlane.xlu0 %2228
  %v2230 = vadd.f32 %v2124, %v2126
  %2231 = vadd.xlane.f32.xlu0 %v2230
  %v2232 = vpop.xlane.xlu0 %2231
  %v2233 = vadd.f32 %v2128, %v2130
  %2234 = vadd.xlane.f32.xlu0 %v2233
  %v2235 = vpop.xlane.xlu0 %2234
  %v2236 = vadd.f32 %v2134, %v2136
  %2237 = vadd.xlane.f32.xlu0 %v2236
  %v2238 = vpop.xlane.xlu0 %2237
  %v2239 = vadd.f32 %v2138, %v2140
  %2240 = vadd.xlane.f32.xlu0 %v2239
  %v2241 = vpop.xlane.xlu0 %2240
  %v2242 = vadd.f32 %v2144, %v2146
  %2243 = vadd.xlane.f32.xlu0 %v2242
  %v2244 = vpop.xlane.xlu0 %2243
  %v2245 = vadd.f32 %v2148, %v2150
  %2246 = vadd.xlane.f32.xlu0 %v2245
  %v2247 = vpop.xlane.xlu0 %2246
  %v2248 = vmul.f32 %v2154, 0.00390625
  %v2249 = vmul.f32 %v2157, 0.00390625
  %v2250 = vmul.f32 %v2160, 0.00390625
  %v2251 = vmul.f32 %v2163, 0.00390625
  %v2252 = vmul.f32 %v2166, 0.00390625
  %v2253 = vmul.f32 %v2169, 0.00390625
  %v2254 = vmul.f32 %v2172, 0.00390625
  %v2255 = vmul.f32 %v2175, 0.00390625
  %v2256 = vmul.f32 %v2178, 0.00390625
  %v2257 = vmul.f32 %v2181, 0.00390625
  %v2258 = vmul.f32 %v2184, 0.00390625
  %v2259 = vmul.f32 %v2187, 0.00390625
  %v2260 = vmul.f32 %v2190, 0.00390625
  %v2261 = vmul.f32 %v2193, 0.00390625
  %v2262 = vmul.f32 %v2196, 0.00390625
  %v2263 = vmul.f32 %v2199, 0.00390625
  %v2264 = vmul.f32 %v2202, 0.00390625
  %v2265 = vmul.f32 %v2205, 0.00390625
  %v2266 = vmul.f32 %v2208, 0.00390625
  %v2267 = vmul.f32 %v2211, 0.00390625
  %v2268 = vmul.f32 %v2214, 0.00390625
  %v2269 = vmul.f32 %v2217, 0.00390625
  %v2270 = vmul.f32 %v2220, 0.00390625
  %v2271 = vmul.f32 %v2223, 0.00390625
  %v2272 = vmul.f32 %v2226, 0.00390625
  %v2273 = vmul.f32 %v2229, 0.00390625
  %v2274 = vmul.f32 %v2232, 0.00390625
  %v2275 = vmul.f32 %v2235, 0.00390625
  %v2276 = vmul.f32 %v2238, 0.00390625
  %v2277 = vmul.f32 %v2241, 0.00390625
  %v2278 = vmul.f32 %v2244, 0.00390625
  %v2279 = vmul.f32 %v2247, 0.00390625
  %v2280 = vmul.f32 %v1994, %v1994
  %v2281 = vmul.f32 %v1996, %v1996
  %v2282 = vmul.f32 %v1998, %v1998
  %v2283 = vmul.f32 %v2000, %v2000
  %v2284 = vmul.f32 %v2004, %v2004
  %v2285 = vmul.f32 %v2006, %v2006
  %v2286 = vmul.f32 %v2008, %v2008
  %v2287 = vmul.f32 %v2010, %v2010
  %v2288 = vmul.f32 %v2014, %v2014
  %v2289 = vmul.f32 %v2016, %v2016
  %v2290 = vmul.f32 %v2018, %v2018
  %v2291 = vmul.f32 %v2020, %v2020
  %v2292 = vmul.f32 %v2024, %v2024
  %v2293 = vmul.f32 %v2026, %v2026
  %v2294 = vmul.f32 %v2028, %v2028
  %v2295 = vmul.f32 %v2030, %v2030
  %v2296 = vmul.f32 %v2034, %v2034
  %v2297 = vmul.f32 %v2036, %v2036
  %v2298 = vmul.f32 %v2038, %v2038
  %v2299 = vmul.f32 %v2040, %v2040
  %v2300 = vmul.f32 %v2044, %v2044
  %v2301 = vmul.f32 %v2046, %v2046
  %v2302 = vmul.f32 %v2048, %v2048
  %v2303 = vmul.f32 %v2050, %v2050
  %v2304 = vmul.f32 %v2054, %v2054
  %v2305 = vmul.f32 %v2056, %v2056
  %v2306 = vmul.f32 %v2058, %v2058
  %v2307 = vmul.f32 %v2060, %v2060
  %v2308 = vmul.f32 %v2064, %v2064
  %v2309 = vmul.f32 %v2066, %v2066
  %v2310 = vmul.f32 %v2068, %v2068
  %v2311 = vmul.f32 %v2070, %v2070
  %v2312 = vmul.f32 %v2074, %v2074
  %v2313 = vmul.f32 %v2076, %v2076
  %v2314 = vmul.f32 %v2078, %v2078
  %v2315 = vmul.f32 %v2080, %v2080
  %v2316 = vmul.f32 %v2084, %v2084
  %v2317 = vmul.f32 %v2086, %v2086
  %v2318 = vmul.f32 %v2088, %v2088
  %v2319 = vmul.f32 %v2090, %v2090
  %v2320 = vmul.f32 %v2094, %v2094
  %v2321 = vmul.f32 %v2096, %v2096
  %v2322 = vmul.f32 %v2098, %v2098
  %v2323 = vmul.f32 %v2100, %v2100
  %v2324 = vmul.f32 %v2104, %v2104
  %v2325 = vmul.f32 %v2106, %v2106
  %v2326 = vmul.f32 %v2108, %v2108
  %v2327 = vmul.f32 %v2110, %v2110
  %v2328 = vmul.f32 %v2114, %v2114
  %v2329 = vmul.f32 %v2116, %v2116
  %v2330 = vmul.f32 %v2118, %v2118
  %v2331 = vmul.f32 %v2120, %v2120
  %v2332 = vmul.f32 %v2124, %v2124
  %v2333 = vmul.f32 %v2126, %v2126
  %v2334 = vmul.f32 %v2128, %v2128
  %v2335 = vmul.f32 %v2130, %v2130
  %v2336 = vmul.f32 %v2134, %v2134
  %v2337 = vmul.f32 %v2136, %v2136
  %v2338 = vmul.f32 %v2138, %v2138
  %v2339 = vmul.f32 %v2140, %v2140
  %v2340 = vmul.f32 %v2144, %v2144
  %v2341 = vmul.f32 %v2146, %v2146
  %v2342 = vmul.f32 %v2148, %v2148
  %v2343 = vmul.f32 %v2150, %v2150
  %v2344 = vadd.f32 %v2280, %v2281
  %2345 = vadd.xlane.f32.xlu0 %v2344
  %v2346 = vpop.xlane.xlu0 %2345
  %v2347 = vadd.f32 %v2282, %v2283
  %2348 = vadd.xlane.f32.xlu0 %v2347
  %v2349 = vpop.xlane.xlu0 %2348
  %v2350 = vadd.f32 %v2284, %v2285
  %2351 = vadd.xlane.f32.xlu0 %v2350
  %v2352 = vpop.xlane.xlu0 %2351
  %v2353 = vadd.f32 %v2286, %v2287
  %2354 = vadd.xlane.f32.xlu0 %v2353
  %v2355 = vpop.xlane.xlu0 %2354
  %v2356 = vadd.f32 %v2288, %v2289
  %2357 = vadd.xlane.f32.xlu0 %v2356
  %v2358 = vpop.xlane.xlu0 %2357
  %v2359 = vadd.f32 %v2290, %v2291
  %2360 = vadd.xlane.f32.xlu0 %v2359
  %v2361 = vpop.xlane.xlu0 %2360
  %v2362 = vadd.f32 %v2292, %v2293
  %2363 = vadd.xlane.f32.xlu0 %v2362
  %v2364 = vpop.xlane.xlu0 %2363
  %v2365 = vadd.f32 %v2294, %v2295
  %2366 = vadd.xlane.f32.xlu0 %v2365
  %v2367 = vpop.xlane.xlu0 %2366
  %v2368 = vadd.f32 %v2296, %v2297
  %2369 = vadd.xlane.f32.xlu0 %v2368
  %v2370 = vpop.xlane.xlu0 %2369
  %v2371 = vadd.f32 %v2298, %v2299
  %2372 = vadd.xlane.f32.xlu0 %v2371
  %v2373 = vpop.xlane.xlu0 %2372
  %v2374 = vadd.f32 %v2300, %v2301
  %2375 = vadd.xlane.f32.xlu0 %v2374
  %v2376 = vpop.xlane.xlu0 %2375
  %v2377 = vadd.f32 %v2302, %v2303
  %2378 = vadd.xlane.f32.xlu0 %v2377
  %v2379 = vpop.xlane.xlu0 %2378
  %v2380 = vadd.f32 %v2304, %v2305
  %2381 = vadd.xlane.f32.xlu0 %v2380
  %v2382 = vpop.xlane.xlu0 %2381
  %v2383 = vadd.f32 %v2306, %v2307
  %2384 = vadd.xlane.f32.xlu0 %v2383
  %v2385 = vpop.xlane.xlu0 %2384
  %v2386 = vadd.f32 %v2308, %v2309
  %2387 = vadd.xlane.f32.xlu0 %v2386
  %v2388 = vpop.xlane.xlu0 %2387
  %v2389 = vadd.f32 %v2310, %v2311
  %2390 = vadd.xlane.f32.xlu0 %v2389
  %v2391 = vpop.xlane.xlu0 %2390
  %v2392 = vadd.f32 %v2312, %v2313
  %2393 = vadd.xlane.f32.xlu0 %v2392
  %v2394 = vpop.xlane.xlu0 %2393
  %v2395 = vadd.f32 %v2314, %v2315
  %2396 = vadd.xlane.f32.xlu0 %v2395
  %v2397 = vpop.xlane.xlu0 %2396
  %v2398 = vadd.f32 %v2316, %v2317
  %2399 = vadd.xlane.f32.xlu0 %v2398
  %v2400 = vpop.xlane.xlu0 %2399
  %v2401 = vadd.f32 %v2318, %v2319
  %2402 = vadd.xlane.f32.xlu0 %v2401
  %v2403 = vpop.xlane.xlu0 %2402
  %v2404 = vadd.f32 %v2320, %v2321
  %2405 = vadd.xlane.f32.xlu0 %v2404
  %v2406 = vpop.xlane.xlu0 %2405
  %v2407 = vadd.f32 %v2322, %v2323
  %2408 = vadd.xlane.f32.xlu0 %v2407
  %v2409 = vpop.xlane.xlu0 %2408
  %v2410 = vadd.f32 %v2324, %v2325
  %2411 = vadd.xlane.f32.xlu0 %v2410
  %v2412 = vpop.xlane.xlu0 %2411
  %v2413 = vadd.f32 %v2326, %v2327
  %2414 = vadd.xlane.f32.xlu0 %v2413
  %v2415 = vpop.xlane.xlu0 %2414
  %v2416 = vadd.f32 %v2328, %v2329
  %2417 = vadd.xlane.f32.xlu0 %v2416
  %v2418 = vpop.xlane.xlu0 %2417
  %v2419 = vadd.f32 %v2330, %v2331
  %2420 = vadd.xlane.f32.xlu0 %v2419
  %v2421 = vpop.xlane.xlu0 %2420
  %v2422 = vadd.f32 %v2332, %v2333
  %2423 = vadd.xlane.f32.xlu0 %v2422
  %v2424 = vpop.xlane.xlu0 %2423
  %v2425 = vadd.f32 %v2334, %v2335
  %2426 = vadd.xlane.f32.xlu0 %v2425
  %v2427 = vpop.xlane.xlu0 %2426
  %v2428 = vadd.f32 %v2336, %v2337
  %2429 = vadd.xlane.f32.xlu0 %v2428
  %v2430 = vpop.xlane.xlu0 %2429
  %v2431 = vadd.f32 %v2338, %v2339
  %2432 = vadd.xlane.f32.xlu0 %v2431
  %v2433 = vpop.xlane.xlu0 %2432
  %v2434 = vadd.f32 %v2340, %v2341
  %2435 = vadd.xlane.f32.xlu0 %v2434
  %v2436 = vpop.xlane.xlu0 %2435
  %v2437 = vadd.f32 %v2342, %v2343
  %2438 = vadd.xlane.f32.xlu0 %v2437
  %v2439 = vpop.xlane.xlu0 %2438
  %v2440 = vmul.f32 %v2346, 0.00390625
  %v2441 = vmul.f32 %v2349, 0.00390625
  %v2442 = vmul.f32 %v2352, 0.00390625
  %v2443 = vmul.f32 %v2355, 0.00390625
  %v2444 = vmul.f32 %v2358, 0.00390625
  %v2445 = vmul.f32 %v2361, 0.00390625
  %v2446 = vmul.f32 %v2364, 0.00390625
  %v2447 = vmul.f32 %v2367, 0.00390625
  %v2448 = vmul.f32 %v2370, 0.00390625
  %v2449 = vmul.f32 %v2373, 0.00390625
  %v2450 = vmul.f32 %v2376, 0.00390625
  %v2451 = vmul.f32 %v2379, 0.00390625
  %v2452 = vmul.f32 %v2382, 0.00390625
  %v2453 = vmul.f32 %v2385, 0.00390625
  %v2454 = vmul.f32 %v2388, 0.00390625
  %v2455 = vmul.f32 %v2391, 0.00390625
  %v2456 = vmul.f32 %v2394, 0.00390625
  %v2457 = vmul.f32 %v2397, 0.00390625
  %v2458 = vmul.f32 %v2400, 0.00390625
  %v2459 = vmul.f32 %v2403, 0.00390625
  %v2460 = vmul.f32 %v2406, 0.00390625
  %v2461 = vmul.f32 %v2409, 0.00390625
  %v2462 = vmul.f32 %v2412, 0.00390625
  %v2463 = vmul.f32 %v2415, 0.00390625
  %v2464 = vmul.f32 %v2418, 0.00390625
  %v2465 = vmul.f32 %v2421, 0.00390625
  %v2466 = vmul.f32 %v2424, 0.00390625
  %v2467 = vmul.f32 %v2427, 0.00390625
  %v2468 = vmul.f32 %v2430, 0.00390625
  %v2469 = vmul.f32 %v2433, 0.00390625
  %v2470 = vmul.f32 %v2436, 0.00390625
  %v2471 = vmul.f32 %v2439, 0.00390625
  %v2472 = vmul.f32 %v2248, %v2248
  %v2473 = vmul.f32 %v2249, %v2249
  %v2474 = vmul.f32 %v2250, %v2250
  %v2475 = vmul.f32 %v2251, %v2251
  %v2476 = vmul.f32 %v2252, %v2252
  %v2477 = vmul.f32 %v2253, %v2253
  %v2478 = vmul.f32 %v2254, %v2254
  %v2479 = vmul.f32 %v2255, %v2255
  %v2480 = vmul.f32 %v2256, %v2256
  %v2481 = vmul.f32 %v2257, %v2257
  %v2482 = vmul.f32 %v2258, %v2258
  %v2483 = vmul.f32 %v2259, %v2259
  %v2484 = vmul.f32 %v2260, %v2260
  %v2485 = vmul.f32 %v2261, %v2261
  %v2486 = vmul.f32 %v2262, %v2262
  %v2487 = vmul.f32 %v2263, %v2263
  %v2488 = vmul.f32 %v2264, %v2264
  %v2489 = vmul.f32 %v2265, %v2265
  %v2490 = vmul.f32 %v2266, %v2266
  %v2491 = vmul.f32 %v2267, %v2267
  %v2492 = vmul.f32 %v2268, %v2268
  %v2493 = vmul.f32 %v2269, %v2269
  %v2494 = vmul.f32 %v2270, %v2270
  %v2495 = vmul.f32 %v2271, %v2271
  %v2496 = vmul.f32 %v2272, %v2272
  %v2497 = vmul.f32 %v2273, %v2273
  %v2498 = vmul.f32 %v2274, %v2274
  %v2499 = vmul.f32 %v2275, %v2275
  %v2500 = vmul.f32 %v2276, %v2276
  %v2501 = vmul.f32 %v2277, %v2277
  %v2502 = vmul.f32 %v2278, %v2278
  %v2503 = vmul.f32 %v2279, %v2279
  %v2504 = vsub.f32 %v2440, %v2472
  %v2505 = vsub.f32 %v2441, %v2473
  %v2506 = vsub.f32 %v2442, %v2474
  %v2507 = vsub.f32 %v2443, %v2475
  %v2508 = vsub.f32 %v2444, %v2476
  %v2509 = vsub.f32 %v2445, %v2477
  %v2510 = vsub.f32 %v2446, %v2478
  %v2511 = vsub.f32 %v2447, %v2479
  %v2512 = vsub.f32 %v2448, %v2480
  %v2513 = vsub.f32 %v2449, %v2481
  %v2514 = vsub.f32 %v2450, %v2482
  %v2515 = vsub.f32 %v2451, %v2483
  %v2516 = vsub.f32 %v2452, %v2484
  %v2517 = vsub.f32 %v2453, %v2485
  %v2518 = vsub.f32 %v2454, %v2486
  %v2519 = vsub.f32 %v2455, %v2487
  %v2520 = vsub.f32 %v2456, %v2488
  %v2521 = vsub.f32 %v2457, %v2489
  %v2522 = vsub.f32 %v2458, %v2490
  %v2523 = vsub.f32 %v2459, %v2491
  %v2524 = vsub.f32 %v2460, %v2492
  %v2525 = vsub.f32 %v2461, %v2493
  %v2526 = vsub.f32 %v2462, %v2494
  %v2527 = vsub.f32 %v2463, %v2495
  %v2528 = vsub.f32 %v2464, %v2496
  %v2529 = vsub.f32 %v2465, %v2497
  %v2530 = vsub.f32 %v2466, %v2498
  %v2531 = vsub.f32 %v2467, %v2499
  %v2532 = vsub.f32 %v2468, %v2500
  %v2533 = vsub.f32 %v2469, %v2501
  %v2534 = vsub.f32 %v2470, %v2502
  %v2535 = vsub.f32 %v2471, %v2503
  %v2536 = vmax.f32 %v2504, 0.0
  %v2537 = vmax.f32 %v2505, 0.0
  %v2538 = vmax.f32 %v2506, 0.0
  %v2539 = vmax.f32 %v2507, 0.0
  %v2540 = vmax.f32 %v2508, 0.0
  %v2541 = vmax.f32 %v2509, 0.0
  %v2542 = vmax.f32 %v2510, 0.0
  %v2543 = vmax.f32 %v2511, 0.0
  %v2544 = vmax.f32 %v2512, 0.0
  %v2545 = vmax.f32 %v2513, 0.0
  %v2546 = vmax.f32 %v2514, 0.0
  %v2547 = vmax.f32 %v2515, 0.0
  %v2548 = vmax.f32 %v2516, 0.0
  %v2549 = vmax.f32 %v2517, 0.0
  %v2550 = vmax.f32 %v2518, 0.0
  %v2551 = vmax.f32 %v2519, 0.0
  %v2552 = vmax.f32 %v2520, 0.0
  %v2553 = vmax.f32 %v2521, 0.0
  %v2554 = vmax.f32 %v2522, 0.0
  %v2555 = vmax.f32 %v2523, 0.0
  %v2556 = vmax.f32 %v2524, 0.0
  %v2557 = vmax.f32 %v2525, 0.0
  %v2558 = vmax.f32 %v2526, 0.0
  %v2559 = vmax.f32 %v2527, 0.0
  %v2560 = vmax.f32 %v2528, 0.0
  %v2561 = vmax.f32 %v2529, 0.0
  %v2562 = vmax.f32 %v2530, 0.0
  %v2563 = vmax.f32 %v2531, 0.0
  %v2564 = vmax.f32 %v2532, 0.0
  %v2565 = vmax.f32 %v2533, 0.0
  %v2566 = vmax.f32 %v2534, 0.0
  %v2567 = vmax.f32 %v2535, 0.0
  %v2568 = vsub.f32 %v1994, %v2248
  %v2569 = vsub.f32 %v1996, %v2248
  %v2570 = vsub.f32 %v1998, %v2249
  %v2571 = vsub.f32 %v2000, %v2249
  %v2572 = vsub.f32 %v2004, %v2250
  %v2573 = vsub.f32 %v2006, %v2250
  %v2574 = vsub.f32 %v2008, %v2251
  %v2575 = vsub.f32 %v2010, %v2251
  %v2576 = vsub.f32 %v2014, %v2252
  %v2577 = vsub.f32 %v2016, %v2252
  %v2578 = vsub.f32 %v2018, %v2253
  %v2579 = vsub.f32 %v2020, %v2253
  %v2580 = vsub.f32 %v2024, %v2254
  %v2581 = vsub.f32 %v2026, %v2254
  %v2582 = vsub.f32 %v2028, %v2255
  %v2583 = vsub.f32 %v2030, %v2255
  %v2584 = vsub.f32 %v2034, %v2256
  %v2585 = vsub.f32 %v2036, %v2256
  %v2586 = vsub.f32 %v2038, %v2257
  %v2587 = vsub.f32 %v2040, %v2257
  %v2588 = vsub.f32 %v2044, %v2258
  %v2589 = vsub.f32 %v2046, %v2258
  %v2590 = vsub.f32 %v2048, %v2259
  %v2591 = vsub.f32 %v2050, %v2259
  %v2592 = vsub.f32 %v2054, %v2260
  %v2593 = vsub.f32 %v2056, %v2260
  %v2594 = vsub.f32 %v2058, %v2261
  %v2595 = vsub.f32 %v2060, %v2261
  %v2596 = vsub.f32 %v2064, %v2262
  %v2597 = vsub.f32 %v2066, %v2262
  %v2598 = vsub.f32 %v2068, %v2263
  %v2599 = vsub.f32 %v2070, %v2263
  %v2600 = vsub.f32 %v2074, %v2264
  %v2601 = vsub.f32 %v2076, %v2264
  %v2602 = vsub.f32 %v2078, %v2265
  %v2603 = vsub.f32 %v2080, %v2265
  %v2604 = vsub.f32 %v2084, %v2266
  %v2605 = vsub.f32 %v2086, %v2266
  %v2606 = vsub.f32 %v2088, %v2267
  %v2607 = vsub.f32 %v2090, %v2267
  %v2608 = vsub.f32 %v2094, %v2268
  %v2609 = vsub.f32 %v2096, %v2268
  %v2610 = vsub.f32 %v2098, %v2269
  %v2611 = vsub.f32 %v2100, %v2269
  %v2612 = vsub.f32 %v2104, %v2270
  %v2613 = vsub.f32 %v2106, %v2270
  %v2614 = vsub.f32 %v2108, %v2271
  %v2615 = vsub.f32 %v2110, %v2271
  %v2616 = vsub.f32 %v2114, %v2272
  %v2617 = vsub.f32 %v2116, %v2272
  %v2618 = vsub.f32 %v2118, %v2273
  %v2619 = vsub.f32 %v2120, %v2273
  %v2620 = vsub.f32 %v2124, %v2274
  %v2621 = vsub.f32 %v2126, %v2274
  %v2622 = vsub.f32 %v2128, %v2275
  %v2623 = vsub.f32 %v2130, %v2275
  %v2624 = vsub.f32 %v2134, %v2276
  %v2625 = vsub.f32 %v2136, %v2276
  %v2626 = vsub.f32 %v2138, %v2277
  %v2627 = vsub.f32 %v2140, %v2277
  %v2628 = vsub.f32 %v2144, %v2278
  %v2629 = vsub.f32 %v2146, %v2278
  %v2630 = vsub.f32 %v2148, %v2279
  %v2631 = vsub.f32 %v2150, %v2279
  %v2632 = vadd.f32 %v2536, 1e-05
  %v2633 = vadd.f32 %v2537, 1e-05
  %v2634 = vadd.f32 %v2538, 1e-05
  %v2635 = vadd.f32 %v2539, 1e-05
  %v2636 = vadd.f32 %v2540, 1e-05
  %v2637 = vadd.f32 %v2541, 1e-05
  %v2638 = vadd.f32 %v2542, 1e-05
  %v2639 = vadd.f32 %v2543, 1e-05
  %v2640 = vadd.f32 %v2544, 1e-05
  %v2641 = vadd.f32 %v2545, 1e-05
  %v2642 = vadd.f32 %v2546, 1e-05
  %v2643 = vadd.f32 %v2547, 1e-05
  %v2644 = vadd.f32 %v2548, 1e-05
  %v2645 = vadd.f32 %v2549, 1e-05
  %v2646 = vadd.f32 %v2550, 1e-05
  %v2647 = vadd.f32 %v2551, 1e-05
  %v2648 = vadd.f32 %v2552, 1e-05
  %v2649 = vadd.f32 %v2553, 1e-05
  %v2650 = vadd.f32 %v2554, 1e-05
  %v2651 = vadd.f32 %v2555, 1e-05
  %v2652 = vadd.f32 %v2556, 1e-05
  %v2653 = vadd.f32 %v2557, 1e-05
  %v2654 = vadd.f32 %v2558, 1e-05
  %v2655 = vadd.f32 %v2559, 1e-05
  %v2656 = vadd.f32 %v2560, 1e-05
  %v2657 = vadd.f32 %v2561, 1e-05
  %v2658 = vadd.f32 %v2562, 1e-05
  %v2659 = vadd.f32 %v2563, 1e-05
  %v2660 = vadd.f32 %v2564, 1e-05
  %v2661 = vadd.f32 %v2565, 1e-05
  %v2662 = vadd.f32 %v2566, 1e-05
  %v2663 = vadd.f32 %v2567, 1e-05
  %v2664 = vrsqrt.pop %v2632
  %v2665 = vrsqrt.pop %v2633
  %v2666 = vrsqrt.pop %v2634
  %v2667 = vrsqrt.pop %v2635
  %v2668 = vrsqrt.pop %v2636
  %v2669 = vrsqrt.pop %v2637
  %v2670 = vrsqrt.pop %v2638
  %v2671 = vrsqrt.pop %v2639
  %v2672 = vrsqrt.pop %v2640
  %v2673 = vrsqrt.pop %v2641
  %v2674 = vrsqrt.pop %v2642
  %v2675 = vrsqrt.pop %v2643
  %v2676 = vrsqrt.pop %v2644
  %v2677 = vrsqrt.pop %v2645
  %v2678 = vrsqrt.pop %v2646
  %v2679 = vrsqrt.pop %v2647
  %v2680 = vrsqrt.pop %v2648
  %v2681 = vrsqrt.pop %v2649
  %v2682 = vrsqrt.pop %v2650
  %v2683 = vrsqrt.pop %v2651
  %v2684 = vrsqrt.pop %v2652
  %v2685 = vrsqrt.pop %v2653
  %v2686 = vrsqrt.pop %v2654
  %v2687 = vrsqrt.pop %v2655
  %v2688 = vrsqrt.pop %v2656
  %v2689 = vrsqrt.pop %v2657
  %v2690 = vrsqrt.pop %v2658
  %v2691 = vrsqrt.pop %v2659
  %v2692 = vrsqrt.pop %v2660
  %v2693 = vrsqrt.pop %v2661
  %v2694 = vrsqrt.pop %v2662
  %v2695 = vrsqrt.pop %v2663
  %v2696 = vmul.f32 %v2568, %v2664
  %v2697 = vmul.f32 %v2569, %v2664
  %v2698 = vmul.f32 %v2570, %v2665
  %v2699 = vmul.f32 %v2571, %v2665
  %v2700 = vmul.f32 %v2572, %v2666
  %v2701 = vmul.f32 %v2573, %v2666
  %v2702 = vmul.f32 %v2574, %v2667
  %v2703 = vmul.f32 %v2575, %v2667
  %v2704 = vmul.f32 %v2576, %v2668
  %v2705 = vmul.f32 %v2577, %v2668
  %v2706 = vmul.f32 %v2578, %v2669
  %v2707 = vmul.f32 %v2579, %v2669
  %v2708 = vmul.f32 %v2580, %v2670
  %v2709 = vmul.f32 %v2581, %v2670
  %v2710 = vmul.f32 %v2582, %v2671
  %v2711 = vmul.f32 %v2583, %v2671
  %v2712 = vmul.f32 %v2584, %v2672
  %v2713 = vmul.f32 %v2585, %v2672
  %v2714 = vmul.f32 %v2586, %v2673
  %v2715 = vmul.f32 %v2587, %v2673
  %v2716 = vmul.f32 %v2588, %v2674
  %v2717 = vmul.f32 %v2589, %v2674
  %v2718 = vmul.f32 %v2590, %v2675
  %v2719 = vmul.f32 %v2591, %v2675
  %v2720 = vmul.f32 %v2592, %v2676
  %v2721 = vmul.f32 %v2593, %v2676
  %v2722 = vmul.f32 %v2594, %v2677
  %v2723 = vmul.f32 %v2595, %v2677
  %v2724 = vmul.f32 %v2596, %v2678
  %v2725 = vmul.f32 %v2597, %v2678
  %v2726 = vmul.f32 %v2598, %v2679
  %v2727 = vmul.f32 %v2599, %v2679
  %v2728 = vmul.f32 %v2600, %v2680
  %v2729 = vmul.f32 %v2601, %v2680
  %v2730 = vmul.f32 %v2602, %v2681
  %v2731 = vmul.f32 %v2603, %v2681
  %v2732 = vmul.f32 %v2604, %v2682
  %v2733 = vmul.f32 %v2605, %v2682
  %v2734 = vmul.f32 %v2606, %v2683
  %v2735 = vmul.f32 %v2607, %v2683
  %v2736 = vmul.f32 %v2608, %v2684
  %v2737 = vmul.f32 %v2609, %v2684
  %v2738 = vmul.f32 %v2610, %v2685
  %v2739 = vmul.f32 %v2611, %v2685
  %v2740 = vmul.f32 %v2612, %v2686
  %v2741 = vmul.f32 %v2613, %v2686
  %v2742 = vmul.f32 %v2614, %v2687
  %v2743 = vmul.f32 %v2615, %v2687
  %v2744 = vmul.f32 %v2616, %v2688
  %v2745 = vmul.f32 %v2617, %v2688
  %v2746 = vmul.f32 %v2618, %v2689
  %v2747 = vmul.f32 %v2619, %v2689
  %v2748 = vmul.f32 %v2620, %v2690
  %v2749 = vmul.f32 %v2621, %v2690
  %v2750 = vmul.f32 %v2622, %v2691
  %v2751 = vmul.f32 %v2623, %v2691
  %v2752 = vmul.f32 %v2624, %v2692
  %v2753 = vmul.f32 %v2625, %v2692
  %v2754 = vmul.f32 %v2626, %v2693
  %v2755 = vmul.f32 %v2627, %v2693
  %v2756 = vmul.f32 %v2628, %v2694
  %v2757 = vmul.f32 %v2629, %v2694
  %v2758 = vmul.f32 %v2630, %v2695
  %v2759 = vmul.f32 %v2631, %v2695
  %s2760 = scalar_lea.vmem %s4, 256
  %v2761 = vld [vmem:[%s2760] sm:$0xff]
  %v2762 = vld [vmem:[%s2760 + $0x8] sm:$0xff]
  %v2763 = vld [vmem:[%s2760 + $0x10] sm:$0xff]
  %v2764 = vld [vmem:[%s2760 + $0x18] sm:$0xff]
  %v2765 = vld [vmem:[%s2760 + $0x20] sm:$0xff]
  %v2766 = vld [vmem:[%s2760 + $0x28] sm:$0xff]
  %v2767 = vld [vmem:[%s2760 + $0x30] sm:$0xff]
  %v2768 = vld [vmem:[%s2760 + $0x38] sm:$0xff]
  %v2769 = vld [vmem:[%s2760 + $0x40] sm:$0xff]
  %v2770 = vld [vmem:[%s2760 + $0x48] sm:$0xff]
  %v2771 = vld [vmem:[%s2760 + $0x50] sm:$0xff]
  %v2772 = vld [vmem:[%s2760 + $0x58] sm:$0xff]
  %v2773 = vld [vmem:[%s2760 + $0x60] sm:$0xff]
  %v2774 = vld [vmem:[%s2760 + $0x68] sm:$0xff]
  %v2775 = vld [vmem:[%s2760 + $0x70] sm:$0xff]
  %v2776 = vld [vmem:[%s2760 + $0x78] sm:$0xff]
  %v2777 = vld [vmem:[%s2760 + $0x80] sm:$0xff]
  %v2778 = vld [vmem:[%s2760 + $0x88] sm:$0xff]
  %v2779 = vld [vmem:[%s2760 + $0x90] sm:$0xff]
  %v2780 = vld [vmem:[%s2760 + $0x98] sm:$0xff]
  %v2781 = vld [vmem:[%s2760 + $0xa0] sm:$0xff]
  %v2782 = vld [vmem:[%s2760 + $0xa8] sm:$0xff]
  %v2783 = vld [vmem:[%s2760 + $0xb0] sm:$0xff]
  %v2784 = vld [vmem:[%s2760 + $0xb8] sm:$0xff]
  %v2785 = vld [vmem:[%s2760 + $0xc0] sm:$0xff]
  %v2786 = vld [vmem:[%s2760 + $0xc8] sm:$0xff]
  %v2787 = vld [vmem:[%s2760 + $0xd0] sm:$0xff]
  %v2788 = vld [vmem:[%s2760 + $0xd8] sm:$0xff]
  %v2789 = vld [vmem:[%s2760 + $0xe0] sm:$0xff]
  %v2790 = vld [vmem:[%s2760 + $0xe8] sm:$0xff]
  %v2791 = vld [vmem:[%s2760 + $0xf0] sm:$0xff]
  %v2792 = vld [vmem:[%s2760 + $0xf8] sm:$0xff]
  %2794 = vset.pattern.permute.xlu0 0
  %2795 = vperm.xlu0 %2794, %v2761
  %v2796 = vpop.permute.xlu0 %2795
  %2799 = vset.pattern.permute.xlu0 0
  %2800 = vperm.xlu0 %2799, %v2762
  %v2801 = vpop.permute.xlu0 %2800
  %2804 = vset.pattern.permute.xlu0 0
  %2805 = vperm.xlu0 %2804, %v2763
  %v2806 = vpop.permute.xlu0 %2805
  %2809 = vset.pattern.permute.xlu0 0
  %2810 = vperm.xlu0 %2809, %v2764
  %v2811 = vpop.permute.xlu0 %2810
  %2814 = vset.pattern.permute.xlu0 0
  %2815 = vperm.xlu0 %2814, %v2765
  %v2816 = vpop.permute.xlu0 %2815
  %2819 = vset.pattern.permute.xlu0 0
  %2820 = vperm.xlu0 %2819, %v2766
  %v2821 = vpop.permute.xlu0 %2820
  %2824 = vset.pattern.permute.xlu0 0
  %2825 = vperm.xlu0 %2824, %v2767
  %v2826 = vpop.permute.xlu0 %2825
  %2829 = vset.pattern.permute.xlu0 0
  %2830 = vperm.xlu0 %2829, %v2768
  %v2831 = vpop.permute.xlu0 %2830
  %2834 = vset.pattern.permute.xlu0 0
  %2835 = vperm.xlu0 %2834, %v2769
  %v2836 = vpop.permute.xlu0 %2835
  %2839 = vset.pattern.permute.xlu0 0
  %2840 = vperm.xlu0 %2839, %v2770
  %v2841 = vpop.permute.xlu0 %2840
  %2844 = vset.pattern.permute.xlu0 0
  %2845 = vperm.xlu0 %2844, %v2771
  %v2846 = vpop.permute.xlu0 %2845
  %2849 = vset.pattern.permute.xlu0 0
  %2850 = vperm.xlu0 %2849, %v2772
  %v2851 = vpop.permute.xlu0 %2850
  %2854 = vset.pattern.permute.xlu0 0
  %2855 = vperm.xlu0 %2854, %v2773
  %v2856 = vpop.permute.xlu0 %2855
  %2859 = vset.pattern.permute.xlu0 0
  %2860 = vperm.xlu0 %2859, %v2774
  %v2861 = vpop.permute.xlu0 %2860
  %2864 = vset.pattern.permute.xlu0 0
  %2865 = vperm.xlu0 %2864, %v2775
  %v2866 = vpop.permute.xlu0 %2865
  %2869 = vset.pattern.permute.xlu0 0
  %2870 = vperm.xlu0 %2869, %v2776
  %v2871 = vpop.permute.xlu0 %2870
  %2874 = vset.pattern.permute.xlu0 0
  %2875 = vperm.xlu0 %2874, %v2777
  %v2876 = vpop.permute.xlu0 %2875
  %2879 = vset.pattern.permute.xlu0 0
  %2880 = vperm.xlu0 %2879, %v2778
  %v2881 = vpop.permute.xlu0 %2880
  %2884 = vset.pattern.permute.xlu0 0
  %2885 = vperm.xlu0 %2884, %v2779
  %v2886 = vpop.permute.xlu0 %2885
  %2889 = vset.pattern.permute.xlu0 0
  %2890 = vperm.xlu0 %2889, %v2780
  %v2891 = vpop.permute.xlu0 %2890
  %2894 = vset.pattern.permute.xlu0 0
  %2895 = vperm.xlu0 %2894, %v2781
  %v2896 = vpop.permute.xlu0 %2895
  %2899 = vset.pattern.permute.xlu0 0
  %2900 = vperm.xlu0 %2899, %v2782
  %v2901 = vpop.permute.xlu0 %2900
  %2904 = vset.pattern.permute.xlu0 0
  %2905 = vperm.xlu0 %2904, %v2783
  %v2906 = vpop.permute.xlu0 %2905
  %2909 = vset.pattern.permute.xlu0 0
  %2910 = vperm.xlu0 %2909, %v2784
  %v2911 = vpop.permute.xlu0 %2910
  %2914 = vset.pattern.permute.xlu0 0
  %2915 = vperm.xlu0 %2914, %v2785
  %v2916 = vpop.permute.xlu0 %2915
  %2919 = vset.pattern.permute.xlu0 0
  %2920 = vperm.xlu0 %2919, %v2786
  %v2921 = vpop.permute.xlu0 %2920
  %2924 = vset.pattern.permute.xlu0 0
  %2925 = vperm.xlu0 %2924, %v2787
  %v2926 = vpop.permute.xlu0 %2925
  %2929 = vset.pattern.permute.xlu0 0
  %2930 = vperm.xlu0 %2929, %v2788
  %v2931 = vpop.permute.xlu0 %2930
  %2934 = vset.pattern.permute.xlu0 0
  %2935 = vperm.xlu0 %2934, %v2789
  %v2936 = vpop.permute.xlu0 %2935
  %2939 = vset.pattern.permute.xlu0 0
  %2940 = vperm.xlu0 %2939, %v2790
  %v2941 = vpop.permute.xlu0 %2940
  %2944 = vset.pattern.permute.xlu0 0
  %2945 = vperm.xlu0 %2944, %v2791
  %v2946 = vpop.permute.xlu0 %2945
  %2949 = vset.pattern.permute.xlu0 0
  %2950 = vperm.xlu0 %2949, %v2792
  %v2951 = vpop.permute.xlu0 %2950
  %v2953 = vmul.f32 %v2696, %v2796
  %v2954 = vmul.f32 %v2697, %v2796
  %v2955 = vmul.f32 %v2698, %v2801
  %v2956 = vmul.f32 %v2699, %v2801
  %v2957 = vmul.f32 %v2700, %v2806
  %v2958 = vmul.f32 %v2701, %v2806
  %v2959 = vmul.f32 %v2702, %v2811
  %v2960 = vmul.f32 %v2703, %v2811
  %v2961 = vmul.f32 %v2704, %v2816
  %v2962 = vmul.f32 %v2705, %v2816
  %v2963 = vmul.f32 %v2706, %v2821
  %v2964 = vmul.f32 %v2707, %v2821
  %v2965 = vmul.f32 %v2708, %v2826
  %v2966 = vmul.f32 %v2709, %v2826
  %v2967 = vmul.f32 %v2710, %v2831
  %v2968 = vmul.f32 %v2711, %v2831
  %v2969 = vmul.f32 %v2712, %v2836
  %v2970 = vmul.f32 %v2713, %v2836
  %v2971 = vmul.f32 %v2714, %v2841
  %v2972 = vmul.f32 %v2715, %v2841
  %v2973 = vmul.f32 %v2716, %v2846
  %v2974 = vmul.f32 %v2717, %v2846
  %v2975 = vmul.f32 %v2718, %v2851
  %v2976 = vmul.f32 %v2719, %v2851
  %v2977 = vmul.f32 %v2720, %v2856
  %v2978 = vmul.f32 %v2721, %v2856
  %v2979 = vmul.f32 %v2722, %v2861
  %v2980 = vmul.f32 %v2723, %v2861
  %v2981 = vmul.f32 %v2724, %v2866
  %v2982 = vmul.f32 %v2725, %v2866
  %v2983 = vmul.f32 %v2726, %v2871
  %v2984 = vmul.f32 %v2727, %v2871
  %v2985 = vmul.f32 %v2728, %v2876
  %v2986 = vmul.f32 %v2729, %v2876
  %v2987 = vmul.f32 %v2730, %v2881
  %v2988 = vmul.f32 %v2731, %v2881
  %v2989 = vmul.f32 %v2732, %v2886
  %v2990 = vmul.f32 %v2733, %v2886
  %v2991 = vmul.f32 %v2734, %v2891
  %v2992 = vmul.f32 %v2735, %v2891
  %v2993 = vmul.f32 %v2736, %v2896
  %v2994 = vmul.f32 %v2737, %v2896
  %v2995 = vmul.f32 %v2738, %v2901
  %v2996 = vmul.f32 %v2739, %v2901
  %v2997 = vmul.f32 %v2740, %v2906
  %v2998 = vmul.f32 %v2741, %v2906
  %v2999 = vmul.f32 %v2742, %v2911
  %v3000 = vmul.f32 %v2743, %v2911
  %v3001 = vmul.f32 %v2744, %v2916
  %v3002 = vmul.f32 %v2745, %v2916
  %v3003 = vmul.f32 %v2746, %v2921
  %v3004 = vmul.f32 %v2747, %v2921
  %v3005 = vmul.f32 %v2748, %v2926
  %v3006 = vmul.f32 %v2749, %v2926
  %v3007 = vmul.f32 %v2750, %v2931
  %v3008 = vmul.f32 %v2751, %v2931
  %v3009 = vmul.f32 %v2752, %v2936
  %v3010 = vmul.f32 %v2753, %v2936
  %v3011 = vmul.f32 %v2754, %v2941
  %v3012 = vmul.f32 %v2755, %v2941
  %v3013 = vmul.f32 %v2756, %v2946
  %v3014 = vmul.f32 %v2757, %v2946
  %v3015 = vmul.f32 %v2758, %v2951
  %v3016 = vmul.f32 %v2759, %v2951
  %s3017 = scalar_lea.vmem %s3, 256
  %v3018 = vld [vmem:[%s3017] sm:$0xff]
  %v3019 = vld [vmem:[%s3017 + $0x8] sm:$0xff]
  %v3020 = vld [vmem:[%s3017 + $0x10] sm:$0xff]
  %v3021 = vld [vmem:[%s3017 + $0x18] sm:$0xff]
  %v3022 = vld [vmem:[%s3017 + $0x20] sm:$0xff]
  %v3023 = vld [vmem:[%s3017 + $0x28] sm:$0xff]
  %v3024 = vld [vmem:[%s3017 + $0x30] sm:$0xff]
  %v3025 = vld [vmem:[%s3017 + $0x38] sm:$0xff]
  %v3026 = vld [vmem:[%s3017 + $0x40] sm:$0xff]
  %v3027 = vld [vmem:[%s3017 + $0x48] sm:$0xff]
  %v3028 = vld [vmem:[%s3017 + $0x50] sm:$0xff]
  %v3029 = vld [vmem:[%s3017 + $0x58] sm:$0xff]
  %v3030 = vld [vmem:[%s3017 + $0x60] sm:$0xff]
  %v3031 = vld [vmem:[%s3017 + $0x68] sm:$0xff]
  %v3032 = vld [vmem:[%s3017 + $0x70] sm:$0xff]
  %v3033 = vld [vmem:[%s3017 + $0x78] sm:$0xff]
  %v3034 = vld [vmem:[%s3017 + $0x80] sm:$0xff]
  %v3035 = vld [vmem:[%s3017 + $0x88] sm:$0xff]
  %v3036 = vld [vmem:[%s3017 + $0x90] sm:$0xff]
  %v3037 = vld [vmem:[%s3017 + $0x98] sm:$0xff]
  %v3038 = vld [vmem:[%s3017 + $0xa0] sm:$0xff]
  %v3039 = vld [vmem:[%s3017 + $0xa8] sm:$0xff]
  %v3040 = vld [vmem:[%s3017 + $0xb0] sm:$0xff]
  %v3041 = vld [vmem:[%s3017 + $0xb8] sm:$0xff]
  %v3042 = vld [vmem:[%s3017 + $0xc0] sm:$0xff]
  %v3043 = vld [vmem:[%s3017 + $0xc8] sm:$0xff]
  %v3044 = vld [vmem:[%s3017 + $0xd0] sm:$0xff]
  %v3045 = vld [vmem:[%s3017 + $0xd8] sm:$0xff]
  %v3046 = vld [vmem:[%s3017 + $0xe0] sm:$0xff]
  %v3047 = vld [vmem:[%s3017 + $0xe8] sm:$0xff]
  %v3048 = vld [vmem:[%s3017 + $0xf0] sm:$0xff]
  %v3049 = vld [vmem:[%s3017 + $0xf8] sm:$0xff]
  %3051 = vset.pattern.permute.xlu0 0
  %3052 = vperm.xlu0 %3051, %v3018
  %v3053 = vpop.permute.xlu0 %3052
  %3056 = vset.pattern.permute.xlu0 0
  %3057 = vperm.xlu0 %3056, %v3019
  %v3058 = vpop.permute.xlu0 %3057
  %3061 = vset.pattern.permute.xlu0 0
  %3062 = vperm.xlu0 %3061, %v3020
  %v3063 = vpop.permute.xlu0 %3062
  %3066 = vset.pattern.permute.xlu0 0
  %3067 = vperm.xlu0 %3066, %v3021
  %v3068 = vpop.permute.xlu0 %3067
  %3071 = vset.pattern.permute.xlu0 0
  %3072 = vperm.xlu0 %3071, %v3022
  %v3073 = vpop.permute.xlu0 %3072
  %3076 = vset.pattern.permute.xlu0 0
  %3077 = vperm.xlu0 %3076, %v3023
  %v3078 = vpop.permute.xlu0 %3077
  %3081 = vset.pattern.permute.xlu0 0
  %3082 = vperm.xlu0 %3081, %v3024
  %v3083 = vpop.permute.xlu0 %3082
  %3086 = vset.pattern.permute.xlu0 0
  %3087 = vperm.xlu0 %3086, %v3025
  %v3088 = vpop.permute.xlu0 %3087
  %3091 = vset.pattern.permute.xlu0 0
  %3092 = vperm.xlu0 %3091, %v3026
  %v3093 = vpop.permute.xlu0 %3092
  %3096 = vset.pattern.permute.xlu0 0
  %3097 = vperm.xlu0 %3096, %v3027
  %v3098 = vpop.permute.xlu0 %3097
  %3101 = vset.pattern.permute.xlu0 0
  %3102 = vperm.xlu0 %3101, %v3028
  %v3103 = vpop.permute.xlu0 %3102
  %3106 = vset.pattern.permute.xlu0 0
  %3107 = vperm.xlu0 %3106, %v3029
  %v3108 = vpop.permute.xlu0 %3107
  %3111 = vset.pattern.permute.xlu0 0
  %3112 = vperm.xlu0 %3111, %v3030
  %v3113 = vpop.permute.xlu0 %3112
  %3116 = vset.pattern.permute.xlu0 0
  %3117 = vperm.xlu0 %3116, %v3031
  %v3118 = vpop.permute.xlu0 %3117
  %3121 = vset.pattern.permute.xlu0 0
  %3122 = vperm.xlu0 %3121, %v3032
  %v3123 = vpop.permute.xlu0 %3122
  %3126 = vset.pattern.permute.xlu0 0
  %3127 = vperm.xlu0 %3126, %v3033
  %v3128 = vpop.permute.xlu0 %3127
  %3131 = vset.pattern.permute.xlu0 0
  %3132 = vperm.xlu0 %3131, %v3034
  %v3133 = vpop.permute.xlu0 %3132
  %3136 = vset.pattern.permute.xlu0 0
  %3137 = vperm.xlu0 %3136, %v3035
  %v3138 = vpop.permute.xlu0 %3137
  %3141 = vset.pattern.permute.xlu0 0
  %3142 = vperm.xlu0 %3141, %v3036
  %v3143 = vpop.permute.xlu0 %3142
  %3146 = vset.pattern.permute.xlu0 0
  %3147 = vperm.xlu0 %3146, %v3037
  %v3148 = vpop.permute.xlu0 %3147
  %3151 = vset.pattern.permute.xlu0 0
  %3152 = vperm.xlu0 %3151, %v3038
  %v3153 = vpop.permute.xlu0 %3152
  %3156 = vset.pattern.permute.xlu0 0
  %3157 = vperm.xlu0 %3156, %v3039
  %v3158 = vpop.permute.xlu0 %3157
  %3161 = vset.pattern.permute.xlu0 0
  %3162 = vperm.xlu0 %3161, %v3040
  %v3163 = vpop.permute.xlu0 %3162
  %3166 = vset.pattern.permute.xlu0 0
  %3167 = vperm.xlu0 %3166, %v3041
  %v3168 = vpop.permute.xlu0 %3167
  %3171 = vset.pattern.permute.xlu0 0
  %3172 = vperm.xlu0 %3171, %v3042
  %v3173 = vpop.permute.xlu0 %3172
  %3176 = vset.pattern.permute.xlu0 0
  %3177 = vperm.xlu0 %3176, %v3043
  %v3178 = vpop.permute.xlu0 %3177
  %3181 = vset.pattern.permute.xlu0 0
  %3182 = vperm.xlu0 %3181, %v3044
  %v3183 = vpop.permute.xlu0 %3182
  %3186 = vset.pattern.permute.xlu0 0
  %3187 = vperm.xlu0 %3186, %v3045
  %v3188 = vpop.permute.xlu0 %3187
  %3191 = vset.pattern.permute.xlu0 0
  %3192 = vperm.xlu0 %3191, %v3046
  %v3193 = vpop.permute.xlu0 %3192
  %3196 = vset.pattern.permute.xlu0 0
  %3197 = vperm.xlu0 %3196, %v3047
  %v3198 = vpop.permute.xlu0 %3197
  %3201 = vset.pattern.permute.xlu0 0
  %3202 = vperm.xlu0 %3201, %v3048
  %v3203 = vpop.permute.xlu0 %3202
  %3206 = vset.pattern.permute.xlu0 0
  %3207 = vperm.xlu0 %3206, %v3049
  %v3208 = vpop.permute.xlu0 %3207
  %v3210 = vadd.f32 %v2953, %v3053
  %v3211 = vadd.f32 %v2954, %v3053
  %v3212 = vadd.f32 %v2955, %v3058
  %v3213 = vadd.f32 %v2956, %v3058
  %v3214 = vadd.f32 %v2957, %v3063
  %v3215 = vadd.f32 %v2958, %v3063
  %v3216 = vadd.f32 %v2959, %v3068
  %v3217 = vadd.f32 %v2960, %v3068
  %v3218 = vadd.f32 %v2961, %v3073
  %v3219 = vadd.f32 %v2962, %v3073
  %v3220 = vadd.f32 %v2963, %v3078
  %v3221 = vadd.f32 %v2964, %v3078
  %v3222 = vadd.f32 %v2965, %v3083
  %v3223 = vadd.f32 %v2966, %v3083
  %v3224 = vadd.f32 %v2967, %v3088
  %v3225 = vadd.f32 %v2968, %v3088
  %v3226 = vadd.f32 %v2969, %v3093
  %v3227 = vadd.f32 %v2970, %v3093
  %v3228 = vadd.f32 %v2971, %v3098
  %v3229 = vadd.f32 %v2972, %v3098
  %v3230 = vadd.f32 %v2973, %v3103
  %v3231 = vadd.f32 %v2974, %v3103
  %v3232 = vadd.f32 %v2975, %v3108
  %v3233 = vadd.f32 %v2976, %v3108
  %v3234 = vadd.f32 %v2977, %v3113
  %v3235 = vadd.f32 %v2978, %v3113
  %v3236 = vadd.f32 %v2979, %v3118
  %v3237 = vadd.f32 %v2980, %v3118
  %v3238 = vadd.f32 %v2981, %v3123
  %v3239 = vadd.f32 %v2982, %v3123
  %v3240 = vadd.f32 %v2983, %v3128
  %v3241 = vadd.f32 %v2984, %v3128
  %v3242 = vadd.f32 %v2985, %v3133
  %v3243 = vadd.f32 %v2986, %v3133
  %v3244 = vadd.f32 %v2987, %v3138
  %v3245 = vadd.f32 %v2988, %v3138
  %v3246 = vadd.f32 %v2989, %v3143
  %v3247 = vadd.f32 %v2990, %v3143
  %v3248 = vadd.f32 %v2991, %v3148
  %v3249 = vadd.f32 %v2992, %v3148
  %v3250 = vadd.f32 %v2993, %v3153
  %v3251 = vadd.f32 %v2994, %v3153
  %v3252 = vadd.f32 %v2995, %v3158
  %v3253 = vadd.f32 %v2996, %v3158
  %v3254 = vadd.f32 %v2997, %v3163
  %v3255 = vadd.f32 %v2998, %v3163
  %v3256 = vadd.f32 %v2999, %v3168
  %v3257 = vadd.f32 %v3000, %v3168
  %v3258 = vadd.f32 %v3001, %v3173
  %v3259 = vadd.f32 %v3002, %v3173
  %v3260 = vadd.f32 %v3003, %v3178
  %v3261 = vadd.f32 %v3004, %v3178
  %v3262 = vadd.f32 %v3005, %v3183
  %v3263 = vadd.f32 %v3006, %v3183
  %v3264 = vadd.f32 %v3007, %v3188
  %v3265 = vadd.f32 %v3008, %v3188
  %v3266 = vadd.f32 %v3009, %v3193
  %v3267 = vadd.f32 %v3010, %v3193
  %v3268 = vadd.f32 %v3011, %v3198
  %v3269 = vadd.f32 %v3012, %v3198
  %v3270 = vadd.f32 %v3013, %v3203
  %v3271 = vadd.f32 %v3014, %v3203
  %v3272 = vadd.f32 %v3015, %v3208
  %v3273 = vadd.f32 %v3016, %v3208
  %v3274 = vadd.f32 %v1863, %v1864
  %3275 = vadd.xlane.f32.xlu0 %v3274
  %v3276 = vpop.xlane.xlu0 %3275
  %v3277 = vadd.f32 %v1865, %v1866
  %3278 = vadd.xlane.f32.xlu0 %v3277
  %v3279 = vpop.xlane.xlu0 %3278
  %v3280 = vadd.f32 %v1867, %v1868
  %3281 = vadd.xlane.f32.xlu0 %v3280
  %v3282 = vpop.xlane.xlu0 %3281
  %v3283 = vadd.f32 %v1869, %v1870
  %3284 = vadd.xlane.f32.xlu0 %v3283
  %v3285 = vpop.xlane.xlu0 %3284
  %v3286 = vadd.f32 %v1871, %v1872
  %3287 = vadd.xlane.f32.xlu0 %v3286
  %v3288 = vpop.xlane.xlu0 %3287
  %v3289 = vadd.f32 %v1873, %v1874
  %3290 = vadd.xlane.f32.xlu0 %v3289
  %v3291 = vpop.xlane.xlu0 %3290
  %v3292 = vadd.f32 %v1875, %v1876
  %3293 = vadd.xlane.f32.xlu0 %v3292
  %v3294 = vpop.xlane.xlu0 %3293
  %v3295 = vadd.f32 %v1877, %v1878
  %3296 = vadd.xlane.f32.xlu0 %v3295
  %v3297 = vpop.xlane.xlu0 %3296
  %v3298 = vadd.f32 %v1879, %v1880
  %3299 = vadd.xlane.f32.xlu0 %v3298
  %v3300 = vpop.xlane.xlu0 %3299
  %v3301 = vadd.f32 %v1881, %v1882
  %3302 = vadd.xlane.f32.xlu0 %v3301
  %v3303 = vpop.xlane.xlu0 %3302
  %v3304 = vadd.f32 %v1883, %v1884
  %3305 = vadd.xlane.f32.xlu0 %v3304
  %v3306 = vpop.xlane.xlu0 %3305
  %v3307 = vadd.f32 %v1885, %v1886
  %3308 = vadd.xlane.f32.xlu0 %v3307
  %v3309 = vpop.xlane.xlu0 %3308
  %v3310 = vadd.f32 %v1887, %v1888
  %3311 = vadd.xlane.f32.xlu0 %v3310
  %v3312 = vpop.xlane.xlu0 %3311
  %v3313 = vadd.f32 %v1889, %v1890
  %3314 = vadd.xlane.f32.xlu0 %v3313
  %v3315 = vpop.xlane.xlu0 %3314
  %v3316 = vadd.f32 %v1891, %v1892
  %3317 = vadd.xlane.f32.xlu0 %v3316
  %v3318 = vpop.xlane.xlu0 %3317
  %v3319 = vadd.f32 %v1893, %v1894
  %3320 = vadd.xlane.f32.xlu0 %v3319
  %v3321 = vpop.xlane.xlu0 %3320
  %v3322 = vadd.f32 %v1895, %v1896
  %3323 = vadd.xlane.f32.xlu0 %v3322
  %v3324 = vpop.xlane.xlu0 %3323
  %v3325 = vadd.f32 %v1897, %v1898
  %3326 = vadd.xlane.f32.xlu0 %v3325
  %v3327 = vpop.xlane.xlu0 %3326
  %v3328 = vadd.f32 %v1899, %v1900
  %3329 = vadd.xlane.f32.xlu0 %v3328
  %v3330 = vpop.xlane.xlu0 %3329
  %v3331 = vadd.f32 %v1901, %v1902
  %3332 = vadd.xlane.f32.xlu0 %v3331
  %v3333 = vpop.xlane.xlu0 %3332
  %v3334 = vadd.f32 %v1903, %v1904
  %3335 = vadd.xlane.f32.xlu0 %v3334
  %v3336 = vpop.xlane.xlu0 %3335
  %v3337 = vadd.f32 %v1905, %v1906
  %3338 = vadd.xlane.f32.xlu0 %v3337
  %v3339 = vpop.xlane.xlu0 %3338
  %v3340 = vadd.f32 %v1907, %v1908
  %3341 = vadd.xlane.f32.xlu0 %v3340
  %v3342 = vpop.xlane.xlu0 %3341
  %v3343 = vadd.f32 %v1909, %v1910
  %3344 = vadd.xlane.f32.xlu0 %v3343
  %v3345 = vpop.xlane.xlu0 %3344
  %v3346 = vadd.f32 %v1911, %v1912
  %3347 = vadd.xlane.f32.xlu0 %v3346
  %v3348 = vpop.xlane.xlu0 %3347
  %v3349 = vadd.f32 %v1913, %v1914
  %3350 = vadd.xlane.f32.xlu0 %v3349
  %v3351 = vpop.xlane.xlu0 %3350
  %v3352 = vadd.f32 %v1915, %v1916
  %3353 = vadd.xlane.f32.xlu0 %v3352
  %v3354 = vpop.xlane.xlu0 %3353
  %v3355 = vadd.f32 %v1917, %v1918
  %3356 = vadd.xlane.f32.xlu0 %v3355
  %v3357 = vpop.xlane.xlu0 %3356
  %v3358 = vadd.f32 %v1919, %v1920
  %3359 = vadd.xlane.f32.xlu0 %v3358
  %v3360 = vpop.xlane.xlu0 %3359
  %v3361 = vadd.f32 %v1921, %v1922
  %3362 = vadd.xlane.f32.xlu0 %v3361
  %v3363 = vpop.xlane.xlu0 %3362
  %v3364 = vadd.f32 %v1923, %v1924
  %3365 = vadd.xlane.f32.xlu0 %v3364
  %v3366 = vpop.xlane.xlu0 %3365
  %v3367 = vadd.f32 %v1925, %v1926
  %3368 = vadd.xlane.f32.xlu0 %v3367
  %v3369 = vpop.xlane.xlu0 %3368
  %v3370 = vadd.f32 %v3276, 0.0
  %v3371 = vadd.f32 %v3279, 0.0
  %v3372 = vadd.f32 %v3282, 0.0
  %v3373 = vadd.f32 %v3285, 0.0
  %v3374 = vadd.f32 %v3288, 0.0
  %v3375 = vadd.f32 %v3291, 0.0
  %v3376 = vadd.f32 %v3294, 0.0
  %v3377 = vadd.f32 %v3297, 0.0
  %v3378 = vadd.f32 %v3300, 0.0
  %v3379 = vadd.f32 %v3303, 0.0
  %v3380 = vadd.f32 %v3306, 0.0
  %v3381 = vadd.f32 %v3309, 0.0
  %v3382 = vadd.f32 %v3312, 0.0
  %v3383 = vadd.f32 %v3315, 0.0
  %v3384 = vadd.f32 %v3318, 0.0
  %v3385 = vadd.f32 %v3321, 0.0
  %v3386 = vadd.f32 %v3324, 0.0
  %v3387 = vadd.f32 %v3327, 0.0
  %v3388 = vadd.f32 %v3330, 0.0
  %v3389 = vadd.f32 %v3333, 0.0
  %v3390 = vadd.f32 %v3336, 0.0
  %v3391 = vadd.f32 %v3339, 0.0
  %v3392 = vadd.f32 %v3342, 0.0
  %v3393 = vadd.f32 %v3345, 0.0
  %v3394 = vadd.f32 %v3348, 0.0
  %v3395 = vadd.f32 %v3351, 0.0
  %v3396 = vadd.f32 %v3354, 0.0
  %v3397 = vadd.f32 %v3357, 0.0
  %v3398 = vadd.f32 %v3360, 0.0
  %v3399 = vadd.f32 %v3363, 0.0
  %v3400 = vadd.f32 %v3366, 0.0
  %v3401 = vadd.f32 %v3369, 0.0
  %v3402 = vadd.f32 %v3210, %v3211
  %3403 = vadd.xlane.f32.xlu0 %v3402
  %v3404 = vpop.xlane.xlu0 %3403
  %v3405 = vadd.f32 %v3212, %v3213
  %3406 = vadd.xlane.f32.xlu0 %v3405
  %v3407 = vpop.xlane.xlu0 %3406
  %v3408 = vadd.f32 %v3214, %v3215
  %3409 = vadd.xlane.f32.xlu0 %v3408
  %v3410 = vpop.xlane.xlu0 %3409
  %v3411 = vadd.f32 %v3216, %v3217
  %3412 = vadd.xlane.f32.xlu0 %v3411
  %v3413 = vpop.xlane.xlu0 %3412
  %v3414 = vadd.f32 %v3218, %v3219
  %3415 = vadd.xlane.f32.xlu0 %v3414
  %v3416 = vpop.xlane.xlu0 %3415
  %v3417 = vadd.f32 %v3220, %v3221
  %3418 = vadd.xlane.f32.xlu0 %v3417
  %v3419 = vpop.xlane.xlu0 %3418
  %v3420 = vadd.f32 %v3222, %v3223
  %3421 = vadd.xlane.f32.xlu0 %v3420
  %v3422 = vpop.xlane.xlu0 %3421
  %v3423 = vadd.f32 %v3224, %v3225
  %3424 = vadd.xlane.f32.xlu0 %v3423
  %v3425 = vpop.xlane.xlu0 %3424
  %v3426 = vadd.f32 %v3226, %v3227
  %3427 = vadd.xlane.f32.xlu0 %v3426
  %v3428 = vpop.xlane.xlu0 %3427
  %v3429 = vadd.f32 %v3228, %v3229
  %3430 = vadd.xlane.f32.xlu0 %v3429
  %v3431 = vpop.xlane.xlu0 %3430
  %v3432 = vadd.f32 %v3230, %v3231
  %3433 = vadd.xlane.f32.xlu0 %v3432
  %v3434 = vpop.xlane.xlu0 %3433
  %v3435 = vadd.f32 %v3232, %v3233
  %3436 = vadd.xlane.f32.xlu0 %v3435
  %v3437 = vpop.xlane.xlu0 %3436
  %v3438 = vadd.f32 %v3234, %v3235
  %3439 = vadd.xlane.f32.xlu0 %v3438
  %v3440 = vpop.xlane.xlu0 %3439
  %v3441 = vadd.f32 %v3236, %v3237
  %3442 = vadd.xlane.f32.xlu0 %v3441
  %v3443 = vpop.xlane.xlu0 %3442
  %v3444 = vadd.f32 %v3238, %v3239
  %3445 = vadd.xlane.f32.xlu0 %v3444
  %v3446 = vpop.xlane.xlu0 %3445
  %v3447 = vadd.f32 %v3240, %v3241
  %3448 = vadd.xlane.f32.xlu0 %v3447
  %v3449 = vpop.xlane.xlu0 %3448
  %v3450 = vadd.f32 %v3242, %v3243
  %3451 = vadd.xlane.f32.xlu0 %v3450
  %v3452 = vpop.xlane.xlu0 %3451
  %v3453 = vadd.f32 %v3244, %v3245
  %3454 = vadd.xlane.f32.xlu0 %v3453
  %v3455 = vpop.xlane.xlu0 %3454
  %v3456 = vadd.f32 %v3246, %v3247
  %3457 = vadd.xlane.f32.xlu0 %v3456
  %v3458 = vpop.xlane.xlu0 %3457
  %v3459 = vadd.f32 %v3248, %v3249
  %3460 = vadd.xlane.f32.xlu0 %v3459
  %v3461 = vpop.xlane.xlu0 %3460
  %v3462 = vadd.f32 %v3250, %v3251
  %3463 = vadd.xlane.f32.xlu0 %v3462
  %v3464 = vpop.xlane.xlu0 %3463
  %v3465 = vadd.f32 %v3252, %v3253
  %3466 = vadd.xlane.f32.xlu0 %v3465
  %v3467 = vpop.xlane.xlu0 %3466
  %v3468 = vadd.f32 %v3254, %v3255
  %3469 = vadd.xlane.f32.xlu0 %v3468
  %v3470 = vpop.xlane.xlu0 %3469
  %v3471 = vadd.f32 %v3256, %v3257
  %3472 = vadd.xlane.f32.xlu0 %v3471
  %v3473 = vpop.xlane.xlu0 %3472
  %v3474 = vadd.f32 %v3258, %v3259
  %3475 = vadd.xlane.f32.xlu0 %v3474
  %v3476 = vpop.xlane.xlu0 %3475
  %v3477 = vadd.f32 %v3260, %v3261
  %3478 = vadd.xlane.f32.xlu0 %v3477
  %v3479 = vpop.xlane.xlu0 %3478
  %v3480 = vadd.f32 %v3262, %v3263
  %3481 = vadd.xlane.f32.xlu0 %v3480
  %v3482 = vpop.xlane.xlu0 %3481
  %v3483 = vadd.f32 %v3264, %v3265
  %3484 = vadd.xlane.f32.xlu0 %v3483
  %v3485 = vpop.xlane.xlu0 %3484
  %v3486 = vadd.f32 %v3266, %v3267
  %3487 = vadd.xlane.f32.xlu0 %v3486
  %v3488 = vpop.xlane.xlu0 %3487
  %v3489 = vadd.f32 %v3268, %v3269
  %3490 = vadd.xlane.f32.xlu0 %v3489
  %v3491 = vpop.xlane.xlu0 %3490
  %v3492 = vadd.f32 %v3270, %v3271
  %3493 = vadd.xlane.f32.xlu0 %v3492
  %v3494 = vpop.xlane.xlu0 %3493
  %v3495 = vadd.f32 %v3272, %v3273
  %3496 = vadd.xlane.f32.xlu0 %v3495
  %v3497 = vpop.xlane.xlu0 %3496
  %v3498 = vadd.f32 %v3370, %v3404
  %v3499 = vadd.f32 %v3371, %v3407
  %v3500 = vadd.f32 %v3372, %v3410
  %v3501 = vadd.f32 %v3373, %v3413
  %v3502 = vadd.f32 %v3374, %v3416
  %v3503 = vadd.f32 %v3375, %v3419
  %v3504 = vadd.f32 %v3376, %v3422
  %v3505 = vadd.f32 %v3377, %v3425
  %v3506 = vadd.f32 %v3378, %v3428
  %v3507 = vadd.f32 %v3379, %v3431
  %v3508 = vadd.f32 %v3380, %v3434
  %v3509 = vadd.f32 %v3381, %v3437
  %v3510 = vadd.f32 %v3382, %v3440
  %v3511 = vadd.f32 %v3383, %v3443
  %v3512 = vadd.f32 %v3384, %v3446
  %v3513 = vadd.f32 %v3385, %v3449
  %v3514 = vadd.f32 %v3386, %v3452
  %v3515 = vadd.f32 %v3387, %v3455
  %v3516 = vadd.f32 %v3388, %v3458
  %v3517 = vadd.f32 %v3389, %v3461
  %v3518 = vadd.f32 %v3390, %v3464
  %v3519 = vadd.f32 %v3391, %v3467
  %v3520 = vadd.f32 %v3392, %v3470
  %v3521 = vadd.f32 %v3393, %v3473
  %v3522 = vadd.f32 %v3394, %v3476
  %v3523 = vadd.f32 %v3395, %v3479
  %v3524 = vadd.f32 %v3396, %v3482
  %v3525 = vadd.f32 %v3397, %v3485
  %v3526 = vadd.f32 %v3398, %v3488
  %v3527 = vadd.f32 %v3399, %v3491
  %v3528 = vadd.f32 %v3400, %v3494
  %v3529 = vadd.f32 %v3401, %v3497
  %v3530 = vmul.f32 %v1863, %v1863
  %v3531 = vmul.f32 %v1864, %v1864
  %v3532 = vmul.f32 %v1865, %v1865
  %v3533 = vmul.f32 %v1866, %v1866
  %v3534 = vmul.f32 %v1867, %v1867
  %v3535 = vmul.f32 %v1868, %v1868
  %v3536 = vmul.f32 %v1869, %v1869
  %v3537 = vmul.f32 %v1870, %v1870
  %v3538 = vmul.f32 %v1871, %v1871
  %v3539 = vmul.f32 %v1872, %v1872
  %v3540 = vmul.f32 %v1873, %v1873
  %v3541 = vmul.f32 %v1874, %v1874
  %v3542 = vmul.f32 %v1875, %v1875
  %v3543 = vmul.f32 %v1876, %v1876
  %v3544 = vmul.f32 %v1877, %v1877
  %v3545 = vmul.f32 %v1878, %v1878
  %v3546 = vmul.f32 %v1879, %v1879
  %v3547 = vmul.f32 %v1880, %v1880
  %v3548 = vmul.f32 %v1881, %v1881
  %v3549 = vmul.f32 %v1882, %v1882
  %v3550 = vmul.f32 %v1883, %v1883
  %v3551 = vmul.f32 %v1884, %v1884
  %v3552 = vmul.f32 %v1885, %v1885
  %v3553 = vmul.f32 %v1886, %v1886
  %v3554 = vmul.f32 %v1887, %v1887
  %v3555 = vmul.f32 %v1888, %v1888
  %v3556 = vmul.f32 %v1889, %v1889
  %v3557 = vmul.f32 %v1890, %v1890
  %v3558 = vmul.f32 %v1891, %v1891
  %v3559 = vmul.f32 %v1892, %v1892
  %v3560 = vmul.f32 %v1893, %v1893
  %v3561 = vmul.f32 %v1894, %v1894
  %v3562 = vmul.f32 %v1895, %v1895
  %v3563 = vmul.f32 %v1896, %v1896
  %v3564 = vmul.f32 %v1897, %v1897
  %v3565 = vmul.f32 %v1898, %v1898
  %v3566 = vmul.f32 %v1899, %v1899
  %v3567 = vmul.f32 %v1900, %v1900
  %v3568 = vmul.f32 %v1901, %v1901
  %v3569 = vmul.f32 %v1902, %v1902
  %v3570 = vmul.f32 %v1903, %v1903
  %v3571 = vmul.f32 %v1904, %v1904
  %v3572 = vmul.f32 %v1905, %v1905
  %v3573 = vmul.f32 %v1906, %v1906
  %v3574 = vmul.f32 %v1907, %v1907
  %v3575 = vmul.f32 %v1908, %v1908
  %v3576 = vmul.f32 %v1909, %v1909
  %v3577 = vmul.f32 %v1910, %v1910
  %v3578 = vmul.f32 %v1911, %v1911
  %v3579 = vmul.f32 %v1912, %v1912
  %v3580 = vmul.f32 %v1913, %v1913
  %v3581 = vmul.f32 %v1914, %v1914
  %v3582 = vmul.f32 %v1915, %v1915
  %v3583 = vmul.f32 %v1916, %v1916
  %v3584 = vmul.f32 %v1917, %v1917
  %v3585 = vmul.f32 %v1918, %v1918
  %v3586 = vmul.f32 %v1919, %v1919
  %v3587 = vmul.f32 %v1920, %v1920
  %v3588 = vmul.f32 %v1921, %v1921
  %v3589 = vmul.f32 %v1922, %v1922
  %v3590 = vmul.f32 %v1923, %v1923
  %v3591 = vmul.f32 %v1924, %v1924
  %v3592 = vmul.f32 %v1925, %v1925
  %v3593 = vmul.f32 %v1926, %v1926
  %v3594 = vadd.f32 %v3530, %v3531
  %3595 = vadd.xlane.f32.xlu0 %v3594
  %v3596 = vpop.xlane.xlu0 %3595
  %v3597 = vadd.f32 %v3532, %v3533
  %3598 = vadd.xlane.f32.xlu0 %v3597
  %v3599 = vpop.xlane.xlu0 %3598
  %v3600 = vadd.f32 %v3534, %v3535
  %3601 = vadd.xlane.f32.xlu0 %v3600
  %v3602 = vpop.xlane.xlu0 %3601
  %v3603 = vadd.f32 %v3536, %v3537
  %3604 = vadd.xlane.f32.xlu0 %v3603
  %v3605 = vpop.xlane.xlu0 %3604
  %v3606 = vadd.f32 %v3538, %v3539
  %3607 = vadd.xlane.f32.xlu0 %v3606
  %v3608 = vpop.xlane.xlu0 %3607
  %v3609 = vadd.f32 %v3540, %v3541
  %3610 = vadd.xlane.f32.xlu0 %v3609
  %v3611 = vpop.xlane.xlu0 %3610
  %v3612 = vadd.f32 %v3542, %v3543
  %3613 = vadd.xlane.f32.xlu0 %v3612
  %v3614 = vpop.xlane.xlu0 %3613
  %v3615 = vadd.f32 %v3544, %v3545
  %3616 = vadd.xlane.f32.xlu0 %v3615
  %v3617 = vpop.xlane.xlu0 %3616
  %v3618 = vadd.f32 %v3546, %v3547
  %3619 = vadd.xlane.f32.xlu0 %v3618
  %v3620 = vpop.xlane.xlu0 %3619
  %v3621 = vadd.f32 %v3548, %v3549
  %3622 = vadd.xlane.f32.xlu0 %v3621
  %v3623 = vpop.xlane.xlu0 %3622
  %v3624 = vadd.f32 %v3550, %v3551
  %3625 = vadd.xlane.f32.xlu0 %v3624
  %v3626 = vpop.xlane.xlu0 %3625
  %v3627 = vadd.f32 %v3552, %v3553
  %3628 = vadd.xlane.f32.xlu0 %v3627
  %v3629 = vpop.xlane.xlu0 %3628
  %v3630 = vadd.f32 %v3554, %v3555
  %3631 = vadd.xlane.f32.xlu0 %v3630
  %v3632 = vpop.xlane.xlu0 %3631
  %v3633 = vadd.f32 %v3556, %v3557
  %3634 = vadd.xlane.f32.xlu0 %v3633
  %v3635 = vpop.xlane.xlu0 %3634
  %v3636 = vadd.f32 %v3558, %v3559
  %3637 = vadd.xlane.f32.xlu0 %v3636
  %v3638 = vpop.xlane.xlu0 %3637
  %v3639 = vadd.f32 %v3560, %v3561
  %3640 = vadd.xlane.f32.xlu0 %v3639
  %v3641 = vpop.xlane.xlu0 %3640
  %v3642 = vadd.f32 %v3562, %v3563
  %3643 = vadd.xlane.f32.xlu0 %v3642
  %v3644 = vpop.xlane.xlu0 %3643
  %v3645 = vadd.f32 %v3564, %v3565
  %3646 = vadd.xlane.f32.xlu0 %v3645
  %v3647 = vpop.xlane.xlu0 %3646
  %v3648 = vadd.f32 %v3566, %v3567
  %3649 = vadd.xlane.f32.xlu0 %v3648
  %v3650 = vpop.xlane.xlu0 %3649
  %v3651 = vadd.f32 %v3568, %v3569
  %3652 = vadd.xlane.f32.xlu0 %v3651
  %v3653 = vpop.xlane.xlu0 %3652
  %v3654 = vadd.f32 %v3570, %v3571
  %3655 = vadd.xlane.f32.xlu0 %v3654
  %v3656 = vpop.xlane.xlu0 %3655
  %v3657 = vadd.f32 %v3572, %v3573
  %3658 = vadd.xlane.f32.xlu0 %v3657
  %v3659 = vpop.xlane.xlu0 %3658
  %v3660 = vadd.f32 %v3574, %v3575
  %3661 = vadd.xlane.f32.xlu0 %v3660
  %v3662 = vpop.xlane.xlu0 %3661
  %v3663 = vadd.f32 %v3576, %v3577
  %3664 = vadd.xlane.f32.xlu0 %v3663
  %v3665 = vpop.xlane.xlu0 %3664
  %v3666 = vadd.f32 %v3578, %v3579
  %3667 = vadd.xlane.f32.xlu0 %v3666
  %v3668 = vpop.xlane.xlu0 %3667
  %v3669 = vadd.f32 %v3580, %v3581
  %3670 = vadd.xlane.f32.xlu0 %v3669
  %v3671 = vpop.xlane.xlu0 %3670
  %v3672 = vadd.f32 %v3582, %v3583
  %3673 = vadd.xlane.f32.xlu0 %v3672
  %v3674 = vpop.xlane.xlu0 %3673
  %v3675 = vadd.f32 %v3584, %v3585
  %3676 = vadd.xlane.f32.xlu0 %v3675
  %v3677 = vpop.xlane.xlu0 %3676
  %v3678 = vadd.f32 %v3586, %v3587
  %3679 = vadd.xlane.f32.xlu0 %v3678
  %v3680 = vpop.xlane.xlu0 %3679
  %v3681 = vadd.f32 %v3588, %v3589
  %3682 = vadd.xlane.f32.xlu0 %v3681
  %v3683 = vpop.xlane.xlu0 %3682
  %v3684 = vadd.f32 %v3590, %v3591
  %3685 = vadd.xlane.f32.xlu0 %v3684
  %v3686 = vpop.xlane.xlu0 %3685
  %v3687 = vadd.f32 %v3592, %v3593
  %3688 = vadd.xlane.f32.xlu0 %v3687
  %v3689 = vpop.xlane.xlu0 %3688
  %v3690 = vadd.f32 %v3596, 0.0
  %v3691 = vadd.f32 %v3599, 0.0
  %v3692 = vadd.f32 %v3602, 0.0
  %v3693 = vadd.f32 %v3605, 0.0
  %v3694 = vadd.f32 %v3608, 0.0
  %v3695 = vadd.f32 %v3611, 0.0
  %v3696 = vadd.f32 %v3614, 0.0
  %v3697 = vadd.f32 %v3617, 0.0
  %v3698 = vadd.f32 %v3620, 0.0
  %v3699 = vadd.f32 %v3623, 0.0
  %v3700 = vadd.f32 %v3626, 0.0
  %v3701 = vadd.f32 %v3629, 0.0
  %v3702 = vadd.f32 %v3632, 0.0
  %v3703 = vadd.f32 %v3635, 0.0
  %v3704 = vadd.f32 %v3638, 0.0
  %v3705 = vadd.f32 %v3641, 0.0
  %v3706 = vadd.f32 %v3644, 0.0
  %v3707 = vadd.f32 %v3647, 0.0
  %v3708 = vadd.f32 %v3650, 0.0
  %v3709 = vadd.f32 %v3653, 0.0
  %v3710 = vadd.f32 %v3656, 0.0
  %v3711 = vadd.f32 %v3659, 0.0
  %v3712 = vadd.f32 %v3662, 0.0
  %v3713 = vadd.f32 %v3665, 0.0
  %v3714 = vadd.f32 %v3668, 0.0
  %v3715 = vadd.f32 %v3671, 0.0
  %v3716 = vadd.f32 %v3674, 0.0
  %v3717 = vadd.f32 %v3677, 0.0
  %v3718 = vadd.f32 %v3680, 0.0
  %v3719 = vadd.f32 %v3683, 0.0
  %v3720 = vadd.f32 %v3686, 0.0
  %v3721 = vadd.f32 %v3689, 0.0
  %v3722 = vmul.f32 %v3210, %v3210
  %v3723 = vmul.f32 %v3211, %v3211
  %v3724 = vmul.f32 %v3212, %v3212
  %v3725 = vmul.f32 %v3213, %v3213
  %v3726 = vmul.f32 %v3214, %v3214
  %v3727 = vmul.f32 %v3215, %v3215
  %v3728 = vmul.f32 %v3216, %v3216
  %v3729 = vmul.f32 %v3217, %v3217
  %v3730 = vmul.f32 %v3218, %v3218
  %v3731 = vmul.f32 %v3219, %v3219
  %v3732 = vmul.f32 %v3220, %v3220
  %v3733 = vmul.f32 %v3221, %v3221
  %v3734 = vmul.f32 %v3222, %v3222
  %v3735 = vmul.f32 %v3223, %v3223
  %v3736 = vmul.f32 %v3224, %v3224
  %v3737 = vmul.f32 %v3225, %v3225
  %v3738 = vmul.f32 %v3226, %v3226
  %v3739 = vmul.f32 %v3227, %v3227
  %v3740 = vmul.f32 %v3228, %v3228
  %v3741 = vmul.f32 %v3229, %v3229
  %v3742 = vmul.f32 %v3230, %v3230
  %v3743 = vmul.f32 %v3231, %v3231
  %v3744 = vmul.f32 %v3232, %v3232
  %v3745 = vmul.f32 %v3233, %v3233
  %v3746 = vmul.f32 %v3234, %v3234
  %v3747 = vmul.f32 %v3235, %v3235
  %v3748 = vmul.f32 %v3236, %v3236
  %v3749 = vmul.f32 %v3237, %v3237
  %v3750 = vmul.f32 %v3238, %v3238
  %v3751 = vmul.f32 %v3239, %v3239
  %v3752 = vmul.f32 %v3240, %v3240
  %v3753 = vmul.f32 %v3241, %v3241
  %v3754 = vmul.f32 %v3242, %v3242
  %v3755 = vmul.f32 %v3243, %v3243
  %v3756 = vmul.f32 %v3244, %v3244
  %v3757 = vmul.f32 %v3245, %v3245
  %v3758 = vmul.f32 %v3246, %v3246
  %v3759 = vmul.f32 %v3247, %v3247
  %v3760 = vmul.f32 %v3248, %v3248
  %v3761 = vmul.f32 %v3249, %v3249
  %v3762 = vmul.f32 %v3250, %v3250
  %v3763 = vmul.f32 %v3251, %v3251
  %v3764 = vmul.f32 %v3252, %v3252
  %v3765 = vmul.f32 %v3253, %v3253
  %v3766 = vmul.f32 %v3254, %v3254
  %v3767 = vmul.f32 %v3255, %v3255
  %v3768 = vmul.f32 %v3256, %v3256
  %v3769 = vmul.f32 %v3257, %v3257
  %v3770 = vmul.f32 %v3258, %v3258
  %v3771 = vmul.f32 %v3259, %v3259
  %v3772 = vmul.f32 %v3260, %v3260
  %v3773 = vmul.f32 %v3261, %v3261
  %v3774 = vmul.f32 %v3262, %v3262
  %v3775 = vmul.f32 %v3263, %v3263
  %v3776 = vmul.f32 %v3264, %v3264
  %v3777 = vmul.f32 %v3265, %v3265
  %v3778 = vmul.f32 %v3266, %v3266
  %v3779 = vmul.f32 %v3267, %v3267
  %v3780 = vmul.f32 %v3268, %v3268
  %v3781 = vmul.f32 %v3269, %v3269
  %v3782 = vmul.f32 %v3270, %v3270
  %v3783 = vmul.f32 %v3271, %v3271
  %v3784 = vmul.f32 %v3272, %v3272
  %v3785 = vmul.f32 %v3273, %v3273
  %v3786 = vadd.f32 %v3722, %v3723
  %3787 = vadd.xlane.f32.xlu0 %v3786
  %v3788 = vpop.xlane.xlu0 %3787
  %v3789 = vadd.f32 %v3724, %v3725
  %3790 = vadd.xlane.f32.xlu0 %v3789
  %v3791 = vpop.xlane.xlu0 %3790
  %v3792 = vadd.f32 %v3726, %v3727
  %3793 = vadd.xlane.f32.xlu0 %v3792
  %v3794 = vpop.xlane.xlu0 %3793
  %v3795 = vadd.f32 %v3728, %v3729
  %3796 = vadd.xlane.f32.xlu0 %v3795
  %v3797 = vpop.xlane.xlu0 %3796
  %v3798 = vadd.f32 %v3730, %v3731
  %3799 = vadd.xlane.f32.xlu0 %v3798
  %v3800 = vpop.xlane.xlu0 %3799
  %v3801 = vadd.f32 %v3732, %v3733
  %3802 = vadd.xlane.f32.xlu0 %v3801
  %v3803 = vpop.xlane.xlu0 %3802
  %v3804 = vadd.f32 %v3734, %v3735
  %3805 = vadd.xlane.f32.xlu0 %v3804
  %v3806 = vpop.xlane.xlu0 %3805
  %v3807 = vadd.f32 %v3736, %v3737
  %3808 = vadd.xlane.f32.xlu0 %v3807
  %v3809 = vpop.xlane.xlu0 %3808
  %v3810 = vadd.f32 %v3738, %v3739
  %3811 = vadd.xlane.f32.xlu0 %v3810
  %v3812 = vpop.xlane.xlu0 %3811
  %v3813 = vadd.f32 %v3740, %v3741
  %3814 = vadd.xlane.f32.xlu0 %v3813
  %v3815 = vpop.xlane.xlu0 %3814
  %v3816 = vadd.f32 %v3742, %v3743
  %3817 = vadd.xlane.f32.xlu0 %v3816
  %v3818 = vpop.xlane.xlu0 %3817
  %v3819 = vadd.f32 %v3744, %v3745
  %3820 = vadd.xlane.f32.xlu0 %v3819
  %v3821 = vpop.xlane.xlu0 %3820
  %v3822 = vadd.f32 %v3746, %v3747
  %3823 = vadd.xlane.f32.xlu0 %v3822
  %v3824 = vpop.xlane.xlu0 %3823
  %v3825 = vadd.f32 %v3748, %v3749
  %3826 = vadd.xlane.f32.xlu0 %v3825
  %v3827 = vpop.xlane.xlu0 %3826
  %v3828 = vadd.f32 %v3750, %v3751
  %3829 = vadd.xlane.f32.xlu0 %v3828
  %v3830 = vpop.xlane.xlu0 %3829
  %v3831 = vadd.f32 %v3752, %v3753
  %3832 = vadd.xlane.f32.xlu0 %v3831
  %v3833 = vpop.xlane.xlu0 %3832
  %v3834 = vadd.f32 %v3754, %v3755
  %3835 = vadd.xlane.f32.xlu0 %v3834
  %v3836 = vpop.xlane.xlu0 %3835
  %v3837 = vadd.f32 %v3756, %v3757
  %3838 = vadd.xlane.f32.xlu0 %v3837
  %v3839 = vpop.xlane.xlu0 %3838
  %v3840 = vadd.f32 %v3758, %v3759
  %3841 = vadd.xlane.f32.xlu0 %v3840
  %v3842 = vpop.xlane.xlu0 %3841
  %v3843 = vadd.f32 %v3760, %v3761
  %3844 = vadd.xlane.f32.xlu0 %v3843
  %v3845 = vpop.xlane.xlu0 %3844
  %v3846 = vadd.f32 %v3762, %v3763
  %3847 = vadd.xlane.f32.xlu0 %v3846
  %v3848 = vpop.xlane.xlu0 %3847
  %v3849 = vadd.f32 %v3764, %v3765
  %3850 = vadd.xlane.f32.xlu0 %v3849
  %v3851 = vpop.xlane.xlu0 %3850
  %v3852 = vadd.f32 %v3766, %v3767
  %3853 = vadd.xlane.f32.xlu0 %v3852
  %v3854 = vpop.xlane.xlu0 %3853
  %v3855 = vadd.f32 %v3768, %v3769
  %3856 = vadd.xlane.f32.xlu0 %v3855
  %v3857 = vpop.xlane.xlu0 %3856
  %v3858 = vadd.f32 %v3770, %v3771
  %3859 = vadd.xlane.f32.xlu0 %v3858
  %v3860 = vpop.xlane.xlu0 %3859
  %v3861 = vadd.f32 %v3772, %v3773
  %3862 = vadd.xlane.f32.xlu0 %v3861
  %v3863 = vpop.xlane.xlu0 %3862
  %v3864 = vadd.f32 %v3774, %v3775
  %3865 = vadd.xlane.f32.xlu0 %v3864
  %v3866 = vpop.xlane.xlu0 %3865
  %v3867 = vadd.f32 %v3776, %v3777
  %3868 = vadd.xlane.f32.xlu0 %v3867
  %v3869 = vpop.xlane.xlu0 %3868
  %v3870 = vadd.f32 %v3778, %v3779
  %3871 = vadd.xlane.f32.xlu0 %v3870
  %v3872 = vpop.xlane.xlu0 %3871
  %v3873 = vadd.f32 %v3780, %v3781
  %3874 = vadd.xlane.f32.xlu0 %v3873
  %v3875 = vpop.xlane.xlu0 %3874
  %v3876 = vadd.f32 %v3782, %v3783
  %3877 = vadd.xlane.f32.xlu0 %v3876
  %v3878 = vpop.xlane.xlu0 %3877
  %v3879 = vadd.f32 %v3784, %v3785
  %3880 = vadd.xlane.f32.xlu0 %v3879
  %v3881 = vpop.xlane.xlu0 %3880
  %v3882 = vadd.f32 %v3690, %v3788
  %v3883 = vadd.f32 %v3691, %v3791
  %v3884 = vadd.f32 %v3692, %v3794
  %v3885 = vadd.f32 %v3693, %v3797
  %v3886 = vadd.f32 %v3694, %v3800
  %v3887 = vadd.f32 %v3695, %v3803
  %v3888 = vadd.f32 %v3696, %v3806
  %v3889 = vadd.f32 %v3697, %v3809
  %v3890 = vadd.f32 %v3698, %v3812
  %v3891 = vadd.f32 %v3699, %v3815
  %v3892 = vadd.f32 %v3700, %v3818
  %v3893 = vadd.f32 %v3701, %v3821
  %v3894 = vadd.f32 %v3702, %v3824
  %v3895 = vadd.f32 %v3703, %v3827
  %v3896 = vadd.f32 %v3704, %v3830
  %v3897 = vadd.f32 %v3705, %v3833
  %v3898 = vadd.f32 %v3706, %v3836
  %v3899 = vadd.f32 %v3707, %v3839
  %v3900 = vadd.f32 %v3708, %v3842
  %v3901 = vadd.f32 %v3709, %v3845
  %v3902 = vadd.f32 %v3710, %v3848
  %v3903 = vadd.f32 %v3711, %v3851
  %v3904 = vadd.f32 %v3712, %v3854
  %v3905 = vadd.f32 %v3713, %v3857
  %v3906 = vadd.f32 %v3714, %v3860
  %v3907 = vadd.f32 %v3715, %v3863
  %v3908 = vadd.f32 %v3716, %v3866
  %v3909 = vadd.f32 %v3717, %v3869
  %v3910 = vadd.f32 %v3718, %v3872
  %v3911 = vadd.f32 %v3719, %v3875
  %v3912 = vadd.f32 %v3720, %v3878
  %v3913 = vadd.f32 %v3721, %v3881
  %v3914 = vmul.f32 %v3498, 0.001953125
  %v3915 = vmul.f32 %v3499, 0.001953125
  %v3916 = vmul.f32 %v3500, 0.001953125
  %v3917 = vmul.f32 %v3501, 0.001953125
  %v3918 = vmul.f32 %v3502, 0.001953125
  %v3919 = vmul.f32 %v3503, 0.001953125
  %v3920 = vmul.f32 %v3504, 0.001953125
  %v3921 = vmul.f32 %v3505, 0.001953125
  %v3922 = vmul.f32 %v3506, 0.001953125
  %v3923 = vmul.f32 %v3507, 0.001953125
  %v3924 = vmul.f32 %v3508, 0.001953125
  %v3925 = vmul.f32 %v3509, 0.001953125
  %v3926 = vmul.f32 %v3510, 0.001953125
  %v3927 = vmul.f32 %v3511, 0.001953125
  %v3928 = vmul.f32 %v3512, 0.001953125
  %v3929 = vmul.f32 %v3513, 0.001953125
  %v3930 = vmul.f32 %v3514, 0.001953125
  %v3931 = vmul.f32 %v3515, 0.001953125
  %v3932 = vmul.f32 %v3516, 0.001953125
  %v3933 = vmul.f32 %v3517, 0.001953125
  %v3934 = vmul.f32 %v3518, 0.001953125
  %v3935 = vmul.f32 %v3519, 0.001953125
  %v3936 = vmul.f32 %v3520, 0.001953125
  %v3937 = vmul.f32 %v3521, 0.001953125
  %v3938 = vmul.f32 %v3522, 0.001953125
  %v3939 = vmul.f32 %v3523, 0.001953125
  %v3940 = vmul.f32 %v3524, 0.001953125
  %v3941 = vmul.f32 %v3525, 0.001953125
  %v3942 = vmul.f32 %v3526, 0.001953125
  %v3943 = vmul.f32 %v3527, 0.001953125
  %v3944 = vmul.f32 %v3528, 0.001953125
  %v3945 = vmul.f32 %v3529, 0.001953125
  %v3946 = vmul.f32 %v3882, 0.001953125
  %v3947 = vmul.f32 %v3883, 0.001953125
  %v3948 = vmul.f32 %v3884, 0.001953125
  %v3949 = vmul.f32 %v3885, 0.001953125
  %v3950 = vmul.f32 %v3886, 0.001953125
  %v3951 = vmul.f32 %v3887, 0.001953125
  %v3952 = vmul.f32 %v3888, 0.001953125
  %v3953 = vmul.f32 %v3889, 0.001953125
  %v3954 = vmul.f32 %v3890, 0.001953125
  %v3955 = vmul.f32 %v3891, 0.001953125
  %v3956 = vmul.f32 %v3892, 0.001953125
  %v3957 = vmul.f32 %v3893, 0.001953125
  %v3958 = vmul.f32 %v3894, 0.001953125
  %v3959 = vmul.f32 %v3895, 0.001953125
  %v3960 = vmul.f32 %v3896, 0.001953125
  %v3961 = vmul.f32 %v3897, 0.001953125
  %v3962 = vmul.f32 %v3898, 0.001953125
  %v3963 = vmul.f32 %v3899, 0.001953125
  %v3964 = vmul.f32 %v3900, 0.001953125
  %v3965 = vmul.f32 %v3901, 0.001953125
  %v3966 = vmul.f32 %v3902, 0.001953125
  %v3967 = vmul.f32 %v3903, 0.001953125
  %v3968 = vmul.f32 %v3904, 0.001953125
  %v3969 = vmul.f32 %v3905, 0.001953125
  %v3970 = vmul.f32 %v3906, 0.001953125
  %v3971 = vmul.f32 %v3907, 0.001953125
  %v3972 = vmul.f32 %v3908, 0.001953125
  %v3973 = vmul.f32 %v3909, 0.001953125
  %v3974 = vmul.f32 %v3910, 0.001953125
  %v3975 = vmul.f32 %v3911, 0.001953125
  %v3976 = vmul.f32 %v3912, 0.001953125
  %v3977 = vmul.f32 %v3913, 0.001953125
  %v3978 = vmul.f32 %v3914, %v3914
  %v3979 = vmul.f32 %v3915, %v3915
  %v3980 = vmul.f32 %v3916, %v3916
  %v3981 = vmul.f32 %v3917, %v3917
  %v3982 = vmul.f32 %v3918, %v3918
  %v3983 = vmul.f32 %v3919, %v3919
  %v3984 = vmul.f32 %v3920, %v3920
  %v3985 = vmul.f32 %v3921, %v3921
  %v3986 = vmul.f32 %v3922, %v3922
  %v3987 = vmul.f32 %v3923, %v3923
  %v3988 = vmul.f32 %v3924, %v3924
  %v3989 = vmul.f32 %v3925, %v3925
  %v3990 = vmul.f32 %v3926, %v3926
  %v3991 = vmul.f32 %v3927, %v3927
  %v3992 = vmul.f32 %v3928, %v3928
  %v3993 = vmul.f32 %v3929, %v3929
  %v3994 = vmul.f32 %v3930, %v3930
  %v3995 = vmul.f32 %v3931, %v3931
  %v3996 = vmul.f32 %v3932, %v3932
  %v3997 = vmul.f32 %v3933, %v3933
  %v3998 = vmul.f32 %v3934, %v3934
  %v3999 = vmul.f32 %v3935, %v3935
  %v4000 = vmul.f32 %v3936, %v3936
  %v4001 = vmul.f32 %v3937, %v3937
  %v4002 = vmul.f32 %v3938, %v3938
  %v4003 = vmul.f32 %v3939, %v3939
  %v4004 = vmul.f32 %v3940, %v3940
  %v4005 = vmul.f32 %v3941, %v3941
  %v4006 = vmul.f32 %v3942, %v3942
  %v4007 = vmul.f32 %v3943, %v3943
  %v4008 = vmul.f32 %v3944, %v3944
  %v4009 = vmul.f32 %v3945, %v3945
  %v4010 = vsub.f32 %v3946, %v3978
  %v4011 = vsub.f32 %v3947, %v3979
  %v4012 = vsub.f32 %v3948, %v3980
  %v4013 = vsub.f32 %v3949, %v3981
  %v4014 = vsub.f32 %v3950, %v3982
  %v4015 = vsub.f32 %v3951, %v3983
  %v4016 = vsub.f32 %v3952, %v3984
  %v4017 = vsub.f32 %v3953, %v3985
  %v4018 = vsub.f32 %v3954, %v3986
  %v4019 = vsub.f32 %v3955, %v3987
  %v4020 = vsub.f32 %v3956, %v3988
  %v4021 = vsub.f32 %v3957, %v3989
  %v4022 = vsub.f32 %v3958, %v3990
  %v4023 = vsub.f32 %v3959, %v3991
  %v4024 = vsub.f32 %v3960, %v3992
  %v4025 = vsub.f32 %v3961, %v3993
  %v4026 = vsub.f32 %v3962, %v3994
  %v4027 = vsub.f32 %v3963, %v3995
  %v4028 = vsub.f32 %v3964, %v3996
  %v4029 = vsub.f32 %v3965, %v3997
  %v4030 = vsub.f32 %v3966, %v3998
  %v4031 = vsub.f32 %v3967, %v3999
  %v4032 = vsub.f32 %v3968, %v4000
  %v4033 = vsub.f32 %v3969, %v4001
  %v4034 = vsub.f32 %v3970, %v4002
  %v4035 = vsub.f32 %v3971, %v4003
  %v4036 = vsub.f32 %v3972, %v4004
  %v4037 = vsub.f32 %v3973, %v4005
  %v4038 = vsub.f32 %v3974, %v4006
  %v4039 = vsub.f32 %v3975, %v4007
  %v4040 = vsub.f32 %v3976, %v4008
  %v4041 = vsub.f32 %v3977, %v4009
  %v4042 = vmax.f32 %v4010, 0.0
  %v4043 = vmax.f32 %v4011, 0.0
  %v4044 = vmax.f32 %v4012, 0.0
  %v4045 = vmax.f32 %v4013, 0.0
  %v4046 = vmax.f32 %v4014, 0.0
  %v4047 = vmax.f32 %v4015, 0.0
  %v4048 = vmax.f32 %v4016, 0.0
  %v4049 = vmax.f32 %v4017, 0.0
  %v4050 = vmax.f32 %v4018, 0.0
  %v4051 = vmax.f32 %v4019, 0.0
  %v4052 = vmax.f32 %v4020, 0.0
  %v4053 = vmax.f32 %v4021, 0.0
  %v4054 = vmax.f32 %v4022, 0.0
  %v4055 = vmax.f32 %v4023, 0.0
  %v4056 = vmax.f32 %v4024, 0.0
  %v4057 = vmax.f32 %v4025, 0.0
  %v4058 = vmax.f32 %v4026, 0.0
  %v4059 = vmax.f32 %v4027, 0.0
  %v4060 = vmax.f32 %v4028, 0.0
  %v4061 = vmax.f32 %v4029, 0.0
  %v4062 = vmax.f32 %v4030, 0.0
  %v4063 = vmax.f32 %v4031, 0.0
  %v4064 = vmax.f32 %v4032, 0.0
  %v4065 = vmax.f32 %v4033, 0.0
  %v4066 = vmax.f32 %v4034, 0.0
  %v4067 = vmax.f32 %v4035, 0.0
  %v4068 = vmax.f32 %v4036, 0.0
  %v4069 = vmax.f32 %v4037, 0.0
  %v4070 = vmax.f32 %v4038, 0.0
  %v4071 = vmax.f32 %v4039, 0.0
  %v4072 = vmax.f32 %v4040, 0.0
  %v4073 = vmax.f32 %v4041, 0.0
  %v4074 = vadd.f32 %v4042, 1e-05
  %v4075 = vadd.f32 %v4043, 1e-05
  %v4076 = vadd.f32 %v4044, 1e-05
  %v4077 = vadd.f32 %v4045, 1e-05
  %v4078 = vadd.f32 %v4046, 1e-05
  %v4079 = vadd.f32 %v4047, 1e-05
  %v4080 = vadd.f32 %v4048, 1e-05
  %v4081 = vadd.f32 %v4049, 1e-05
  %v4082 = vadd.f32 %v4050, 1e-05
  %v4083 = vadd.f32 %v4051, 1e-05
  %v4084 = vadd.f32 %v4052, 1e-05
  %v4085 = vadd.f32 %v4053, 1e-05
  %v4086 = vadd.f32 %v4054, 1e-05
  %v4087 = vadd.f32 %v4055, 1e-05
  %v4088 = vadd.f32 %v4056, 1e-05
  %v4089 = vadd.f32 %v4057, 1e-05
  %v4090 = vadd.f32 %v4058, 1e-05
  %v4091 = vadd.f32 %v4059, 1e-05
  %v4092 = vadd.f32 %v4060, 1e-05
  %v4093 = vadd.f32 %v4061, 1e-05
  %v4094 = vadd.f32 %v4062, 1e-05
  %v4095 = vadd.f32 %v4063, 1e-05
  %v4096 = vadd.f32 %v4064, 1e-05
  %v4097 = vadd.f32 %v4065, 1e-05
  %v4098 = vadd.f32 %v4066, 1e-05
  %v4099 = vadd.f32 %v4067, 1e-05
  %v4100 = vadd.f32 %v4068, 1e-05
  %v4101 = vadd.f32 %v4069, 1e-05
  %v4102 = vadd.f32 %v4070, 1e-05
  %v4103 = vadd.f32 %v4071, 1e-05
  %v4104 = vadd.f32 %v4072, 1e-05
  %v4105 = vadd.f32 %v4073, 1e-05
  %v4106 = vrsqrt.pop %v4074
  %v4107 = vrsqrt.pop %v4075
  %v4108 = vrsqrt.pop %v4076
  %v4109 = vrsqrt.pop %v4077
  %v4110 = vrsqrt.pop %v4078
  %v4111 = vrsqrt.pop %v4079
  %v4112 = vrsqrt.pop %v4080
  %v4113 = vrsqrt.pop %v4081
  %v4114 = vrsqrt.pop %v4082
  %v4115 = vrsqrt.pop %v4083
  %v4116 = vrsqrt.pop %v4084
  %v4117 = vrsqrt.pop %v4085
  %v4118 = vrsqrt.pop %v4086
  %v4119 = vrsqrt.pop %v4087
  %v4120 = vrsqrt.pop %v4088
  %v4121 = vrsqrt.pop %v4089
  %v4122 = vrsqrt.pop %v4090
  %v4123 = vrsqrt.pop %v4091
  %v4124 = vrsqrt.pop %v4092
  %v4125 = vrsqrt.pop %v4093
  %v4126 = vrsqrt.pop %v4094
  %v4127 = vrsqrt.pop %v4095
  %v4128 = vrsqrt.pop %v4096
  %v4129 = vrsqrt.pop %v4097
  %v4130 = vrsqrt.pop %v4098
  %v4131 = vrsqrt.pop %v4099
  %v4132 = vrsqrt.pop %v4100
  %v4133 = vrsqrt.pop %v4101
  %v4134 = vrsqrt.pop %v4102
  %v4135 = vrsqrt.pop %v4103
  %v4136 = vrsqrt.pop %v4104
  %v4137 = vrsqrt.pop %v4105
  %v4138 = vld [vmem:[%s5] sm:$0xff]
  %v4139 = vld [vmem:[%s5 + $0x8] sm:$0xff]
  %v4140 = vld [vmem:[%s5 + $0x10] sm:$0xff]
  %v4141 = vld [vmem:[%s5 + $0x18] sm:$0xff]
  %v4142 = vld [vmem:[%s5 + $0x20] sm:$0xff]
  %v4143 = vld [vmem:[%s5 + $0x28] sm:$0xff]
  %v4144 = vld [vmem:[%s5 + $0x30] sm:$0xff]
  %v4145 = vld [vmem:[%s5 + $0x38] sm:$0xff]
  %v4146 = vld [vmem:[%s5 + $0x40] sm:$0xff]
  %v4147 = vld [vmem:[%s5 + $0x48] sm:$0xff]
  %v4148 = vld [vmem:[%s5 + $0x50] sm:$0xff]
  %v4149 = vld [vmem:[%s5 + $0x58] sm:$0xff]
  %v4150 = vld [vmem:[%s5 + $0x60] sm:$0xff]
  %v4151 = vld [vmem:[%s5 + $0x68] sm:$0xff]
  %v4152 = vld [vmem:[%s5 + $0x70] sm:$0xff]
  %v4153 = vld [vmem:[%s5 + $0x78] sm:$0xff]
  %v4154 = vld [vmem:[%s5 + $0x80] sm:$0xff]
  %v4155 = vld [vmem:[%s5 + $0x88] sm:$0xff]
  %v4156 = vld [vmem:[%s5 + $0x90] sm:$0xff]
  %v4157 = vld [vmem:[%s5 + $0x98] sm:$0xff]
  %v4158 = vld [vmem:[%s5 + $0xa0] sm:$0xff]
  %v4159 = vld [vmem:[%s5 + $0xa8] sm:$0xff]
  %v4160 = vld [vmem:[%s5 + $0xb0] sm:$0xff]
  %v4161 = vld [vmem:[%s5 + $0xb8] sm:$0xff]
  %v4162 = vld [vmem:[%s5 + $0xc0] sm:$0xff]
  %v4163 = vld [vmem:[%s5 + $0xc8] sm:$0xff]
  %v4164 = vld [vmem:[%s5 + $0xd0] sm:$0xff]
  %v4165 = vld [vmem:[%s5 + $0xd8] sm:$0xff]
  %v4166 = vld [vmem:[%s5 + $0xe0] sm:$0xff]
  %v4167 = vld [vmem:[%s5 + $0xe8] sm:$0xff]
  %v4168 = vld [vmem:[%s5 + $0xf0] sm:$0xff]
  %v4169 = vld [vmem:[%s5 + $0xf8] sm:$0xff]
  %v4170 = vmul.f32 %v4106, %v4138
  %v4171 = vmul.f32 %v4107, %v4139
  %v4172 = vmul.f32 %v4108, %v4140
  %v4173 = vmul.f32 %v4109, %v4141
  %v4174 = vmul.f32 %v4110, %v4142
  %v4175 = vmul.f32 %v4111, %v4143
  %v4176 = vmul.f32 %v4112, %v4144
  %v4177 = vmul.f32 %v4113, %v4145
  %v4178 = vmul.f32 %v4114, %v4146
  %v4179 = vmul.f32 %v4115, %v4147
  %v4180 = vmul.f32 %v4116, %v4148
  %v4181 = vmul.f32 %v4117, %v4149
  %v4182 = vmul.f32 %v4118, %v4150
  %v4183 = vmul.f32 %v4119, %v4151
  %v4184 = vmul.f32 %v4120, %v4152
  %v4185 = vmul.f32 %v4121, %v4153
  %v4186 = vmul.f32 %v4122, %v4154
  %v4187 = vmul.f32 %v4123, %v4155
  %v4188 = vmul.f32 %v4124, %v4156
  %v4189 = vmul.f32 %v4125, %v4157
  %v4190 = vmul.f32 %v4126, %v4158
  %v4191 = vmul.f32 %v4127, %v4159
  %v4192 = vmul.f32 %v4128, %v4160
  %v4193 = vmul.f32 %v4129, %v4161
  %v4194 = vmul.f32 %v4130, %v4162
  %v4195 = vmul.f32 %v4131, %v4163
  %v4196 = vmul.f32 %v4132, %v4164
  %v4197 = vmul.f32 %v4133, %v4165
  %v4198 = vmul.f32 %v4134, %v4166
  %v4199 = vmul.f32 %v4135, %v4167
  %v4200 = vmul.f32 %v4136, %v4168
  %v4201 = vmul.f32 %v4137, %v4169
  %v4202 = vld [vmem:[%s6] sm:$0xff]
  %v4203 = vld [vmem:[%s6 + $0x8] sm:$0xff]
  %v4204 = vld [vmem:[%s6 + $0x10] sm:$0xff]
  %v4205 = vld [vmem:[%s6 + $0x18] sm:$0xff]
  %v4206 = vld [vmem:[%s6 + $0x20] sm:$0xff]
  %v4207 = vld [vmem:[%s6 + $0x28] sm:$0xff]
  %v4208 = vld [vmem:[%s6 + $0x30] sm:$0xff]
  %v4209 = vld [vmem:[%s6 + $0x38] sm:$0xff]
  %v4210 = vld [vmem:[%s6 + $0x40] sm:$0xff]
  %v4211 = vld [vmem:[%s6 + $0x48] sm:$0xff]
  %v4212 = vld [vmem:[%s6 + $0x50] sm:$0xff]
  %v4213 = vld [vmem:[%s6 + $0x58] sm:$0xff]
  %v4214 = vld [vmem:[%s6 + $0x60] sm:$0xff]
  %v4215 = vld [vmem:[%s6 + $0x68] sm:$0xff]
  %v4216 = vld [vmem:[%s6 + $0x70] sm:$0xff]
  %v4217 = vld [vmem:[%s6 + $0x78] sm:$0xff]
  %v4218 = vld [vmem:[%s6 + $0x80] sm:$0xff]
  %v4219 = vld [vmem:[%s6 + $0x88] sm:$0xff]
  %v4220 = vld [vmem:[%s6 + $0x90] sm:$0xff]
  %v4221 = vld [vmem:[%s6 + $0x98] sm:$0xff]
  %v4222 = vld [vmem:[%s6 + $0xa0] sm:$0xff]
  %v4223 = vld [vmem:[%s6 + $0xa8] sm:$0xff]
  %v4224 = vld [vmem:[%s6 + $0xb0] sm:$0xff]
  %v4225 = vld [vmem:[%s6 + $0xb8] sm:$0xff]
  %v4226 = vld [vmem:[%s6 + $0xc0] sm:$0xff]
  %v4227 = vld [vmem:[%s6 + $0xc8] sm:$0xff]
  %v4228 = vld [vmem:[%s6 + $0xd0] sm:$0xff]
  %v4229 = vld [vmem:[%s6 + $0xd8] sm:$0xff]
  %v4230 = vld [vmem:[%s6 + $0xe0] sm:$0xff]
  %v4231 = vld [vmem:[%s6 + $0xe8] sm:$0xff]
  %v4232 = vld [vmem:[%s6 + $0xf0] sm:$0xff]
  %v4233 = vld [vmem:[%s6 + $0xf8] sm:$0xff]
  %v4234 = vmul.f32 %v3914, %v4170
  %v4235 = vmul.f32 %v3915, %v4171
  %v4236 = vmul.f32 %v3916, %v4172
  %v4237 = vmul.f32 %v3917, %v4173
  %v4238 = vmul.f32 %v3918, %v4174
  %v4239 = vmul.f32 %v3919, %v4175
  %v4240 = vmul.f32 %v3920, %v4176
  %v4241 = vmul.f32 %v3921, %v4177
  %v4242 = vmul.f32 %v3922, %v4178
  %v4243 = vmul.f32 %v3923, %v4179
  %v4244 = vmul.f32 %v3924, %v4180
  %v4245 = vmul.f32 %v3925, %v4181
  %v4246 = vmul.f32 %v3926, %v4182
  %v4247 = vmul.f32 %v3927, %v4183
  %v4248 = vmul.f32 %v3928, %v4184
  %v4249 = vmul.f32 %v3929, %v4185
  %v4250 = vmul.f32 %v3930, %v4186
  %v4251 = vmul.f32 %v3931, %v4187
  %v4252 = vmul.f32 %v3932, %v4188
  %v4253 = vmul.f32 %v3933, %v4189
  %v4254 = vmul.f32 %v3934, %v4190
  %v4255 = vmul.f32 %v3935, %v4191
  %v4256 = vmul.f32 %v3936, %v4192
  %v4257 = vmul.f32 %v3937, %v4193
  %v4258 = vmul.f32 %v3938, %v4194
  %v4259 = vmul.f32 %v3939, %v4195
  %v4260 = vmul.f32 %v3940, %v4196
  %v4261 = vmul.f32 %v3941, %v4197
  %v4262 = vmul.f32 %v3942, %v4198
  %v4263 = vmul.f32 %v3943, %v4199
  %v4264 = vmul.f32 %v3944, %v4200
  %v4265 = vmul.f32 %v3945, %v4201
  %v4266 = vsub.f32 %v4202, %v4234
  %v4267 = vsub.f32 %v4203, %v4235
  %v4268 = vsub.f32 %v4204, %v4236
  %v4269 = vsub.f32 %v4205, %v4237
  %v4270 = vsub.f32 %v4206, %v4238
  %v4271 = vsub.f32 %v4207, %v4239
  %v4272 = vsub.f32 %v4208, %v4240
  %v4273 = vsub.f32 %v4209, %v4241
  %v4274 = vsub.f32 %v4210, %v4242
  %v4275 = vsub.f32 %v4211, %v4243
  %v4276 = vsub.f32 %v4212, %v4244
  %v4277 = vsub.f32 %v4213, %v4245
  %v4278 = vsub.f32 %v4214, %v4246
  %v4279 = vsub.f32 %v4215, %v4247
  %v4280 = vsub.f32 %v4216, %v4248
  %v4281 = vsub.f32 %v4217, %v4249
  %v4282 = vsub.f32 %v4218, %v4250
  %v4283 = vsub.f32 %v4219, %v4251
  %v4284 = vsub.f32 %v4220, %v4252
  %v4285 = vsub.f32 %v4221, %v4253
  %v4286 = vsub.f32 %v4222, %v4254
  %v4287 = vsub.f32 %v4223, %v4255
  %v4288 = vsub.f32 %v4224, %v4256
  %v4289 = vsub.f32 %v4225, %v4257
  %v4290 = vsub.f32 %v4226, %v4258
  %v4291 = vsub.f32 %v4227, %v4259
  %v4292 = vsub.f32 %v4228, %v4260
  %v4293 = vsub.f32 %v4229, %v4261
  %v4294 = vsub.f32 %v4230, %v4262
  %v4295 = vsub.f32 %v4231, %v4263
  %v4296 = vsub.f32 %v4232, %v4264
  %v4297 = vsub.f32 %v4233, %v4265
  %4299 = vset.pattern.permute.xlu0 0
  %4300 = vperm.xlu0 %4299, %v4170
  %v4301 = vpop.permute.xlu0 %4300
  %4304 = vset.pattern.permute.xlu0 0
  %4305 = vperm.xlu0 %4304, %v4171
  %v4306 = vpop.permute.xlu0 %4305
  %4309 = vset.pattern.permute.xlu0 0
  %4310 = vperm.xlu0 %4309, %v4172
  %v4311 = vpop.permute.xlu0 %4310
  %4314 = vset.pattern.permute.xlu0 0
  %4315 = vperm.xlu0 %4314, %v4173
  %v4316 = vpop.permute.xlu0 %4315
  %4319 = vset.pattern.permute.xlu0 0
  %4320 = vperm.xlu0 %4319, %v4174
  %v4321 = vpop.permute.xlu0 %4320
  %4324 = vset.pattern.permute.xlu0 0
  %4325 = vperm.xlu0 %4324, %v4175
  %v4326 = vpop.permute.xlu0 %4325
  %4329 = vset.pattern.permute.xlu0 0
  %4330 = vperm.xlu0 %4329, %v4176
  %v4331 = vpop.permute.xlu0 %4330
  %4334 = vset.pattern.permute.xlu0 0
  %4335 = vperm.xlu0 %4334, %v4177
  %v4336 = vpop.permute.xlu0 %4335
  %4339 = vset.pattern.permute.xlu0 0
  %4340 = vperm.xlu0 %4339, %v4178
  %v4341 = vpop.permute.xlu0 %4340
  %4344 = vset.pattern.permute.xlu0 0
  %4345 = vperm.xlu0 %4344, %v4179
  %v4346 = vpop.permute.xlu0 %4345
  %4349 = vset.pattern.permute.xlu0 0
  %4350 = vperm.xlu0 %4349, %v4180
  %v4351 = vpop.permute.xlu0 %4350
  %4354 = vset.pattern.permute.xlu0 0
  %4355 = vperm.xlu0 %4354, %v4181
  %v4356 = vpop.permute.xlu0 %4355
  %4359 = vset.pattern.permute.xlu0 0
  %4360 = vperm.xlu0 %4359, %v4182
  %v4361 = vpop.permute.xlu0 %4360
  %4364 = vset.pattern.permute.xlu0 0
  %4365 = vperm.xlu0 %4364, %v4183
  %v4366 = vpop.permute.xlu0 %4365
  %4369 = vset.pattern.permute.xlu0 0
  %4370 = vperm.xlu0 %4369, %v4184
  %v4371 = vpop.permute.xlu0 %4370
  %4374 = vset.pattern.permute.xlu0 0
  %4375 = vperm.xlu0 %4374, %v4185
  %v4376 = vpop.permute.xlu0 %4375
  %4379 = vset.pattern.permute.xlu0 0
  %4380 = vperm.xlu0 %4379, %v4186
  %v4381 = vpop.permute.xlu0 %4380
  %4384 = vset.pattern.permute.xlu0 0
  %4385 = vperm.xlu0 %4384, %v4187
  %v4386 = vpop.permute.xlu0 %4385
  %4389 = vset.pattern.permute.xlu0 0
  %4390 = vperm.xlu0 %4389, %v4188
  %v4391 = vpop.permute.xlu0 %4390
  %4394 = vset.pattern.permute.xlu0 0
  %4395 = vperm.xlu0 %4394, %v4189
  %v4396 = vpop.permute.xlu0 %4395
  %4399 = vset.pattern.permute.xlu0 0
  %4400 = vperm.xlu0 %4399, %v4190
  %v4401 = vpop.permute.xlu0 %4400
  %4404 = vset.pattern.permute.xlu0 0
  %4405 = vperm.xlu0 %4404, %v4191
  %v4406 = vpop.permute.xlu0 %4405
  %4409 = vset.pattern.permute.xlu0 0
  %4410 = vperm.xlu0 %4409, %v4192
  %v4411 = vpop.permute.xlu0 %4410
  %4414 = vset.pattern.permute.xlu0 0
  %4415 = vperm.xlu0 %4414, %v4193
  %v4416 = vpop.permute.xlu0 %4415
  %4419 = vset.pattern.permute.xlu0 0
  %4420 = vperm.xlu0 %4419, %v4194
  %v4421 = vpop.permute.xlu0 %4420
  %4424 = vset.pattern.permute.xlu0 0
  %4425 = vperm.xlu0 %4424, %v4195
  %v4426 = vpop.permute.xlu0 %4425
  %4429 = vset.pattern.permute.xlu0 0
  %4430 = vperm.xlu0 %4429, %v4196
  %v4431 = vpop.permute.xlu0 %4430
  %4434 = vset.pattern.permute.xlu0 0
  %4435 = vperm.xlu0 %4434, %v4197
  %v4436 = vpop.permute.xlu0 %4435
  %4439 = vset.pattern.permute.xlu0 0
  %4440 = vperm.xlu0 %4439, %v4198
  %v4441 = vpop.permute.xlu0 %4440
  %4444 = vset.pattern.permute.xlu0 0
  %4445 = vperm.xlu0 %4444, %v4199
  %v4446 = vpop.permute.xlu0 %4445
  %4449 = vset.pattern.permute.xlu0 0
  %4450 = vperm.xlu0 %4449, %v4200
  %v4451 = vpop.permute.xlu0 %4450
  %4454 = vset.pattern.permute.xlu0 0
  %4455 = vperm.xlu0 %4454, %v4201
  %v4456 = vpop.permute.xlu0 %4455
  %v4458 = vmul.f32 %v1863, %v4301
  %v4459 = vmul.f32 %v1864, %v4301
  %v4460 = vmul.f32 %v1865, %v4306
  %v4461 = vmul.f32 %v1866, %v4306
  %v4462 = vmul.f32 %v1867, %v4311
  %v4463 = vmul.f32 %v1868, %v4311
  %v4464 = vmul.f32 %v1869, %v4316
  %v4465 = vmul.f32 %v1870, %v4316
  %v4466 = vmul.f32 %v1871, %v4321
  %v4467 = vmul.f32 %v1872, %v4321
  %v4468 = vmul.f32 %v1873, %v4326
  %v4469 = vmul.f32 %v1874, %v4326
  %v4470 = vmul.f32 %v1875, %v4331
  %v4471 = vmul.f32 %v1876, %v4331
  %v4472 = vmul.f32 %v1877, %v4336
  %v4473 = vmul.f32 %v1878, %v4336
  %v4474 = vmul.f32 %v1879, %v4341
  %v4475 = vmul.f32 %v1880, %v4341
  %v4476 = vmul.f32 %v1881, %v4346
  %v4477 = vmul.f32 %v1882, %v4346
  %v4478 = vmul.f32 %v1883, %v4351
  %v4479 = vmul.f32 %v1884, %v4351
  %v4480 = vmul.f32 %v1885, %v4356
  %v4481 = vmul.f32 %v1886, %v4356
  %v4482 = vmul.f32 %v1887, %v4361
  %v4483 = vmul.f32 %v1888, %v4361
  %v4484 = vmul.f32 %v1889, %v4366
  %v4485 = vmul.f32 %v1890, %v4366
  %v4486 = vmul.f32 %v1891, %v4371
  %v4487 = vmul.f32 %v1892, %v4371
  %v4488 = vmul.f32 %v1893, %v4376
  %v4489 = vmul.f32 %v1894, %v4376
  %v4490 = vmul.f32 %v1895, %v4381
  %v4491 = vmul.f32 %v1896, %v4381
  %v4492 = vmul.f32 %v1897, %v4386
  %v4493 = vmul.f32 %v1898, %v4386
  %v4494 = vmul.f32 %v1899, %v4391
  %v4495 = vmul.f32 %v1900, %v4391
  %v4496 = vmul.f32 %v1901, %v4396
  %v4497 = vmul.f32 %v1902, %v4396
  %v4498 = vmul.f32 %v1903, %v4401
  %v4499 = vmul.f32 %v1904, %v4401
  %v4500 = vmul.f32 %v1905, %v4406
  %v4501 = vmul.f32 %v1906, %v4406
  %v4502 = vmul.f32 %v1907, %v4411
  %v4503 = vmul.f32 %v1908, %v4411
  %v4504 = vmul.f32 %v1909, %v4416
  %v4505 = vmul.f32 %v1910, %v4416
  %v4506 = vmul.f32 %v1911, %v4421
  %v4507 = vmul.f32 %v1912, %v4421
  %v4508 = vmul.f32 %v1913, %v4426
  %v4509 = vmul.f32 %v1914, %v4426
  %v4510 = vmul.f32 %v1915, %v4431
  %v4511 = vmul.f32 %v1916, %v4431
  %v4512 = vmul.f32 %v1917, %v4436
  %v4513 = vmul.f32 %v1918, %v4436
  %v4514 = vmul.f32 %v1919, %v4441
  %v4515 = vmul.f32 %v1920, %v4441
  %v4516 = vmul.f32 %v1921, %v4446
  %v4517 = vmul.f32 %v1922, %v4446
  %v4518 = vmul.f32 %v1923, %v4451
  %v4519 = vmul.f32 %v1924, %v4451
  %v4520 = vmul.f32 %v1925, %v4456
  %v4521 = vmul.f32 %v1926, %v4456
  %4523 = vset.pattern.permute.xlu0 0
  %4524 = vperm.xlu0 %4523, %v4266
  %v4525 = vpop.permute.xlu0 %4524
  %4528 = vset.pattern.permute.xlu0 0
  %4529 = vperm.xlu0 %4528, %v4267
  %v4530 = vpop.permute.xlu0 %4529
  %4533 = vset.pattern.permute.xlu0 0
  %4534 = vperm.xlu0 %4533, %v4268
  %v4535 = vpop.permute.xlu0 %4534
  %4538 = vset.pattern.permute.xlu0 0
  %4539 = vperm.xlu0 %4538, %v4269
  %v4540 = vpop.permute.xlu0 %4539
  %4543 = vset.pattern.permute.xlu0 0
  %4544 = vperm.xlu0 %4543, %v4270
  %v4545 = vpop.permute.xlu0 %4544
  %4548 = vset.pattern.permute.xlu0 0
  %4549 = vperm.xlu0 %4548, %v4271
  %v4550 = vpop.permute.xlu0 %4549
  %4553 = vset.pattern.permute.xlu0 0
  %4554 = vperm.xlu0 %4553, %v4272
  %v4555 = vpop.permute.xlu0 %4554
  %4558 = vset.pattern.permute.xlu0 0
  %4559 = vperm.xlu0 %4558, %v4273
  %v4560 = vpop.permute.xlu0 %4559
  %4563 = vset.pattern.permute.xlu0 0
  %4564 = vperm.xlu0 %4563, %v4274
  %v4565 = vpop.permute.xlu0 %4564
  %4568 = vset.pattern.permute.xlu0 0
  %4569 = vperm.xlu0 %4568, %v4275
  %v4570 = vpop.permute.xlu0 %4569
  %4573 = vset.pattern.permute.xlu0 0
  %4574 = vperm.xlu0 %4573, %v4276
  %v4575 = vpop.permute.xlu0 %4574
  %4578 = vset.pattern.permute.xlu0 0
  %4579 = vperm.xlu0 %4578, %v4277
  %v4580 = vpop.permute.xlu0 %4579
  %4583 = vset.pattern.permute.xlu0 0
  %4584 = vperm.xlu0 %4583, %v4278
  %v4585 = vpop.permute.xlu0 %4584
  %4588 = vset.pattern.permute.xlu0 0
  %4589 = vperm.xlu0 %4588, %v4279
  %v4590 = vpop.permute.xlu0 %4589
  %4593 = vset.pattern.permute.xlu0 0
  %4594 = vperm.xlu0 %4593, %v4280
  %v4595 = vpop.permute.xlu0 %4594
  %4598 = vset.pattern.permute.xlu0 0
  %4599 = vperm.xlu0 %4598, %v4281
  %v4600 = vpop.permute.xlu0 %4599
  %4603 = vset.pattern.permute.xlu0 0
  %4604 = vperm.xlu0 %4603, %v4282
  %v4605 = vpop.permute.xlu0 %4604
  %4608 = vset.pattern.permute.xlu0 0
  %4609 = vperm.xlu0 %4608, %v4283
  %v4610 = vpop.permute.xlu0 %4609
  %4613 = vset.pattern.permute.xlu0 0
  %4614 = vperm.xlu0 %4613, %v4284
  %v4615 = vpop.permute.xlu0 %4614
  %4618 = vset.pattern.permute.xlu0 0
  %4619 = vperm.xlu0 %4618, %v4285
  %v4620 = vpop.permute.xlu0 %4619
  %4623 = vset.pattern.permute.xlu0 0
  %4624 = vperm.xlu0 %4623, %v4286
  %v4625 = vpop.permute.xlu0 %4624
  %4628 = vset.pattern.permute.xlu0 0
  %4629 = vperm.xlu0 %4628, %v4287
  %v4630 = vpop.permute.xlu0 %4629
  %4633 = vset.pattern.permute.xlu0 0
  %4634 = vperm.xlu0 %4633, %v4288
  %v4635 = vpop.permute.xlu0 %4634
  %4638 = vset.pattern.permute.xlu0 0
  %4639 = vperm.xlu0 %4638, %v4289
  %v4640 = vpop.permute.xlu0 %4639
  %4643 = vset.pattern.permute.xlu0 0
  %4644 = vperm.xlu0 %4643, %v4290
  %v4645 = vpop.permute.xlu0 %4644
  %4648 = vset.pattern.permute.xlu0 0
  %4649 = vperm.xlu0 %4648, %v4291
  %v4650 = vpop.permute.xlu0 %4649
  %4653 = vset.pattern.permute.xlu0 0
  %4654 = vperm.xlu0 %4653, %v4292
  %v4655 = vpop.permute.xlu0 %4654
  %4658 = vset.pattern.permute.xlu0 0
  %4659 = vperm.xlu0 %4658, %v4293
  %v4660 = vpop.permute.xlu0 %4659
  %4663 = vset.pattern.permute.xlu0 0
  %4664 = vperm.xlu0 %4663, %v4294
  %v4665 = vpop.permute.xlu0 %4664
  %4668 = vset.pattern.permute.xlu0 0
  %4669 = vperm.xlu0 %4668, %v4295
  %v4670 = vpop.permute.xlu0 %4669
  %4673 = vset.pattern.permute.xlu0 0
  %4674 = vperm.xlu0 %4673, %v4296
  %v4675 = vpop.permute.xlu0 %4674
  %4678 = vset.pattern.permute.xlu0 0
  %4679 = vperm.xlu0 %4678, %v4297
  %v4680 = vpop.permute.xlu0 %4679
  %v4682 = vadd.f32 %v4458, %v4525
  %v4683 = vadd.f32 %v4459, %v4525
  %v4684 = vadd.f32 %v4460, %v4530
  %v4685 = vadd.f32 %v4461, %v4530
  %v4686 = vadd.f32 %v4462, %v4535
  %v4687 = vadd.f32 %v4463, %v4535
  %v4688 = vadd.f32 %v4464, %v4540
  %v4689 = vadd.f32 %v4465, %v4540
  %v4690 = vadd.f32 %v4466, %v4545
  %v4691 = vadd.f32 %v4467, %v4545
  %v4692 = vadd.f32 %v4468, %v4550
  %v4693 = vadd.f32 %v4469, %v4550
  %v4694 = vadd.f32 %v4470, %v4555
  %v4695 = vadd.f32 %v4471, %v4555
  %v4696 = vadd.f32 %v4472, %v4560
  %v4697 = vadd.f32 %v4473, %v4560
  %v4698 = vadd.f32 %v4474, %v4565
  %v4699 = vadd.f32 %v4475, %v4565
  %v4700 = vadd.f32 %v4476, %v4570
  %v4701 = vadd.f32 %v4477, %v4570
  %v4702 = vadd.f32 %v4478, %v4575
  %v4703 = vadd.f32 %v4479, %v4575
  %v4704 = vadd.f32 %v4480, %v4580
  %v4705 = vadd.f32 %v4481, %v4580
  %v4706 = vadd.f32 %v4482, %v4585
  %v4707 = vadd.f32 %v4483, %v4585
  %v4708 = vadd.f32 %v4484, %v4590
  %v4709 = vadd.f32 %v4485, %v4590
  %v4710 = vadd.f32 %v4486, %v4595
  %v4711 = vadd.f32 %v4487, %v4595
  %v4712 = vadd.f32 %v4488, %v4600
  %v4713 = vadd.f32 %v4489, %v4600
  %v4714 = vadd.f32 %v4490, %v4605
  %v4715 = vadd.f32 %v4491, %v4605
  %v4716 = vadd.f32 %v4492, %v4610
  %v4717 = vadd.f32 %v4493, %v4610
  %v4718 = vadd.f32 %v4494, %v4615
  %v4719 = vadd.f32 %v4495, %v4615
  %v4720 = vadd.f32 %v4496, %v4620
  %v4721 = vadd.f32 %v4497, %v4620
  %v4722 = vadd.f32 %v4498, %v4625
  %v4723 = vadd.f32 %v4499, %v4625
  %v4724 = vadd.f32 %v4500, %v4630
  %v4725 = vadd.f32 %v4501, %v4630
  %v4726 = vadd.f32 %v4502, %v4635
  %v4727 = vadd.f32 %v4503, %v4635
  %v4728 = vadd.f32 %v4504, %v4640
  %v4729 = vadd.f32 %v4505, %v4640
  %v4730 = vadd.f32 %v4506, %v4645
  %v4731 = vadd.f32 %v4507, %v4645
  %v4732 = vadd.f32 %v4508, %v4650
  %v4733 = vadd.f32 %v4509, %v4650
  %v4734 = vadd.f32 %v4510, %v4655
  %v4735 = vadd.f32 %v4511, %v4655
  %v4736 = vadd.f32 %v4512, %v4660
  %v4737 = vadd.f32 %v4513, %v4660
  %v4738 = vadd.f32 %v4514, %v4665
  %v4739 = vadd.f32 %v4515, %v4665
  %v4740 = vadd.f32 %v4516, %v4670
  %v4741 = vadd.f32 %v4517, %v4670
  %v4742 = vadd.f32 %v4518, %v4675
  %v4743 = vadd.f32 %v4519, %v4675
  %v4744 = vadd.f32 %v4520, %v4680
  %v4745 = vadd.f32 %v4521, %v4680
  %v4746 = vmax.f32 %v4682, 0.0
  %v4747 = vmax.f32 %v4683, 0.0
  %v4748 = vmax.f32 %v4684, 0.0
  %v4749 = vmax.f32 %v4685, 0.0
  %v4750 = vmax.f32 %v4686, 0.0
  %v4751 = vmax.f32 %v4687, 0.0
  %v4752 = vmax.f32 %v4688, 0.0
  %v4753 = vmax.f32 %v4689, 0.0
  %v4754 = vmax.f32 %v4690, 0.0
  %v4755 = vmax.f32 %v4691, 0.0
  %v4756 = vmax.f32 %v4692, 0.0
  %v4757 = vmax.f32 %v4693, 0.0
  %v4758 = vmax.f32 %v4694, 0.0
  %v4759 = vmax.f32 %v4695, 0.0
  %v4760 = vmax.f32 %v4696, 0.0
  %v4761 = vmax.f32 %v4697, 0.0
  %v4762 = vmax.f32 %v4698, 0.0
  %v4763 = vmax.f32 %v4699, 0.0
  %v4764 = vmax.f32 %v4700, 0.0
  %v4765 = vmax.f32 %v4701, 0.0
  %v4766 = vmax.f32 %v4702, 0.0
  %v4767 = vmax.f32 %v4703, 0.0
  %v4768 = vmax.f32 %v4704, 0.0
  %v4769 = vmax.f32 %v4705, 0.0
  %v4770 = vmax.f32 %v4706, 0.0
  %v4771 = vmax.f32 %v4707, 0.0
  %v4772 = vmax.f32 %v4708, 0.0
  %v4773 = vmax.f32 %v4709, 0.0
  %v4774 = vmax.f32 %v4710, 0.0
  %v4775 = vmax.f32 %v4711, 0.0
  %v4776 = vmax.f32 %v4712, 0.0
  %v4777 = vmax.f32 %v4713, 0.0
  %v4778 = vmax.f32 %v4714, 0.0
  %v4779 = vmax.f32 %v4715, 0.0
  %v4780 = vmax.f32 %v4716, 0.0
  %v4781 = vmax.f32 %v4717, 0.0
  %v4782 = vmax.f32 %v4718, 0.0
  %v4783 = vmax.f32 %v4719, 0.0
  %v4784 = vmax.f32 %v4720, 0.0
  %v4785 = vmax.f32 %v4721, 0.0
  %v4786 = vmax.f32 %v4722, 0.0
  %v4787 = vmax.f32 %v4723, 0.0
  %v4788 = vmax.f32 %v4724, 0.0
  %v4789 = vmax.f32 %v4725, 0.0
  %v4790 = vmax.f32 %v4726, 0.0
  %v4791 = vmax.f32 %v4727, 0.0
  %v4792 = vmax.f32 %v4728, 0.0
  %v4793 = vmax.f32 %v4729, 0.0
  %v4794 = vmax.f32 %v4730, 0.0
  %v4795 = vmax.f32 %v4731, 0.0
  %v4796 = vmax.f32 %v4732, 0.0
  %v4797 = vmax.f32 %v4733, 0.0
  %v4798 = vmax.f32 %v4734, 0.0
  %v4799 = vmax.f32 %v4735, 0.0
  %v4800 = vmax.f32 %v4736, 0.0
  %v4801 = vmax.f32 %v4737, 0.0
  %v4802 = vmax.f32 %v4738, 0.0
  %v4803 = vmax.f32 %v4739, 0.0
  %v4804 = vmax.f32 %v4740, 0.0
  %v4805 = vmax.f32 %v4741, 0.0
  %v4806 = vmax.f32 %v4742, 0.0
  %v4807 = vmax.f32 %v4743, 0.0
  %v4808 = vmax.f32 %v4744, 0.0
  %v4809 = vmax.f32 %v4745, 0.0
  %v4810 = vmul.f32 %v3210, %v4301
  %v4811 = vmul.f32 %v3211, %v4301
  %v4812 = vmul.f32 %v3212, %v4306
  %v4813 = vmul.f32 %v3213, %v4306
  %v4814 = vmul.f32 %v3214, %v4311
  %v4815 = vmul.f32 %v3215, %v4311
  %v4816 = vmul.f32 %v3216, %v4316
  %v4817 = vmul.f32 %v3217, %v4316
  %v4818 = vmul.f32 %v3218, %v4321
  %v4819 = vmul.f32 %v3219, %v4321
  %v4820 = vmul.f32 %v3220, %v4326
  %v4821 = vmul.f32 %v3221, %v4326
  %v4822 = vmul.f32 %v3222, %v4331
  %v4823 = vmul.f32 %v3223, %v4331
  %v4824 = vmul.f32 %v3224, %v4336
  %v4825 = vmul.f32 %v3225, %v4336
  %v4826 = vmul.f32 %v3226, %v4341
  %v4827 = vmul.f32 %v3227, %v4341
  %v4828 = vmul.f32 %v3228, %v4346
  %v4829 = vmul.f32 %v3229, %v4346
  %v4830 = vmul.f32 %v3230, %v4351
  %v4831 = vmul.f32 %v3231, %v4351
  %v4832 = vmul.f32 %v3232, %v4356
  %v4833 = vmul.f32 %v3233, %v4356
  %v4834 = vmul.f32 %v3234, %v4361
  %v4835 = vmul.f32 %v3235, %v4361
  %v4836 = vmul.f32 %v3236, %v4366
  %v4837 = vmul.f32 %v3237, %v4366
  %v4838 = vmul.f32 %v3238, %v4371
  %v4839 = vmul.f32 %v3239, %v4371
  %v4840 = vmul.f32 %v3240, %v4376
  %v4841 = vmul.f32 %v3241, %v4376
  %v4842 = vmul.f32 %v3242, %v4381
  %v4843 = vmul.f32 %v3243, %v4381
  %v4844 = vmul.f32 %v3244, %v4386
  %v4845 = vmul.f32 %v3245, %v4386
  %v4846 = vmul.f32 %v3246, %v4391
  %v4847 = vmul.f32 %v3247, %v4391
  %v4848 = vmul.f32 %v3248, %v4396
  %v4849 = vmul.f32 %v3249, %v4396
  %v4850 = vmul.f32 %v3250, %v4401
  %v4851 = vmul.f32 %v3251, %v4401
  %v4852 = vmul.f32 %v3252, %v4406
  %v4853 = vmul.f32 %v3253, %v4406
  %v4854 = vmul.f32 %v3254, %v4411
  %v4855 = vmul.f32 %v3255, %v4411
  %v4856 = vmul.f32 %v3256, %v4416
  %v4857 = vmul.f32 %v3257, %v4416
  %v4858 = vmul.f32 %v3258, %v4421
  %v4859 = vmul.f32 %v3259, %v4421
  %v4860 = vmul.f32 %v3260, %v4426
  %v4861 = vmul.f32 %v3261, %v4426
  %v4862 = vmul.f32 %v3262, %v4431
  %v4863 = vmul.f32 %v3263, %v4431
  %v4864 = vmul.f32 %v3264, %v4436
  %v4865 = vmul.f32 %v3265, %v4436
  %v4866 = vmul.f32 %v3266, %v4441
  %v4867 = vmul.f32 %v3267, %v4441
  %v4868 = vmul.f32 %v3268, %v4446
  %v4869 = vmul.f32 %v3269, %v4446
  %v4870 = vmul.f32 %v3270, %v4451
  %v4871 = vmul.f32 %v3271, %v4451
  %v4872 = vmul.f32 %v3272, %v4456
  %v4873 = vmul.f32 %v3273, %v4456
  %v4874 = vadd.f32 %v4810, %v4525
  %v4875 = vadd.f32 %v4811, %v4525
  %v4876 = vadd.f32 %v4812, %v4530
  %v4877 = vadd.f32 %v4813, %v4530
  %v4878 = vadd.f32 %v4814, %v4535
  %v4879 = vadd.f32 %v4815, %v4535
  %v4880 = vadd.f32 %v4816, %v4540
  %v4881 = vadd.f32 %v4817, %v4540
  %v4882 = vadd.f32 %v4818, %v4545
  %v4883 = vadd.f32 %v4819, %v4545
  %v4884 = vadd.f32 %v4820, %v4550
  %v4885 = vadd.f32 %v4821, %v4550
  %v4886 = vadd.f32 %v4822, %v4555
  %v4887 = vadd.f32 %v4823, %v4555
  %v4888 = vadd.f32 %v4824, %v4560
  %v4889 = vadd.f32 %v4825, %v4560
  %v4890 = vadd.f32 %v4826, %v4565
  %v4891 = vadd.f32 %v4827, %v4565
  %v4892 = vadd.f32 %v4828, %v4570
  %v4893 = vadd.f32 %v4829, %v4570
  %v4894 = vadd.f32 %v4830, %v4575
  %v4895 = vadd.f32 %v4831, %v4575
  %v4896 = vadd.f32 %v4832, %v4580
  %v4897 = vadd.f32 %v4833, %v4580
  %v4898 = vadd.f32 %v4834, %v4585
  %v4899 = vadd.f32 %v4835, %v4585
  %v4900 = vadd.f32 %v4836, %v4590
  %v4901 = vadd.f32 %v4837, %v4590
  %v4902 = vadd.f32 %v4838, %v4595
  %v4903 = vadd.f32 %v4839, %v4595
  %v4904 = vadd.f32 %v4840, %v4600
  %v4905 = vadd.f32 %v4841, %v4600
  %v4906 = vadd.f32 %v4842, %v4605
  %v4907 = vadd.f32 %v4843, %v4605
  %v4908 = vadd.f32 %v4844, %v4610
  %v4909 = vadd.f32 %v4845, %v4610
  %v4910 = vadd.f32 %v4846, %v4615
  %v4911 = vadd.f32 %v4847, %v4615
  %v4912 = vadd.f32 %v4848, %v4620
  %v4913 = vadd.f32 %v4849, %v4620
  %v4914 = vadd.f32 %v4850, %v4625
  %v4915 = vadd.f32 %v4851, %v4625
  %v4916 = vadd.f32 %v4852, %v4630
  %v4917 = vadd.f32 %v4853, %v4630
  %v4918 = vadd.f32 %v4854, %v4635
  %v4919 = vadd.f32 %v4855, %v4635
  %v4920 = vadd.f32 %v4856, %v4640
  %v4921 = vadd.f32 %v4857, %v4640
  %v4922 = vadd.f32 %v4858, %v4645
  %v4923 = vadd.f32 %v4859, %v4645
  %v4924 = vadd.f32 %v4860, %v4650
  %v4925 = vadd.f32 %v4861, %v4650
  %v4926 = vadd.f32 %v4862, %v4655
  %v4927 = vadd.f32 %v4863, %v4655
  %v4928 = vadd.f32 %v4864, %v4660
  %v4929 = vadd.f32 %v4865, %v4660
  %v4930 = vadd.f32 %v4866, %v4665
  %v4931 = vadd.f32 %v4867, %v4665
  %v4932 = vadd.f32 %v4868, %v4670
  %v4933 = vadd.f32 %v4869, %v4670
  %v4934 = vadd.f32 %v4870, %v4675
  %v4935 = vadd.f32 %v4871, %v4675
  %v4936 = vadd.f32 %v4872, %v4680
  %v4937 = vadd.f32 %v4873, %v4680
  %v4938 = vmax.f32 %v4874, 0.0
  %v4939 = vmax.f32 %v4875, 0.0
  %v4940 = vmax.f32 %v4876, 0.0
  %v4941 = vmax.f32 %v4877, 0.0
  %v4942 = vmax.f32 %v4878, 0.0
  %v4943 = vmax.f32 %v4879, 0.0
  %v4944 = vmax.f32 %v4880, 0.0
  %v4945 = vmax.f32 %v4881, 0.0
  %v4946 = vmax.f32 %v4882, 0.0
  %v4947 = vmax.f32 %v4883, 0.0
  %v4948 = vmax.f32 %v4884, 0.0
  %v4949 = vmax.f32 %v4885, 0.0
  %v4950 = vmax.f32 %v4886, 0.0
  %v4951 = vmax.f32 %v4887, 0.0
  %v4952 = vmax.f32 %v4888, 0.0
  %v4953 = vmax.f32 %v4889, 0.0
  %v4954 = vmax.f32 %v4890, 0.0
  %v4955 = vmax.f32 %v4891, 0.0
  %v4956 = vmax.f32 %v4892, 0.0
  %v4957 = vmax.f32 %v4893, 0.0
  %v4958 = vmax.f32 %v4894, 0.0
  %v4959 = vmax.f32 %v4895, 0.0
  %v4960 = vmax.f32 %v4896, 0.0
  %v4961 = vmax.f32 %v4897, 0.0
  %v4962 = vmax.f32 %v4898, 0.0
  %v4963 = vmax.f32 %v4899, 0.0
  %v4964 = vmax.f32 %v4900, 0.0
  %v4965 = vmax.f32 %v4901, 0.0
  %v4966 = vmax.f32 %v4902, 0.0
  %v4967 = vmax.f32 %v4903, 0.0
  %v4968 = vmax.f32 %v4904, 0.0
  %v4969 = vmax.f32 %v4905, 0.0
  %v4970 = vmax.f32 %v4906, 0.0
  %v4971 = vmax.f32 %v4907, 0.0
  %v4972 = vmax.f32 %v4908, 0.0
  %v4973 = vmax.f32 %v4909, 0.0
  %v4974 = vmax.f32 %v4910, 0.0
  %v4975 = vmax.f32 %v4911, 0.0
  %v4976 = vmax.f32 %v4912, 0.0
  %v4977 = vmax.f32 %v4913, 0.0
  %v4978 = vmax.f32 %v4914, 0.0
  %v4979 = vmax.f32 %v4915, 0.0
  %v4980 = vmax.f32 %v4916, 0.0
  %v4981 = vmax.f32 %v4917, 0.0
  %v4982 = vmax.f32 %v4918, 0.0
  %v4983 = vmax.f32 %v4919, 0.0
  %v4984 = vmax.f32 %v4920, 0.0
  %v4985 = vmax.f32 %v4921, 0.0
  %v4986 = vmax.f32 %v4922, 0.0
  %v4987 = vmax.f32 %v4923, 0.0
  %v4988 = vmax.f32 %v4924, 0.0
  %v4989 = vmax.f32 %v4925, 0.0
  %v4990 = vmax.f32 %v4926, 0.0
  %v4991 = vmax.f32 %v4927, 0.0
  %v4992 = vmax.f32 %v4928, 0.0
  %v4993 = vmax.f32 %v4929, 0.0
  %v4994 = vmax.f32 %v4930, 0.0
  %v4995 = vmax.f32 %v4931, 0.0
  %v4996 = vmax.f32 %v4932, 0.0
  %v4997 = vmax.f32 %v4933, 0.0
  %v4998 = vmax.f32 %v4934, 0.0
  %v4999 = vmax.f32 %v4935, 0.0
  %v5000 = vmax.f32 %v4936, 0.0
  %v5001 = vmax.f32 %v4937, 0.0
  %v5002 = vld [vmem:[%s7] sm:$0xff]
  %v5003 = vld [vmem:[%s7 + $0x8] sm:$0xff]
  %v5004 = vld [vmem:[%s7 + $0x10] sm:$0xff]
  %v5005 = vld [vmem:[%s7 + $0x18] sm:$0xff]
  %v5006 = vld [vmem:[%s7 + $0x20] sm:$0xff]
  %v5007 = vld [vmem:[%s7 + $0x28] sm:$0xff]
  %v5008 = vld [vmem:[%s7 + $0x30] sm:$0xff]
  %v5009 = vld [vmem:[%s7 + $0x38] sm:$0xff]
  %v5010 = vld [vmem:[%s7 + $0x40] sm:$0xff]
  %v5011 = vld [vmem:[%s7 + $0x48] sm:$0xff]
  %v5012 = vld [vmem:[%s7 + $0x50] sm:$0xff]
  %v5013 = vld [vmem:[%s7 + $0x58] sm:$0xff]
  %v5014 = vld [vmem:[%s7 + $0x60] sm:$0xff]
  %v5015 = vld [vmem:[%s7 + $0x68] sm:$0xff]
  %v5016 = vld [vmem:[%s7 + $0x70] sm:$0xff]
  %v5017 = vld [vmem:[%s7 + $0x78] sm:$0xff]
  %v5018 = vld [vmem:[%s8] sm:$0xff]
  %v5019 = vld [vmem:[%s8 + $0x8] sm:$0xff]
  %v5020 = vld [vmem:[%s8 + $0x10] sm:$0xff]
  %v5021 = vld [vmem:[%s8 + $0x18] sm:$0xff]
  %v5022 = vld [vmem:[%s8 + $0x20] sm:$0xff]
  %v5023 = vld [vmem:[%s8 + $0x28] sm:$0xff]
  %v5024 = vld [vmem:[%s8 + $0x30] sm:$0xff]
  %v5025 = vld [vmem:[%s8 + $0x38] sm:$0xff]
  %v5026 = vld [vmem:[%s8 + $0x40] sm:$0xff]
  %v5027 = vld [vmem:[%s8 + $0x48] sm:$0xff]
  %v5028 = vld [vmem:[%s8 + $0x50] sm:$0xff]
  %v5029 = vld [vmem:[%s8 + $0x58] sm:$0xff]
  %v5030 = vld [vmem:[%s8 + $0x60] sm:$0xff]
  %v5031 = vld [vmem:[%s8 + $0x68] sm:$0xff]
  %v5032 = vld [vmem:[%s8 + $0x70] sm:$0xff]
  %v5033 = vld [vmem:[%s8 + $0x78] sm:$0xff]
  %v5034 = vpack.c.bf16 %v4748, %v4746
  %v5035 = vpack.c.bf16 %v4749, %v4747
  %v5036 = vpack.c.bf16 %v4752, %v4750
  %v5037 = vpack.c.bf16 %v4753, %v4751
  %v5038 = vpack.c.bf16 %v4756, %v4754
  %v5039 = vpack.c.bf16 %v4757, %v4755
  %v5040 = vpack.c.bf16 %v4760, %v4758
  %v5041 = vpack.c.bf16 %v4761, %v4759
  %v5042 = vpack.c.bf16 %v4764, %v4762
  %v5043 = vpack.c.bf16 %v4765, %v4763
  %v5044 = vpack.c.bf16 %v4768, %v4766
  %v5045 = vpack.c.bf16 %v4769, %v4767
  %v5046 = vpack.c.bf16 %v4772, %v4770
  %v5047 = vpack.c.bf16 %v4773, %v4771
  %v5048 = vpack.c.bf16 %v4776, %v4774
  %v5049 = vpack.c.bf16 %v4777, %v4775
  %v5050 = vpack.c.bf16 %v4780, %v4778
  %v5051 = vpack.c.bf16 %v4781, %v4779
  %v5052 = vpack.c.bf16 %v4784, %v4782
  %v5053 = vpack.c.bf16 %v4785, %v4783
  %v5054 = vpack.c.bf16 %v4788, %v4786
  %v5055 = vpack.c.bf16 %v4789, %v4787
  %v5056 = vpack.c.bf16 %v4792, %v4790
  %v5057 = vpack.c.bf16 %v4793, %v4791
  %v5058 = vpack.c.bf16 %v4796, %v4794
  %v5059 = vpack.c.bf16 %v4797, %v4795
  %v5060 = vpack.c.bf16 %v4800, %v4798
  %v5061 = vpack.c.bf16 %v4801, %v4799
  %v5062 = vpack.c.bf16 %v4804, %v4802
  %v5063 = vpack.c.bf16 %v4805, %v4803
  %v5064 = vpack.c.bf16 %v4808, %v4806
  %v5065 = vpack.c.bf16 %v4809, %v4807
  %5067 = vset.pattern.permute.xlu0 0
  %5068 = vperm.xlu0 %5067, %v5018
  %v5069 = vpop.permute.xlu0 %5068
  %5072 = vset.pattern.permute.xlu0 0
  %5073 = vperm.xlu0 %5072, %v5019
  %v5074 = vpop.permute.xlu0 %5073
  %5077 = vset.pattern.permute.xlu0 0
  %5078 = vperm.xlu0 %5077, %v5020
  %v5079 = vpop.permute.xlu0 %5078
  %5082 = vset.pattern.permute.xlu0 0
  %5083 = vperm.xlu0 %5082, %v5021
  %v5084 = vpop.permute.xlu0 %5083
  %5087 = vset.pattern.permute.xlu0 0
  %5088 = vperm.xlu0 %5087, %v5022
  %v5089 = vpop.permute.xlu0 %5088
  %5092 = vset.pattern.permute.xlu0 0
  %5093 = vperm.xlu0 %5092, %v5023
  %v5094 = vpop.permute.xlu0 %5093
  %5097 = vset.pattern.permute.xlu0 0
  %5098 = vperm.xlu0 %5097, %v5024
  %v5099 = vpop.permute.xlu0 %5098
  %5102 = vset.pattern.permute.xlu0 0
  %5103 = vperm.xlu0 %5102, %v5025
  %v5104 = vpop.permute.xlu0 %5103
  %5107 = vset.pattern.permute.xlu0 0
  %5108 = vperm.xlu0 %5107, %v5026
  %v5109 = vpop.permute.xlu0 %5108
  %5112 = vset.pattern.permute.xlu0 0
  %5113 = vperm.xlu0 %5112, %v5027
  %v5114 = vpop.permute.xlu0 %5113
  %5117 = vset.pattern.permute.xlu0 0
  %5118 = vperm.xlu0 %5117, %v5028
  %v5119 = vpop.permute.xlu0 %5118
  %5122 = vset.pattern.permute.xlu0 0
  %5123 = vperm.xlu0 %5122, %v5029
  %v5124 = vpop.permute.xlu0 %5123
  %5127 = vset.pattern.permute.xlu0 0
  %5128 = vperm.xlu0 %5127, %v5030
  %v5129 = vpop.permute.xlu0 %5128
  %5132 = vset.pattern.permute.xlu0 0
  %5133 = vperm.xlu0 %5132, %v5031
  %v5134 = vpop.permute.xlu0 %5133
  %5137 = vset.pattern.permute.xlu0 0
  %5138 = vperm.xlu0 %5137, %v5032
  %v5139 = vpop.permute.xlu0 %5138
  %5142 = vset.pattern.permute.xlu0 0
  %5143 = vperm.xlu0 %5142, %v5033
  %v5144 = vpop.permute.xlu0 %5143
  %v5162 = vunpack.c.l.b16 %v5002
  %v5163 = vunpack.c.h.b16 %v5002
  %v5164 = vunpack.c.l.b16 %v5003
  %v5165 = vunpack.c.h.b16 %v5003
  %v5166 = vunpack.c.l.b16 %v5004
  %v5167 = vunpack.c.h.b16 %v5004
  %v5168 = vunpack.c.l.b16 %v5005
  %v5169 = vunpack.c.h.b16 %v5005
  %v5170 = vunpack.c.l.b16 %v5006
  %v5171 = vunpack.c.h.b16 %v5006
  %v5172 = vunpack.c.l.b16 %v5007
  %v5173 = vunpack.c.h.b16 %v5007
  %v5174 = vunpack.c.l.b16 %v5008
  %v5175 = vunpack.c.h.b16 %v5008
  %v5176 = vunpack.c.l.b16 %v5009
  %v5177 = vunpack.c.h.b16 %v5009
  %v5178 = vunpack.c.l.b16 %v5010
  %v5179 = vunpack.c.h.b16 %v5010
  %v5180 = vunpack.c.l.b16 %v5011
  %v5181 = vunpack.c.h.b16 %v5011
  %v5182 = vunpack.c.l.b16 %v5012
  %v5183 = vunpack.c.h.b16 %v5012
  %v5184 = vunpack.c.l.b16 %v5013
  %v5185 = vunpack.c.h.b16 %v5013
  %v5186 = vunpack.c.l.b16 %v5014
  %v5187 = vunpack.c.h.b16 %v5014
  %v5188 = vunpack.c.l.b16 %v5015
  %v5189 = vunpack.c.h.b16 %v5015
  %v5190 = vunpack.c.l.b16 %v5016
  %v5191 = vunpack.c.h.b16 %v5016
  %v5192 = vunpack.c.l.b16 %v5017
  %v5193 = vunpack.c.h.b16 %v5017
  %v5194 = vpack.c.b16 %v5164, %v5162
  %v5195 = vpack.c.b16 %v5165, %v5163
  %v5196 = vpack.c.b16 %v5168, %v5166
  %v5197 = vpack.c.b16 %v5169, %v5167
  %v5198 = vpack.c.b16 %v5172, %v5170
  %v5199 = vpack.c.b16 %v5173, %v5171
  %v5200 = vpack.c.b16 %v5176, %v5174
  %v5201 = vpack.c.b16 %v5177, %v5175
  %v5202 = vpack.c.b16 %v5180, %v5178
  %v5203 = vpack.c.b16 %v5181, %v5179
  %v5204 = vpack.c.b16 %v5184, %v5182
  %v5205 = vpack.c.b16 %v5185, %v5183
  %v5206 = vpack.c.b16 %v5188, %v5186
  %v5207 = vpack.c.b16 %v5189, %v5187
  %v5208 = vpack.c.b16 %v5192, %v5190
  %v5209 = vpack.c.b16 %v5193, %v5191
  %5226 = vmatprep.subr.bf16.mxu0 %v5049
  %5227 = vmatpush1.bf16.msra.mxu0 %v5048
  %5228 = vmatprep.subr.bf16.mxu0 %v5047
  %5229 = vmatpush1.bf16.msra.mxu0 %v5046
  %5230 = vmatprep.subr.bf16.mxu0 %v5045
  %5231 = vmatpush1.bf16.msra.mxu0 %v5044
  %5232 = vmatprep.subr.bf16.mxu0 %v5043
  %5233 = vmatpush1.bf16.msra.mxu0 %v5042
  %5234 = vmatprep.subr.bf16.mxu0 %v5041
  %5235 = vmatpush1.bf16.msra.mxu0 %v5040
  %5236 = vmatprep.subr.bf16.mxu0 %v5039
  %5237 = vmatpush1.bf16.msra.mxu0 %v5038
  %5238 = vmatprep.subr.bf16.mxu0 %v5037
  %5239 = vmatpush1.bf16.msra.mxu0 %v5036
  %5240 = vmatprep.subr.bf16.mxu0 %v5035
  %5241 = vmatpush1.bf16.msra.mxu0 %v5034
  %5242 = vmatprep.subr.bf16.mxu0 %v5065
  %5243 = vmatpush2.bf16.msra.mxu0 %v5064
  %5244 = vmatprep.subr.bf16.mxu0 %v5063
  %5245 = vmatpush2.bf16.msra.mxu0 %v5062
  %5246 = vmatprep.subr.bf16.mxu0 %v5061
  %5247 = vmatpush2.bf16.msra.mxu0 %v5060
  %5248 = vmatprep.subr.bf16.mxu0 %v5059
  %5249 = vmatpush2.bf16.msra.mxu0 %v5058
  %5250 = vmatprep.subr.bf16.mxu0 %v5057
  %5251 = vmatpush2.bf16.msra.mxu0 %v5056
  %5252 = vmatprep.subr.bf16.mxu0 %v5055
  %5253 = vmatpush2.bf16.msra.mxu0 %v5054
  %5254 = vmatprep.subr.bf16.mxu0 %v5053
  %5255 = vmatpush2.bf16.msra.mxu0 %v5052
  %5256 = vmatprep.subr.bf16.mxu0 %v5051
  %5257 = vmatpush2.bf16.msra.mxu0 %v5050
  %5258 = vmatprep.mubr.bf16.mxu0 %v5195
  %5259 = vmatmul.mubr.bf16.gmra.mxu0 %v5194
  %v5260 = vpop.f32.mrf.mxu0
  %v5261 = vadd.f32 %v5069, %v5260
  %v5262 = vpop.f32.mrf.mxu0
  %v5263 = vadd.f32 %v5069, %v5262
  %v5264 = vpop.f32.mrf.mxu0
  %v5265 = vadd.f32 %v5074, %v5264
  %v5266 = vpop.f32.mrf.mxu0
  %v5267 = vadd.f32 %v5074, %v5266
  %5268 = vmatprep.mubr.bf16.mxu0 %v5197
  %5269 = vmatmul.mubr.bf16.gmra.mxu0 %v5196
  %v5270 = vpop.f32.mrf.mxu0
  %v5271 = vadd.f32 %v5079, %v5270
  %v5272 = vpop.f32.mrf.mxu0
  %v5273 = vadd.f32 %v5079, %v5272
  %v5274 = vpop.f32.mrf.mxu0
  %v5275 = vadd.f32 %v5084, %v5274
  %v5276 = vpop.f32.mrf.mxu0
  %v5277 = vadd.f32 %v5084, %v5276
  %5278 = vmatprep.mubr.bf16.mxu0 %v5199
  %5279 = vmatmul.mubr.bf16.gmra.mxu0 %v5198
  %v5280 = vpop.f32.mrf.mxu0
  %v5281 = vadd.f32 %v5089, %v5280
  %v5282 = vpop.f32.mrf.mxu0
  %v5283 = vadd.f32 %v5089, %v5282
  %v5284 = vpop.f32.mrf.mxu0
  %v5285 = vadd.f32 %v5094, %v5284
  %v5286 = vpop.f32.mrf.mxu0
  %v5287 = vadd.f32 %v5094, %v5286
  %5288 = vmatprep.mubr.bf16.mxu0 %v5201
  %5289 = vmatmul.mubr.bf16.gmra.mxu0 %v5200
  %v5290 = vpop.f32.mrf.mxu0
  %v5291 = vadd.f32 %v5099, %v5290
  %v5292 = vpop.f32.mrf.mxu0
  %v5293 = vadd.f32 %v5099, %v5292
  %v5294 = vpop.f32.mrf.mxu0
  %v5295 = vadd.f32 %v5104, %v5294
  %v5296 = vpop.f32.mrf.mxu0
  %v5297 = vadd.f32 %v5104, %v5296
  %5298 = vmatprep.mubr.bf16.mxu0 %v5203
  %5299 = vmatmul.mubr.bf16.gmra.mxu0 %v5202
  %v5300 = vpop.f32.mrf.mxu0
  %v5301 = vadd.f32 %v5109, %v5300
  %v5302 = vpop.f32.mrf.mxu0
  %v5303 = vadd.f32 %v5109, %v5302
  %v5304 = vpop.f32.mrf.mxu0
  %v5305 = vadd.f32 %v5114, %v5304
  %v5306 = vpop.f32.mrf.mxu0
  %v5307 = vadd.f32 %v5114, %v5306
  %5308 = vmatprep.mubr.bf16.mxu0 %v5205
  %5309 = vmatmul.mubr.bf16.gmra.mxu0 %v5204
  %v5310 = vpop.f32.mrf.mxu0
  %v5311 = vadd.f32 %v5119, %v5310
  %v5312 = vpop.f32.mrf.mxu0
  %v5313 = vadd.f32 %v5119, %v5312
  %v5314 = vpop.f32.mrf.mxu0
  %v5315 = vadd.f32 %v5124, %v5314
  %v5316 = vpop.f32.mrf.mxu0
  %v5317 = vadd.f32 %v5124, %v5316
  %5318 = vmatprep.mubr.bf16.mxu0 %v5207
  %5319 = vmatmul.mubr.bf16.gmra.mxu0 %v5206
  %v5320 = vpop.f32.mrf.mxu0
  %v5321 = vadd.f32 %v5129, %v5320
  %v5322 = vpop.f32.mrf.mxu0
  %v5323 = vadd.f32 %v5129, %v5322
  %v5324 = vpop.f32.mrf.mxu0
  %v5325 = vadd.f32 %v5134, %v5324
  %v5326 = vpop.f32.mrf.mxu0
  %v5327 = vadd.f32 %v5134, %v5326
  %5328 = vmatprep.mubr.bf16.mxu0 %v5209
  %5329 = vmatmul.mubr.bf16.gmra.mxu0 %v5208
  %v5330 = vpop.f32.mrf.mxu0
  %v5331 = vadd.f32 %v5139, %v5330
  %v5332 = vpop.f32.mrf.mxu0
  %v5333 = vadd.f32 %v5139, %v5332
  %v5334 = vpop.f32.mrf.mxu0
  %v5335 = vadd.f32 %v5144, %v5334
  %v5336 = vpop.f32.mrf.mxu0
  %v5337 = vadd.f32 %v5144, %v5336
  %5338 = vdwg.mxu0
  %v5339 = vadd.f32 %v5261, %v5263
  %5340 = vadd.xlane.f32.xlu0 %v5339
  %v5341 = vpop.xlane.xlu0 %5340
  %v5342 = vadd.f32 %v5265, %v5267
  %5343 = vadd.xlane.f32.xlu0 %v5342
  %v5344 = vpop.xlane.xlu0 %5343
  %v5345 = vadd.f32 %v5271, %v5273
  %5346 = vadd.xlane.f32.xlu0 %v5345
  %v5347 = vpop.xlane.xlu0 %5346
  %v5348 = vadd.f32 %v5275, %v5277
  %5349 = vadd.xlane.f32.xlu0 %v5348
  %v5350 = vpop.xlane.xlu0 %5349
  %v5351 = vadd.f32 %v5281, %v5283
  %5352 = vadd.xlane.f32.xlu0 %v5351
  %v5353 = vpop.xlane.xlu0 %5352
  %v5354 = vadd.f32 %v5285, %v5287
  %5355 = vadd.xlane.f32.xlu0 %v5354
  %v5356 = vpop.xlane.xlu0 %5355
  %v5357 = vadd.f32 %v5291, %v5293
  %5358 = vadd.xlane.f32.xlu0 %v5357
  %v5359 = vpop.xlane.xlu0 %5358
  %v5360 = vadd.f32 %v5295, %v5297
  %5361 = vadd.xlane.f32.xlu0 %v5360
  %v5362 = vpop.xlane.xlu0 %5361
  %v5363 = vadd.f32 %v5301, %v5303
  %5364 = vadd.xlane.f32.xlu0 %v5363
  %v5365 = vpop.xlane.xlu0 %5364
  %v5366 = vadd.f32 %v5305, %v5307
  %5367 = vadd.xlane.f32.xlu0 %v5366
  %v5368 = vpop.xlane.xlu0 %5367
  %v5369 = vadd.f32 %v5311, %v5313
  %5370 = vadd.xlane.f32.xlu0 %v5369
  %v5371 = vpop.xlane.xlu0 %5370
  %v5372 = vadd.f32 %v5315, %v5317
  %5373 = vadd.xlane.f32.xlu0 %v5372
  %v5374 = vpop.xlane.xlu0 %5373
  %v5375 = vadd.f32 %v5321, %v5323
  %5376 = vadd.xlane.f32.xlu0 %v5375
  %v5377 = vpop.xlane.xlu0 %5376
  %v5378 = vadd.f32 %v5325, %v5327
  %5379 = vadd.xlane.f32.xlu0 %v5378
  %v5380 = vpop.xlane.xlu0 %5379
  %v5381 = vadd.f32 %v5331, %v5333
  %5382 = vadd.xlane.f32.xlu0 %v5381
  %v5383 = vpop.xlane.xlu0 %5382
  %v5384 = vadd.f32 %v5335, %v5337
  %5385 = vadd.xlane.f32.xlu0 %v5384
  %v5386 = vpop.xlane.xlu0 %5385
  %v5387 = vmul.f32 %v5341, 0.00390625
  %v5388 = vmul.f32 %v5344, 0.00390625
  %v5389 = vmul.f32 %v5347, 0.00390625
  %v5390 = vmul.f32 %v5350, 0.00390625
  %v5391 = vmul.f32 %v5353, 0.00390625
  %v5392 = vmul.f32 %v5356, 0.00390625
  %v5393 = vmul.f32 %v5359, 0.00390625
  %v5394 = vmul.f32 %v5362, 0.00390625
  %v5395 = vmul.f32 %v5365, 0.00390625
  %v5396 = vmul.f32 %v5368, 0.00390625
  %v5397 = vmul.f32 %v5371, 0.00390625
  %v5398 = vmul.f32 %v5374, 0.00390625
  %v5399 = vmul.f32 %v5377, 0.00390625
  %v5400 = vmul.f32 %v5380, 0.00390625
  %v5401 = vmul.f32 %v5383, 0.00390625
  %v5402 = vmul.f32 %v5386, 0.00390625
  %v5403 = vmul.f32 %v5261, %v5261
  %v5404 = vmul.f32 %v5263, %v5263
  %v5405 = vmul.f32 %v5265, %v5265
  %v5406 = vmul.f32 %v5267, %v5267
  %v5407 = vmul.f32 %v5271, %v5271
  %v5408 = vmul.f32 %v5273, %v5273
  %v5409 = vmul.f32 %v5275, %v5275
  %v5410 = vmul.f32 %v5277, %v5277
  %v5411 = vmul.f32 %v5281, %v5281
  %v5412 = vmul.f32 %v5283, %v5283
  %v5413 = vmul.f32 %v5285, %v5285
  %v5414 = vmul.f32 %v5287, %v5287
  %v5415 = vmul.f32 %v5291, %v5291
  %v5416 = vmul.f32 %v5293, %v5293
  %v5417 = vmul.f32 %v5295, %v5295
  %v5418 = vmul.f32 %v5297, %v5297
  %v5419 = vmul.f32 %v5301, %v5301
  %v5420 = vmul.f32 %v5303, %v5303
  %v5421 = vmul.f32 %v5305, %v5305
  %v5422 = vmul.f32 %v5307, %v5307
  %v5423 = vmul.f32 %v5311, %v5311
  %v5424 = vmul.f32 %v5313, %v5313
  %v5425 = vmul.f32 %v5315, %v5315
  %v5426 = vmul.f32 %v5317, %v5317
  %v5427 = vmul.f32 %v5321, %v5321
  %v5428 = vmul.f32 %v5323, %v5323
  %v5429 = vmul.f32 %v5325, %v5325
  %v5430 = vmul.f32 %v5327, %v5327
  %v5431 = vmul.f32 %v5331, %v5331
  %v5432 = vmul.f32 %v5333, %v5333
  %v5433 = vmul.f32 %v5335, %v5335
  %v5434 = vmul.f32 %v5337, %v5337
  %v5435 = vadd.f32 %v5403, %v5404
  %5436 = vadd.xlane.f32.xlu0 %v5435
  %v5437 = vpop.xlane.xlu0 %5436
  %v5438 = vadd.f32 %v5405, %v5406
  %5439 = vadd.xlane.f32.xlu0 %v5438
  %v5440 = vpop.xlane.xlu0 %5439
  %v5441 = vadd.f32 %v5407, %v5408
  %5442 = vadd.xlane.f32.xlu0 %v5441
  %v5443 = vpop.xlane.xlu0 %5442
  %v5444 = vadd.f32 %v5409, %v5410
  %5445 = vadd.xlane.f32.xlu0 %v5444
  %v5446 = vpop.xlane.xlu0 %5445
  %v5447 = vadd.f32 %v5411, %v5412
  %5448 = vadd.xlane.f32.xlu0 %v5447
  %v5449 = vpop.xlane.xlu0 %5448
  %v5450 = vadd.f32 %v5413, %v5414
  %5451 = vadd.xlane.f32.xlu0 %v5450
  %v5452 = vpop.xlane.xlu0 %5451
  %v5453 = vadd.f32 %v5415, %v5416
  %5454 = vadd.xlane.f32.xlu0 %v5453
  %v5455 = vpop.xlane.xlu0 %5454
  %v5456 = vadd.f32 %v5417, %v5418
  %5457 = vadd.xlane.f32.xlu0 %v5456
  %v5458 = vpop.xlane.xlu0 %5457
  %v5459 = vadd.f32 %v5419, %v5420
  %5460 = vadd.xlane.f32.xlu0 %v5459
  %v5461 = vpop.xlane.xlu0 %5460
  %v5462 = vadd.f32 %v5421, %v5422
  %5463 = vadd.xlane.f32.xlu0 %v5462
  %v5464 = vpop.xlane.xlu0 %5463
  %v5465 = vadd.f32 %v5423, %v5424
  %5466 = vadd.xlane.f32.xlu0 %v5465
  %v5467 = vpop.xlane.xlu0 %5466
  %v5468 = vadd.f32 %v5425, %v5426
  %5469 = vadd.xlane.f32.xlu0 %v5468
  %v5470 = vpop.xlane.xlu0 %5469
  %v5471 = vadd.f32 %v5427, %v5428
  %5472 = vadd.xlane.f32.xlu0 %v5471
  %v5473 = vpop.xlane.xlu0 %5472
  %v5474 = vadd.f32 %v5429, %v5430
  %5475 = vadd.xlane.f32.xlu0 %v5474
  %v5476 = vpop.xlane.xlu0 %5475
  %v5477 = vadd.f32 %v5431, %v5432
  %5478 = vadd.xlane.f32.xlu0 %v5477
  %v5479 = vpop.xlane.xlu0 %5478
  %v5480 = vadd.f32 %v5433, %v5434
  %5481 = vadd.xlane.f32.xlu0 %v5480
  %v5482 = vpop.xlane.xlu0 %5481
  %v5483 = vmul.f32 %v5437, 0.00390625
  %v5484 = vmul.f32 %v5440, 0.00390625
  %v5485 = vmul.f32 %v5443, 0.00390625
  %v5486 = vmul.f32 %v5446, 0.00390625
  %v5487 = vmul.f32 %v5449, 0.00390625
  %v5488 = vmul.f32 %v5452, 0.00390625
  %v5489 = vmul.f32 %v5455, 0.00390625
  %v5490 = vmul.f32 %v5458, 0.00390625
  %v5491 = vmul.f32 %v5461, 0.00390625
  %v5492 = vmul.f32 %v5464, 0.00390625
  %v5493 = vmul.f32 %v5467, 0.00390625
  %v5494 = vmul.f32 %v5470, 0.00390625
  %v5495 = vmul.f32 %v5473, 0.00390625
  %v5496 = vmul.f32 %v5476, 0.00390625
  %v5497 = vmul.f32 %v5479, 0.00390625
  %v5498 = vmul.f32 %v5482, 0.00390625
  %v5499 = vmul.f32 %v5387, %v5387
  %v5500 = vmul.f32 %v5388, %v5388
  %v5501 = vmul.f32 %v5389, %v5389
  %v5502 = vmul.f32 %v5390, %v5390
  %v5503 = vmul.f32 %v5391, %v5391
  %v5504 = vmul.f32 %v5392, %v5392
  %v5505 = vmul.f32 %v5393, %v5393
  %v5506 = vmul.f32 %v5394, %v5394
  %v5507 = vmul.f32 %v5395, %v5395
  %v5508 = vmul.f32 %v5396, %v5396
  %v5509 = vmul.f32 %v5397, %v5397
  %v5510 = vmul.f32 %v5398, %v5398
  %v5511 = vmul.f32 %v5399, %v5399
  %v5512 = vmul.f32 %v5400, %v5400
  %v5513 = vmul.f32 %v5401, %v5401
  %v5514 = vmul.f32 %v5402, %v5402
  %v5515 = vsub.f32 %v5483, %v5499
  %v5516 = vsub.f32 %v5484, %v5500
  %v5517 = vsub.f32 %v5485, %v5501
  %v5518 = vsub.f32 %v5486, %v5502
  %v5519 = vsub.f32 %v5487, %v5503
  %v5520 = vsub.f32 %v5488, %v5504
  %v5521 = vsub.f32 %v5489, %v5505
  %v5522 = vsub.f32 %v5490, %v5506
  %v5523 = vsub.f32 %v5491, %v5507
  %v5524 = vsub.f32 %v5492, %v5508
  %v5525 = vsub.f32 %v5493, %v5509
  %v5526 = vsub.f32 %v5494, %v5510
  %v5527 = vsub.f32 %v5495, %v5511
  %v5528 = vsub.f32 %v5496, %v5512
  %v5529 = vsub.f32 %v5497, %v5513
  %v5530 = vsub.f32 %v5498, %v5514
  %v5531 = vmax.f32 %v5515, 0.0
  %v5532 = vmax.f32 %v5516, 0.0
  %v5533 = vmax.f32 %v5517, 0.0
  %v5534 = vmax.f32 %v5518, 0.0
  %v5535 = vmax.f32 %v5519, 0.0
  %v5536 = vmax.f32 %v5520, 0.0
  %v5537 = vmax.f32 %v5521, 0.0
  %v5538 = vmax.f32 %v5522, 0.0
  %v5539 = vmax.f32 %v5523, 0.0
  %v5540 = vmax.f32 %v5524, 0.0
  %v5541 = vmax.f32 %v5525, 0.0
  %v5542 = vmax.f32 %v5526, 0.0
  %v5543 = vmax.f32 %v5527, 0.0
  %v5544 = vmax.f32 %v5528, 0.0
  %v5545 = vmax.f32 %v5529, 0.0
  %v5546 = vmax.f32 %v5530, 0.0
  %v5547 = vsub.f32 %v5261, %v5387
  %v5548 = vsub.f32 %v5263, %v5387
  %v5549 = vsub.f32 %v5265, %v5388
  %v5550 = vsub.f32 %v5267, %v5388
  %v5551 = vsub.f32 %v5271, %v5389
  %v5552 = vsub.f32 %v5273, %v5389
  %v5553 = vsub.f32 %v5275, %v5390
  %v5554 = vsub.f32 %v5277, %v5390
  %v5555 = vsub.f32 %v5281, %v5391
  %v5556 = vsub.f32 %v5283, %v5391
  %v5557 = vsub.f32 %v5285, %v5392
  %v5558 = vsub.f32 %v5287, %v5392
  %v5559 = vsub.f32 %v5291, %v5393
  %v5560 = vsub.f32 %v5293, %v5393
  %v5561 = vsub.f32 %v5295, %v5394
  %v5562 = vsub.f32 %v5297, %v5394
  %v5563 = vsub.f32 %v5301, %v5395
  %v5564 = vsub.f32 %v5303, %v5395
  %v5565 = vsub.f32 %v5305, %v5396
  %v5566 = vsub.f32 %v5307, %v5396
  %v5567 = vsub.f32 %v5311, %v5397
  %v5568 = vsub.f32 %v5313, %v5397
  %v5569 = vsub.f32 %v5315, %v5398
  %v5570 = vsub.f32 %v5317, %v5398
  %v5571 = vsub.f32 %v5321, %v5399
  %v5572 = vsub.f32 %v5323, %v5399
  %v5573 = vsub.f32 %v5325, %v5400
  %v5574 = vsub.f32 %v5327, %v5400
  %v5575 = vsub.f32 %v5331, %v5401
  %v5576 = vsub.f32 %v5333, %v5401
  %v5577 = vsub.f32 %v5335, %v5402
  %v5578 = vsub.f32 %v5337, %v5402
  %v5579 = vadd.f32 %v5531, 1e-05
  %v5580 = vadd.f32 %v5532, 1e-05
  %v5581 = vadd.f32 %v5533, 1e-05
  %v5582 = vadd.f32 %v5534, 1e-05
  %v5583 = vadd.f32 %v5535, 1e-05
  %v5584 = vadd.f32 %v5536, 1e-05
  %v5585 = vadd.f32 %v5537, 1e-05
  %v5586 = vadd.f32 %v5538, 1e-05
  %v5587 = vadd.f32 %v5539, 1e-05
  %v5588 = vadd.f32 %v5540, 1e-05
  %v5589 = vadd.f32 %v5541, 1e-05
  %v5590 = vadd.f32 %v5542, 1e-05
  %v5591 = vadd.f32 %v5543, 1e-05
  %v5592 = vadd.f32 %v5544, 1e-05
  %v5593 = vadd.f32 %v5545, 1e-05
  %v5594 = vadd.f32 %v5546, 1e-05
  %v5595 = vrsqrt.pop %v5579
  %v5596 = vrsqrt.pop %v5580
  %v5597 = vrsqrt.pop %v5581
  %v5598 = vrsqrt.pop %v5582
  %v5599 = vrsqrt.pop %v5583
  %v5600 = vrsqrt.pop %v5584
  %v5601 = vrsqrt.pop %v5585
  %v5602 = vrsqrt.pop %v5586
  %v5603 = vrsqrt.pop %v5587
  %v5604 = vrsqrt.pop %v5588
  %v5605 = vrsqrt.pop %v5589
  %v5606 = vrsqrt.pop %v5590
  %v5607 = vrsqrt.pop %v5591
  %v5608 = vrsqrt.pop %v5592
  %v5609 = vrsqrt.pop %v5593
  %v5610 = vrsqrt.pop %v5594
  %v5611 = vmul.f32 %v5547, %v5595
  %v5612 = vmul.f32 %v5548, %v5595
  %v5613 = vmul.f32 %v5549, %v5596
  %v5614 = vmul.f32 %v5550, %v5596
  %v5615 = vmul.f32 %v5551, %v5597
  %v5616 = vmul.f32 %v5552, %v5597
  %v5617 = vmul.f32 %v5553, %v5598
  %v5618 = vmul.f32 %v5554, %v5598
  %v5619 = vmul.f32 %v5555, %v5599
  %v5620 = vmul.f32 %v5556, %v5599
  %v5621 = vmul.f32 %v5557, %v5600
  %v5622 = vmul.f32 %v5558, %v5600
  %v5623 = vmul.f32 %v5559, %v5601
  %v5624 = vmul.f32 %v5560, %v5601
  %v5625 = vmul.f32 %v5561, %v5602
  %v5626 = vmul.f32 %v5562, %v5602
  %v5627 = vmul.f32 %v5563, %v5603
  %v5628 = vmul.f32 %v5564, %v5603
  %v5629 = vmul.f32 %v5565, %v5604
  %v5630 = vmul.f32 %v5566, %v5604
  %v5631 = vmul.f32 %v5567, %v5605
  %v5632 = vmul.f32 %v5568, %v5605
  %v5633 = vmul.f32 %v5569, %v5606
  %v5634 = vmul.f32 %v5570, %v5606
  %v5635 = vmul.f32 %v5571, %v5607
  %v5636 = vmul.f32 %v5572, %v5607
  %v5637 = vmul.f32 %v5573, %v5608
  %v5638 = vmul.f32 %v5574, %v5608
  %v5639 = vmul.f32 %v5575, %v5609
  %v5640 = vmul.f32 %v5576, %v5609
  %v5641 = vmul.f32 %v5577, %v5610
  %v5642 = vmul.f32 %v5578, %v5610
  %v5643 = vld [vmem:[%s10] sm:$0xff]
  %v5644 = vld [vmem:[%s10 + $0x8] sm:$0xff]
  %v5645 = vld [vmem:[%s10 + $0x10] sm:$0xff]
  %v5646 = vld [vmem:[%s10 + $0x18] sm:$0xff]
  %v5647 = vld [vmem:[%s10 + $0x20] sm:$0xff]
  %v5648 = vld [vmem:[%s10 + $0x28] sm:$0xff]
  %v5649 = vld [vmem:[%s10 + $0x30] sm:$0xff]
  %v5650 = vld [vmem:[%s10 + $0x38] sm:$0xff]
  %v5651 = vld [vmem:[%s10 + $0x40] sm:$0xff]
  %v5652 = vld [vmem:[%s10 + $0x48] sm:$0xff]
  %v5653 = vld [vmem:[%s10 + $0x50] sm:$0xff]
  %v5654 = vld [vmem:[%s10 + $0x58] sm:$0xff]
  %v5655 = vld [vmem:[%s10 + $0x60] sm:$0xff]
  %v5656 = vld [vmem:[%s10 + $0x68] sm:$0xff]
  %v5657 = vld [vmem:[%s10 + $0x70] sm:$0xff]
  %v5658 = vld [vmem:[%s10 + $0x78] sm:$0xff]
  %5660 = vset.pattern.permute.xlu0 0
  %5661 = vperm.xlu0 %5660, %v5643
  %v5662 = vpop.permute.xlu0 %5661
  %5665 = vset.pattern.permute.xlu0 0
  %5666 = vperm.xlu0 %5665, %v5644
  %v5667 = vpop.permute.xlu0 %5666
  %5670 = vset.pattern.permute.xlu0 0
  %5671 = vperm.xlu0 %5670, %v5645
  %v5672 = vpop.permute.xlu0 %5671
  %5675 = vset.pattern.permute.xlu0 0
  %5676 = vperm.xlu0 %5675, %v5646
  %v5677 = vpop.permute.xlu0 %5676
  %5680 = vset.pattern.permute.xlu0 0
  %5681 = vperm.xlu0 %5680, %v5647
  %v5682 = vpop.permute.xlu0 %5681
  %5685 = vset.pattern.permute.xlu0 0
  %5686 = vperm.xlu0 %5685, %v5648
  %v5687 = vpop.permute.xlu0 %5686
  %5690 = vset.pattern.permute.xlu0 0
  %5691 = vperm.xlu0 %5690, %v5649
  %v5692 = vpop.permute.xlu0 %5691
  %5695 = vset.pattern.permute.xlu0 0
  %5696 = vperm.xlu0 %5695, %v5650
  %v5697 = vpop.permute.xlu0 %5696
  %5700 = vset.pattern.permute.xlu0 0
  %5701 = vperm.xlu0 %5700, %v5651
  %v5702 = vpop.permute.xlu0 %5701
  %5705 = vset.pattern.permute.xlu0 0
  %5706 = vperm.xlu0 %5705, %v5652
  %v5707 = vpop.permute.xlu0 %5706
  %5710 = vset.pattern.permute.xlu0 0
  %5711 = vperm.xlu0 %5710, %v5653
  %v5712 = vpop.permute.xlu0 %5711
  %5715 = vset.pattern.permute.xlu0 0
  %5716 = vperm.xlu0 %5715, %v5654
  %v5717 = vpop.permute.xlu0 %5716
  %5720 = vset.pattern.permute.xlu0 0
  %5721 = vperm.xlu0 %5720, %v5655
  %v5722 = vpop.permute.xlu0 %5721
  %5725 = vset.pattern.permute.xlu0 0
  %5726 = vperm.xlu0 %5725, %v5656
  %v5727 = vpop.permute.xlu0 %5726
  %5730 = vset.pattern.permute.xlu0 0
  %5731 = vperm.xlu0 %5730, %v5657
  %v5732 = vpop.permute.xlu0 %5731
  %5735 = vset.pattern.permute.xlu0 0
  %5736 = vperm.xlu0 %5735, %v5658
  %v5737 = vpop.permute.xlu0 %5736
  %v5739 = vmul.f32 %v5611, %v5662
  %v5740 = vmul.f32 %v5612, %v5662
  %v5741 = vmul.f32 %v5613, %v5667
  %v5742 = vmul.f32 %v5614, %v5667
  %v5743 = vmul.f32 %v5615, %v5672
  %v5744 = vmul.f32 %v5616, %v5672
  %v5745 = vmul.f32 %v5617, %v5677
  %v5746 = vmul.f32 %v5618, %v5677
  %v5747 = vmul.f32 %v5619, %v5682
  %v5748 = vmul.f32 %v5620, %v5682
  %v5749 = vmul.f32 %v5621, %v5687
  %v5750 = vmul.f32 %v5622, %v5687
  %v5751 = vmul.f32 %v5623, %v5692
  %v5752 = vmul.f32 %v5624, %v5692
  %v5753 = vmul.f32 %v5625, %v5697
  %v5754 = vmul.f32 %v5626, %v5697
  %v5755 = vmul.f32 %v5627, %v5702
  %v5756 = vmul.f32 %v5628, %v5702
  %v5757 = vmul.f32 %v5629, %v5707
  %v5758 = vmul.f32 %v5630, %v5707
  %v5759 = vmul.f32 %v5631, %v5712
  %v5760 = vmul.f32 %v5632, %v5712
  %v5761 = vmul.f32 %v5633, %v5717
  %v5762 = vmul.f32 %v5634, %v5717
  %v5763 = vmul.f32 %v5635, %v5722
  %v5764 = vmul.f32 %v5636, %v5722
  %v5765 = vmul.f32 %v5637, %v5727
  %v5766 = vmul.f32 %v5638, %v5727
  %v5767 = vmul.f32 %v5639, %v5732
  %v5768 = vmul.f32 %v5640, %v5732
  %v5769 = vmul.f32 %v5641, %v5737
  %v5770 = vmul.f32 %v5642, %v5737
  %v5771 = vld [vmem:[%s9] sm:$0xff]
  %v5772 = vld [vmem:[%s9 + $0x8] sm:$0xff]
  %v5773 = vld [vmem:[%s9 + $0x10] sm:$0xff]
  %v5774 = vld [vmem:[%s9 + $0x18] sm:$0xff]
  %v5775 = vld [vmem:[%s9 + $0x20] sm:$0xff]
  %v5776 = vld [vmem:[%s9 + $0x28] sm:$0xff]
  %v5777 = vld [vmem:[%s9 + $0x30] sm:$0xff]
  %v5778 = vld [vmem:[%s9 + $0x38] sm:$0xff]
  %v5779 = vld [vmem:[%s9 + $0x40] sm:$0xff]
  %v5780 = vld [vmem:[%s9 + $0x48] sm:$0xff]
  %v5781 = vld [vmem:[%s9 + $0x50] sm:$0xff]
  %v5782 = vld [vmem:[%s9 + $0x58] sm:$0xff]
  %v5783 = vld [vmem:[%s9 + $0x60] sm:$0xff]
  %v5784 = vld [vmem:[%s9 + $0x68] sm:$0xff]
  %v5785 = vld [vmem:[%s9 + $0x70] sm:$0xff]
  %v5786 = vld [vmem:[%s9 + $0x78] sm:$0xff]
  %5788 = vset.pattern.permute.xlu0 0
  %5789 = vperm.xlu0 %5788, %v5771
  %v5790 = vpop.permute.xlu0 %5789
  %5793 = vset.pattern.permute.xlu0 0
  %5794 = vperm.xlu0 %5793, %v5772
  %v5795 = vpop.permute.xlu0 %5794
  %5798 = vset.pattern.permute.xlu0 0
  %5799 = vperm.xlu0 %5798, %v5773
  %v5800 = vpop.permute.xlu0 %5799
  %5803 = vset.pattern.permute.xlu0 0
  %5804 = vperm.xlu0 %5803, %v5774
  %v5805 = vpop.permute.xlu0 %5804
  %5808 = vset.pattern.permute.xlu0 0
  %5809 = vperm.xlu0 %5808, %v5775
  %v5810 = vpop.permute.xlu0 %5809
  %5813 = vset.pattern.permute.xlu0 0
  %5814 = vperm.xlu0 %5813, %v5776
  %v5815 = vpop.permute.xlu0 %5814
  %5818 = vset.pattern.permute.xlu0 0
  %5819 = vperm.xlu0 %5818, %v5777
  %v5820 = vpop.permute.xlu0 %5819
  %5823 = vset.pattern.permute.xlu0 0
  %5824 = vperm.xlu0 %5823, %v5778
  %v5825 = vpop.permute.xlu0 %5824
  %5828 = vset.pattern.permute.xlu0 0
  %5829 = vperm.xlu0 %5828, %v5779
  %v5830 = vpop.permute.xlu0 %5829
  %5833 = vset.pattern.permute.xlu0 0
  %5834 = vperm.xlu0 %5833, %v5780
  %v5835 = vpop.permute.xlu0 %5834
  %5838 = vset.pattern.permute.xlu0 0
  %5839 = vperm.xlu0 %5838, %v5781
  %v5840 = vpop.permute.xlu0 %5839
  %5843 = vset.pattern.permute.xlu0 0
  %5844 = vperm.xlu0 %5843, %v5782
  %v5845 = vpop.permute.xlu0 %5844
  %5848 = vset.pattern.permute.xlu0 0
  %5849 = vperm.xlu0 %5848, %v5783
  %v5850 = vpop.permute.xlu0 %5849
  %5853 = vset.pattern.permute.xlu0 0
  %5854 = vperm.xlu0 %5853, %v5784
  %v5855 = vpop.permute.xlu0 %5854
  %5858 = vset.pattern.permute.xlu0 0
  %5859 = vperm.xlu0 %5858, %v5785
  %v5860 = vpop.permute.xlu0 %5859
  %5863 = vset.pattern.permute.xlu0 0
  %5864 = vperm.xlu0 %5863, %v5786
  %v5865 = vpop.permute.xlu0 %5864
  %v5867 = vadd.f32 %v5739, %v5790
  %v5868 = vadd.f32 %v5740, %v5790
  %v5869 = vadd.f32 %v5741, %v5795
  %v5870 = vadd.f32 %v5742, %v5795
  %v5871 = vadd.f32 %v5743, %v5800
  %v5872 = vadd.f32 %v5744, %v5800
  %v5873 = vadd.f32 %v5745, %v5805
  %v5874 = vadd.f32 %v5746, %v5805
  %v5875 = vadd.f32 %v5747, %v5810
  %v5876 = vadd.f32 %v5748, %v5810
  %v5877 = vadd.f32 %v5749, %v5815
  %v5878 = vadd.f32 %v5750, %v5815
  %v5879 = vadd.f32 %v5751, %v5820
  %v5880 = vadd.f32 %v5752, %v5820
  %v5881 = vadd.f32 %v5753, %v5825
  %v5882 = vadd.f32 %v5754, %v5825
  %v5883 = vadd.f32 %v5755, %v5830
  %v5884 = vadd.f32 %v5756, %v5830
  %v5885 = vadd.f32 %v5757, %v5835
  %v5886 = vadd.f32 %v5758, %v5835
  %v5887 = vadd.f32 %v5759, %v5840
  %v5888 = vadd.f32 %v5760, %v5840
  %v5889 = vadd.f32 %v5761, %v5845
  %v5890 = vadd.f32 %v5762, %v5845
  %v5891 = vadd.f32 %v5763, %v5850
  %v5892 = vadd.f32 %v5764, %v5850
  %v5893 = vadd.f32 %v5765, %v5855
  %v5894 = vadd.f32 %v5766, %v5855
  %v5895 = vadd.f32 %v5767, %v5860
  %v5896 = vadd.f32 %v5768, %v5860
  %v5897 = vadd.f32 %v5769, %v5865
  %v5898 = vadd.f32 %v5770, %v5865
  %v5899 = vpack.c.bf16 %v4940, %v4938
  %v5900 = vpack.c.bf16 %v4941, %v4939
  %v5901 = vpack.c.bf16 %v4944, %v4942
  %v5902 = vpack.c.bf16 %v4945, %v4943
  %v5903 = vpack.c.bf16 %v4948, %v4946
  %v5904 = vpack.c.bf16 %v4949, %v4947
  %v5905 = vpack.c.bf16 %v4952, %v4950
  %v5906 = vpack.c.bf16 %v4953, %v4951
  %v5907 = vpack.c.bf16 %v4956, %v4954
  %v5908 = vpack.c.bf16 %v4957, %v4955
  %v5909 = vpack.c.bf16 %v4960, %v4958
  %v5910 = vpack.c.bf16 %v4961, %v4959
  %v5911 = vpack.c.bf16 %v4964, %v4962
  %v5912 = vpack.c.bf16 %v4965, %v4963
  %v5913 = vpack.c.bf16 %v4968, %v4966
  %v5914 = vpack.c.bf16 %v4969, %v4967
  %v5915 = vpack.c.bf16 %v4972, %v4970
  %v5916 = vpack.c.bf16 %v4973, %v4971
  %v5917 = vpack.c.bf16 %v4976, %v4974
  %v5918 = vpack.c.bf16 %v4977, %v4975
  %v5919 = vpack.c.bf16 %v4980, %v4978
  %v5920 = vpack.c.bf16 %v4981, %v4979
  %v5921 = vpack.c.bf16 %v4984, %v4982
  %v5922 = vpack.c.bf16 %v4985, %v4983
  %v5923 = vpack.c.bf16 %v4988, %v4986
  %v5924 = vpack.c.bf16 %v4989, %v4987
  %v5925 = vpack.c.bf16 %v4992, %v4990
  %v5926 = vpack.c.bf16 %v4993, %v4991
  %v5927 = vpack.c.bf16 %v4996, %v4994
  %v5928 = vpack.c.bf16 %v4997, %v4995
  %v5929 = vpack.c.bf16 %v5000, %v4998
  %v5930 = vpack.c.bf16 %v5001, %v4999
  %5931 = vmatprep.subr.bf16.mxu0 %v5914
  %5932 = vmatpush1.bf16.msra.mxu0 %v5913
  %5933 = vmatprep.subr.bf16.mxu0 %v5912
  %5934 = vmatpush1.bf16.msra.mxu0 %v5911
  %5935 = vmatprep.subr.bf16.mxu0 %v5910
  %5936 = vmatpush1.bf16.msra.mxu0 %v5909
  %5937 = vmatprep.subr.bf16.mxu0 %v5908
  %5938 = vmatpush1.bf16.msra.mxu0 %v5907
  %5939 = vmatprep.subr.bf16.mxu0 %v5906
  %5940 = vmatpush1.bf16.msra.mxu0 %v5905
  %5941 = vmatprep.subr.bf16.mxu0 %v5904
  %5942 = vmatpush1.bf16.msra.mxu0 %v5903
  %5943 = vmatprep.subr.bf16.mxu0 %v5902
  %5944 = vmatpush1.bf16.msra.mxu0 %v5901
  %5945 = vmatprep.subr.bf16.mxu0 %v5900
  %5946 = vmatpush1.bf16.msra.mxu0 %v5899
  %5947 = vmatprep.subr.bf16.mxu0 %v5930
  %5948 = vmatpush2.bf16.msra.mxu0 %v5929
  %5949 = vmatprep.subr.bf16.mxu0 %v5928
  %5950 = vmatpush2.bf16.msra.mxu0 %v5927
  %5951 = vmatprep.subr.bf16.mxu0 %v5926
  %5952 = vmatpush2.bf16.msra.mxu0 %v5925
  %5953 = vmatprep.subr.bf16.mxu0 %v5924
  %5954 = vmatpush2.bf16.msra.mxu0 %v5923
  %5955 = vmatprep.subr.bf16.mxu0 %v5922
  %5956 = vmatpush2.bf16.msra.mxu0 %v5921
  %5957 = vmatprep.subr.bf16.mxu0 %v5920
  %5958 = vmatpush2.bf16.msra.mxu0 %v5919
  %5959 = vmatprep.subr.bf16.mxu0 %v5918
  %5960 = vmatpush2.bf16.msra.mxu0 %v5917
  %5961 = vmatprep.subr.bf16.mxu0 %v5916
  %5962 = vmatpush2.bf16.msra.mxu0 %v5915
  %5963 = vmatprep.mubr.bf16.mxu0 %v5195
  %5964 = vmatmul.mubr.bf16.gmra.mxu0 %v5194
  %v5965 = vpop.f32.mrf.mxu0
  %v5966 = vadd.f32 %v5069, %v5965
  %v5967 = vpop.f32.mrf.mxu0
  %v5968 = vadd.f32 %v5069, %v5967
  %v5969 = vpop.f32.mrf.mxu0
  %v5970 = vadd.f32 %v5074, %v5969
  %v5971 = vpop.f32.mrf.mxu0
  %v5972 = vadd.f32 %v5074, %v5971
  %5973 = vmatprep.mubr.bf16.mxu0 %v5197
  %5974 = vmatmul.mubr.bf16.gmra.mxu0 %v5196
  %v5975 = vpop.f32.mrf.mxu0
  %v5976 = vadd.f32 %v5079, %v5975
  %v5977 = vpop.f32.mrf.mxu0
  %v5978 = vadd.f32 %v5079, %v5977
  %v5979 = vpop.f32.mrf.mxu0
  %v5980 = vadd.f32 %v5084, %v5979
  %v5981 = vpop.f32.mrf.mxu0
  %v5982 = vadd.f32 %v5084, %v5981
  %5983 = vmatprep.mubr.bf16.mxu0 %v5199
  %5984 = vmatmul.mubr.bf16.gmra.mxu0 %v5198
  %v5985 = vpop.f32.mrf.mxu0
  %v5986 = vadd.f32 %v5089, %v5985
  %v5987 = vpop.f32.mrf.mxu0
  %v5988 = vadd.f32 %v5089, %v5987
  %v5989 = vpop.f32.mrf.mxu0
  %v5990 = vadd.f32 %v5094, %v5989
  %v5991 = vpop.f32.mrf.mxu0
  %v5992 = vadd.f32 %v5094, %v5991
  %5993 = vmatprep.mubr.bf16.mxu0 %v5201
  %5994 = vmatmul.mubr.bf16.gmra.mxu0 %v5200
  %v5995 = vpop.f32.mrf.mxu0
  %v5996 = vadd.f32 %v5099, %v5995
  %v5997 = vpop.f32.mrf.mxu0
  %v5998 = vadd.f32 %v5099, %v5997
  %v5999 = vpop.f32.mrf.mxu0
  %v6000 = vadd.f32 %v5104, %v5999
  %v6001 = vpop.f32.mrf.mxu0
  %v6002 = vadd.f32 %v5104, %v6001
  %6003 = vmatprep.mubr.bf16.mxu0 %v5203
  %6004 = vmatmul.mubr.bf16.gmra.mxu0 %v5202
  %v6005 = vpop.f32.mrf.mxu0
  %v6006 = vadd.f32 %v5109, %v6005
  %v6007 = vpop.f32.mrf.mxu0
  %v6008 = vadd.f32 %v5109, %v6007
  %v6009 = vpop.f32.mrf.mxu0
  %v6010 = vadd.f32 %v5114, %v6009
  %v6011 = vpop.f32.mrf.mxu0
  %v6012 = vadd.f32 %v5114, %v6011
  %6013 = vmatprep.mubr.bf16.mxu0 %v5205
  %6014 = vmatmul.mubr.bf16.gmra.mxu0 %v5204
  %v6015 = vpop.f32.mrf.mxu0
  %v6016 = vadd.f32 %v5119, %v6015
  %v6017 = vpop.f32.mrf.mxu0
  %v6018 = vadd.f32 %v5119, %v6017
  %v6019 = vpop.f32.mrf.mxu0
  %v6020 = vadd.f32 %v5124, %v6019
  %v6021 = vpop.f32.mrf.mxu0
  %v6022 = vadd.f32 %v5124, %v6021
  %6023 = vmatprep.mubr.bf16.mxu0 %v5207
  %6024 = vmatmul.mubr.bf16.gmra.mxu0 %v5206
  %v6025 = vpop.f32.mrf.mxu0
  %v6026 = vadd.f32 %v5129, %v6025
  %v6027 = vpop.f32.mrf.mxu0
  %v6028 = vadd.f32 %v5129, %v6027
  %v6029 = vpop.f32.mrf.mxu0
  %v6030 = vadd.f32 %v5134, %v6029
  %v6031 = vpop.f32.mrf.mxu0
  %v6032 = vadd.f32 %v5134, %v6031
  %6033 = vmatprep.mubr.bf16.mxu0 %v5209
  %6034 = vmatmul.mubr.bf16.gmra.mxu0 %v5208
  %v6035 = vpop.f32.mrf.mxu0
  %v6036 = vadd.f32 %v5139, %v6035
  %v6037 = vpop.f32.mrf.mxu0
  %v6038 = vadd.f32 %v5139, %v6037
  %v6039 = vpop.f32.mrf.mxu0
  %v6040 = vadd.f32 %v5144, %v6039
  %v6041 = vpop.f32.mrf.mxu0
  %v6042 = vadd.f32 %v5144, %v6041
  %6043 = vdwg.mxu0
  %v6044 = vadd.f32 %v5966, %v5968
  %6045 = vadd.xlane.f32.xlu0 %v6044
  %v6046 = vpop.xlane.xlu0 %6045
  %v6047 = vadd.f32 %v5970, %v5972
  %6048 = vadd.xlane.f32.xlu0 %v6047
  %v6049 = vpop.xlane.xlu0 %6048
  %v6050 = vadd.f32 %v5976, %v5978
  %6051 = vadd.xlane.f32.xlu0 %v6050
  %v6052 = vpop.xlane.xlu0 %6051
  %v6053 = vadd.f32 %v5980, %v5982
  %6054 = vadd.xlane.f32.xlu0 %v6053
  %v6055 = vpop.xlane.xlu0 %6054
  %v6056 = vadd.f32 %v5986, %v5988
  %6057 = vadd.xlane.f32.xlu0 %v6056
  %v6058 = vpop.xlane.xlu0 %6057
  %v6059 = vadd.f32 %v5990, %v5992
  %6060 = vadd.xlane.f32.xlu0 %v6059
  %v6061 = vpop.xlane.xlu0 %6060
  %v6062 = vadd.f32 %v5996, %v5998
  %6063 = vadd.xlane.f32.xlu0 %v6062
  %v6064 = vpop.xlane.xlu0 %6063
  %v6065 = vadd.f32 %v6000, %v6002
  %6066 = vadd.xlane.f32.xlu0 %v6065
  %v6067 = vpop.xlane.xlu0 %6066
  %v6068 = vadd.f32 %v6006, %v6008
  %6069 = vadd.xlane.f32.xlu0 %v6068
  %v6070 = vpop.xlane.xlu0 %6069
  %v6071 = vadd.f32 %v6010, %v6012
  %6072 = vadd.xlane.f32.xlu0 %v6071
  %v6073 = vpop.xlane.xlu0 %6072
  %v6074 = vadd.f32 %v6016, %v6018
  %6075 = vadd.xlane.f32.xlu0 %v6074
  %v6076 = vpop.xlane.xlu0 %6075
  %v6077 = vadd.f32 %v6020, %v6022
  %6078 = vadd.xlane.f32.xlu0 %v6077
  %v6079 = vpop.xlane.xlu0 %6078
  %v6080 = vadd.f32 %v6026, %v6028
  %6081 = vadd.xlane.f32.xlu0 %v6080
  %v6082 = vpop.xlane.xlu0 %6081
  %v6083 = vadd.f32 %v6030, %v6032
  %6084 = vadd.xlane.f32.xlu0 %v6083
  %v6085 = vpop.xlane.xlu0 %6084
  %v6086 = vadd.f32 %v6036, %v6038
  %6087 = vadd.xlane.f32.xlu0 %v6086
  %v6088 = vpop.xlane.xlu0 %6087
  %v6089 = vadd.f32 %v6040, %v6042
  %6090 = vadd.xlane.f32.xlu0 %v6089
  %v6091 = vpop.xlane.xlu0 %6090
  %v6092 = vmul.f32 %v6046, 0.00390625
  %v6093 = vmul.f32 %v6049, 0.00390625
  %v6094 = vmul.f32 %v6052, 0.00390625
  %v6095 = vmul.f32 %v6055, 0.00390625
  %v6096 = vmul.f32 %v6058, 0.00390625
  %v6097 = vmul.f32 %v6061, 0.00390625
  %v6098 = vmul.f32 %v6064, 0.00390625
  %v6099 = vmul.f32 %v6067, 0.00390625
  %v6100 = vmul.f32 %v6070, 0.00390625
  %v6101 = vmul.f32 %v6073, 0.00390625
  %v6102 = vmul.f32 %v6076, 0.00390625
  %v6103 = vmul.f32 %v6079, 0.00390625
  %v6104 = vmul.f32 %v6082, 0.00390625
  %v6105 = vmul.f32 %v6085, 0.00390625
  %v6106 = vmul.f32 %v6088, 0.00390625
  %v6107 = vmul.f32 %v6091, 0.00390625
  %v6108 = vmul.f32 %v5966, %v5966
  %v6109 = vmul.f32 %v5968, %v5968
  %v6110 = vmul.f32 %v5970, %v5970
  %v6111 = vmul.f32 %v5972, %v5972
  %v6112 = vmul.f32 %v5976, %v5976
  %v6113 = vmul.f32 %v5978, %v5978
  %v6114 = vmul.f32 %v5980, %v5980
  %v6115 = vmul.f32 %v5982, %v5982
  %v6116 = vmul.f32 %v5986, %v5986
  %v6117 = vmul.f32 %v5988, %v5988
  %v6118 = vmul.f32 %v5990, %v5990
  %v6119 = vmul.f32 %v5992, %v5992
  %v6120 = vmul.f32 %v5996, %v5996
  %v6121 = vmul.f32 %v5998, %v5998
  %v6122 = vmul.f32 %v6000, %v6000
  %v6123 = vmul.f32 %v6002, %v6002
  %v6124 = vmul.f32 %v6006, %v6006
  %v6125 = vmul.f32 %v6008, %v6008
  %v6126 = vmul.f32 %v6010, %v6010
  %v6127 = vmul.f32 %v6012, %v6012
  %v6128 = vmul.f32 %v6016, %v6016
  %v6129 = vmul.f32 %v6018, %v6018
  %v6130 = vmul.f32 %v6020, %v6020
  %v6131 = vmul.f32 %v6022, %v6022
  %v6132 = vmul.f32 %v6026, %v6026
  %v6133 = vmul.f32 %v6028, %v6028
  %v6134 = vmul.f32 %v6030, %v6030
  %v6135 = vmul.f32 %v6032, %v6032
  %v6136 = vmul.f32 %v6036, %v6036
  %v6137 = vmul.f32 %v6038, %v6038
  %v6138 = vmul.f32 %v6040, %v6040
  %v6139 = vmul.f32 %v6042, %v6042
  %v6140 = vadd.f32 %v6108, %v6109
  %6141 = vadd.xlane.f32.xlu0 %v6140
  %v6142 = vpop.xlane.xlu0 %6141
  %v6143 = vadd.f32 %v6110, %v6111
  %6144 = vadd.xlane.f32.xlu0 %v6143
  %v6145 = vpop.xlane.xlu0 %6144
  %v6146 = vadd.f32 %v6112, %v6113
  %6147 = vadd.xlane.f32.xlu0 %v6146
  %v6148 = vpop.xlane.xlu0 %6147
  %v6149 = vadd.f32 %v6114, %v6115
  %6150 = vadd.xlane.f32.xlu0 %v6149
  %v6151 = vpop.xlane.xlu0 %6150
  %v6152 = vadd.f32 %v6116, %v6117
  %6153 = vadd.xlane.f32.xlu0 %v6152
  %v6154 = vpop.xlane.xlu0 %6153
  %v6155 = vadd.f32 %v6118, %v6119
  %6156 = vadd.xlane.f32.xlu0 %v6155
  %v6157 = vpop.xlane.xlu0 %6156
  %v6158 = vadd.f32 %v6120, %v6121
  %6159 = vadd.xlane.f32.xlu0 %v6158
  %v6160 = vpop.xlane.xlu0 %6159
  %v6161 = vadd.f32 %v6122, %v6123
  %6162 = vadd.xlane.f32.xlu0 %v6161
  %v6163 = vpop.xlane.xlu0 %6162
  %v6164 = vadd.f32 %v6124, %v6125
  %6165 = vadd.xlane.f32.xlu0 %v6164
  %v6166 = vpop.xlane.xlu0 %6165
  %v6167 = vadd.f32 %v6126, %v6127
  %6168 = vadd.xlane.f32.xlu0 %v6167
  %v6169 = vpop.xlane.xlu0 %6168
  %v6170 = vadd.f32 %v6128, %v6129
  %6171 = vadd.xlane.f32.xlu0 %v6170
  %v6172 = vpop.xlane.xlu0 %6171
  %v6173 = vadd.f32 %v6130, %v6131
  %6174 = vadd.xlane.f32.xlu0 %v6173
  %v6175 = vpop.xlane.xlu0 %6174
  %v6176 = vadd.f32 %v6132, %v6133
  %6177 = vadd.xlane.f32.xlu0 %v6176
  %v6178 = vpop.xlane.xlu0 %6177
  %v6179 = vadd.f32 %v6134, %v6135
  %6180 = vadd.xlane.f32.xlu0 %v6179
  %v6181 = vpop.xlane.xlu0 %6180
  %v6182 = vadd.f32 %v6136, %v6137
  %6183 = vadd.xlane.f32.xlu0 %v6182
  %v6184 = vpop.xlane.xlu0 %6183
  %v6185 = vadd.f32 %v6138, %v6139
  %6186 = vadd.xlane.f32.xlu0 %v6185
  %v6187 = vpop.xlane.xlu0 %6186
  %v6188 = vmul.f32 %v6142, 0.00390625
  %v6189 = vmul.f32 %v6145, 0.00390625
  %v6190 = vmul.f32 %v6148, 0.00390625
  %v6191 = vmul.f32 %v6151, 0.00390625
  %v6192 = vmul.f32 %v6154, 0.00390625
  %v6193 = vmul.f32 %v6157, 0.00390625
  %v6194 = vmul.f32 %v6160, 0.00390625
  %v6195 = vmul.f32 %v6163, 0.00390625
  %v6196 = vmul.f32 %v6166, 0.00390625
  %v6197 = vmul.f32 %v6169, 0.00390625
  %v6198 = vmul.f32 %v6172, 0.00390625
  %v6199 = vmul.f32 %v6175, 0.00390625
  %v6200 = vmul.f32 %v6178, 0.00390625
  %v6201 = vmul.f32 %v6181, 0.00390625
  %v6202 = vmul.f32 %v6184, 0.00390625
  %v6203 = vmul.f32 %v6187, 0.00390625
  %v6204 = vmul.f32 %v6092, %v6092
  %v6205 = vmul.f32 %v6093, %v6093
  %v6206 = vmul.f32 %v6094, %v6094
  %v6207 = vmul.f32 %v6095, %v6095
  %v6208 = vmul.f32 %v6096, %v6096
  %v6209 = vmul.f32 %v6097, %v6097
  %v6210 = vmul.f32 %v6098, %v6098
  %v6211 = vmul.f32 %v6099, %v6099
  %v6212 = vmul.f32 %v6100, %v6100
  %v6213 = vmul.f32 %v6101, %v6101
  %v6214 = vmul.f32 %v6102, %v6102
  %v6215 = vmul.f32 %v6103, %v6103
  %v6216 = vmul.f32 %v6104, %v6104
  %v6217 = vmul.f32 %v6105, %v6105
  %v6218 = vmul.f32 %v6106, %v6106
  %v6219 = vmul.f32 %v6107, %v6107
  %v6220 = vsub.f32 %v6188, %v6204
  %v6221 = vsub.f32 %v6189, %v6205
  %v6222 = vsub.f32 %v6190, %v6206
  %v6223 = vsub.f32 %v6191, %v6207
  %v6224 = vsub.f32 %v6192, %v6208
  %v6225 = vsub.f32 %v6193, %v6209
  %v6226 = vsub.f32 %v6194, %v6210
  %v6227 = vsub.f32 %v6195, %v6211
  %v6228 = vsub.f32 %v6196, %v6212
  %v6229 = vsub.f32 %v6197, %v6213
  %v6230 = vsub.f32 %v6198, %v6214
  %v6231 = vsub.f32 %v6199, %v6215
  %v6232 = vsub.f32 %v6200, %v6216
  %v6233 = vsub.f32 %v6201, %v6217
  %v6234 = vsub.f32 %v6202, %v6218
  %v6235 = vsub.f32 %v6203, %v6219
  %v6236 = vmax.f32 %v6220, 0.0
  %v6237 = vmax.f32 %v6221, 0.0
  %v6238 = vmax.f32 %v6222, 0.0
  %v6239 = vmax.f32 %v6223, 0.0
  %v6240 = vmax.f32 %v6224, 0.0
  %v6241 = vmax.f32 %v6225, 0.0
  %v6242 = vmax.f32 %v6226, 0.0
  %v6243 = vmax.f32 %v6227, 0.0
  %v6244 = vmax.f32 %v6228, 0.0
  %v6245 = vmax.f32 %v6229, 0.0
  %v6246 = vmax.f32 %v6230, 0.0
  %v6247 = vmax.f32 %v6231, 0.0
  %v6248 = vmax.f32 %v6232, 0.0
  %v6249 = vmax.f32 %v6233, 0.0
  %v6250 = vmax.f32 %v6234, 0.0
  %v6251 = vmax.f32 %v6235, 0.0
  %v6252 = vsub.f32 %v5966, %v6092
  %v6253 = vsub.f32 %v5968, %v6092
  %v6254 = vsub.f32 %v5970, %v6093
  %v6255 = vsub.f32 %v5972, %v6093
  %v6256 = vsub.f32 %v5976, %v6094
  %v6257 = vsub.f32 %v5978, %v6094
  %v6258 = vsub.f32 %v5980, %v6095
  %v6259 = vsub.f32 %v5982, %v6095
  %v6260 = vsub.f32 %v5986, %v6096
  %v6261 = vsub.f32 %v5988, %v6096
  %v6262 = vsub.f32 %v5990, %v6097
  %v6263 = vsub.f32 %v5992, %v6097
  %v6264 = vsub.f32 %v5996, %v6098
  %v6265 = vsub.f32 %v5998, %v6098
  %v6266 = vsub.f32 %v6000, %v6099
  %v6267 = vsub.f32 %v6002, %v6099
  %v6268 = vsub.f32 %v6006, %v6100
  %v6269 = vsub.f32 %v6008, %v6100
  %v6270 = vsub.f32 %v6010, %v6101
  %v6271 = vsub.f32 %v6012, %v6101
  %v6272 = vsub.f32 %v6016, %v6102
  %v6273 = vsub.f32 %v6018, %v6102
  %v6274 = vsub.f32 %v6020, %v6103
  %v6275 = vsub.f32 %v6022, %v6103
  %v6276 = vsub.f32 %v6026, %v6104
  %v6277 = vsub.f32 %v6028, %v6104
  %v6278 = vsub.f32 %v6030, %v6105
  %v6279 = vsub.f32 %v6032, %v6105
  %v6280 = vsub.f32 %v6036, %v6106
  %v6281 = vsub.f32 %v6038, %v6106
  %v6282 = vsub.f32 %v6040, %v6107
  %v6283 = vsub.f32 %v6042, %v6107
  %v6284 = vadd.f32 %v6236, 1e-05
  %v6285 = vadd.f32 %v6237, 1e-05
  %v6286 = vadd.f32 %v6238, 1e-05
  %v6287 = vadd.f32 %v6239, 1e-05
  %v6288 = vadd.f32 %v6240, 1e-05
  %v6289 = vadd.f32 %v6241, 1e-05
  %v6290 = vadd.f32 %v6242, 1e-05
  %v6291 = vadd.f32 %v6243, 1e-05
  %v6292 = vadd.f32 %v6244, 1e-05
  %v6293 = vadd.f32 %v6245, 1e-05
  %v6294 = vadd.f32 %v6246, 1e-05
  %v6295 = vadd.f32 %v6247, 1e-05
  %v6296 = vadd.f32 %v6248, 1e-05
  %v6297 = vadd.f32 %v6249, 1e-05
  %v6298 = vadd.f32 %v6250, 1e-05
  %v6299 = vadd.f32 %v6251, 1e-05
  %v6300 = vrsqrt.pop %v6284
  %v6301 = vrsqrt.pop %v6285
  %v6302 = vrsqrt.pop %v6286
  %v6303 = vrsqrt.pop %v6287
  %v6304 = vrsqrt.pop %v6288
  %v6305 = vrsqrt.pop %v6289
  %v6306 = vrsqrt.pop %v6290
  %v6307 = vrsqrt.pop %v6291
  %v6308 = vrsqrt.pop %v6292
  %v6309 = vrsqrt.pop %v6293
  %v6310 = vrsqrt.pop %v6294
  %v6311 = vrsqrt.pop %v6295
  %v6312 = vrsqrt.pop %v6296
  %v6313 = vrsqrt.pop %v6297
  %v6314 = vrsqrt.pop %v6298
  %v6315 = vrsqrt.pop %v6299
  %v6316 = vmul.f32 %v6252, %v6300
  %v6317 = vmul.f32 %v6253, %v6300
  %v6318 = vmul.f32 %v6254, %v6301
  %v6319 = vmul.f32 %v6255, %v6301
  %v6320 = vmul.f32 %v6256, %v6302
  %v6321 = vmul.f32 %v6257, %v6302
  %v6322 = vmul.f32 %v6258, %v6303
  %v6323 = vmul.f32 %v6259, %v6303
  %v6324 = vmul.f32 %v6260, %v6304
  %v6325 = vmul.f32 %v6261, %v6304
  %v6326 = vmul.f32 %v6262, %v6305
  %v6327 = vmul.f32 %v6263, %v6305
  %v6328 = vmul.f32 %v6264, %v6306
  %v6329 = vmul.f32 %v6265, %v6306
  %v6330 = vmul.f32 %v6266, %v6307
  %v6331 = vmul.f32 %v6267, %v6307
  %v6332 = vmul.f32 %v6268, %v6308
  %v6333 = vmul.f32 %v6269, %v6308
  %v6334 = vmul.f32 %v6270, %v6309
  %v6335 = vmul.f32 %v6271, %v6309
  %v6336 = vmul.f32 %v6272, %v6310
  %v6337 = vmul.f32 %v6273, %v6310
  %v6338 = vmul.f32 %v6274, %v6311
  %v6339 = vmul.f32 %v6275, %v6311
  %v6340 = vmul.f32 %v6276, %v6312
  %v6341 = vmul.f32 %v6277, %v6312
  %v6342 = vmul.f32 %v6278, %v6313
  %v6343 = vmul.f32 %v6279, %v6313
  %v6344 = vmul.f32 %v6280, %v6314
  %v6345 = vmul.f32 %v6281, %v6314
  %v6346 = vmul.f32 %v6282, %v6315
  %v6347 = vmul.f32 %v6283, %v6315
  %s6348 = scalar_lea.vmem %s10, 128
  %v6349 = vld [vmem:[%s6348] sm:$0xff]
  %v6350 = vld [vmem:[%s6348 + $0x8] sm:$0xff]
  %v6351 = vld [vmem:[%s6348 + $0x10] sm:$0xff]
  %v6352 = vld [vmem:[%s6348 + $0x18] sm:$0xff]
  %v6353 = vld [vmem:[%s6348 + $0x20] sm:$0xff]
  %v6354 = vld [vmem:[%s6348 + $0x28] sm:$0xff]
  %v6355 = vld [vmem:[%s6348 + $0x30] sm:$0xff]
  %v6356 = vld [vmem:[%s6348 + $0x38] sm:$0xff]
  %v6357 = vld [vmem:[%s6348 + $0x40] sm:$0xff]
  %v6358 = vld [vmem:[%s6348 + $0x48] sm:$0xff]
  %v6359 = vld [vmem:[%s6348 + $0x50] sm:$0xff]
  %v6360 = vld [vmem:[%s6348 + $0x58] sm:$0xff]
  %v6361 = vld [vmem:[%s6348 + $0x60] sm:$0xff]
  %v6362 = vld [vmem:[%s6348 + $0x68] sm:$0xff]
  %v6363 = vld [vmem:[%s6348 + $0x70] sm:$0xff]
  %v6364 = vld [vmem:[%s6348 + $0x78] sm:$0xff]
  %6366 = vset.pattern.permute.xlu0 0
  %6367 = vperm.xlu0 %6366, %v6349
  %v6368 = vpop.permute.xlu0 %6367
  %6371 = vset.pattern.permute.xlu0 0
  %6372 = vperm.xlu0 %6371, %v6350
  %v6373 = vpop.permute.xlu0 %6372
  %6376 = vset.pattern.permute.xlu0 0
  %6377 = vperm.xlu0 %6376, %v6351
  %v6378 = vpop.permute.xlu0 %6377
  %6381 = vset.pattern.permute.xlu0 0
  %6382 = vperm.xlu0 %6381, %v6352
  %v6383 = vpop.permute.xlu0 %6382
  %6386 = vset.pattern.permute.xlu0 0
  %6387 = vperm.xlu0 %6386, %v6353
  %v6388 = vpop.permute.xlu0 %6387
  %6391 = vset.pattern.permute.xlu0 0
  %6392 = vperm.xlu0 %6391, %v6354
  %v6393 = vpop.permute.xlu0 %6392
  %6396 = vset.pattern.permute.xlu0 0
  %6397 = vperm.xlu0 %6396, %v6355
  %v6398 = vpop.permute.xlu0 %6397
  %6401 = vset.pattern.permute.xlu0 0
  %6402 = vperm.xlu0 %6401, %v6356
  %v6403 = vpop.permute.xlu0 %6402
  %6406 = vset.pattern.permute.xlu0 0
  %6407 = vperm.xlu0 %6406, %v6357
  %v6408 = vpop.permute.xlu0 %6407
  %6411 = vset.pattern.permute.xlu0 0
  %6412 = vperm.xlu0 %6411, %v6358
  %v6413 = vpop.permute.xlu0 %6412
  %6416 = vset.pattern.permute.xlu0 0
  %6417 = vperm.xlu0 %6416, %v6359
  %v6418 = vpop.permute.xlu0 %6417
  %6421 = vset.pattern.permute.xlu0 0
  %6422 = vperm.xlu0 %6421, %v6360
  %v6423 = vpop.permute.xlu0 %6422
  %6426 = vset.pattern.permute.xlu0 0
  %6427 = vperm.xlu0 %6426, %v6361
  %v6428 = vpop.permute.xlu0 %6427
  %6431 = vset.pattern.permute.xlu0 0
  %6432 = vperm.xlu0 %6431, %v6362
  %v6433 = vpop.permute.xlu0 %6432
  %6436 = vset.pattern.permute.xlu0 0
  %6437 = vperm.xlu0 %6436, %v6363
  %v6438 = vpop.permute.xlu0 %6437
  %6441 = vset.pattern.permute.xlu0 0
  %6442 = vperm.xlu0 %6441, %v6364
  %v6443 = vpop.permute.xlu0 %6442
  %v6445 = vmul.f32 %v6316, %v6368
  %v6446 = vmul.f32 %v6317, %v6368
  %v6447 = vmul.f32 %v6318, %v6373
  %v6448 = vmul.f32 %v6319, %v6373
  %v6449 = vmul.f32 %v6320, %v6378
  %v6450 = vmul.f32 %v6321, %v6378
  %v6451 = vmul.f32 %v6322, %v6383
  %v6452 = vmul.f32 %v6323, %v6383
  %v6453 = vmul.f32 %v6324, %v6388
  %v6454 = vmul.f32 %v6325, %v6388
  %v6455 = vmul.f32 %v6326, %v6393
  %v6456 = vmul.f32 %v6327, %v6393
  %v6457 = vmul.f32 %v6328, %v6398
  %v6458 = vmul.f32 %v6329, %v6398
  %v6459 = vmul.f32 %v6330, %v6403
  %v6460 = vmul.f32 %v6331, %v6403
  %v6461 = vmul.f32 %v6332, %v6408
  %v6462 = vmul.f32 %v6333, %v6408
  %v6463 = vmul.f32 %v6334, %v6413
  %v6464 = vmul.f32 %v6335, %v6413
  %v6465 = vmul.f32 %v6336, %v6418
  %v6466 = vmul.f32 %v6337, %v6418
  %v6467 = vmul.f32 %v6338, %v6423
  %v6468 = vmul.f32 %v6339, %v6423
  %v6469 = vmul.f32 %v6340, %v6428
  %v6470 = vmul.f32 %v6341, %v6428
  %v6471 = vmul.f32 %v6342, %v6433
  %v6472 = vmul.f32 %v6343, %v6433
  %v6473 = vmul.f32 %v6344, %v6438
  %v6474 = vmul.f32 %v6345, %v6438
  %v6475 = vmul.f32 %v6346, %v6443
  %v6476 = vmul.f32 %v6347, %v6443
  %s6477 = scalar_lea.vmem %s9, 128
  %v6478 = vld [vmem:[%s6477] sm:$0xff]
  %v6479 = vld [vmem:[%s6477 + $0x8] sm:$0xff]
  %v6480 = vld [vmem:[%s6477 + $0x10] sm:$0xff]
  %v6481 = vld [vmem:[%s6477 + $0x18] sm:$0xff]
  %v6482 = vld [vmem:[%s6477 + $0x20] sm:$0xff]
  %v6483 = vld [vmem:[%s6477 + $0x28] sm:$0xff]
  %v6484 = vld [vmem:[%s6477 + $0x30] sm:$0xff]
  %v6485 = vld [vmem:[%s6477 + $0x38] sm:$0xff]
  %v6486 = vld [vmem:[%s6477 + $0x40] sm:$0xff]
  %v6487 = vld [vmem:[%s6477 + $0x48] sm:$0xff]
  %v6488 = vld [vmem:[%s6477 + $0x50] sm:$0xff]
  %v6489 = vld [vmem:[%s6477 + $0x58] sm:$0xff]
  %v6490 = vld [vmem:[%s6477 + $0x60] sm:$0xff]
  %v6491 = vld [vmem:[%s6477 + $0x68] sm:$0xff]
  %v6492 = vld [vmem:[%s6477 + $0x70] sm:$0xff]
  %v6493 = vld [vmem:[%s6477 + $0x78] sm:$0xff]
  %6495 = vset.pattern.permute.xlu0 0
  %6496 = vperm.xlu0 %6495, %v6478
  %v6497 = vpop.permute.xlu0 %6496
  %6500 = vset.pattern.permute.xlu0 0
  %6501 = vperm.xlu0 %6500, %v6479
  %v6502 = vpop.permute.xlu0 %6501
  %6505 = vset.pattern.permute.xlu0 0
  %6506 = vperm.xlu0 %6505, %v6480
  %v6507 = vpop.permute.xlu0 %6506
  %6510 = vset.pattern.permute.xlu0 0
  %6511 = vperm.xlu0 %6510, %v6481
  %v6512 = vpop.permute.xlu0 %6511
  %6515 = vset.pattern.permute.xlu0 0
  %6516 = vperm.xlu0 %6515, %v6482
  %v6517 = vpop.permute.xlu0 %6516
  %6520 = vset.pattern.permute.xlu0 0
  %6521 = vperm.xlu0 %6520, %v6483
  %v6522 = vpop.permute.xlu0 %6521
  %6525 = vset.pattern.permute.xlu0 0
  %6526 = vperm.xlu0 %6525, %v6484
  %v6527 = vpop.permute.xlu0 %6526
  %6530 = vset.pattern.permute.xlu0 0
  %6531 = vperm.xlu0 %6530, %v6485
  %v6532 = vpop.permute.xlu0 %6531
  %6535 = vset.pattern.permute.xlu0 0
  %6536 = vperm.xlu0 %6535, %v6486
  %v6537 = vpop.permute.xlu0 %6536
  %6540 = vset.pattern.permute.xlu0 0
  %6541 = vperm.xlu0 %6540, %v6487
  %v6542 = vpop.permute.xlu0 %6541
  %6545 = vset.pattern.permute.xlu0 0
  %6546 = vperm.xlu0 %6545, %v6488
  %v6547 = vpop.permute.xlu0 %6546
  %6550 = vset.pattern.permute.xlu0 0
  %6551 = vperm.xlu0 %6550, %v6489
  %v6552 = vpop.permute.xlu0 %6551
  %6555 = vset.pattern.permute.xlu0 0
  %6556 = vperm.xlu0 %6555, %v6490
  %v6557 = vpop.permute.xlu0 %6556
  %6560 = vset.pattern.permute.xlu0 0
  %6561 = vperm.xlu0 %6560, %v6491
  %v6562 = vpop.permute.xlu0 %6561
  %6565 = vset.pattern.permute.xlu0 0
  %6566 = vperm.xlu0 %6565, %v6492
  %v6567 = vpop.permute.xlu0 %6566
  %6570 = vset.pattern.permute.xlu0 0
  %6571 = vperm.xlu0 %6570, %v6493
  %v6572 = vpop.permute.xlu0 %6571
  %v6574 = vadd.f32 %v6445, %v6497
  %v6575 = vadd.f32 %v6446, %v6497
  %v6576 = vadd.f32 %v6447, %v6502
  %v6577 = vadd.f32 %v6448, %v6502
  %v6578 = vadd.f32 %v6449, %v6507
  %v6579 = vadd.f32 %v6450, %v6507
  %v6580 = vadd.f32 %v6451, %v6512
  %v6581 = vadd.f32 %v6452, %v6512
  %v6582 = vadd.f32 %v6453, %v6517
  %v6583 = vadd.f32 %v6454, %v6517
  %v6584 = vadd.f32 %v6455, %v6522
  %v6585 = vadd.f32 %v6456, %v6522
  %v6586 = vadd.f32 %v6457, %v6527
  %v6587 = vadd.f32 %v6458, %v6527
  %v6588 = vadd.f32 %v6459, %v6532
  %v6589 = vadd.f32 %v6460, %v6532
  %v6590 = vadd.f32 %v6461, %v6537
  %v6591 = vadd.f32 %v6462, %v6537
  %v6592 = vadd.f32 %v6463, %v6542
  %v6593 = vadd.f32 %v6464, %v6542
  %v6594 = vadd.f32 %v6465, %v6547
  %v6595 = vadd.f32 %v6466, %v6547
  %v6596 = vadd.f32 %v6467, %v6552
  %v6597 = vadd.f32 %v6468, %v6552
  %v6598 = vadd.f32 %v6469, %v6557
  %v6599 = vadd.f32 %v6470, %v6557
  %v6600 = vadd.f32 %v6471, %v6562
  %v6601 = vadd.f32 %v6472, %v6562
  %v6602 = vadd.f32 %v6473, %v6567
  %v6603 = vadd.f32 %v6474, %v6567
  %v6604 = vadd.f32 %v6475, %v6572
  %v6605 = vadd.f32 %v6476, %v6572
  %v6606 = vadd.f32 %v5867, %v5868
  %6607 = vadd.xlane.f32.xlu0 %v6606
  %v6608 = vpop.xlane.xlu0 %6607
  %v6609 = vadd.f32 %v5869, %v5870
  %6610 = vadd.xlane.f32.xlu0 %v6609
  %v6611 = vpop.xlane.xlu0 %6610
  %v6612 = vadd.f32 %v5871, %v5872
  %6613 = vadd.xlane.f32.xlu0 %v6612
  %v6614 = vpop.xlane.xlu0 %6613
  %v6615 = vadd.f32 %v5873, %v5874
  %6616 = vadd.xlane.f32.xlu0 %v6615
  %v6617 = vpop.xlane.xlu0 %6616
  %v6618 = vadd.f32 %v5875, %v5876
  %6619 = vadd.xlane.f32.xlu0 %v6618
  %v6620 = vpop.xlane.xlu0 %6619
  %v6621 = vadd.f32 %v5877, %v5878
  %6622 = vadd.xlane.f32.xlu0 %v6621
  %v6623 = vpop.xlane.xlu0 %6622
  %v6624 = vadd.f32 %v5879, %v5880
  %6625 = vadd.xlane.f32.xlu0 %v6624
  %v6626 = vpop.xlane.xlu0 %6625
  %v6627 = vadd.f32 %v5881, %v5882
  %6628 = vadd.xlane.f32.xlu0 %v6627
  %v6629 = vpop.xlane.xlu0 %6628
  %v6630 = vadd.f32 %v5883, %v5884
  %6631 = vadd.xlane.f32.xlu0 %v6630
  %v6632 = vpop.xlane.xlu0 %6631
  %v6633 = vadd.f32 %v5885, %v5886
  %6634 = vadd.xlane.f32.xlu0 %v6633
  %v6635 = vpop.xlane.xlu0 %6634
  %v6636 = vadd.f32 %v5887, %v5888
  %6637 = vadd.xlane.f32.xlu0 %v6636
  %v6638 = vpop.xlane.xlu0 %6637
  %v6639 = vadd.f32 %v5889, %v5890
  %6640 = vadd.xlane.f32.xlu0 %v6639
  %v6641 = vpop.xlane.xlu0 %6640
  %v6642 = vadd.f32 %v5891, %v5892
  %6643 = vadd.xlane.f32.xlu0 %v6642
  %v6644 = vpop.xlane.xlu0 %6643
  %v6645 = vadd.f32 %v5893, %v5894
  %6646 = vadd.xlane.f32.xlu0 %v6645
  %v6647 = vpop.xlane.xlu0 %6646
  %v6648 = vadd.f32 %v5895, %v5896
  %6649 = vadd.xlane.f32.xlu0 %v6648
  %v6650 = vpop.xlane.xlu0 %6649
  %v6651 = vadd.f32 %v5897, %v5898
  %6652 = vadd.xlane.f32.xlu0 %v6651
  %v6653 = vpop.xlane.xlu0 %6652
  %v6654 = vadd.f32 %v6608, 0.0
  %v6655 = vadd.f32 %v6611, 0.0
  %v6656 = vadd.f32 %v6614, 0.0
  %v6657 = vadd.f32 %v6617, 0.0
  %v6658 = vadd.f32 %v6620, 0.0
  %v6659 = vadd.f32 %v6623, 0.0
  %v6660 = vadd.f32 %v6626, 0.0
  %v6661 = vadd.f32 %v6629, 0.0
  %v6662 = vadd.f32 %v6632, 0.0
  %v6663 = vadd.f32 %v6635, 0.0
  %v6664 = vadd.f32 %v6638, 0.0
  %v6665 = vadd.f32 %v6641, 0.0
  %v6666 = vadd.f32 %v6644, 0.0
  %v6667 = vadd.f32 %v6647, 0.0
  %v6668 = vadd.f32 %v6650, 0.0
  %v6669 = vadd.f32 %v6653, 0.0
  %v6670 = vadd.f32 %v6574, %v6575
  %6671 = vadd.xlane.f32.xlu0 %v6670
  %v6672 = vpop.xlane.xlu0 %6671
  %v6673 = vadd.f32 %v6576, %v6577
  %6674 = vadd.xlane.f32.xlu0 %v6673
  %v6675 = vpop.xlane.xlu0 %6674
  %v6676 = vadd.f32 %v6578, %v6579
  %6677 = vadd.xlane.f32.xlu0 %v6676
  %v6678 = vpop.xlane.xlu0 %6677
  %v6679 = vadd.f32 %v6580, %v6581
  %6680 = vadd.xlane.f32.xlu0 %v6679
  %v6681 = vpop.xlane.xlu0 %6680
  %v6682 = vadd.f32 %v6582, %v6583
  %6683 = vadd.xlane.f32.xlu0 %v6682
  %v6684 = vpop.xlane.xlu0 %6683
  %v6685 = vadd.f32 %v6584, %v6585
  %6686 = vadd.xlane.f32.xlu0 %v6685
  %v6687 = vpop.xlane.xlu0 %6686
  %v6688 = vadd.f32 %v6586, %v6587
  %6689 = vadd.xlane.f32.xlu0 %v6688
  %v6690 = vpop.xlane.xlu0 %6689
  %v6691 = vadd.f32 %v6588, %v6589
  %6692 = vadd.xlane.f32.xlu0 %v6691
  %v6693 = vpop.xlane.xlu0 %6692
  %v6694 = vadd.f32 %v6590, %v6591
  %6695 = vadd.xlane.f32.xlu0 %v6694
  %v6696 = vpop.xlane.xlu0 %6695
  %v6697 = vadd.f32 %v6592, %v6593
  %6698 = vadd.xlane.f32.xlu0 %v6697
  %v6699 = vpop.xlane.xlu0 %6698
  %v6700 = vadd.f32 %v6594, %v6595
  %6701 = vadd.xlane.f32.xlu0 %v6700
  %v6702 = vpop.xlane.xlu0 %6701
  %v6703 = vadd.f32 %v6596, %v6597
  %6704 = vadd.xlane.f32.xlu0 %v6703
  %v6705 = vpop.xlane.xlu0 %6704
  %v6706 = vadd.f32 %v6598, %v6599
  %6707 = vadd.xlane.f32.xlu0 %v6706
  %v6708 = vpop.xlane.xlu0 %6707
  %v6709 = vadd.f32 %v6600, %v6601
  %6710 = vadd.xlane.f32.xlu0 %v6709
  %v6711 = vpop.xlane.xlu0 %6710
  %v6712 = vadd.f32 %v6602, %v6603
  %6713 = vadd.xlane.f32.xlu0 %v6712
  %v6714 = vpop.xlane.xlu0 %6713
  %v6715 = vadd.f32 %v6604, %v6605
  %6716 = vadd.xlane.f32.xlu0 %v6715
  %v6717 = vpop.xlane.xlu0 %6716
  %v6718 = vadd.f32 %v6654, %v6672
  %v6719 = vadd.f32 %v6655, %v6675
  %v6720 = vadd.f32 %v6656, %v6678
  %v6721 = vadd.f32 %v6657, %v6681
  %v6722 = vadd.f32 %v6658, %v6684
  %v6723 = vadd.f32 %v6659, %v6687
  %v6724 = vadd.f32 %v6660, %v6690
  %v6725 = vadd.f32 %v6661, %v6693
  %v6726 = vadd.f32 %v6662, %v6696
  %v6727 = vadd.f32 %v6663, %v6699
  %v6728 = vadd.f32 %v6664, %v6702
  %v6729 = vadd.f32 %v6665, %v6705
  %v6730 = vadd.f32 %v6666, %v6708
  %v6731 = vadd.f32 %v6667, %v6711
  %v6732 = vadd.f32 %v6668, %v6714
  %v6733 = vadd.f32 %v6669, %v6717
  %v6734 = vmul.f32 %v5867, %v5867
  %v6735 = vmul.f32 %v5868, %v5868
  %v6736 = vmul.f32 %v5869, %v5869
  %v6737 = vmul.f32 %v5870, %v5870
  %v6738 = vmul.f32 %v5871, %v5871
  %v6739 = vmul.f32 %v5872, %v5872
  %v6740 = vmul.f32 %v5873, %v5873
  %v6741 = vmul.f32 %v5874, %v5874
  %v6742 = vmul.f32 %v5875, %v5875
  %v6743 = vmul.f32 %v5876, %v5876
  %v6744 = vmul.f32 %v5877, %v5877
  %v6745 = vmul.f32 %v5878, %v5878
  %v6746 = vmul.f32 %v5879, %v5879
  %v6747 = vmul.f32 %v5880, %v5880
  %v6748 = vmul.f32 %v5881, %v5881
  %v6749 = vmul.f32 %v5882, %v5882
  %v6750 = vmul.f32 %v5883, %v5883
  %v6751 = vmul.f32 %v5884, %v5884
  %v6752 = vmul.f32 %v5885, %v5885
  %v6753 = vmul.f32 %v5886, %v5886
  %v6754 = vmul.f32 %v5887, %v5887
  %v6755 = vmul.f32 %v5888, %v5888
  %v6756 = vmul.f32 %v5889, %v5889
  %v6757 = vmul.f32 %v5890, %v5890
  %v6758 = vmul.f32 %v5891, %v5891
  %v6759 = vmul.f32 %v5892, %v5892
  %v6760 = vmul.f32 %v5893, %v5893
  %v6761 = vmul.f32 %v5894, %v5894
  %v6762 = vmul.f32 %v5895, %v5895
  %v6763 = vmul.f32 %v5896, %v5896
  %v6764 = vmul.f32 %v5897, %v5897
  %v6765 = vmul.f32 %v5898, %v5898
  %v6766 = vadd.f32 %v6734, %v6735
  %6767 = vadd.xlane.f32.xlu0 %v6766
  %v6768 = vpop.xlane.xlu0 %6767
  %v6769 = vadd.f32 %v6736, %v6737
  %6770 = vadd.xlane.f32.xlu0 %v6769
  %v6771 = vpop.xlane.xlu0 %6770
  %v6772 = vadd.f32 %v6738, %v6739
  %6773 = vadd.xlane.f32.xlu0 %v6772
  %v6774 = vpop.xlane.xlu0 %6773
  %v6775 = vadd.f32 %v6740, %v6741
  %6776 = vadd.xlane.f32.xlu0 %v6775
  %v6777 = vpop.xlane.xlu0 %6776
  %v6778 = vadd.f32 %v6742, %v6743
  %6779 = vadd.xlane.f32.xlu0 %v6778
  %v6780 = vpop.xlane.xlu0 %6779
  %v6781 = vadd.f32 %v6744, %v6745
  %6782 = vadd.xlane.f32.xlu0 %v6781
  %v6783 = vpop.xlane.xlu0 %6782
  %v6784 = vadd.f32 %v6746, %v6747
  %6785 = vadd.xlane.f32.xlu0 %v6784
  %v6786 = vpop.xlane.xlu0 %6785
  %v6787 = vadd.f32 %v6748, %v6749
  %6788 = vadd.xlane.f32.xlu0 %v6787
  %v6789 = vpop.xlane.xlu0 %6788
  %v6790 = vadd.f32 %v6750, %v6751
  %6791 = vadd.xlane.f32.xlu0 %v6790
  %v6792 = vpop.xlane.xlu0 %6791
  %v6793 = vadd.f32 %v6752, %v6753
  %6794 = vadd.xlane.f32.xlu0 %v6793
  %v6795 = vpop.xlane.xlu0 %6794
  %v6796 = vadd.f32 %v6754, %v6755
  %6797 = vadd.xlane.f32.xlu0 %v6796
  %v6798 = vpop.xlane.xlu0 %6797
  %v6799 = vadd.f32 %v6756, %v6757
  %6800 = vadd.xlane.f32.xlu0 %v6799
  %v6801 = vpop.xlane.xlu0 %6800
  %v6802 = vadd.f32 %v6758, %v6759
  %6803 = vadd.xlane.f32.xlu0 %v6802
  %v6804 = vpop.xlane.xlu0 %6803
  %v6805 = vadd.f32 %v6760, %v6761
  %6806 = vadd.xlane.f32.xlu0 %v6805
  %v6807 = vpop.xlane.xlu0 %6806
  %v6808 = vadd.f32 %v6762, %v6763
  %6809 = vadd.xlane.f32.xlu0 %v6808
  %v6810 = vpop.xlane.xlu0 %6809
  %v6811 = vadd.f32 %v6764, %v6765
  %6812 = vadd.xlane.f32.xlu0 %v6811
  %v6813 = vpop.xlane.xlu0 %6812
  %v6814 = vadd.f32 %v6768, 0.0
  %v6815 = vadd.f32 %v6771, 0.0
  %v6816 = vadd.f32 %v6774, 0.0
  %v6817 = vadd.f32 %v6777, 0.0
  %v6818 = vadd.f32 %v6780, 0.0
  %v6819 = vadd.f32 %v6783, 0.0
  %v6820 = vadd.f32 %v6786, 0.0
  %v6821 = vadd.f32 %v6789, 0.0
  %v6822 = vadd.f32 %v6792, 0.0
  %v6823 = vadd.f32 %v6795, 0.0
  %v6824 = vadd.f32 %v6798, 0.0
  %v6825 = vadd.f32 %v6801, 0.0
  %v6826 = vadd.f32 %v6804, 0.0
  %v6827 = vadd.f32 %v6807, 0.0
  %v6828 = vadd.f32 %v6810, 0.0
  %v6829 = vadd.f32 %v6813, 0.0
  %v6830 = vmul.f32 %v6574, %v6574
  %v6831 = vmul.f32 %v6575, %v6575
  %v6832 = vmul.f32 %v6576, %v6576
  %v6833 = vmul.f32 %v6577, %v6577
  %v6834 = vmul.f32 %v6578, %v6578
  %v6835 = vmul.f32 %v6579, %v6579
  %v6836 = vmul.f32 %v6580, %v6580
  %v6837 = vmul.f32 %v6581, %v6581
  %v6838 = vmul.f32 %v6582, %v6582
  %v6839 = vmul.f32 %v6583, %v6583
  %v6840 = vmul.f32 %v6584, %v6584
  %v6841 = vmul.f32 %v6585, %v6585
  %v6842 = vmul.f32 %v6586, %v6586
  %v6843 = vmul.f32 %v6587, %v6587
  %v6844 = vmul.f32 %v6588, %v6588
  %v6845 = vmul.f32 %v6589, %v6589
  %v6846 = vmul.f32 %v6590, %v6590
  %v6847 = vmul.f32 %v6591, %v6591
  %v6848 = vmul.f32 %v6592, %v6592
  %v6849 = vmul.f32 %v6593, %v6593
  %v6850 = vmul.f32 %v6594, %v6594
  %v6851 = vmul.f32 %v6595, %v6595
  %v6852 = vmul.f32 %v6596, %v6596
  %v6853 = vmul.f32 %v6597, %v6597
  %v6854 = vmul.f32 %v6598, %v6598
  %v6855 = vmul.f32 %v6599, %v6599
  %v6856 = vmul.f32 %v6600, %v6600
  %v6857 = vmul.f32 %v6601, %v6601
  %v6858 = vmul.f32 %v6602, %v6602
  %v6859 = vmul.f32 %v6603, %v6603
  %v6860 = vmul.f32 %v6604, %v6604
  %v6861 = vmul.f32 %v6605, %v6605
  %v6862 = vadd.f32 %v6830, %v6831
  %6863 = vadd.xlane.f32.xlu0 %v6862
  %v6864 = vpop.xlane.xlu0 %6863
  %v6865 = vadd.f32 %v6832, %v6833
  %6866 = vadd.xlane.f32.xlu0 %v6865
  %v6867 = vpop.xlane.xlu0 %6866
  %v6868 = vadd.f32 %v6834, %v6835
  %6869 = vadd.xlane.f32.xlu0 %v6868
  %v6870 = vpop.xlane.xlu0 %6869
  %v6871 = vadd.f32 %v6836, %v6837
  %6872 = vadd.xlane.f32.xlu0 %v6871
  %v6873 = vpop.xlane.xlu0 %6872
  %v6874 = vadd.f32 %v6838, %v6839
  %6875 = vadd.xlane.f32.xlu0 %v6874
  %v6876 = vpop.xlane.xlu0 %6875
  %v6877 = vadd.f32 %v6840, %v6841
  %6878 = vadd.xlane.f32.xlu0 %v6877
  %v6879 = vpop.xlane.xlu0 %6878
  %v6880 = vadd.f32 %v6842, %v6843
  %6881 = vadd.xlane.f32.xlu0 %v6880
  %v6882 = vpop.xlane.xlu0 %6881
  %v6883 = vadd.f32 %v6844, %v6845
  %6884 = vadd.xlane.f32.xlu0 %v6883
  %v6885 = vpop.xlane.xlu0 %6884
  %v6886 = vadd.f32 %v6846, %v6847
  %6887 = vadd.xlane.f32.xlu0 %v6886
  %v6888 = vpop.xlane.xlu0 %6887
  %v6889 = vadd.f32 %v6848, %v6849
  %6890 = vadd.xlane.f32.xlu0 %v6889
  %v6891 = vpop.xlane.xlu0 %6890
  %v6892 = vadd.f32 %v6850, %v6851
  %6893 = vadd.xlane.f32.xlu0 %v6892
  %v6894 = vpop.xlane.xlu0 %6893
  %v6895 = vadd.f32 %v6852, %v6853
  %6896 = vadd.xlane.f32.xlu0 %v6895
  %v6897 = vpop.xlane.xlu0 %6896
  %v6898 = vadd.f32 %v6854, %v6855
  %6899 = vadd.xlane.f32.xlu0 %v6898
  %v6900 = vpop.xlane.xlu0 %6899
  %v6901 = vadd.f32 %v6856, %v6857
  %6902 = vadd.xlane.f32.xlu0 %v6901
  %v6903 = vpop.xlane.xlu0 %6902
  %v6904 = vadd.f32 %v6858, %v6859
  %6905 = vadd.xlane.f32.xlu0 %v6904
  %v6906 = vpop.xlane.xlu0 %6905
  %v6907 = vadd.f32 %v6860, %v6861
  %6908 = vadd.xlane.f32.xlu0 %v6907
  %v6909 = vpop.xlane.xlu0 %6908
  %v6910 = vadd.f32 %v6814, %v6864
  %v6911 = vadd.f32 %v6815, %v6867
  %v6912 = vadd.f32 %v6816, %v6870
  %v6913 = vadd.f32 %v6817, %v6873
  %v6914 = vadd.f32 %v6818, %v6876
  %v6915 = vadd.f32 %v6819, %v6879
  %v6916 = vadd.f32 %v6820, %v6882
  %v6917 = vadd.f32 %v6821, %v6885
  %v6918 = vadd.f32 %v6822, %v6888
  %v6919 = vadd.f32 %v6823, %v6891
  %v6920 = vadd.f32 %v6824, %v6894
  %v6921 = vadd.f32 %v6825, %v6897
  %v6922 = vadd.f32 %v6826, %v6900
  %v6923 = vadd.f32 %v6827, %v6903
  %v6924 = vadd.f32 %v6828, %v6906
  %v6925 = vadd.f32 %v6829, %v6909
  %v6926 = vmul.f32 %v6718, 0.001953125
  %v6927 = vmul.f32 %v6719, 0.001953125
  %v6928 = vmul.f32 %v6720, 0.001953125
  %v6929 = vmul.f32 %v6721, 0.001953125
  %v6930 = vmul.f32 %v6722, 0.001953125
  %v6931 = vmul.f32 %v6723, 0.001953125
  %v6932 = vmul.f32 %v6724, 0.001953125
  %v6933 = vmul.f32 %v6725, 0.001953125
  %v6934 = vmul.f32 %v6726, 0.001953125
  %v6935 = vmul.f32 %v6727, 0.001953125
  %v6936 = vmul.f32 %v6728, 0.001953125
  %v6937 = vmul.f32 %v6729, 0.001953125
  %v6938 = vmul.f32 %v6730, 0.001953125
  %v6939 = vmul.f32 %v6731, 0.001953125
  %v6940 = vmul.f32 %v6732, 0.001953125
  %v6941 = vmul.f32 %v6733, 0.001953125
  %v6942 = vmul.f32 %v6910, 0.001953125
  %v6943 = vmul.f32 %v6911, 0.001953125
  %v6944 = vmul.f32 %v6912, 0.001953125
  %v6945 = vmul.f32 %v6913, 0.001953125
  %v6946 = vmul.f32 %v6914, 0.001953125
  %v6947 = vmul.f32 %v6915, 0.001953125
  %v6948 = vmul.f32 %v6916, 0.001953125
  %v6949 = vmul.f32 %v6917, 0.001953125
  %v6950 = vmul.f32 %v6918, 0.001953125
  %v6951 = vmul.f32 %v6919, 0.001953125
  %v6952 = vmul.f32 %v6920, 0.001953125
  %v6953 = vmul.f32 %v6921, 0.001953125
  %v6954 = vmul.f32 %v6922, 0.001953125
  %v6955 = vmul.f32 %v6923, 0.001953125
  %v6956 = vmul.f32 %v6924, 0.001953125
  %v6957 = vmul.f32 %v6925, 0.001953125
  %v6958 = vmul.f32 %v6926, %v6926
  %v6959 = vmul.f32 %v6927, %v6927
  %v6960 = vmul.f32 %v6928, %v6928
  %v6961 = vmul.f32 %v6929, %v6929
  %v6962 = vmul.f32 %v6930, %v6930
  %v6963 = vmul.f32 %v6931, %v6931
  %v6964 = vmul.f32 %v6932, %v6932
  %v6965 = vmul.f32 %v6933, %v6933
  %v6966 = vmul.f32 %v6934, %v6934
  %v6967 = vmul.f32 %v6935, %v6935
  %v6968 = vmul.f32 %v6936, %v6936
  %v6969 = vmul.f32 %v6937, %v6937
  %v6970 = vmul.f32 %v6938, %v6938
  %v6971 = vmul.f32 %v6939, %v6939
  %v6972 = vmul.f32 %v6940, %v6940
  %v6973 = vmul.f32 %v6941, %v6941
  %v6974 = vsub.f32 %v6942, %v6958
  %v6975 = vsub.f32 %v6943, %v6959
  %v6976 = vsub.f32 %v6944, %v6960
  %v6977 = vsub.f32 %v6945, %v6961
  %v6978 = vsub.f32 %v6946, %v6962
  %v6979 = vsub.f32 %v6947, %v6963
  %v6980 = vsub.f32 %v6948, %v6964
  %v6981 = vsub.f32 %v6949, %v6965
  %v6982 = vsub.f32 %v6950, %v6966
  %v6983 = vsub.f32 %v6951, %v6967
  %v6984 = vsub.f32 %v6952, %v6968
  %v6985 = vsub.f32 %v6953, %v6969
  %v6986 = vsub.f32 %v6954, %v6970
  %v6987 = vsub.f32 %v6955, %v6971
  %v6988 = vsub.f32 %v6956, %v6972
  %v6989 = vsub.f32 %v6957, %v6973
  %v6990 = vmax.f32 %v6974, 0.0
  %v6991 = vmax.f32 %v6975, 0.0
  %v6992 = vmax.f32 %v6976, 0.0
  %v6993 = vmax.f32 %v6977, 0.0
  %v6994 = vmax.f32 %v6978, 0.0
  %v6995 = vmax.f32 %v6979, 0.0
  %v6996 = vmax.f32 %v6980, 0.0
  %v6997 = vmax.f32 %v6981, 0.0
  %v6998 = vmax.f32 %v6982, 0.0
  %v6999 = vmax.f32 %v6983, 0.0
  %v7000 = vmax.f32 %v6984, 0.0
  %v7001 = vmax.f32 %v6985, 0.0
  %v7002 = vmax.f32 %v6986, 0.0
  %v7003 = vmax.f32 %v6987, 0.0
  %v7004 = vmax.f32 %v6988, 0.0
  %v7005 = vmax.f32 %v6989, 0.0
  %v7006 = vadd.f32 %v6990, 1e-05
  %v7007 = vadd.f32 %v6991, 1e-05
  %v7008 = vadd.f32 %v6992, 1e-05
  %v7009 = vadd.f32 %v6993, 1e-05
  %v7010 = vadd.f32 %v6994, 1e-05
  %v7011 = vadd.f32 %v6995, 1e-05
  %v7012 = vadd.f32 %v6996, 1e-05
  %v7013 = vadd.f32 %v6997, 1e-05
  %v7014 = vadd.f32 %v6998, 1e-05
  %v7015 = vadd.f32 %v6999, 1e-05
  %v7016 = vadd.f32 %v7000, 1e-05
  %v7017 = vadd.f32 %v7001, 1e-05
  %v7018 = vadd.f32 %v7002, 1e-05
  %v7019 = vadd.f32 %v7003, 1e-05
  %v7020 = vadd.f32 %v7004, 1e-05
  %v7021 = vadd.f32 %v7005, 1e-05
  %v7022 = vrsqrt.pop %v7006
  %v7023 = vrsqrt.pop %v7007
  %v7024 = vrsqrt.pop %v7008
  %v7025 = vrsqrt.pop %v7009
  %v7026 = vrsqrt.pop %v7010
  %v7027 = vrsqrt.pop %v7011
  %v7028 = vrsqrt.pop %v7012
  %v7029 = vrsqrt.pop %v7013
  %v7030 = vrsqrt.pop %v7014
  %v7031 = vrsqrt.pop %v7015
  %v7032 = vrsqrt.pop %v7016
  %v7033 = vrsqrt.pop %v7017
  %v7034 = vrsqrt.pop %v7018
  %v7035 = vrsqrt.pop %v7019
  %v7036 = vrsqrt.pop %v7020
  %v7037 = vrsqrt.pop %v7021
  %v7038 = vld [vmem:[%s11] sm:$0xff]
  %v7039 = vld [vmem:[%s11 + $0x8] sm:$0xff]
  %v7040 = vld [vmem:[%s11 + $0x10] sm:$0xff]
  %v7041 = vld [vmem:[%s11 + $0x18] sm:$0xff]
  %v7042 = vld [vmem:[%s11 + $0x20] sm:$0xff]
  %v7043 = vld [vmem:[%s11 + $0x28] sm:$0xff]
  %v7044 = vld [vmem:[%s11 + $0x30] sm:$0xff]
  %v7045 = vld [vmem:[%s11 + $0x38] sm:$0xff]
  %v7046 = vld [vmem:[%s11 + $0x40] sm:$0xff]
  %v7047 = vld [vmem:[%s11 + $0x48] sm:$0xff]
  %v7048 = vld [vmem:[%s11 + $0x50] sm:$0xff]
  %v7049 = vld [vmem:[%s11 + $0x58] sm:$0xff]
  %v7050 = vld [vmem:[%s11 + $0x60] sm:$0xff]
  %v7051 = vld [vmem:[%s11 + $0x68] sm:$0xff]
  %v7052 = vld [vmem:[%s11 + $0x70] sm:$0xff]
  %v7053 = vld [vmem:[%s11 + $0x78] sm:$0xff]
  %v7054 = vmul.f32 %v7022, %v7038
  %v7055 = vmul.f32 %v7023, %v7039
  %v7056 = vmul.f32 %v7024, %v7040
  %v7057 = vmul.f32 %v7025, %v7041
  %v7058 = vmul.f32 %v7026, %v7042
  %v7059 = vmul.f32 %v7027, %v7043
  %v7060 = vmul.f32 %v7028, %v7044
  %v7061 = vmul.f32 %v7029, %v7045
  %v7062 = vmul.f32 %v7030, %v7046
  %v7063 = vmul.f32 %v7031, %v7047
  %v7064 = vmul.f32 %v7032, %v7048
  %v7065 = vmul.f32 %v7033, %v7049
  %v7066 = vmul.f32 %v7034, %v7050
  %v7067 = vmul.f32 %v7035, %v7051
  %v7068 = vmul.f32 %v7036, %v7052
  %v7069 = vmul.f32 %v7037, %v7053
  %v7070 = vld [vmem:[%s12] sm:$0xff]
  %v7071 = vld [vmem:[%s12 + $0x8] sm:$0xff]
  %v7072 = vld [vmem:[%s12 + $0x10] sm:$0xff]
  %v7073 = vld [vmem:[%s12 + $0x18] sm:$0xff]
  %v7074 = vld [vmem:[%s12 + $0x20] sm:$0xff]
  %v7075 = vld [vmem:[%s12 + $0x28] sm:$0xff]
  %v7076 = vld [vmem:[%s12 + $0x30] sm:$0xff]
  %v7077 = vld [vmem:[%s12 + $0x38] sm:$0xff]
  %v7078 = vld [vmem:[%s12 + $0x40] sm:$0xff]
  %v7079 = vld [vmem:[%s12 + $0x48] sm:$0xff]
  %v7080 = vld [vmem:[%s12 + $0x50] sm:$0xff]
  %v7081 = vld [vmem:[%s12 + $0x58] sm:$0xff]
  %v7082 = vld [vmem:[%s12 + $0x60] sm:$0xff]
  %v7083 = vld [vmem:[%s12 + $0x68] sm:$0xff]
  %v7084 = vld [vmem:[%s12 + $0x70] sm:$0xff]
  %v7085 = vld [vmem:[%s12 + $0x78] sm:$0xff]
  %v7086 = vmul.f32 %v6926, %v7054
  %v7087 = vmul.f32 %v6927, %v7055
  %v7088 = vmul.f32 %v6928, %v7056
  %v7089 = vmul.f32 %v6929, %v7057
  %v7090 = vmul.f32 %v6930, %v7058
  %v7091 = vmul.f32 %v6931, %v7059
  %v7092 = vmul.f32 %v6932, %v7060
  %v7093 = vmul.f32 %v6933, %v7061
  %v7094 = vmul.f32 %v6934, %v7062
  %v7095 = vmul.f32 %v6935, %v7063
  %v7096 = vmul.f32 %v6936, %v7064
  %v7097 = vmul.f32 %v6937, %v7065
  %v7098 = vmul.f32 %v6938, %v7066
  %v7099 = vmul.f32 %v6939, %v7067
  %v7100 = vmul.f32 %v6940, %v7068
  %v7101 = vmul.f32 %v6941, %v7069
  %v7102 = vsub.f32 %v7070, %v7086
  %v7103 = vsub.f32 %v7071, %v7087
  %v7104 = vsub.f32 %v7072, %v7088
  %v7105 = vsub.f32 %v7073, %v7089
  %v7106 = vsub.f32 %v7074, %v7090
  %v7107 = vsub.f32 %v7075, %v7091
  %v7108 = vsub.f32 %v7076, %v7092
  %v7109 = vsub.f32 %v7077, %v7093
  %v7110 = vsub.f32 %v7078, %v7094
  %v7111 = vsub.f32 %v7079, %v7095
  %v7112 = vsub.f32 %v7080, %v7096
  %v7113 = vsub.f32 %v7081, %v7097
  %v7114 = vsub.f32 %v7082, %v7098
  %v7115 = vsub.f32 %v7083, %v7099
  %v7116 = vsub.f32 %v7084, %v7100
  %v7117 = vsub.f32 %v7085, %v7101
  %7119 = vset.pattern.permute.xlu0 0
  %7120 = vperm.xlu0 %7119, %v7054
  %v7121 = vpop.permute.xlu0 %7120
  %7124 = vset.pattern.permute.xlu0 0
  %7125 = vperm.xlu0 %7124, %v7055
  %v7126 = vpop.permute.xlu0 %7125
  %7129 = vset.pattern.permute.xlu0 0
  %7130 = vperm.xlu0 %7129, %v7056
  %v7131 = vpop.permute.xlu0 %7130
  %7134 = vset.pattern.permute.xlu0 0
  %7135 = vperm.xlu0 %7134, %v7057
  %v7136 = vpop.permute.xlu0 %7135
  %7139 = vset.pattern.permute.xlu0 0
  %7140 = vperm.xlu0 %7139, %v7058
  %v7141 = vpop.permute.xlu0 %7140
  %7144 = vset.pattern.permute.xlu0 0
  %7145 = vperm.xlu0 %7144, %v7059
  %v7146 = vpop.permute.xlu0 %7145
  %7149 = vset.pattern.permute.xlu0 0
  %7150 = vperm.xlu0 %7149, %v7060
  %v7151 = vpop.permute.xlu0 %7150
  %7154 = vset.pattern.permute.xlu0 0
  %7155 = vperm.xlu0 %7154, %v7061
  %v7156 = vpop.permute.xlu0 %7155
  %7159 = vset.pattern.permute.xlu0 0
  %7160 = vperm.xlu0 %7159, %v7062
  %v7161 = vpop.permute.xlu0 %7160
  %7164 = vset.pattern.permute.xlu0 0
  %7165 = vperm.xlu0 %7164, %v7063
  %v7166 = vpop.permute.xlu0 %7165
  %7169 = vset.pattern.permute.xlu0 0
  %7170 = vperm.xlu0 %7169, %v7064
  %v7171 = vpop.permute.xlu0 %7170
  %7174 = vset.pattern.permute.xlu0 0
  %7175 = vperm.xlu0 %7174, %v7065
  %v7176 = vpop.permute.xlu0 %7175
  %7179 = vset.pattern.permute.xlu0 0
  %7180 = vperm.xlu0 %7179, %v7066
  %v7181 = vpop.permute.xlu0 %7180
  %7184 = vset.pattern.permute.xlu0 0
  %7185 = vperm.xlu0 %7184, %v7067
  %v7186 = vpop.permute.xlu0 %7185
  %7189 = vset.pattern.permute.xlu0 0
  %7190 = vperm.xlu0 %7189, %v7068
  %v7191 = vpop.permute.xlu0 %7190
  %7194 = vset.pattern.permute.xlu0 0
  %7195 = vperm.xlu0 %7194, %v7069
  %v7196 = vpop.permute.xlu0 %7195
  %v7198 = vmul.f32 %v5867, %v7121
  %v7199 = vmul.f32 %v5868, %v7121
  %v7200 = vmul.f32 %v5869, %v7126
  %v7201 = vmul.f32 %v5870, %v7126
  %v7202 = vmul.f32 %v5871, %v7131
  %v7203 = vmul.f32 %v5872, %v7131
  %v7204 = vmul.f32 %v5873, %v7136
  %v7205 = vmul.f32 %v5874, %v7136
  %v7206 = vmul.f32 %v5875, %v7141
  %v7207 = vmul.f32 %v5876, %v7141
  %v7208 = vmul.f32 %v5877, %v7146
  %v7209 = vmul.f32 %v5878, %v7146
  %v7210 = vmul.f32 %v5879, %v7151
  %v7211 = vmul.f32 %v5880, %v7151
  %v7212 = vmul.f32 %v5881, %v7156
  %v7213 = vmul.f32 %v5882, %v7156
  %v7214 = vmul.f32 %v5883, %v7161
  %v7215 = vmul.f32 %v5884, %v7161
  %v7216 = vmul.f32 %v5885, %v7166
  %v7217 = vmul.f32 %v5886, %v7166
  %v7218 = vmul.f32 %v5887, %v7171
  %v7219 = vmul.f32 %v5888, %v7171
  %v7220 = vmul.f32 %v5889, %v7176
  %v7221 = vmul.f32 %v5890, %v7176
  %v7222 = vmul.f32 %v5891, %v7181
  %v7223 = vmul.f32 %v5892, %v7181
  %v7224 = vmul.f32 %v5893, %v7186
  %v7225 = vmul.f32 %v5894, %v7186
  %v7226 = vmul.f32 %v5895, %v7191
  %v7227 = vmul.f32 %v5896, %v7191
  %v7228 = vmul.f32 %v5897, %v7196
  %v7229 = vmul.f32 %v5898, %v7196
  %7231 = vset.pattern.permute.xlu0 0
  %7232 = vperm.xlu0 %7231, %v7102
  %v7233 = vpop.permute.xlu0 %7232
  %7236 = vset.pattern.permute.xlu0 0
  %7237 = vperm.xlu0 %7236, %v7103
  %v7238 = vpop.permute.xlu0 %7237
  %7241 = vset.pattern.permute.xlu0 0
  %7242 = vperm.xlu0 %7241, %v7104
  %v7243 = vpop.permute.xlu0 %7242
  %7246 = vset.pattern.permute.xlu0 0
  %7247 = vperm.xlu0 %7246, %v7105
  %v7248 = vpop.permute.xlu0 %7247
  %7251 = vset.pattern.permute.xlu0 0
  %7252 = vperm.xlu0 %7251, %v7106
  %v7253 = vpop.permute.xlu0 %7252
  %7256 = vset.pattern.permute.xlu0 0
  %7257 = vperm.xlu0 %7256, %v7107
  %v7258 = vpop.permute.xlu0 %7257
  %7261 = vset.pattern.permute.xlu0 0
  %7262 = vperm.xlu0 %7261, %v7108
  %v7263 = vpop.permute.xlu0 %7262
  %7266 = vset.pattern.permute.xlu0 0
  %7267 = vperm.xlu0 %7266, %v7109
  %v7268 = vpop.permute.xlu0 %7267
  %7271 = vset.pattern.permute.xlu0 0
  %7272 = vperm.xlu0 %7271, %v7110
  %v7273 = vpop.permute.xlu0 %7272
  %7276 = vset.pattern.permute.xlu0 0
  %7277 = vperm.xlu0 %7276, %v7111
  %v7278 = vpop.permute.xlu0 %7277
  %7281 = vset.pattern.permute.xlu0 0
  %7282 = vperm.xlu0 %7281, %v7112
  %v7283 = vpop.permute.xlu0 %7282
  %7286 = vset.pattern.permute.xlu0 0
  %7287 = vperm.xlu0 %7286, %v7113
  %v7288 = vpop.permute.xlu0 %7287
  %7291 = vset.pattern.permute.xlu0 0
  %7292 = vperm.xlu0 %7291, %v7114
  %v7293 = vpop.permute.xlu0 %7292
  %7296 = vset.pattern.permute.xlu0 0
  %7297 = vperm.xlu0 %7296, %v7115
  %v7298 = vpop.permute.xlu0 %7297
  %7301 = vset.pattern.permute.xlu0 0
  %7302 = vperm.xlu0 %7301, %v7116
  %v7303 = vpop.permute.xlu0 %7302
  %7306 = vset.pattern.permute.xlu0 0
  %7307 = vperm.xlu0 %7306, %v7117
  %v7308 = vpop.permute.xlu0 %7307
  %v7310 = vadd.f32 %v7198, %v7233
  %v7311 = vadd.f32 %v7199, %v7233
  %v7312 = vadd.f32 %v7200, %v7238
  %v7313 = vadd.f32 %v7201, %v7238
  %v7314 = vadd.f32 %v7202, %v7243
  %v7315 = vadd.f32 %v7203, %v7243
  %v7316 = vadd.f32 %v7204, %v7248
  %v7317 = vadd.f32 %v7205, %v7248
  %v7318 = vadd.f32 %v7206, %v7253
  %v7319 = vadd.f32 %v7207, %v7253
  %v7320 = vadd.f32 %v7208, %v7258
  %v7321 = vadd.f32 %v7209, %v7258
  %v7322 = vadd.f32 %v7210, %v7263
  %v7323 = vadd.f32 %v7211, %v7263
  %v7324 = vadd.f32 %v7212, %v7268
  %v7325 = vadd.f32 %v7213, %v7268
  %v7326 = vadd.f32 %v7214, %v7273
  %v7327 = vadd.f32 %v7215, %v7273
  %v7328 = vadd.f32 %v7216, %v7278
  %v7329 = vadd.f32 %v7217, %v7278
  %v7330 = vadd.f32 %v7218, %v7283
  %v7331 = vadd.f32 %v7219, %v7283
  %v7332 = vadd.f32 %v7220, %v7288
  %v7333 = vadd.f32 %v7221, %v7288
  %v7334 = vadd.f32 %v7222, %v7293
  %v7335 = vadd.f32 %v7223, %v7293
  %v7336 = vadd.f32 %v7224, %v7298
  %v7337 = vadd.f32 %v7225, %v7298
  %v7338 = vadd.f32 %v7226, %v7303
  %v7339 = vadd.f32 %v7227, %v7303
  %v7340 = vadd.f32 %v7228, %v7308
  %v7341 = vadd.f32 %v7229, %v7308
  %v7342 = vmax.f32 %v7310, 0.0
  %v7343 = vmax.f32 %v7311, 0.0
  %v7344 = vmax.f32 %v7312, 0.0
  %v7345 = vmax.f32 %v7313, 0.0
  %v7346 = vmax.f32 %v7314, 0.0
  %v7347 = vmax.f32 %v7315, 0.0
  %v7348 = vmax.f32 %v7316, 0.0
  %v7349 = vmax.f32 %v7317, 0.0
  %v7350 = vmax.f32 %v7318, 0.0
  %v7351 = vmax.f32 %v7319, 0.0
  %v7352 = vmax.f32 %v7320, 0.0
  %v7353 = vmax.f32 %v7321, 0.0
  %v7354 = vmax.f32 %v7322, 0.0
  %v7355 = vmax.f32 %v7323, 0.0
  %v7356 = vmax.f32 %v7324, 0.0
  %v7357 = vmax.f32 %v7325, 0.0
  %v7358 = vmax.f32 %v7326, 0.0
  %v7359 = vmax.f32 %v7327, 0.0
  %v7360 = vmax.f32 %v7328, 0.0
  %v7361 = vmax.f32 %v7329, 0.0
  %v7362 = vmax.f32 %v7330, 0.0
  %v7363 = vmax.f32 %v7331, 0.0
  %v7364 = vmax.f32 %v7332, 0.0
  %v7365 = vmax.f32 %v7333, 0.0
  %v7366 = vmax.f32 %v7334, 0.0
  %v7367 = vmax.f32 %v7335, 0.0
  %v7368 = vmax.f32 %v7336, 0.0
  %v7369 = vmax.f32 %v7337, 0.0
  %v7370 = vmax.f32 %v7338, 0.0
  %v7371 = vmax.f32 %v7339, 0.0
  %v7372 = vmax.f32 %v7340, 0.0
  %v7373 = vmax.f32 %v7341, 0.0
  %v7374 = vmul.f32 %v6574, %v7121
  %v7375 = vmul.f32 %v6575, %v7121
  %v7376 = vmul.f32 %v6576, %v7126
  %v7377 = vmul.f32 %v6577, %v7126
  %v7378 = vmul.f32 %v6578, %v7131
  %v7379 = vmul.f32 %v6579, %v7131
  %v7380 = vmul.f32 %v6580, %v7136
  %v7381 = vmul.f32 %v6581, %v7136
  %v7382 = vmul.f32 %v6582, %v7141
  %v7383 = vmul.f32 %v6583, %v7141
  %v7384 = vmul.f32 %v6584, %v7146
  %v7385 = vmul.f32 %v6585, %v7146
  %v7386 = vmul.f32 %v6586, %v7151
  %v7387 = vmul.f32 %v6587, %v7151
  %v7388 = vmul.f32 %v6588, %v7156
  %v7389 = vmul.f32 %v6589, %v7156
  %v7390 = vmul.f32 %v6590, %v7161
  %v7391 = vmul.f32 %v6591, %v7161
  %v7392 = vmul.f32 %v6592, %v7166
  %v7393 = vmul.f32 %v6593, %v7166
  %v7394 = vmul.f32 %v6594, %v7171
  %v7395 = vmul.f32 %v6595, %v7171
  %v7396 = vmul.f32 %v6596, %v7176
  %v7397 = vmul.f32 %v6597, %v7176
  %v7398 = vmul.f32 %v6598, %v7181
  %v7399 = vmul.f32 %v6599, %v7181
  %v7400 = vmul.f32 %v6600, %v7186
  %v7401 = vmul.f32 %v6601, %v7186
  %v7402 = vmul.f32 %v6602, %v7191
  %v7403 = vmul.f32 %v6603, %v7191
  %v7404 = vmul.f32 %v6604, %v7196
  %v7405 = vmul.f32 %v6605, %v7196
  %v7406 = vadd.f32 %v7374, %v7233
  %v7407 = vadd.f32 %v7375, %v7233
  %v7408 = vadd.f32 %v7376, %v7238
  %v7409 = vadd.f32 %v7377, %v7238
  %v7410 = vadd.f32 %v7378, %v7243
  %v7411 = vadd.f32 %v7379, %v7243
  %v7412 = vadd.f32 %v7380, %v7248
  %v7413 = vadd.f32 %v7381, %v7248
  %v7414 = vadd.f32 %v7382, %v7253
  %v7415 = vadd.f32 %v7383, %v7253
  %v7416 = vadd.f32 %v7384, %v7258
  %v7417 = vadd.f32 %v7385, %v7258
  %v7418 = vadd.f32 %v7386, %v7263
  %v7419 = vadd.f32 %v7387, %v7263
  %v7420 = vadd.f32 %v7388, %v7268
  %v7421 = vadd.f32 %v7389, %v7268
  %v7422 = vadd.f32 %v7390, %v7273
  %v7423 = vadd.f32 %v7391, %v7273
  %v7424 = vadd.f32 %v7392, %v7278
  %v7425 = vadd.f32 %v7393, %v7278
  %v7426 = vadd.f32 %v7394, %v7283
  %v7427 = vadd.f32 %v7395, %v7283
  %v7428 = vadd.f32 %v7396, %v7288
  %v7429 = vadd.f32 %v7397, %v7288
  %v7430 = vadd.f32 %v7398, %v7293
  %v7431 = vadd.f32 %v7399, %v7293
  %v7432 = vadd.f32 %v7400, %v7298
  %v7433 = vadd.f32 %v7401, %v7298
  %v7434 = vadd.f32 %v7402, %v7303
  %v7435 = vadd.f32 %v7403, %v7303
  %v7436 = vadd.f32 %v7404, %v7308
  %v7437 = vadd.f32 %v7405, %v7308
  %v7438 = vmax.f32 %v7406, 0.0
  %v7439 = vmax.f32 %v7407, 0.0
  %v7440 = vmax.f32 %v7408, 0.0
  %v7441 = vmax.f32 %v7409, 0.0
  %v7442 = vmax.f32 %v7410, 0.0
  %v7443 = vmax.f32 %v7411, 0.0
  %v7444 = vmax.f32 %v7412, 0.0
  %v7445 = vmax.f32 %v7413, 0.0
  %v7446 = vmax.f32 %v7414, 0.0
  %v7447 = vmax.f32 %v7415, 0.0
  %v7448 = vmax.f32 %v7416, 0.0
  %v7449 = vmax.f32 %v7417, 0.0
  %v7450 = vmax.f32 %v7418, 0.0
  %v7451 = vmax.f32 %v7419, 0.0
  %v7452 = vmax.f32 %v7420, 0.0
  %v7453 = vmax.f32 %v7421, 0.0
  %v7454 = vmax.f32 %v7422, 0.0
  %v7455 = vmax.f32 %v7423, 0.0
  %v7456 = vmax.f32 %v7424, 0.0
  %v7457 = vmax.f32 %v7425, 0.0
  %v7458 = vmax.f32 %v7426, 0.0
  %v7459 = vmax.f32 %v7427, 0.0
  %v7460 = vmax.f32 %v7428, 0.0
  %v7461 = vmax.f32 %v7429, 0.0
  %v7462 = vmax.f32 %v7430, 0.0
  %v7463 = vmax.f32 %v7431, 0.0
  %v7464 = vmax.f32 %v7432, 0.0
  %v7465 = vmax.f32 %v7433, 0.0
  %v7466 = vmax.f32 %v7434, 0.0
  %v7467 = vmax.f32 %v7435, 0.0
  %v7468 = vmax.f32 %v7436, 0.0
  %v7469 = vmax.f32 %v7437, 0.0
  %v7470 = vld [vmem:[%s13] sm:$0xf]
  %v7471 = vld [vmem:[%s13 + $0x4] sm:$0xf]
  %v7472 = vld [vmem:[%s13 + $0x8] sm:$0xf]
  %v7473 = vld [vmem:[%s13 + $0xc] sm:$0xf]
  %v7474 = vld [vmem:[%s13 + $0x10] sm:$0xf]
  %v7475 = vld [vmem:[%s13 + $0x14] sm:$0xf]
  %v7476 = vld [vmem:[%s13 + $0x18] sm:$0xf]
  %v7477 = vld [vmem:[%s13 + $0x1c] sm:$0xf]
  %v7478 = vld [vmem:[%s14] sm:$0xff]
  %v7479 = vld [vmem:[%s14 + $0x8] sm:$0xff]
  %v7480 = vld [vmem:[%s14 + $0x10] sm:$0xff]
  %v7481 = vld [vmem:[%s14 + $0x18] sm:$0xff]
  %v7482 = vld [vmem:[%s14 + $0x20] sm:$0xff]
  %v7483 = vld [vmem:[%s14 + $0x28] sm:$0xff]
  %v7484 = vld [vmem:[%s14 + $0x30] sm:$0xff]
  %v7485 = vld [vmem:[%s14 + $0x38] sm:$0xff]
  %v7486 = vpack.c.bf16 %v7344, %v7342
  %v7487 = vpack.c.bf16 %v7345, %v7343
  %v7488 = vpack.c.bf16 %v7348, %v7346
  %v7489 = vpack.c.bf16 %v7349, %v7347
  %v7490 = vpack.c.bf16 %v7352, %v7350
  %v7491 = vpack.c.bf16 %v7353, %v7351
  %v7492 = vpack.c.bf16 %v7356, %v7354
  %v7493 = vpack.c.bf16 %v7357, %v7355
  %v7494 = vpack.c.bf16 %v7360, %v7358
  %v7495 = vpack.c.bf16 %v7361, %v7359
  %v7496 = vpack.c.bf16 %v7364, %v7362
  %v7497 = vpack.c.bf16 %v7365, %v7363
  %v7498 = vpack.c.bf16 %v7368, %v7366
  %v7499 = vpack.c.bf16 %v7369, %v7367
  %v7500 = vpack.c.bf16 %v7372, %v7370
  %v7501 = vpack.c.bf16 %v7373, %v7371
  %7503 = vset.pattern.permute.xlu0 0
  %7504 = vperm.xlu0 %7503, %v7478
  %v7505 = vpop.permute.xlu0 %7504
  %7508 = vset.pattern.permute.xlu0 0
  %7509 = vperm.xlu0 %7508, %v7479
  %v7510 = vpop.permute.xlu0 %7509
  %7513 = vset.pattern.permute.xlu0 0
  %7514 = vperm.xlu0 %7513, %v7480
  %v7515 = vpop.permute.xlu0 %7514
  %7518 = vset.pattern.permute.xlu0 0
  %7519 = vperm.xlu0 %7518, %v7481
  %v7520 = vpop.permute.xlu0 %7519
  %7523 = vset.pattern.permute.xlu0 0
  %7524 = vperm.xlu0 %7523, %v7482
  %v7525 = vpop.permute.xlu0 %7524
  %7528 = vset.pattern.permute.xlu0 0
  %7529 = vperm.xlu0 %7528, %v7483
  %v7530 = vpop.permute.xlu0 %7529
  %7533 = vset.pattern.permute.xlu0 0
  %7534 = vperm.xlu0 %7533, %v7484
  %v7535 = vpop.permute.xlu0 %7534
  %7538 = vset.pattern.permute.xlu0 0
  %7539 = vperm.xlu0 %7538, %v7485
  %v7540 = vpop.permute.xlu0 %7539
  %v7550 = vunpack.c.l.b16 %v7470
  %v7551 = vunpack.c.l.b16 %v7471
  %v7552 = vunpack.c.l.b16 %v7472
  %v7553 = vunpack.c.l.b16 %v7473
  %v7554 = vunpack.c.l.b16 %v7474
  %v7555 = vunpack.c.l.b16 %v7475
  %v7556 = vunpack.c.l.b16 %v7476
  %v7557 = vunpack.c.l.b16 %v7477
  %v7558 = vpack.c.b16 %v7551, %v7550
  %v7559 = vpack.c.b16 %v7553, %v7552
  %v7560 = vpack.c.b16 %v7555, %v7554
  %v7561 = vpack.c.b16 %v7557, %v7556
  %7566 = vmatprep.subr.bf16.mxu0 %v7501
  %7567 = vmatpush1.bf16.msra.mxu0 %v7500
  %7568 = vmatprep.subr.bf16.mxu0 %v7499
  %7569 = vmatpush1.bf16.msra.mxu0 %v7498
  %7570 = vmatprep.subr.bf16.mxu0 %v7497
  %7571 = vmatpush1.bf16.msra.mxu0 %v7496
  %7572 = vmatprep.subr.bf16.mxu0 %v7495
  %7573 = vmatpush1.bf16.msra.mxu0 %v7494
  %7574 = vmatprep.subr.bf16.mxu0 %v7493
  %7575 = vmatpush1.bf16.msra.mxu0 %v7492
  %7576 = vmatprep.subr.bf16.mxu0 %v7491
  %7577 = vmatpush1.bf16.msra.mxu0 %v7490
  %7578 = vmatprep.subr.bf16.mxu0 %v7489
  %7579 = vmatpush1.bf16.msra.mxu0 %v7488
  %7580 = vmatprep.subr.bf16.mxu0 %v7487
  %7581 = vmatpush1.bf16.msra.mxu0 %v7486
  %7582 = vmatprep.subr.bf16.mxu0 0
  %7583 = vmatpush2.bf16.msra.mxu0 0
  %7584 = vmatprep.subr.bf16.mxu0 0
  %7585 = vmatpush2.bf16.msra.mxu0 0
  %7586 = vmatprep.subr.bf16.mxu0 0
  %7587 = vmatpush2.bf16.msra.mxu0 0
  %7588 = vmatprep.subr.bf16.mxu0 0
  %7589 = vmatpush2.bf16.msra.mxu0 0
  %7590 = vmatprep.subr.bf16.mxu0 0
  %7591 = vmatpush2.bf16.msra.mxu0 0
  %7592 = vmatprep.subr.bf16.mxu0 0
  %7593 = vmatpush2.bf16.msra.mxu0 0
  %7594 = vmatprep.subr.bf16.mxu0 0
  %7595 = vmatpush2.bf16.msra.mxu0 0
  %7596 = vmatprep.subr.bf16.mxu0 0
  %7597 = vmatpush2.bf16.msra.mxu0 0
  %7598 = vmatprep.mubr.bf16.mxu0 0
  %7599 = vmatmul.mubr.bf16.gmra.mxu0 %v7558
  %v7600 = vpop.f32.mrf.mxu0
  %v7601 = vadd.f32 %v7505, %v7600
  %v7602 = vpop.f32.mrf.mxu0
  %v7603 = vadd.f32 %v7505, %v7602
  %v7604 = vpop.f32.mrf.mxu0
  %v7605 = vadd.f32 %v7510, %v7604
  %v7606 = vpop.f32.mrf.mxu0
  %v7607 = vadd.f32 %v7510, %v7606
  %7608 = vmatprep.mubr.bf16.mxu0 0
  %7609 = vmatmul.mubr.bf16.gmra.mxu0 %v7559
  %v7610 = vpop.f32.mrf.mxu0
  %v7611 = vadd.f32 %v7515, %v7610
  %v7612 = vpop.f32.mrf.mxu0
  %v7613 = vadd.f32 %v7515, %v7612
  %v7614 = vpop.f32.mrf.mxu0
  %v7615 = vadd.f32 %v7520, %v7614
  %v7616 = vpop.f32.mrf.mxu0
  %v7617 = vadd.f32 %v7520, %v7616
  %7618 = vmatprep.mubr.bf16.mxu0 0
  %7619 = vmatmul.mubr.bf16.gmra.mxu0 %v7560
  %v7620 = vpop.f32.mrf.mxu0
  %v7621 = vadd.f32 %v7525, %v7620
  %v7622 = vpop.f32.mrf.mxu0
  %v7623 = vadd.f32 %v7525, %v7622
  %v7624 = vpop.f32.mrf.mxu0
  %v7625 = vadd.f32 %v7530, %v7624
  %v7626 = vpop.f32.mrf.mxu0
  %v7627 = vadd.f32 %v7530, %v7626
  %7628 = vmatprep.mubr.bf16.mxu0 0
  %7629 = vmatmul.mubr.bf16.gmra.mxu0 %v7561
  %v7630 = vpop.f32.mrf.mxu0
  %v7631 = vadd.f32 %v7535, %v7630
  %v7632 = vpop.f32.mrf.mxu0
  %v7633 = vadd.f32 %v7535, %v7632
  %v7634 = vpop.f32.mrf.mxu0
  %v7635 = vadd.f32 %v7540, %v7634
  %v7636 = vpop.f32.mrf.mxu0
  %v7637 = vadd.f32 %v7540, %v7636
  %7638 = vdwg.mxu0
  %v7639 = vadd.f32 %v7601, %v7603
  %7640 = vadd.xlane.f32.xlu0 %v7639
  %v7641 = vpop.xlane.xlu0 %7640
  %v7642 = vadd.f32 %v7605, %v7607
  %7643 = vadd.xlane.f32.xlu0 %v7642
  %v7644 = vpop.xlane.xlu0 %7643
  %v7645 = vadd.f32 %v7611, %v7613
  %7646 = vadd.xlane.f32.xlu0 %v7645
  %v7647 = vpop.xlane.xlu0 %7646
  %v7648 = vadd.f32 %v7615, %v7617
  %7649 = vadd.xlane.f32.xlu0 %v7648
  %v7650 = vpop.xlane.xlu0 %7649
  %v7651 = vadd.f32 %v7621, %v7623
  %7652 = vadd.xlane.f32.xlu0 %v7651
  %v7653 = vpop.xlane.xlu0 %7652
  %v7654 = vadd.f32 %v7625, %v7627
  %7655 = vadd.xlane.f32.xlu0 %v7654
  %v7656 = vpop.xlane.xlu0 %7655
  %v7657 = vadd.f32 %v7631, %v7633
  %7658 = vadd.xlane.f32.xlu0 %v7657
  %v7659 = vpop.xlane.xlu0 %7658
  %v7660 = vadd.f32 %v7635, %v7637
  %7661 = vadd.xlane.f32.xlu0 %v7660
  %v7662 = vpop.xlane.xlu0 %7661
  %v7663 = vmul.f32 %v7641, 0.00390625
  %v7664 = vmul.f32 %v7644, 0.00390625
  %v7665 = vmul.f32 %v7647, 0.00390625
  %v7666 = vmul.f32 %v7650, 0.00390625
  %v7667 = vmul.f32 %v7653, 0.00390625
  %v7668 = vmul.f32 %v7656, 0.00390625
  %v7669 = vmul.f32 %v7659, 0.00390625
  %v7670 = vmul.f32 %v7662, 0.00390625
  %v7671 = vmul.f32 %v7601, %v7601
  %v7672 = vmul.f32 %v7603, %v7603
  %v7673 = vmul.f32 %v7605, %v7605
  %v7674 = vmul.f32 %v7607, %v7607
  %v7675 = vmul.f32 %v7611, %v7611
  %v7676 = vmul.f32 %v7613, %v7613
  %v7677 = vmul.f32 %v7615, %v7615
  %v7678 = vmul.f32 %v7617, %v7617
  %v7679 = vmul.f32 %v7621, %v7621
  %v7680 = vmul.f32 %v7623, %v7623
  %v7681 = vmul.f32 %v7625, %v7625
  %v7682 = vmul.f32 %v7627, %v7627
  %v7683 = vmul.f32 %v7631, %v7631
  %v7684 = vmul.f32 %v7633, %v7633
  %v7685 = vmul.f32 %v7635, %v7635
  %v7686 = vmul.f32 %v7637, %v7637
  %v7687 = vadd.f32 %v7671, %v7672
  %7688 = vadd.xlane.f32.xlu0 %v7687
  %v7689 = vpop.xlane.xlu0 %7688
  %v7690 = vadd.f32 %v7673, %v7674
  %7691 = vadd.xlane.f32.xlu0 %v7690
  %v7692 = vpop.xlane.xlu0 %7691
  %v7693 = vadd.f32 %v7675, %v7676
  %7694 = vadd.xlane.f32.xlu0 %v7693
  %v7695 = vpop.xlane.xlu0 %7694
  %v7696 = vadd.f32 %v7677, %v7678
  %7697 = vadd.xlane.f32.xlu0 %v7696
  %v7698 = vpop.xlane.xlu0 %7697
  %v7699 = vadd.f32 %v7679, %v7680
  %7700 = vadd.xlane.f32.xlu0 %v7699
  %v7701 = vpop.xlane.xlu0 %7700
  %v7702 = vadd.f32 %v7681, %v7682
  %7703 = vadd.xlane.f32.xlu0 %v7702
  %v7704 = vpop.xlane.xlu0 %7703
  %v7705 = vadd.f32 %v7683, %v7684
  %7706 = vadd.xlane.f32.xlu0 %v7705
  %v7707 = vpop.xlane.xlu0 %7706
  %v7708 = vadd.f32 %v7685, %v7686
  %7709 = vadd.xlane.f32.xlu0 %v7708
  %v7710 = vpop.xlane.xlu0 %7709
  %v7711 = vmul.f32 %v7689, 0.00390625
  %v7712 = vmul.f32 %v7692, 0.00390625
  %v7713 = vmul.f32 %v7695, 0.00390625
  %v7714 = vmul.f32 %v7698, 0.00390625
  %v7715 = vmul.f32 %v7701, 0.00390625
  %v7716 = vmul.f32 %v7704, 0.00390625
  %v7717 = vmul.f32 %v7707, 0.00390625
  %v7718 = vmul.f32 %v7710, 0.00390625
  %v7719 = vmul.f32 %v7663, %v7663
  %v7720 = vmul.f32 %v7664, %v7664
  %v7721 = vmul.f32 %v7665, %v7665
  %v7722 = vmul.f32 %v7666, %v7666
  %v7723 = vmul.f32 %v7667, %v7667
  %v7724 = vmul.f32 %v7668, %v7668
  %v7725 = vmul.f32 %v7669, %v7669
  %v7726 = vmul.f32 %v7670, %v7670
  %v7727 = vsub.f32 %v7711, %v7719
  %v7728 = vsub.f32 %v7712, %v7720
  %v7729 = vsub.f32 %v7713, %v7721
  %v7730 = vsub.f32 %v7714, %v7722
  %v7731 = vsub.f32 %v7715, %v7723
  %v7732 = vsub.f32 %v7716, %v7724
  %v7733 = vsub.f32 %v7717, %v7725
  %v7734 = vsub.f32 %v7718, %v7726
  %v7735 = vmax.f32 %v7727, 0.0
  %v7736 = vmax.f32 %v7728, 0.0
  %v7737 = vmax.f32 %v7729, 0.0
  %v7738 = vmax.f32 %v7730, 0.0
  %v7739 = vmax.f32 %v7731, 0.0
  %v7740 = vmax.f32 %v7732, 0.0
  %v7741 = vmax.f32 %v7733, 0.0
  %v7742 = vmax.f32 %v7734, 0.0
  %v7743 = vsub.f32 %v7601, %v7663
  %v7744 = vsub.f32 %v7603, %v7663
  %v7745 = vsub.f32 %v7605, %v7664
  %v7746 = vsub.f32 %v7607, %v7664
  %v7747 = vsub.f32 %v7611, %v7665
  %v7748 = vsub.f32 %v7613, %v7665
  %v7749 = vsub.f32 %v7615, %v7666
  %v7750 = vsub.f32 %v7617, %v7666
  %v7751 = vsub.f32 %v7621, %v7667
  %v7752 = vsub.f32 %v7623, %v7667
  %v7753 = vsub.f32 %v7625, %v7668
  %v7754 = vsub.f32 %v7627, %v7668
  %v7755 = vsub.f32 %v7631, %v7669
  %v7756 = vsub.f32 %v7633, %v7669
  %v7757 = vsub.f32 %v7635, %v7670
  %v7758 = vsub.f32 %v7637, %v7670
  %v7759 = vadd.f32 %v7735, 1e-05
  %v7760 = vadd.f32 %v7736, 1e-05
  %v7761 = vadd.f32 %v7737, 1e-05
  %v7762 = vadd.f32 %v7738, 1e-05
  %v7763 = vadd.f32 %v7739, 1e-05
  %v7764 = vadd.f32 %v7740, 1e-05
  %v7765 = vadd.f32 %v7741, 1e-05
  %v7766 = vadd.f32 %v7742, 1e-05
  %v7767 = vrsqrt.pop %v7759
  %v7768 = vrsqrt.pop %v7760
  %v7769 = vrsqrt.pop %v7761
  %v7770 = vrsqrt.pop %v7762
  %v7771 = vrsqrt.pop %v7763
  %v7772 = vrsqrt.pop %v7764
  %v7773 = vrsqrt.pop %v7765
  %v7774 = vrsqrt.pop %v7766
  %v7775 = vmul.f32 %v7743, %v7767
  %v7776 = vmul.f32 %v7744, %v7767
  %v7777 = vmul.f32 %v7745, %v7768
  %v7778 = vmul.f32 %v7746, %v7768
  %v7779 = vmul.f32 %v7747, %v7769
  %v7780 = vmul.f32 %v7748, %v7769
  %v7781 = vmul.f32 %v7749, %v7770
  %v7782 = vmul.f32 %v7750, %v7770
  %v7783 = vmul.f32 %v7751, %v7771
  %v7784 = vmul.f32 %v7752, %v7771
  %v7785 = vmul.f32 %v7753, %v7772
  %v7786 = vmul.f32 %v7754, %v7772
  %v7787 = vmul.f32 %v7755, %v7773
  %v7788 = vmul.f32 %v7756, %v7773
  %v7789 = vmul.f32 %v7757, %v7774
  %v7790 = vmul.f32 %v7758, %v7774
  %v7791 = vld [vmem:[%s16] sm:$0xff]
  %v7792 = vld [vmem:[%s16 + $0x8] sm:$0xff]
  %v7793 = vld [vmem:[%s16 + $0x10] sm:$0xff]
  %v7794 = vld [vmem:[%s16 + $0x18] sm:$0xff]
  %v7795 = vld [vmem:[%s16 + $0x20] sm:$0xff]
  %v7796 = vld [vmem:[%s16 + $0x28] sm:$0xff]
  %v7797 = vld [vmem:[%s16 + $0x30] sm:$0xff]
  %v7798 = vld [vmem:[%s16 + $0x38] sm:$0xff]
  %7800 = vset.pattern.permute.xlu0 0
  %7801 = vperm.xlu0 %7800, %v7791
  %v7802 = vpop.permute.xlu0 %7801
  %7805 = vset.pattern.permute.xlu0 0
  %7806 = vperm.xlu0 %7805, %v7792
  %v7807 = vpop.permute.xlu0 %7806
  %7810 = vset.pattern.permute.xlu0 0
  %7811 = vperm.xlu0 %7810, %v7793
  %v7812 = vpop.permute.xlu0 %7811
  %7815 = vset.pattern.permute.xlu0 0
  %7816 = vperm.xlu0 %7815, %v7794
  %v7817 = vpop.permute.xlu0 %7816
  %7820 = vset.pattern.permute.xlu0 0
  %7821 = vperm.xlu0 %7820, %v7795
  %v7822 = vpop.permute.xlu0 %7821
  %7825 = vset.pattern.permute.xlu0 0
  %7826 = vperm.xlu0 %7825, %v7796
  %v7827 = vpop.permute.xlu0 %7826
  %7830 = vset.pattern.permute.xlu0 0
  %7831 = vperm.xlu0 %7830, %v7797
  %v7832 = vpop.permute.xlu0 %7831
  %7835 = vset.pattern.permute.xlu0 0
  %7836 = vperm.xlu0 %7835, %v7798
  %v7837 = vpop.permute.xlu0 %7836
  %v7839 = vmul.f32 %v7775, %v7802
  %v7840 = vmul.f32 %v7776, %v7802
  %v7841 = vmul.f32 %v7777, %v7807
  %v7842 = vmul.f32 %v7778, %v7807
  %v7843 = vmul.f32 %v7779, %v7812
  %v7844 = vmul.f32 %v7780, %v7812
  %v7845 = vmul.f32 %v7781, %v7817
  %v7846 = vmul.f32 %v7782, %v7817
  %v7847 = vmul.f32 %v7783, %v7822
  %v7848 = vmul.f32 %v7784, %v7822
  %v7849 = vmul.f32 %v7785, %v7827
  %v7850 = vmul.f32 %v7786, %v7827
  %v7851 = vmul.f32 %v7787, %v7832
  %v7852 = vmul.f32 %v7788, %v7832
  %v7853 = vmul.f32 %v7789, %v7837
  %v7854 = vmul.f32 %v7790, %v7837
  %v7855 = vld [vmem:[%s15] sm:$0xff]
  %v7856 = vld [vmem:[%s15 + $0x8] sm:$0xff]
  %v7857 = vld [vmem:[%s15 + $0x10] sm:$0xff]
  %v7858 = vld [vmem:[%s15 + $0x18] sm:$0xff]
  %v7859 = vld [vmem:[%s15 + $0x20] sm:$0xff]
  %v7860 = vld [vmem:[%s15 + $0x28] sm:$0xff]
  %v7861 = vld [vmem:[%s15 + $0x30] sm:$0xff]
  %v7862 = vld [vmem:[%s15 + $0x38] sm:$0xff]
  %7864 = vset.pattern.permute.xlu0 0
  %7865 = vperm.xlu0 %7864, %v7855
  %v7866 = vpop.permute.xlu0 %7865
  %7869 = vset.pattern.permute.xlu0 0
  %7870 = vperm.xlu0 %7869, %v7856
  %v7871 = vpop.permute.xlu0 %7870
  %7874 = vset.pattern.permute.xlu0 0
  %7875 = vperm.xlu0 %7874, %v7857
  %v7876 = vpop.permute.xlu0 %7875
  %7879 = vset.pattern.permute.xlu0 0
  %7880 = vperm.xlu0 %7879, %v7858
  %v7881 = vpop.permute.xlu0 %7880
  %7884 = vset.pattern.permute.xlu0 0
  %7885 = vperm.xlu0 %7884, %v7859
  %v7886 = vpop.permute.xlu0 %7885
  %7889 = vset.pattern.permute.xlu0 0
  %7890 = vperm.xlu0 %7889, %v7860
  %v7891 = vpop.permute.xlu0 %7890
  %7894 = vset.pattern.permute.xlu0 0
  %7895 = vperm.xlu0 %7894, %v7861
  %v7896 = vpop.permute.xlu0 %7895
  %7899 = vset.pattern.permute.xlu0 0
  %7900 = vperm.xlu0 %7899, %v7862
  %v7901 = vpop.permute.xlu0 %7900
  %v7903 = vadd.f32 %v7839, %v7866
  %v7904 = vadd.f32 %v7840, %v7866
  %v7905 = vadd.f32 %v7841, %v7871
  %v7906 = vadd.f32 %v7842, %v7871
  %v7907 = vadd.f32 %v7843, %v7876
  %v7908 = vadd.f32 %v7844, %v7876
  %v7909 = vadd.f32 %v7845, %v7881
  %v7910 = vadd.f32 %v7846, %v7881
  %v7911 = vadd.f32 %v7847, %v7886
  %v7912 = vadd.f32 %v7848, %v7886
  %v7913 = vadd.f32 %v7849, %v7891
  %v7914 = vadd.f32 %v7850, %v7891
  %v7915 = vadd.f32 %v7851, %v7896
  %v7916 = vadd.f32 %v7852, %v7896
  %v7917 = vadd.f32 %v7853, %v7901
  %v7918 = vadd.f32 %v7854, %v7901
  %v7919 = vpack.c.bf16 %v7440, %v7438
  %v7920 = vpack.c.bf16 %v7441, %v7439
  %v7921 = vpack.c.bf16 %v7444, %v7442
  %v7922 = vpack.c.bf16 %v7445, %v7443
  %v7923 = vpack.c.bf16 %v7448, %v7446
  %v7924 = vpack.c.bf16 %v7449, %v7447
  %v7925 = vpack.c.bf16 %v7452, %v7450
  %v7926 = vpack.c.bf16 %v7453, %v7451
  %v7927 = vpack.c.bf16 %v7456, %v7454
  %v7928 = vpack.c.bf16 %v7457, %v7455
  %v7929 = vpack.c.bf16 %v7460, %v7458
  %v7930 = vpack.c.bf16 %v7461, %v7459
  %v7931 = vpack.c.bf16 %v7464, %v7462
  %v7932 = vpack.c.bf16 %v7465, %v7463
  %v7933 = vpack.c.bf16 %v7468, %v7466
  %v7934 = vpack.c.bf16 %v7469, %v7467
  %7935 = vmatprep.subr.bf16.mxu0 %v7934
  %7936 = vmatpush1.bf16.msra.mxu0 %v7933
  %7937 = vmatprep.subr.bf16.mxu0 %v7932
  %7938 = vmatpush1.bf16.msra.mxu0 %v7931
  %7939 = vmatprep.subr.bf16.mxu0 %v7930
  %7940 = vmatpush1.bf16.msra.mxu0 %v7929
  %7941 = vmatprep.subr.bf16.mxu0 %v7928
  %7942 = vmatpush1.bf16.msra.mxu0 %v7927
  %7943 = vmatprep.subr.bf16.mxu0 %v7926
  %7944 = vmatpush1.bf16.msra.mxu0 %v7925
  %7945 = vmatprep.subr.bf16.mxu0 %v7924
  %7946 = vmatpush1.bf16.msra.mxu0 %v7923
  %7947 = vmatprep.subr.bf16.mxu0 %v7922
  %7948 = vmatpush1.bf16.msra.mxu0 %v7921
  %7949 = vmatprep.subr.bf16.mxu0 %v7920
  %7950 = vmatpush1.bf16.msra.mxu0 %v7919
  %7951 = vmatprep.subr.bf16.mxu0 0
  %7952 = vmatpush2.bf16.msra.mxu0 0
  %7953 = vmatprep.subr.bf16.mxu0 0
  %7954 = vmatpush2.bf16.msra.mxu0 0
  %7955 = vmatprep.subr.bf16.mxu0 0
  %7956 = vmatpush2.bf16.msra.mxu0 0
  %7957 = vmatprep.subr.bf16.mxu0 0
  %7958 = vmatpush2.bf16.msra.mxu0 0
  %7959 = vmatprep.subr.bf16.mxu0 0
  %7960 = vmatpush2.bf16.msra.mxu0 0
  %7961 = vmatprep.subr.bf16.mxu0 0
  %7962 = vmatpush2.bf16.msra.mxu0 0
  %7963 = vmatprep.subr.bf16.mxu0 0
  %7964 = vmatpush2.bf16.msra.mxu0 0
  %7965 = vmatprep.subr.bf16.mxu0 0
  %7966 = vmatpush2.bf16.msra.mxu0 0
  %7967 = vmatprep.mubr.bf16.mxu0 0
  %7968 = vmatmul.mubr.bf16.gmra.mxu0 %v7558
  %v7969 = vpop.f32.mrf.mxu0
  %v7970 = vadd.f32 %v7505, %v7969
  %v7971 = vpop.f32.mrf.mxu0
  %v7972 = vadd.f32 %v7505, %v7971
  %v7973 = vpop.f32.mrf.mxu0
  %v7974 = vadd.f32 %v7510, %v7973
  %v7975 = vpop.f32.mrf.mxu0
  %v7976 = vadd.f32 %v7510, %v7975
  %7977 = vmatprep.mubr.bf16.mxu0 0
  %7978 = vmatmul.mubr.bf16.gmra.mxu0 %v7559
  %v7979 = vpop.f32.mrf.mxu0
  %v7980 = vadd.f32 %v7515, %v7979
  %v7981 = vpop.f32.mrf.mxu0
  %v7982 = vadd.f32 %v7515, %v7981
  %v7983 = vpop.f32.mrf.mxu0
  %v7984 = vadd.f32 %v7520, %v7983
  %v7985 = vpop.f32.mrf.mxu0
  %v7986 = vadd.f32 %v7520, %v7985
  %7987 = vmatprep.mubr.bf16.mxu0 0
  %7988 = vmatmul.mubr.bf16.gmra.mxu0 %v7560
  %v7989 = vpop.f32.mrf.mxu0
  %v7990 = vadd.f32 %v7525, %v7989
  %v7991 = vpop.f32.mrf.mxu0
  %v7992 = vadd.f32 %v7525, %v7991
  %v7993 = vpop.f32.mrf.mxu0
  %v7994 = vadd.f32 %v7530, %v7993
  %v7995 = vpop.f32.mrf.mxu0
  %v7996 = vadd.f32 %v7530, %v7995
  %7997 = vmatprep.mubr.bf16.mxu0 0
  %7998 = vmatmul.mubr.bf16.gmra.mxu0 %v7561
  %v7999 = vpop.f32.mrf.mxu0
  %v8000 = vadd.f32 %v7535, %v7999
  %v8001 = vpop.f32.mrf.mxu0
  %v8002 = vadd.f32 %v7535, %v8001
  %v8003 = vpop.f32.mrf.mxu0
  %v8004 = vadd.f32 %v7540, %v8003
  %v8005 = vpop.f32.mrf.mxu0
  %v8006 = vadd.f32 %v7540, %v8005
  %8007 = vdwg.mxu0
  %v8008 = vadd.f32 %v7970, %v7972
  %8009 = vadd.xlane.f32.xlu0 %v8008
  %v8010 = vpop.xlane.xlu0 %8009
  %v8011 = vadd.f32 %v7974, %v7976
  %8012 = vadd.xlane.f32.xlu0 %v8011
  %v8013 = vpop.xlane.xlu0 %8012
  %v8014 = vadd.f32 %v7980, %v7982
  %8015 = vadd.xlane.f32.xlu0 %v8014
  %v8016 = vpop.xlane.xlu0 %8015
  %v8017 = vadd.f32 %v7984, %v7986
  %8018 = vadd.xlane.f32.xlu0 %v8017
  %v8019 = vpop.xlane.xlu0 %8018
  %v8020 = vadd.f32 %v7990, %v7992
  %8021 = vadd.xlane.f32.xlu0 %v8020
  %v8022 = vpop.xlane.xlu0 %8021
  %v8023 = vadd.f32 %v7994, %v7996
  %8024 = vadd.xlane.f32.xlu0 %v8023
  %v8025 = vpop.xlane.xlu0 %8024
  %v8026 = vadd.f32 %v8000, %v8002
  %8027 = vadd.xlane.f32.xlu0 %v8026
  %v8028 = vpop.xlane.xlu0 %8027
  %v8029 = vadd.f32 %v8004, %v8006
  %8030 = vadd.xlane.f32.xlu0 %v8029
  %v8031 = vpop.xlane.xlu0 %8030
  %v8032 = vmul.f32 %v8010, 0.00390625
  %v8033 = vmul.f32 %v8013, 0.00390625
  %v8034 = vmul.f32 %v8016, 0.00390625
  %v8035 = vmul.f32 %v8019, 0.00390625
  %v8036 = vmul.f32 %v8022, 0.00390625
  %v8037 = vmul.f32 %v8025, 0.00390625
  %v8038 = vmul.f32 %v8028, 0.00390625
  %v8039 = vmul.f32 %v8031, 0.00390625
  %v8040 = vmul.f32 %v7970, %v7970
  %v8041 = vmul.f32 %v7972, %v7972
  %v8042 = vmul.f32 %v7974, %v7974
  %v8043 = vmul.f32 %v7976, %v7976
  %v8044 = vmul.f32 %v7980, %v7980
  %v8045 = vmul.f32 %v7982, %v7982
  %v8046 = vmul.f32 %v7984, %v7984
  %v8047 = vmul.f32 %v7986, %v7986
  %v8048 = vmul.f32 %v7990, %v7990
  %v8049 = vmul.f32 %v7992, %v7992
  %v8050 = vmul.f32 %v7994, %v7994
  %v8051 = vmul.f32 %v7996, %v7996
  %v8052 = vmul.f32 %v8000, %v8000
  %v8053 = vmul.f32 %v8002, %v8002
  %v8054 = vmul.f32 %v8004, %v8004
  %v8055 = vmul.f32 %v8006, %v8006
  %v8056 = vadd.f32 %v8040, %v8041
  %8057 = vadd.xlane.f32.xlu0 %v8056
  %v8058 = vpop.xlane.xlu0 %8057
  %v8059 = vadd.f32 %v8042, %v8043
  %8060 = vadd.xlane.f32.xlu0 %v8059
  %v8061 = vpop.xlane.xlu0 %8060
  %v8062 = vadd.f32 %v8044, %v8045
  %8063 = vadd.xlane.f32.xlu0 %v8062
  %v8064 = vpop.xlane.xlu0 %8063
  %v8065 = vadd.f32 %v8046, %v8047
  %8066 = vadd.xlane.f32.xlu0 %v8065
  %v8067 = vpop.xlane.xlu0 %8066
  %v8068 = vadd.f32 %v8048, %v8049
  %8069 = vadd.xlane.f32.xlu0 %v8068
  %v8070 = vpop.xlane.xlu0 %8069
  %v8071 = vadd.f32 %v8050, %v8051
  %8072 = vadd.xlane.f32.xlu0 %v8071
  %v8073 = vpop.xlane.xlu0 %8072
  %v8074 = vadd.f32 %v8052, %v8053
  %8075 = vadd.xlane.f32.xlu0 %v8074
  %v8076 = vpop.xlane.xlu0 %8075
  %v8077 = vadd.f32 %v8054, %v8055
  %8078 = vadd.xlane.f32.xlu0 %v8077
  %v8079 = vpop.xlane.xlu0 %8078
  %v8080 = vmul.f32 %v8058, 0.00390625
  %v8081 = vmul.f32 %v8061, 0.00390625
  %v8082 = vmul.f32 %v8064, 0.00390625
  %v8083 = vmul.f32 %v8067, 0.00390625
  %v8084 = vmul.f32 %v8070, 0.00390625
  %v8085 = vmul.f32 %v8073, 0.00390625
  %v8086 = vmul.f32 %v8076, 0.00390625
  %v8087 = vmul.f32 %v8079, 0.00390625
  %v8088 = vmul.f32 %v8032, %v8032
  %v8089 = vmul.f32 %v8033, %v8033
  %v8090 = vmul.f32 %v8034, %v8034
  %v8091 = vmul.f32 %v8035, %v8035
  %v8092 = vmul.f32 %v8036, %v8036
  %v8093 = vmul.f32 %v8037, %v8037
  %v8094 = vmul.f32 %v8038, %v8038
  %v8095 = vmul.f32 %v8039, %v8039
  %v8096 = vsub.f32 %v8080, %v8088
  %v8097 = vsub.f32 %v8081, %v8089
  %v8098 = vsub.f32 %v8082, %v8090
  %v8099 = vsub.f32 %v8083, %v8091
  %v8100 = vsub.f32 %v8084, %v8092
  %v8101 = vsub.f32 %v8085, %v8093
  %v8102 = vsub.f32 %v8086, %v8094
  %v8103 = vsub.f32 %v8087, %v8095
  %v8104 = vmax.f32 %v8096, 0.0
  %v8105 = vmax.f32 %v8097, 0.0
  %v8106 = vmax.f32 %v8098, 0.0
  %v8107 = vmax.f32 %v8099, 0.0
  %v8108 = vmax.f32 %v8100, 0.0
  %v8109 = vmax.f32 %v8101, 0.0
  %v8110 = vmax.f32 %v8102, 0.0
  %v8111 = vmax.f32 %v8103, 0.0
  %v8112 = vsub.f32 %v7970, %v8032
  %v8113 = vsub.f32 %v7972, %v8032
  %v8114 = vsub.f32 %v7974, %v8033
  %v8115 = vsub.f32 %v7976, %v8033
  %v8116 = vsub.f32 %v7980, %v8034
  %v8117 = vsub.f32 %v7982, %v8034
  %v8118 = vsub.f32 %v7984, %v8035
  %v8119 = vsub.f32 %v7986, %v8035
  %v8120 = vsub.f32 %v7990, %v8036
  %v8121 = vsub.f32 %v7992, %v8036
  %v8122 = vsub.f32 %v7994, %v8037
  %v8123 = vsub.f32 %v7996, %v8037
  %v8124 = vsub.f32 %v8000, %v8038
  %v8125 = vsub.f32 %v8002, %v8038
  %v8126 = vsub.f32 %v8004, %v8039
  %v8127 = vsub.f32 %v8006, %v8039
  %v8128 = vadd.f32 %v8104, 1e-05
  %v8129 = vadd.f32 %v8105, 1e-05
  %v8130 = vadd.f32 %v8106, 1e-05
  %v8131 = vadd.f32 %v8107, 1e-05
  %v8132 = vadd.f32 %v8108, 1e-05
  %v8133 = vadd.f32 %v8109, 1e-05
  %v8134 = vadd.f32 %v8110, 1e-05
  %v8135 = vadd.f32 %v8111, 1e-05
  %v8136 = vrsqrt.pop %v8128
  %v8137 = vrsqrt.pop %v8129
  %v8138 = vrsqrt.pop %v8130
  %v8139 = vrsqrt.pop %v8131
  %v8140 = vrsqrt.pop %v8132
  %v8141 = vrsqrt.pop %v8133
  %v8142 = vrsqrt.pop %v8134
  %v8143 = vrsqrt.pop %v8135
  %v8144 = vmul.f32 %v8112, %v8136
  %v8145 = vmul.f32 %v8113, %v8136
  %v8146 = vmul.f32 %v8114, %v8137
  %v8147 = vmul.f32 %v8115, %v8137
  %v8148 = vmul.f32 %v8116, %v8138
  %v8149 = vmul.f32 %v8117, %v8138
  %v8150 = vmul.f32 %v8118, %v8139
  %v8151 = vmul.f32 %v8119, %v8139
  %v8152 = vmul.f32 %v8120, %v8140
  %v8153 = vmul.f32 %v8121, %v8140
  %v8154 = vmul.f32 %v8122, %v8141
  %v8155 = vmul.f32 %v8123, %v8141
  %v8156 = vmul.f32 %v8124, %v8142
  %v8157 = vmul.f32 %v8125, %v8142
  %v8158 = vmul.f32 %v8126, %v8143
  %v8159 = vmul.f32 %v8127, %v8143
  %s8160 = scalar_lea.vmem %s16, 64
  %v8161 = vld [vmem:[%s8160] sm:$0xff]
  %v8162 = vld [vmem:[%s8160 + $0x8] sm:$0xff]
  %v8163 = vld [vmem:[%s8160 + $0x10] sm:$0xff]
  %v8164 = vld [vmem:[%s8160 + $0x18] sm:$0xff]
  %v8165 = vld [vmem:[%s8160 + $0x20] sm:$0xff]
  %v8166 = vld [vmem:[%s8160 + $0x28] sm:$0xff]
  %v8167 = vld [vmem:[%s8160 + $0x30] sm:$0xff]
  %v8168 = vld [vmem:[%s8160 + $0x38] sm:$0xff]
  %8170 = vset.pattern.permute.xlu0 0
  %8171 = vperm.xlu0 %8170, %v8161
  %v8172 = vpop.permute.xlu0 %8171
  %8175 = vset.pattern.permute.xlu0 0
  %8176 = vperm.xlu0 %8175, %v8162
  %v8177 = vpop.permute.xlu0 %8176
  %8180 = vset.pattern.permute.xlu0 0
  %8181 = vperm.xlu0 %8180, %v8163
  %v8182 = vpop.permute.xlu0 %8181
  %8185 = vset.pattern.permute.xlu0 0
  %8186 = vperm.xlu0 %8185, %v8164
  %v8187 = vpop.permute.xlu0 %8186
  %8190 = vset.pattern.permute.xlu0 0
  %8191 = vperm.xlu0 %8190, %v8165
  %v8192 = vpop.permute.xlu0 %8191
  %8195 = vset.pattern.permute.xlu0 0
  %8196 = vperm.xlu0 %8195, %v8166
  %v8197 = vpop.permute.xlu0 %8196
  %8200 = vset.pattern.permute.xlu0 0
  %8201 = vperm.xlu0 %8200, %v8167
  %v8202 = vpop.permute.xlu0 %8201
  %8205 = vset.pattern.permute.xlu0 0
  %8206 = vperm.xlu0 %8205, %v8168
  %v8207 = vpop.permute.xlu0 %8206
  %v8209 = vmul.f32 %v8144, %v8172
  %v8210 = vmul.f32 %v8145, %v8172
  %v8211 = vmul.f32 %v8146, %v8177
  %v8212 = vmul.f32 %v8147, %v8177
  %v8213 = vmul.f32 %v8148, %v8182
  %v8214 = vmul.f32 %v8149, %v8182
  %v8215 = vmul.f32 %v8150, %v8187
  %v8216 = vmul.f32 %v8151, %v8187
  %v8217 = vmul.f32 %v8152, %v8192
  %v8218 = vmul.f32 %v8153, %v8192
  %v8219 = vmul.f32 %v8154, %v8197
  %v8220 = vmul.f32 %v8155, %v8197
  %v8221 = vmul.f32 %v8156, %v8202
  %v8222 = vmul.f32 %v8157, %v8202
  %v8223 = vmul.f32 %v8158, %v8207
  %v8224 = vmul.f32 %v8159, %v8207
  %s8225 = scalar_lea.vmem %s15, 64
  %v8226 = vld [vmem:[%s8225] sm:$0xff]
  %v8227 = vld [vmem:[%s8225 + $0x8] sm:$0xff]
  %v8228 = vld [vmem:[%s8225 + $0x10] sm:$0xff]
  %v8229 = vld [vmem:[%s8225 + $0x18] sm:$0xff]
  %v8230 = vld [vmem:[%s8225 + $0x20] sm:$0xff]
  %v8231 = vld [vmem:[%s8225 + $0x28] sm:$0xff]
  %v8232 = vld [vmem:[%s8225 + $0x30] sm:$0xff]
  %v8233 = vld [vmem:[%s8225 + $0x38] sm:$0xff]
  %8235 = vset.pattern.permute.xlu0 0
  %8236 = vperm.xlu0 %8235, %v8226
  %v8237 = vpop.permute.xlu0 %8236
  %8240 = vset.pattern.permute.xlu0 0
  %8241 = vperm.xlu0 %8240, %v8227
  %v8242 = vpop.permute.xlu0 %8241
  %8245 = vset.pattern.permute.xlu0 0
  %8246 = vperm.xlu0 %8245, %v8228
  %v8247 = vpop.permute.xlu0 %8246
  %8250 = vset.pattern.permute.xlu0 0
  %8251 = vperm.xlu0 %8250, %v8229
  %v8252 = vpop.permute.xlu0 %8251
  %8255 = vset.pattern.permute.xlu0 0
  %8256 = vperm.xlu0 %8255, %v8230
  %v8257 = vpop.permute.xlu0 %8256
  %8260 = vset.pattern.permute.xlu0 0
  %8261 = vperm.xlu0 %8260, %v8231
  %v8262 = vpop.permute.xlu0 %8261
  %8265 = vset.pattern.permute.xlu0 0
  %8266 = vperm.xlu0 %8265, %v8232
  %v8267 = vpop.permute.xlu0 %8266
  %8270 = vset.pattern.permute.xlu0 0
  %8271 = vperm.xlu0 %8270, %v8233
  %v8272 = vpop.permute.xlu0 %8271
  %v8274 = vadd.f32 %v8209, %v8237
  %v8275 = vadd.f32 %v8210, %v8237
  %v8276 = vadd.f32 %v8211, %v8242
  %v8277 = vadd.f32 %v8212, %v8242
  %v8278 = vadd.f32 %v8213, %v8247
  %v8279 = vadd.f32 %v8214, %v8247
  %v8280 = vadd.f32 %v8215, %v8252
  %v8281 = vadd.f32 %v8216, %v8252
  %v8282 = vadd.f32 %v8217, %v8257
  %v8283 = vadd.f32 %v8218, %v8257
  %v8284 = vadd.f32 %v8219, %v8262
  %v8285 = vadd.f32 %v8220, %v8262
  %v8286 = vadd.f32 %v8221, %v8267
  %v8287 = vadd.f32 %v8222, %v8267
  %v8288 = vadd.f32 %v8223, %v8272
  %v8289 = vadd.f32 %v8224, %v8272
  %v8290 = vadd.f32 %v7903, %v7904
  %8291 = vadd.xlane.f32.xlu0 %v8290
  %v8292 = vpop.xlane.xlu0 %8291
  %v8293 = vadd.f32 %v7905, %v7906
  %8294 = vadd.xlane.f32.xlu0 %v8293
  %v8295 = vpop.xlane.xlu0 %8294
  %v8296 = vadd.f32 %v7907, %v7908
  %8297 = vadd.xlane.f32.xlu0 %v8296
  %v8298 = vpop.xlane.xlu0 %8297
  %v8299 = vadd.f32 %v7909, %v7910
  %8300 = vadd.xlane.f32.xlu0 %v8299
  %v8301 = vpop.xlane.xlu0 %8300
  %v8302 = vadd.f32 %v7911, %v7912
  %8303 = vadd.xlane.f32.xlu0 %v8302
  %v8304 = vpop.xlane.xlu0 %8303
  %v8305 = vadd.f32 %v7913, %v7914
  %8306 = vadd.xlane.f32.xlu0 %v8305
  %v8307 = vpop.xlane.xlu0 %8306
  %v8308 = vadd.f32 %v7915, %v7916
  %8309 = vadd.xlane.f32.xlu0 %v8308
  %v8310 = vpop.xlane.xlu0 %8309
  %v8311 = vadd.f32 %v7917, %v7918
  %8312 = vadd.xlane.f32.xlu0 %v8311
  %v8313 = vpop.xlane.xlu0 %8312
  %v8314 = vadd.f32 %v8292, 0.0
  %v8315 = vadd.f32 %v8295, 0.0
  %v8316 = vadd.f32 %v8298, 0.0
  %v8317 = vadd.f32 %v8301, 0.0
  %v8318 = vadd.f32 %v8304, 0.0
  %v8319 = vadd.f32 %v8307, 0.0
  %v8320 = vadd.f32 %v8310, 0.0
  %v8321 = vadd.f32 %v8313, 0.0
  %v8322 = vadd.f32 %v8274, %v8275
  %8323 = vadd.xlane.f32.xlu0 %v8322
  %v8324 = vpop.xlane.xlu0 %8323
  %v8325 = vadd.f32 %v8276, %v8277
  %8326 = vadd.xlane.f32.xlu0 %v8325
  %v8327 = vpop.xlane.xlu0 %8326
  %v8328 = vadd.f32 %v8278, %v8279
  %8329 = vadd.xlane.f32.xlu0 %v8328
  %v8330 = vpop.xlane.xlu0 %8329
  %v8331 = vadd.f32 %v8280, %v8281
  %8332 = vadd.xlane.f32.xlu0 %v8331
  %v8333 = vpop.xlane.xlu0 %8332
  %v8334 = vadd.f32 %v8282, %v8283
  %8335 = vadd.xlane.f32.xlu0 %v8334
  %v8336 = vpop.xlane.xlu0 %8335
  %v8337 = vadd.f32 %v8284, %v8285
  %8338 = vadd.xlane.f32.xlu0 %v8337
  %v8339 = vpop.xlane.xlu0 %8338
  %v8340 = vadd.f32 %v8286, %v8287
  %8341 = vadd.xlane.f32.xlu0 %v8340
  %v8342 = vpop.xlane.xlu0 %8341
  %v8343 = vadd.f32 %v8288, %v8289
  %8344 = vadd.xlane.f32.xlu0 %v8343
  %v8345 = vpop.xlane.xlu0 %8344
  %v8346 = vadd.f32 %v8314, %v8324
  %v8347 = vadd.f32 %v8315, %v8327
  %v8348 = vadd.f32 %v8316, %v8330
  %v8349 = vadd.f32 %v8317, %v8333
  %v8350 = vadd.f32 %v8318, %v8336
  %v8351 = vadd.f32 %v8319, %v8339
  %v8352 = vadd.f32 %v8320, %v8342
  %v8353 = vadd.f32 %v8321, %v8345
  %v8354 = vmul.f32 %v7903, %v7903
  %v8355 = vmul.f32 %v7904, %v7904
  %v8356 = vmul.f32 %v7905, %v7905
  %v8357 = vmul.f32 %v7906, %v7906
  %v8358 = vmul.f32 %v7907, %v7907
  %v8359 = vmul.f32 %v7908, %v7908
  %v8360 = vmul.f32 %v7909, %v7909
  %v8361 = vmul.f32 %v7910, %v7910
  %v8362 = vmul.f32 %v7911, %v7911
  %v8363 = vmul.f32 %v7912, %v7912
  %v8364 = vmul.f32 %v7913, %v7913
  %v8365 = vmul.f32 %v7914, %v7914
  %v8366 = vmul.f32 %v7915, %v7915
  %v8367 = vmul.f32 %v7916, %v7916
  %v8368 = vmul.f32 %v7917, %v7917
  %v8369 = vmul.f32 %v7918, %v7918
  %v8370 = vadd.f32 %v8354, %v8355
  %8371 = vadd.xlane.f32.xlu0 %v8370
  %v8372 = vpop.xlane.xlu0 %8371
  %v8373 = vadd.f32 %v8356, %v8357
  %8374 = vadd.xlane.f32.xlu0 %v8373
  %v8375 = vpop.xlane.xlu0 %8374
  %v8376 = vadd.f32 %v8358, %v8359
  %8377 = vadd.xlane.f32.xlu0 %v8376
  %v8378 = vpop.xlane.xlu0 %8377
  %v8379 = vadd.f32 %v8360, %v8361
  %8380 = vadd.xlane.f32.xlu0 %v8379
  %v8381 = vpop.xlane.xlu0 %8380
  %v8382 = vadd.f32 %v8362, %v8363
  %8383 = vadd.xlane.f32.xlu0 %v8382
  %v8384 = vpop.xlane.xlu0 %8383
  %v8385 = vadd.f32 %v8364, %v8365
  %8386 = vadd.xlane.f32.xlu0 %v8385
  %v8387 = vpop.xlane.xlu0 %8386
  %v8388 = vadd.f32 %v8366, %v8367
  %8389 = vadd.xlane.f32.xlu0 %v8388
  %v8390 = vpop.xlane.xlu0 %8389
  %v8391 = vadd.f32 %v8368, %v8369
  %8392 = vadd.xlane.f32.xlu0 %v8391
  %v8393 = vpop.xlane.xlu0 %8392
  %v8394 = vadd.f32 %v8372, 0.0
  %v8395 = vadd.f32 %v8375, 0.0
  %v8396 = vadd.f32 %v8378, 0.0
  %v8397 = vadd.f32 %v8381, 0.0
  %v8398 = vadd.f32 %v8384, 0.0
  %v8399 = vadd.f32 %v8387, 0.0
  %v8400 = vadd.f32 %v8390, 0.0
  %v8401 = vadd.f32 %v8393, 0.0
  %v8402 = vmul.f32 %v8274, %v8274
  %v8403 = vmul.f32 %v8275, %v8275
  %v8404 = vmul.f32 %v8276, %v8276
  %v8405 = vmul.f32 %v8277, %v8277
  %v8406 = vmul.f32 %v8278, %v8278
  %v8407 = vmul.f32 %v8279, %v8279
  %v8408 = vmul.f32 %v8280, %v8280
  %v8409 = vmul.f32 %v8281, %v8281
  %v8410 = vmul.f32 %v8282, %v8282
  %v8411 = vmul.f32 %v8283, %v8283
  %v8412 = vmul.f32 %v8284, %v8284
  %v8413 = vmul.f32 %v8285, %v8285
  %v8414 = vmul.f32 %v8286, %v8286
  %v8415 = vmul.f32 %v8287, %v8287
  %v8416 = vmul.f32 %v8288, %v8288
  %v8417 = vmul.f32 %v8289, %v8289
  %v8418 = vadd.f32 %v8402, %v8403
  %8419 = vadd.xlane.f32.xlu0 %v8418
  %v8420 = vpop.xlane.xlu0 %8419
  %v8421 = vadd.f32 %v8404, %v8405
  %8422 = vadd.xlane.f32.xlu0 %v8421
  %v8423 = vpop.xlane.xlu0 %8422
  %v8424 = vadd.f32 %v8406, %v8407
  %8425 = vadd.xlane.f32.xlu0 %v8424
  %v8426 = vpop.xlane.xlu0 %8425
  %v8427 = vadd.f32 %v8408, %v8409
  %8428 = vadd.xlane.f32.xlu0 %v8427
  %v8429 = vpop.xlane.xlu0 %8428
  %v8430 = vadd.f32 %v8410, %v8411
  %8431 = vadd.xlane.f32.xlu0 %v8430
  %v8432 = vpop.xlane.xlu0 %8431
  %v8433 = vadd.f32 %v8412, %v8413
  %8434 = vadd.xlane.f32.xlu0 %v8433
  %v8435 = vpop.xlane.xlu0 %8434
  %v8436 = vadd.f32 %v8414, %v8415
  %8437 = vadd.xlane.f32.xlu0 %v8436
  %v8438 = vpop.xlane.xlu0 %8437
  %v8439 = vadd.f32 %v8416, %v8417
  %8440 = vadd.xlane.f32.xlu0 %v8439
  %v8441 = vpop.xlane.xlu0 %8440
  %v8442 = vadd.f32 %v8394, %v8420
  %v8443 = vadd.f32 %v8395, %v8423
  %v8444 = vadd.f32 %v8396, %v8426
  %v8445 = vadd.f32 %v8397, %v8429
  %v8446 = vadd.f32 %v8398, %v8432
  %v8447 = vadd.f32 %v8399, %v8435
  %v8448 = vadd.f32 %v8400, %v8438
  %v8449 = vadd.f32 %v8401, %v8441
  %v8450 = vmul.f32 %v8346, 0.001953125
  %v8451 = vmul.f32 %v8347, 0.001953125
  %v8452 = vmul.f32 %v8348, 0.001953125
  %v8453 = vmul.f32 %v8349, 0.001953125
  %v8454 = vmul.f32 %v8350, 0.001953125
  %v8455 = vmul.f32 %v8351, 0.001953125
  %v8456 = vmul.f32 %v8352, 0.001953125
  %v8457 = vmul.f32 %v8353, 0.001953125
  %v8458 = vmul.f32 %v8442, 0.001953125
  %v8459 = vmul.f32 %v8443, 0.001953125
  %v8460 = vmul.f32 %v8444, 0.001953125
  %v8461 = vmul.f32 %v8445, 0.001953125
  %v8462 = vmul.f32 %v8446, 0.001953125
  %v8463 = vmul.f32 %v8447, 0.001953125
  %v8464 = vmul.f32 %v8448, 0.001953125
  %v8465 = vmul.f32 %v8449, 0.001953125
  %v8466 = vmul.f32 %v8450, %v8450
  %v8467 = vmul.f32 %v8451, %v8451
  %v8468 = vmul.f32 %v8452, %v8452
  %v8469 = vmul.f32 %v8453, %v8453
  %v8470 = vmul.f32 %v8454, %v8454
  %v8471 = vmul.f32 %v8455, %v8455
  %v8472 = vmul.f32 %v8456, %v8456
  %v8473 = vmul.f32 %v8457, %v8457
  %v8474 = vsub.f32 %v8458, %v8466
  %v8475 = vsub.f32 %v8459, %v8467
  %v8476 = vsub.f32 %v8460, %v8468
  %v8477 = vsub.f32 %v8461, %v8469
  %v8478 = vsub.f32 %v8462, %v8470
  %v8479 = vsub.f32 %v8463, %v8471
  %v8480 = vsub.f32 %v8464, %v8472
  %v8481 = vsub.f32 %v8465, %v8473
  %v8482 = vmax.f32 %v8474, 0.0
  %v8483 = vmax.f32 %v8475, 0.0
  %v8484 = vmax.f32 %v8476, 0.0
  %v8485 = vmax.f32 %v8477, 0.0
  %v8486 = vmax.f32 %v8478, 0.0
  %v8487 = vmax.f32 %v8479, 0.0
  %v8488 = vmax.f32 %v8480, 0.0
  %v8489 = vmax.f32 %v8481, 0.0
  %v8490 = vadd.f32 %v8482, 1e-05
  %v8491 = vadd.f32 %v8483, 1e-05
  %v8492 = vadd.f32 %v8484, 1e-05
  %v8493 = vadd.f32 %v8485, 1e-05
  %v8494 = vadd.f32 %v8486, 1e-05
  %v8495 = vadd.f32 %v8487, 1e-05
  %v8496 = vadd.f32 %v8488, 1e-05
  %v8497 = vadd.f32 %v8489, 1e-05
  %v8498 = vrsqrt.pop %v8490
  %v8499 = vrsqrt.pop %v8491
  %v8500 = vrsqrt.pop %v8492
  %v8501 = vrsqrt.pop %v8493
  %v8502 = vrsqrt.pop %v8494
  %v8503 = vrsqrt.pop %v8495
  %v8504 = vrsqrt.pop %v8496
  %v8505 = vrsqrt.pop %v8497
  %v8506 = vld [vmem:[%s17] sm:$0xff]
  %v8507 = vld [vmem:[%s17 + $0x8] sm:$0xff]
  %v8508 = vld [vmem:[%s17 + $0x10] sm:$0xff]
  %v8509 = vld [vmem:[%s17 + $0x18] sm:$0xff]
  %v8510 = vld [vmem:[%s17 + $0x20] sm:$0xff]
  %v8511 = vld [vmem:[%s17 + $0x28] sm:$0xff]
  %v8512 = vld [vmem:[%s17 + $0x30] sm:$0xff]
  %v8513 = vld [vmem:[%s17 + $0x38] sm:$0xff]
  %v8514 = vmul.f32 %v8498, %v8506
  %v8515 = vmul.f32 %v8499, %v8507
  %v8516 = vmul.f32 %v8500, %v8508
  %v8517 = vmul.f32 %v8501, %v8509
  %v8518 = vmul.f32 %v8502, %v8510
  %v8519 = vmul.f32 %v8503, %v8511
  %v8520 = vmul.f32 %v8504, %v8512
  %v8521 = vmul.f32 %v8505, %v8513
  %v8522 = vld [vmem:[%s18] sm:$0xff]
  %v8523 = vld [vmem:[%s18 + $0x8] sm:$0xff]
  %v8524 = vld [vmem:[%s18 + $0x10] sm:$0xff]
  %v8525 = vld [vmem:[%s18 + $0x18] sm:$0xff]
  %v8526 = vld [vmem:[%s18 + $0x20] sm:$0xff]
  %v8527 = vld [vmem:[%s18 + $0x28] sm:$0xff]
  %v8528 = vld [vmem:[%s18 + $0x30] sm:$0xff]
  %v8529 = vld [vmem:[%s18 + $0x38] sm:$0xff]
  %v8530 = vmul.f32 %v8450, %v8514
  %v8531 = vmul.f32 %v8451, %v8515
  %v8532 = vmul.f32 %v8452, %v8516
  %v8533 = vmul.f32 %v8453, %v8517
  %v8534 = vmul.f32 %v8454, %v8518
  %v8535 = vmul.f32 %v8455, %v8519
  %v8536 = vmul.f32 %v8456, %v8520
  %v8537 = vmul.f32 %v8457, %v8521
  %v8538 = vsub.f32 %v8522, %v8530
  %v8539 = vsub.f32 %v8523, %v8531
  %v8540 = vsub.f32 %v8524, %v8532
  %v8541 = vsub.f32 %v8525, %v8533
  %v8542 = vsub.f32 %v8526, %v8534
  %v8543 = vsub.f32 %v8527, %v8535
  %v8544 = vsub.f32 %v8528, %v8536
  %v8545 = vsub.f32 %v8529, %v8537
  %8547 = vset.pattern.permute.xlu0 0
  %8548 = vperm.xlu0 %8547, %v8514
  %v8549 = vpop.permute.xlu0 %8548
  %8552 = vset.pattern.permute.xlu0 0
  %8553 = vperm.xlu0 %8552, %v8515
  %v8554 = vpop.permute.xlu0 %8553
  %8557 = vset.pattern.permute.xlu0 0
  %8558 = vperm.xlu0 %8557, %v8516
  %v8559 = vpop.permute.xlu0 %8558
  %8562 = vset.pattern.permute.xlu0 0
  %8563 = vperm.xlu0 %8562, %v8517
  %v8564 = vpop.permute.xlu0 %8563
  %8567 = vset.pattern.permute.xlu0 0
  %8568 = vperm.xlu0 %8567, %v8518
  %v8569 = vpop.permute.xlu0 %8568
  %8572 = vset.pattern.permute.xlu0 0
  %8573 = vperm.xlu0 %8572, %v8519
  %v8574 = vpop.permute.xlu0 %8573
  %8577 = vset.pattern.permute.xlu0 0
  %8578 = vperm.xlu0 %8577, %v8520
  %v8579 = vpop.permute.xlu0 %8578
  %8582 = vset.pattern.permute.xlu0 0
  %8583 = vperm.xlu0 %8582, %v8521
  %v8584 = vpop.permute.xlu0 %8583
  %v8586 = vmul.f32 %v7903, %v8549
  %v8587 = vmul.f32 %v7904, %v8549
  %v8588 = vmul.f32 %v7905, %v8554
  %v8589 = vmul.f32 %v7906, %v8554
  %v8590 = vmul.f32 %v7907, %v8559
  %v8591 = vmul.f32 %v7908, %v8559
  %v8592 = vmul.f32 %v7909, %v8564
  %v8593 = vmul.f32 %v7910, %v8564
  %v8594 = vmul.f32 %v7911, %v8569
  %v8595 = vmul.f32 %v7912, %v8569
  %v8596 = vmul.f32 %v7913, %v8574
  %v8597 = vmul.f32 %v7914, %v8574
  %v8598 = vmul.f32 %v7915, %v8579
  %v8599 = vmul.f32 %v7916, %v8579
  %v8600 = vmul.f32 %v7917, %v8584
  %v8601 = vmul.f32 %v7918, %v8584
  %8603 = vset.pattern.permute.xlu0 0
  %8604 = vperm.xlu0 %8603, %v8538
  %v8605 = vpop.permute.xlu0 %8604
  %8608 = vset.pattern.permute.xlu0 0
  %8609 = vperm.xlu0 %8608, %v8539
  %v8610 = vpop.permute.xlu0 %8609
  %8613 = vset.pattern.permute.xlu0 0
  %8614 = vperm.xlu0 %8613, %v8540
  %v8615 = vpop.permute.xlu0 %8614
  %8618 = vset.pattern.permute.xlu0 0
  %8619 = vperm.xlu0 %8618, %v8541
  %v8620 = vpop.permute.xlu0 %8619
  %8623 = vset.pattern.permute.xlu0 0
  %8624 = vperm.xlu0 %8623, %v8542
  %v8625 = vpop.permute.xlu0 %8624
  %8628 = vset.pattern.permute.xlu0 0
  %8629 = vperm.xlu0 %8628, %v8543
  %v8630 = vpop.permute.xlu0 %8629
  %8633 = vset.pattern.permute.xlu0 0
  %8634 = vperm.xlu0 %8633, %v8544
  %v8635 = vpop.permute.xlu0 %8634
  %8638 = vset.pattern.permute.xlu0 0
  %8639 = vperm.xlu0 %8638, %v8545
  %v8640 = vpop.permute.xlu0 %8639
  %v8642 = vadd.f32 %v8586, %v8605
  %v8643 = vadd.f32 %v8587, %v8605
  %v8644 = vadd.f32 %v8588, %v8610
  %v8645 = vadd.f32 %v8589, %v8610
  %v8646 = vadd.f32 %v8590, %v8615
  %v8647 = vadd.f32 %v8591, %v8615
  %v8648 = vadd.f32 %v8592, %v8620
  %v8649 = vadd.f32 %v8593, %v8620
  %v8650 = vadd.f32 %v8594, %v8625
  %v8651 = vadd.f32 %v8595, %v8625
  %v8652 = vadd.f32 %v8596, %v8630
  %v8653 = vadd.f32 %v8597, %v8630
  %v8654 = vadd.f32 %v8598, %v8635
  %v8655 = vadd.f32 %v8599, %v8635
  %v8656 = vadd.f32 %v8600, %v8640
  %v8657 = vadd.f32 %v8601, %v8640
  %v8658 = vmax.f32 %v8642, 0.0
  %v8659 = vmax.f32 %v8643, 0.0
  %v8660 = vmax.f32 %v8644, 0.0
  %v8661 = vmax.f32 %v8645, 0.0
  %v8662 = vmax.f32 %v8646, 0.0
  %v8663 = vmax.f32 %v8647, 0.0
  %v8664 = vmax.f32 %v8648, 0.0
  %v8665 = vmax.f32 %v8649, 0.0
  %v8666 = vmax.f32 %v8650, 0.0
  %v8667 = vmax.f32 %v8651, 0.0
  %v8668 = vmax.f32 %v8652, 0.0
  %v8669 = vmax.f32 %v8653, 0.0
  %v8670 = vmax.f32 %v8654, 0.0
  %v8671 = vmax.f32 %v8655, 0.0
  %v8672 = vmax.f32 %v8656, 0.0
  %v8673 = vmax.f32 %v8657, 0.0
  %v8674 = vmul.f32 %v8274, %v8549
  %v8675 = vmul.f32 %v8275, %v8549
  %v8676 = vmul.f32 %v8276, %v8554
  %v8677 = vmul.f32 %v8277, %v8554
  %v8678 = vmul.f32 %v8278, %v8559
  %v8679 = vmul.f32 %v8279, %v8559
  %v8680 = vmul.f32 %v8280, %v8564
  %v8681 = vmul.f32 %v8281, %v8564
  %v8682 = vmul.f32 %v8282, %v8569
  %v8683 = vmul.f32 %v8283, %v8569
  %v8684 = vmul.f32 %v8284, %v8574
  %v8685 = vmul.f32 %v8285, %v8574
  %v8686 = vmul.f32 %v8286, %v8579
  %v8687 = vmul.f32 %v8287, %v8579
  %v8688 = vmul.f32 %v8288, %v8584
  %v8689 = vmul.f32 %v8289, %v8584
  %v8690 = vadd.f32 %v8674, %v8605
  %v8691 = vadd.f32 %v8675, %v8605
  %v8692 = vadd.f32 %v8676, %v8610
  %v8693 = vadd.f32 %v8677, %v8610
  %v8694 = vadd.f32 %v8678, %v8615
  %v8695 = vadd.f32 %v8679, %v8615
  %v8696 = vadd.f32 %v8680, %v8620
  %v8697 = vadd.f32 %v8681, %v8620
  %v8698 = vadd.f32 %v8682, %v8625
  %v8699 = vadd.f32 %v8683, %v8625
  %v8700 = vadd.f32 %v8684, %v8630
  %v8701 = vadd.f32 %v8685, %v8630
  %v8702 = vadd.f32 %v8686, %v8635
  %v8703 = vadd.f32 %v8687, %v8635
  %v8704 = vadd.f32 %v8688, %v8640
  %v8705 = vadd.f32 %v8689, %v8640
  %v8706 = vmax.f32 %v8690, 0.0
  %v8707 = vmax.f32 %v8691, 0.0
  %v8708 = vmax.f32 %v8692, 0.0
  %v8709 = vmax.f32 %v8693, 0.0
  %v8710 = vmax.f32 %v8694, 0.0
  %v8711 = vmax.f32 %v8695, 0.0
  %v8712 = vmax.f32 %v8696, 0.0
  %v8713 = vmax.f32 %v8697, 0.0
  %v8714 = vmax.f32 %v8698, 0.0
  %v8715 = vmax.f32 %v8699, 0.0
  %v8716 = vmax.f32 %v8700, 0.0
  %v8717 = vmax.f32 %v8701, 0.0
  %v8718 = vmax.f32 %v8702, 0.0
  %v8719 = vmax.f32 %v8703, 0.0
  %v8720 = vmax.f32 %v8704, 0.0
  %v8721 = vmax.f32 %v8705, 0.0
  %v8722 = vld [vmem:[%s19] sm:$0x3]
  %v8723 = vld [vmem:[%s20] sm:$0x7]
  %v8724 = vpack.c.bf16 %v8660, %v8658
  %v8725 = vpack.c.bf16 %v8661, %v8659
  %v8726 = vpack.c.bf16 %v8664, %v8662
  %v8727 = vpack.c.bf16 %v8665, %v8663
  %v8728 = vpack.c.bf16 %v8668, %v8666
  %v8729 = vpack.c.bf16 %v8669, %v8667
  %v8730 = vpack.c.bf16 %v8672, %v8670
  %v8731 = vpack.c.bf16 %v8673, %v8671
  %8733 = vset.pattern.permute.xlu0 0
  %8734 = vperm.xlu0 %8733, %v8723
  %v8735 = vpop.permute.xlu0 %8734
  %vm8737 = vcmask 523264
  %v8739 = vsel %vm8737, %v8722, 0
  %8741 = vmatprep.subr.bf16.mxu0 0
  %8742 = vmatpush1.bf16.msra.mxu0 0
  %8743 = vmatprep.subr.bf16.mxu0 0
  %8744 = vmatpush1.bf16.msra.mxu0 0
  %8745 = vmatprep.subr.bf16.mxu0 0
  %8746 = vmatpush1.bf16.msra.mxu0 0
  %8747 = vmatprep.subr.bf16.mxu0 0
  %8748 = vmatpush1.bf16.msra.mxu0 0
  %8749 = vmatprep.subr.bf16.mxu0 %v8731
  %8750 = vmatpush1.bf16.msra.mxu0 %v8730
  %8751 = vmatprep.subr.bf16.mxu0 %v8729
  %8752 = vmatpush1.bf16.msra.mxu0 %v8728
  %8753 = vmatprep.subr.bf16.mxu0 %v8727
  %8754 = vmatpush1.bf16.msra.mxu0 %v8726
  %8755 = vmatprep.subr.bf16.mxu0 %v8725
  %8756 = vmatpush1.bf16.msra.mxu0 %v8724
  %8757 = vmatprep.subr.bf16.mxu0 0
  %8758 = vmatpush2.bf16.msra.mxu0 0
  %8759 = vmatprep.subr.bf16.mxu0 0
  %8760 = vmatpush2.bf16.msra.mxu0 0
  %8761 = vmatprep.subr.bf16.mxu0 0
  %8762 = vmatpush2.bf16.msra.mxu0 0
  %8763 = vmatprep.subr.bf16.mxu0 0
  %8764 = vmatpush2.bf16.msra.mxu0 0
  %8765 = vmatprep.subr.bf16.mxu0 0
  %8766 = vmatpush2.bf16.msra.mxu0 0
  %8767 = vmatprep.subr.bf16.mxu0 0
  %8768 = vmatpush2.bf16.msra.mxu0 0
  %8769 = vmatprep.subr.bf16.mxu0 0
  %8770 = vmatpush2.bf16.msra.mxu0 0
  %8771 = vmatprep.subr.bf16.mxu0 0
  %8772 = vmatpush2.bf16.msra.mxu0 0
  %8773 = vmatprep.mubr.bf16.mxu0 0
  %8774 = vmatmul.mubr.bf16.gmra.mxu0 %v8739
  %v8775 = vpop.f32.mrf.mxu0
  %v8776 = vadd.f32 %v8735, %v8775
  %v8777 = vpop.f32.mrf.mxu0
  %v8778 = vadd.f32 %v8735, %v8777
  %v8779 = vpop.f32.mrf.mxu0
  %v8780 = vpop.f32.mrf.mxu0
  %8781 = vdwg.mxu0
  %v8782 = vtanh.pop %v8776
  %v8783 = vtanh.pop %v8778
  %v8786 = vcombine.low %v8782, %v8783
  %8788 = vst [vmem:[%s21] sm:$0x77] %v8786
  %v8789 = vpack.c.bf16 %v8708, %v8706
  %v8790 = vpack.c.bf16 %v8709, %v8707
  %v8791 = vpack.c.bf16 %v8712, %v8710
  %v8792 = vpack.c.bf16 %v8713, %v8711
  %v8793 = vpack.c.bf16 %v8716, %v8714
  %v8794 = vpack.c.bf16 %v8717, %v8715
  %v8795 = vpack.c.bf16 %v8720, %v8718
  %v8796 = vpack.c.bf16 %v8721, %v8719
  %8797 = vmatprep.subr.bf16.mxu0 0
  %8798 = vmatpush1.bf16.msra.mxu0 0
  %8799 = vmatprep.subr.bf16.mxu0 0
  %8800 = vmatpush1.bf16.msra.mxu0 0
  %8801 = vmatprep.subr.bf16.mxu0 0
  %8802 = vmatpush1.bf16.msra.mxu0 0
  %8803 = vmatprep.subr.bf16.mxu0 0
  %8804 = vmatpush1.bf16.msra.mxu0 0
  %8805 = vmatprep.subr.bf16.mxu0 %v8796
  %8806 = vmatpush1.bf16.msra.mxu0 %v8795
  %8807 = vmatprep.subr.bf16.mxu0 %v8794
  %8808 = vmatpush1.bf16.msra.mxu0 %v8793
  %8809 = vmatprep.subr.bf16.mxu0 %v8792
  %8810 = vmatpush1.bf16.msra.mxu0 %v8791
  %8811 = vmatprep.subr.bf16.mxu0 %v8790
  %8812 = vmatpush1.bf16.msra.mxu0 %v8789
  %8813 = vmatprep.subr.bf16.mxu0 0
  %8814 = vmatpush2.bf16.msra.mxu0 0
  %8815 = vmatprep.subr.bf16.mxu0 0
  %8816 = vmatpush2.bf16.msra.mxu0 0
  %8817 = vmatprep.subr.bf16.mxu0 0
  %8818 = vmatpush2.bf16.msra.mxu0 0
  %8819 = vmatprep.subr.bf16.mxu0 0
  %8820 = vmatpush2.bf16.msra.mxu0 0
  %8821 = vmatprep.subr.bf16.mxu0 0
  %8822 = vmatpush2.bf16.msra.mxu0 0
  %8823 = vmatprep.subr.bf16.mxu0 0
  %8824 = vmatpush2.bf16.msra.mxu0 0
  %8825 = vmatprep.subr.bf16.mxu0 0
  %8826 = vmatpush2.bf16.msra.mxu0 0
  %8827 = vmatprep.subr.bf16.mxu0 0
  %8828 = vmatpush2.bf16.msra.mxu0 0
  %8829 = vmatprep.mubr.bf16.mxu0 0
  %8830 = vmatmul.mubr.bf16.gmra.mxu0 %v8739
  %v8831 = vpop.f32.mrf.mxu0
  %v8832 = vadd.f32 %v8735, %v8831
  %v8833 = vpop.f32.mrf.mxu0
  %v8834 = vadd.f32 %v8735, %v8833
  %v8835 = vpop.f32.mrf.mxu0
  %v8836 = vpop.f32.mrf.mxu0
  %8837 = vdwg.mxu0
  %v8838 = vtanh.pop %v8832
  %v8839 = vtanh.pop %v8834
  %v8842 = vcombine.low %v8838, %v8839
  %s8844 = scalar_lea.vmem %s21, 8
  %8845 = vst [vmem:[%s8844] sm:$0x77] %v8842
  // Predicated region
  $region86: #{tpu_custom_call.1} parent=0 // pred_check
    _
  $region87: #{tpu_custom_call.1} parent=0 // pred_check_branch
    %8847 = sbr.rel (0) target = $region89
  $region88: #{tpu_custom_call.1} parent=0 // pred_region
    _
  $region89: #{tpu_custom_call.1} parent=0 // pred_fallthru
    _
  // Predicated region
  $region90: #{tpu_custom_call.1} parent=0 // pred_check
    _
  $region91: #{tpu_custom_call.1} parent=0 // pred_check_branch
    %8849 = sbr.rel (0) target = $region93
  $region92: #{tpu_custom_call.1} parent=0 // pred_region
    _
  $region93: #{tpu_custom_call.1} parent=0 // pred_fallthru
    _

</llo_original>
